<compile_context>
chip_gen: v5e
topology: v5e:2x2
jax: 0.10.0
libtpu: 0.0.40
codegen_flags: <defaults>
</compile_context>

<pallas_src>
import functools

import jax
import jax.numpy as jnp
from jax.experimental import pallas as pl
from jax.experimental.pallas import tpu as pltpu

BN_EPS = 1e-5
ACT_DTYPE = jnp.bfloat16   # HBM dtype of the intermediate activations out1/out2
_LANE = 128

_VMEM_CFG = None


def _vmem_config():
    """(vmem_limit_bytes, row-tile operand budget) chosen per TPU generation."""
    global _VMEM_CFG
    if _VMEM_CFG is None:
        cap = 64 * 1024 * 1024
        try:
            cap = int(pltpu.get_tpu_info().vmem_capacity_bytes)
        except Exception:
            pass
        if cap >= 100 * 1024 * 1024:          # v4/v5e/v5p/v6e: 128 MiB VMEM
            _VMEM_CFG = (96 * 1024 * 1024, 24 * 1024 * 1024)
        else:                                 # v7x: 64 MiB per TensorCore
            _VMEM_CFG = (48 * 1024 * 1024, 12 * 1024 * 1024)
    return _VMEM_CFG


def _round_up(x, k):
    return (x + k - 1) // k * k


def _sign_f32(x):
    # torch.Tensor.sign semantics: sign(0) == 0
    return jnp.where(x > 0, 1.0, jnp.where(x < 0, -1.0, 0.0))


def _row_tile(m, row_bytes_2buf, budget_bytes):
    """Row tile for the 1x1 kernels: multiple of 8, fits the (double-buffered)
    operand budget, capped at 2048 rows, and small enough to give ~>=8 grid
    steps when m allows (pipelining + megacore).  Never requires divisibility;
    ragged tails are masked in the kernels."""
    cap = budget_bytes // max(1, row_bytes_2buf)
    cap = max(8, min(cap, 2048, m))
    target = min(cap, max(256, pl.cdiv(m, 8)))
    return max(8, (target // 8) * 8)


# ------------- BinActivConv 1x1 (conv1): conv + partial BN stats --------------

def _binact_conv1x1_kernel(x_ref, w_ref, o_ref, sum_ref, sq_ref, *,
                           cin, m_total, tm, mask_tail):
    x = x_ref[...].astype(jnp.float32)                        # (TM, Cin), f32 input
    s = _sign_f32(x)
    k = jnp.sum(x * s, axis=1, keepdims=True) * (1.0 / cin)   # |x| channel mean == K
    y = jnp.dot(s.astype(jnp.bfloat16), w_ref[...],
                preferred_element_type=jnp.float32) * k       # bf16 MXU, f32 accum
    o_ref[...] = y.astype(o_ref.dtype)                        # bf16 activation store
    if mask_tail:
        # ragged last tile: out-of-bounds rows hold garbage -> exclude from stats
        rows_valid = m_total - pl.program_id(0) * tm
        row_idx = jax.lax.broadcasted_iota(jnp.int32, y.shape, 0)
        y = jnp.where(row_idx < rows_valid, y, 0.0)
    # per-tile partial batch statistics of the f32 conv output (consumed by bn2)
    sum_ref[...] = jnp.sum(y, axis=0, keepdims=True)[None]
    sq_ref[...] = jnp.sum(y * y, axis=0, keepdims=True)[None]


def binact_conv1x1_stats(x2d, w_bf16):
    m, cin = x2d.shape
    cout = w_bf16.shape[1]
    vmem_limit, tile_budget = _vmem_config()
    row_bytes = 2 * (x2d.dtype.itemsize * cin + ACT_DTYPE.dtype.itemsize * cout)
    tm = _row_tile(m, row_bytes, tile_budget)
    nt = pl.cdiv(m, tm)
    kernel = functools.partial(_binact_conv1x1_kernel, cin=cin, m_total=m, tm=tm,
                               mask_tail=(m % tm != 0))
    return pl.pallas_call(
        kernel,
        out_shape=(
            jax.ShapeDtypeStruct((m, cout), ACT_DTYPE),
            jax.ShapeDtypeStruct((nt, 1, cout), jnp.float32),
            jax.ShapeDtypeStruct((nt, 1, cout), jnp.float32),
        ),
        grid=(nt,),
        in_specs=[
            pl.BlockSpec((tm, cin), lambda i: (i, 0)),
            pl.BlockSpec((cin, cout), lambda i: (0, 0)),
        ],
        out_specs=(
            pl.BlockSpec((tm, cout), lambda i: (i, 0)),
            pl.BlockSpec((1, 1, cout), lambda i: (i, 0, 0)),
            pl.BlockSpec((1, 1, cout), lambda i: (i, 0, 0)),
        ),
        compiler_params=pltpu.CompilerParams(
            dimension_semantics=("parallel",),
            vmem_limit_bytes=vmem_limit),
        cost_estimate=pl.CostEstimate(
            flops=2 * m * cin * cout, transcendentals=0,
            bytes_accessed=m * (4 * cin + 2 * cout) + 2 * cin * cout + 8 * nt * cout),
    )(x2d, w_bf16)


# ------------- BinActivConv 1x1 (conv3): fused bn3-apply + residual add -------

def _binact_conv1x1_bn_add_kernel(x_ref, sc_ref, sh_ref, w_ref, r_ref, o_ref, *,
                                  cin_true):
    x = x_ref[...].astype(jnp.float32)                        # (TM, Cin_p), bf16 input
    xb = x * sc_ref[...] + sh_ref[...]                        # fused BN (apply)
    s = _sign_f32(xb)
    k = jnp.sum(xb * s, axis=1, keepdims=True) * (1.0 / cin_true)
    y = jnp.dot(s.astype(jnp.bfloat16), w_ref[...],
                preferred_element_type=jnp.float32)
    o_ref[...] = (y * k + r_ref[...].astype(jnp.float32)).astype(o_ref.dtype)


def binact_conv1x1_bn_add(x2d, scale, shift, w_bf16, residual, cin_true):
    m, cin = x2d.shape
    cout = w_bf16.shape[1]
    vmem_limit, tile_budget = _vmem_config()
    row_bytes = 2 * (x2d.dtype.itemsize * cin
                     + residual.dtype.itemsize * cout
                     + residual.dtype.itemsize * cout)
    tm = _row_tile(m, row_bytes, tile_budget)
    nt = pl.cdiv(m, tm)
    kernel = functools.partial(_binact_conv1x1_bn_add_kernel, cin_true=cin_true)
    return pl.pallas_call(
        kernel,
        out_shape=jax.ShapeDtypeStruct((m, cout), residual.dtype),
        grid=(nt,),
        in_specs=[
            pl.BlockSpec((tm, cin), lambda i: (i, 0)),
            pl.BlockSpec((1, cin), lambda i: (0, 0)),
            pl.BlockSpec((1, cin), lambda i: (0, 0)),
            pl.BlockSpec((cin, cout), lambda i: (0, 0)),
            pl.BlockSpec((tm, cout), lambda i: (i, 0)),
        ],
        out_specs=pl.BlockSpec((tm, cout), lambda i: (i, 0)),
        compiler_params=pltpu.CompilerParams(
            dimension_semantics=("parallel",),
            vmem_limit_bytes=vmem_limit),
        cost_estimate=pl.CostEstimate(
            flops=2 * m * cin * cout, transcendentals=0,
            bytes_accessed=m * (2 * cin + 8 * cout) + 2 * cin * cout),
    )(x2d, scale, shift, w_bf16, residual)


# ------------- BinActivConv 3x3 (conv2): fused bn2-apply + partial BN stats ---

def _binact_conv3x3_bn_kernel(x_ref, sc_ref, sh_ref, w_ref, o_ref, sum_ref, sq_ref,
                              *, H, W, cin_p, cin_true, cout):
    x = x_ref[0].astype(jnp.float32)                          # (H, W, Cin_p), unpadded
    xb = x * sc_ref[...].reshape(1, 1, cin_p) + sh_ref[...].reshape(1, 1, cin_p)
    s = _sign_f32(xb)
    # |x| channel mean over the *true* channels (padded channels are exactly 0).
    a = jnp.sum(xb * s, axis=-1, keepdims=True) * (1.0 / cin_true)   # (H, W, 1)

    # Zero halo (torch zero-pads sign(bn2(out)) and A inside the conv/avg-pool):
    # synthesized in VMEM from the unpadded tile, never written to HBM.  The sign
    # tensor is cast to bf16 *before* any slicing so all copies are half-width.
    sb = s.astype(jnp.bfloat16)
    zr = jnp.zeros((1, W, cin_p), jnp.bfloat16)
    zc = jnp.zeros((H + 2, 1, cin_p), jnp.bfloat16)
    sp = jnp.concatenate([zr, sb, zr], axis=0)
    sp = jnp.concatenate([zc, sp, zc], axis=1)                # (H+2, W+2, Cin_p)
    zr1 = jnp.zeros((1, W, 1), jnp.float32)
    zc1 = jnp.zeros((H + 2, 1, 1), jnp.float32)
    ap = jnp.concatenate([zr1, a, zr1], axis=0)
    ap = jnp.concatenate([zc1, ap, zc1], axis=1)              # (H+2, W+2, 1)

    # Nine accumulating bf16 MXU dots (no f32 im2col materialization / lane concat).
    acc = jnp.zeros((H * W, cout), jnp.float32)
    ksum = jnp.zeros((H, W, 1), jnp.float32)
    for t in range(9):
        dy, dx = t // 3, t % 3
        st = sp[dy:dy + H, dx:dx + W, :].reshape(H * W, cin_p)
        acc = acc + jnp.dot(st, w_ref[t * cin_p:(t + 1) * cin_p, :],
                            preferred_element_type=jnp.float32)
        ksum = ksum + ap[dy:dy + H, dx:dx + W, :]
    y = acc * (ksum * (1.0 / 9.0)).reshape(H * W, 1)          # K = avg-pool3x3(A), pad 1

    o_ref[...] = y.reshape(1, H, W, cout).astype(o_ref.dtype)  # bf16 activation store
    # per-image partial batch statistics of the f32 conv output (consumed by bn3)
    sum_ref[...] = jnp.sum(y, axis=0, keepdims=True)[None]
    sq_ref[...] = jnp.sum(y * y, axis=0, keepdims=True)[None]


def binact_conv3x3_bn_stats(x_nhwc, scale, shift, w2m_bf16, cin_true):
    # stride=1 only.  One whole (unpadded) image per grid step.
    n, H, W, cin_p = x_nhwc.shape
    cout = w2m_bf16.shape[1]
    vmem_limit, _ = _vmem_config()
    kernel = functools.partial(_binact_conv3x3_bn_kernel, H=H, W=W, cin_p=cin_p,
                               cin_true=cin_true, cout=cout)
    return pl.pallas_call(
        kernel,
        out_shape=(
            jax.ShapeDtypeStruct((n, H, W, cout), ACT_DTYPE),
            jax.ShapeDtypeStruct((n, 1, cout), jnp.float32),
            jax.ShapeDtypeStruct((n, 1, cout), jnp.float32),
        ),
        grid=(n,),
        in_specs=[
            pl.BlockSpec((1, H, W, cin_p), lambda i: (i, 0, 0, 0)),
            pl.BlockSpec((1, cin_p), lambda i: (0, 0)),
            pl.BlockSpec((1, cin_p), lambda i: (0, 0)),
            pl.BlockSpec((9 * cin_p, cout), lambda i: (0, 0)),
        ],
        out_specs=(
            pl.BlockSpec((1, H, W, cout), lambda i: (i, 0, 0, 0)),
            pl.BlockSpec((1, 1, cout), lambda i: (i, 0, 0)),
            pl.BlockSpec((1, 1, cout), lambda i: (i, 0, 0)),
        ),
        compiler_params=pltpu.CompilerParams(
            dimension_semantics=("parallel",),
            vmem_limit_bytes=vmem_limit),
        cost_estimate=pl.CostEstimate(
            flops=2 * n * H * W * 9 * cin_p * cout, transcendentals=0,
            bytes_accessed=n * H * W * 2 * (cin_p + cout) + 2 * 9 * cin_p * cout
                           + 8 * n * cout),
    )(x_nhwc, scale, shift, w2m_bf16)


# ------------- BatchNorm (training-mode batch stats) folded to scale/shift ----

def _bn_scale_shift(sums, sqsums, count, gamma, beta):
    total = jnp.sum(sums, axis=(0, 1))            # (C,)
    total_sq = jnp.sum(sqsums, axis=(0, 1))       # (C,)
    mean = total / count
    var = total_sq / count - mean * mean          # biased (training-mode) variance
    inv = jax.lax.rsqrt(var + BN_EPS)
    scale = gamma.astype(jnp.float32) * inv
    shift = beta.astype(jnp.float32) - mean * scale
    c = scale.shape[0]
    return scale.reshape(1, c), shift.reshape(1, c)


# ------------- Bottleneck forward ---------------------------------------------

def bottleneck_forward_nhwc(x_nhwc, params):
    """Layout-native entry point; activations stay NHWC across the whole block."""
    n, H, W, cin = x_nhwc.shape
    m = n * H * W
    planes = params["w1"].shape[1]
    cexp = params["w3"].shape[1]
    assert cin == cexp, "stride=1 / downsample=None config requires inplanes == 4*planes"
    planes_p = _round_up(planes, _LANE)           # lane-align the conv1/conv2 outputs
    dp = planes_p - planes

    # MXU operands in bf16 (sign is exactly +-1/0; weights cast once).  Padded
    # weight columns/rows and padded gamma/beta are zero -> padded lanes are 0.
    w1 = jnp.pad(params["w1"].astype(jnp.bfloat16), ((0, 0), (0, dp)))
    w2 = jnp.pad(params["w2"].astype(jnp.bfloat16),
                 ((0, 0), (0, 0), (0, dp), (0, dp))).reshape(9 * planes_p, planes_p)
    w3 = jnp.pad(params["w3"].astype(jnp.bfloat16), ((0, dp), (0, 0)))
    g2 = jnp.pad(params["bn2_gamma"].astype(jnp.float32), (0, dp))
    b2 = jnp.pad(params["bn2_beta"].astype(jnp.float32), (0, dp))
    g3 = jnp.pad(params["bn3_gamma"].astype(jnp.float32), (0, dp))
    b3 = jnp.pad(params["bn3_beta"].astype(jnp.float32), (0, dp))

    x2d = x_nhwc.reshape(m, cin)

    # (bn1(x) is computed and immediately discarded in the reference -> omitted)
    out1, s1, q1 = binact_conv1x1_stats(x2d, w1)                        # conv1 (+bn2 stats)
    scale2, shift2 = _bn_scale_shift(s1, q1, float(m), g2, b2)
    out2, s2, q2 = binact_conv3x3_bn_stats(                             # bn2 + conv2 (+bn3 stats)
        out1.reshape(n, H, W, planes_p), scale2, shift2, w2, planes)
    scale3, shift3 = _bn_scale_shift(s2, q2, float(m), g3, b3)
    out = binact_conv1x1_bn_add(out2.reshape(m, planes_p),              # bn3 + conv3 + skip
                                scale3, shift3, w3, x2d, planes)
    return out.reshape(n, H, W, cexp)


def bottleneck_forward(x_nchw, params):
    """PyTorch-style NCHW interface.  For multi-block networks prefer
    bottleneck_forward_nhwc to avoid per-block layout transposes in HBM."""
    x = jnp.transpose(x_nchw, (0, 2, 3, 1))
    out = bottleneck_forward_nhwc(x, params)
    return jnp.transpose(out, (0, 3, 1, 2))


# ------------- pure-JAX reference (for correctness check) ---------------------

def _ref_binact_conv(x, w_oihw, ksize, pad):
    s = jnp.sign(x)
    A = jnp.mean(jnp.abs(x), axis=1, keepdims=True)
    dn = ("NCHW", "OIHW", "NCHW")
    if ksize > 1:
        avg = jnp.full((1, 1, ksize, ksize), 1.0 / (ksize * ksize), x.dtype)
        K = jax.lax.conv_general_dilated(A, avg, (1, 1), [(pad, pad)] * 2,
                                         dimension_numbers=dn)
    else:
        K = A
    y = jax.lax.conv_general_dilated(s, w_oihw, (1, 1), [(pad, pad)] * 2,
                                     dimension_numbers=dn)
    return y * K


def _ref_bn_fold(x, gamma, beta):
    # training-mode batch stats, biased variance, folded to scale/shift (same
    # single-pass formulation as the kernels' streaming statistics)
    mean = jnp.mean(x, axis=(0, 2, 3), keepdims=True)
    var = jnp.mean(x * x, axis=(0, 2, 3), keepdims=True) - mean * mean
    scale = gamma.reshape(1, -1, 1, 1) * jax.lax.rsqrt(var + BN_EPS)
    shift = beta.reshape(1, -1, 1, 1) - mean * scale
    return scale, shift


def _quant_act(x):
    # The kernels store intermediate activations in ACT_DTYPE; mirror that here.
    return x.astype(ACT_DTYPE).astype(jnp.float32)


def _ref_bottleneck(x, p):
    w1 = jnp.transpose(p["w1"], (1, 0))[:, :, None, None]     # (Cout, Cin, 1, 1)
    w2 = jnp.transpose(p["w2"], (3, 2, 0, 1))                  # HWIO -> OIHW
    w3 = jnp.transpose(p["w3"], (1, 0))[:, :, None, None]
    out1 = _ref_binact_conv(x, w1, 1, 0)
    sc2, sh2 = _ref_bn_fold(out1, p["bn2_gamma"], p["bn2_beta"])   # stats from f32 output
    out2 = _ref_binact_conv(_quant_act(out1) * sc2 + sh2, w2, 3, 1)
    sc3, sh3 = _ref_bn_fold(out2, p["bn3_gamma"], p["bn3_beta"])
    out3 = _ref_binact_conv(_quant_act(out2) * sc3 + sh3, w3, 1, 0)
    return out3 + x


if __name__ == "__main__":
    key = jax.random.PRNGKey(0)
    n, planes = 2, 4
    inplanes = planes * 4          # == planes * expansion -> downsample=None valid
    H = W = 14                     # m = 392: multi-step 1x1 grids with a ragged tail

    k_x, k1, k2, k3, k4, k5 = jax.random.split(key, 6)
    x = jax.random.normal(k_x, (n, inplanes, H, W), jnp.float32)

    def bf16_round(a):
        # The kernels run the MXU in bf16; keep test weights exactly
        # bf16-representable so the f32 reference sees identical weights.
        return (0.1 * a).astype(jnp.bfloat16).astype(jnp.float32)

    params = {
        "w1": bf16_round(jax.random.normal(k1, (inplanes, planes), jnp.float32)),
        "w2": bf16_round(jax.random.normal(k2, (3, 3, planes, planes), jnp.float32)),
        "w3": bf16_round(jax.random.normal(k3, (planes, planes * 4), jnp.float32)),
        "bn2_gamma": 1.0 + 0.1 * jax.random.normal(k4, (planes,), jnp.float32),
        "bn2_beta": 0.1 * jax.random.normal(k5, (planes,), jnp.float32),
        "bn3_gamma": jnp.ones((planes,), jnp.float32),
        "bn3_beta": jnp.zeros((planes,), jnp.float32),
    }

    fwd = jax.jit(bottleneck_forward)
    out = jax.block_until_ready(fwd(x, params))
    ref = jax.block_until_ready(_ref_bottleneck(x, params))
    assert out.shape == (n, inplanes, H, W), out.shape
    max_err = float(jnp.max(jnp.abs(out - ref)))
    assert jnp.allclose(out, ref, rtol=2e-3, atol=2e-3), max_err
    print("KERNEL_OK")
</pallas_src>

<mosaic_0001>
module attributes {stable_mosaic.version = 11 : i64} {
  func.func @_binact_conv1x1_kernel(%arg0: i32, %arg1: memref<256x16xf32, #tpu.memory_space<vmem>>, %arg2: memref<16x128xbf16, #tpu.memory_space<vmem>>, %arg3: memref<256x128xbf16, #tpu.memory_space<vmem>>, %arg4: memref<1x1x128xf32, #tpu.memory_space<vmem>>, %arg5: memref<1x1x128xf32, #tpu.memory_space<vmem>>) attributes {dimension_semantics = [#tpu.dimension_semantics<parallel>], iteration_bounds = array<i64: 2>, scalar_prefetch = 0 : i64, scratch_operands = 0 : i64, tpu.core_type = #tpu.core_type<tc>, window_params = [{transform_indices = @transform_0, window_bounds = array<i64: 256, 16>}, {pipeline_mode = #tpu.pipeline_mode<synchronous>, transform_indices = @transform_1, window_bounds = array<i64: 16, 128>}, {transform_indices = @transform_2, window_bounds = array<i64: 256, 128>}, {transform_indices = @transform_3, window_bounds = array<i64: 1, 1, 128>}, {transform_indices = @transform_4, window_bounds = array<i64: 1, 1, 128>}]} {
    %c0 = arith.constant 0 : index
    %c0_0 = arith.constant 0 : index
    %0 = vector.load %arg1[%c0, %c0_0] : memref<256x16xf32, #tpu.memory_space<vmem>>, vector<256x16xf32>
    %cst = arith.constant 0.000000e+00 : f32
    %1 = vector.broadcast %cst : f32 to vector<256x16xf32>
    %2 = arith.cmpf ogt, %0, %1 : vector<256x16xf32>
    %cst_1 = arith.constant 0.000000e+00 : f32
    %3 = vector.broadcast %cst_1 : f32 to vector<256x16xf32>
    %4 = arith.cmpf olt, %0, %3 : vector<256x16xf32>
    %cst_2 = arith.constant -1.000000e+00 : f32
    %cst_3 = arith.constant 0.000000e+00 : f32
    %5 = vector.broadcast %cst_2 : f32 to vector<256x16xf32>
    %6 = vector.broadcast %cst_3 : f32 to vector<256x16xf32>
    %7 = arith.select %4, %5, %6 : vector<256x16xi1>, vector<256x16xf32>
    %cst_4 = arith.constant 1.000000e+00 : f32
    %8 = vector.broadcast %cst_4 : f32 to vector<256x16xf32>
    %9 = arith.select %2, %8, %7 : vector<256x16xi1>, vector<256x16xf32>
    %10 = arith.mulf %0, %9 : vector<256x16xf32>
    %cst_5 = arith.constant dense<0.000000e+00> : vector<256xf32>
    %11 = vector.multi_reduction <add>, %10, %cst_5 [1] : vector<256x16xf32> to vector<256xf32>
    %12 = vector.shape_cast %11 : vector<256xf32> to vector<256x1xf32>
    %cst_6 = arith.constant 6.250000e-02 : f32
    %13 = vector.broadcast %cst_6 : f32 to vector<256x1xf32>
    %14 = arith.mulf %12, %13 : vector<256x1xf32>
    %15 = arith.truncf %9 : vector<256x16xf32> to vector<256x16xbf16>
    %c0_7 = arith.constant 0 : index
    %c0_8 = arith.constant 0 : index
    %16 = vector.load %arg2[%c0_7, %c0_8] : memref<16x128xbf16, #tpu.memory_space<vmem>>, vector<16x128xbf16>
    %cst_9 = arith.constant dense<0.000000e+00> : vector<256x128xf32>
    %17 = tpu.matmul %15, %16, %cst_9 {dimension_numbers = #tpu.dot_dimension_numbers<[1], [0], [0], [1], [0, 0, 1, 1], [], []>} : vector<256x16xbf16>, vector<16x128xbf16>, vector<256x128xf32> -> vector<256x128xf32>
    %18 = vector.broadcast %14 : vector<256x1xf32> to vector<256x128xf32>
    %19 = arith.mulf %17, %18 : vector<256x128xf32>
    %20 = arith.truncf %19 : vector<256x128xf32> to vector<256x128xbf16>
    %c0_10 = arith.constant 0 : index
    %c0_11 = arith.constant 0 : index
    %21 = vector.load %arg3[%c0_10, %c0_11] : memref<256x128xbf16, #tpu.memory_space<vmem>>, vector<256x128xbf16>
    tpu.vector_store %arg3[%c0_10, %c0_11], %20 {strides = array<i32>} : memref<256x128xbf16, #tpu.memory_space<vmem>>, vector<256x128xbf16>,
    %c256_i32 = arith.constant 256 : i32
    %22 = arith.muli %arg0, %c256_i32 : i32
    %c392_i32 = arith.constant 392 : i32
    %23 = arith.subi %c392_i32, %22 : i32
    %24 = tpu.iota {dimensions = array<i32: 0>} : vector<256x128xi32>
    %25 = vector.broadcast %23 : i32 to vector<256x128xi32>
    %26 = arith.cmpi slt, %24, %25 : vector<256x128xi32>
    %cst_12 = arith.constant 0.000000e+00 : f32
    %27 = vector.broadcast %cst_12 : f32 to vector<256x128xf32>
    %28 = arith.select %26, %19, %27 : vector<256x128xi1>, vector<256x128xf32>
    %cst_13 = arith.constant dense<0.000000e+00> : vector<128xf32>
    %29 = vector.multi_reduction <add>, %28, %cst_13 [0] : vector<256x128xf32> to vector<128xf32>
    %30 = vector.shape_cast %29 : vector<128xf32> to vector<1x128xf32>
    %31 = vector.shape_cast %30 : vector<1x128xf32> to vector<1x1x128xf32>
    %c0_14 = arith.constant 0 : index
    %c0_15 = arith.constant 0 : index
    %c0_16 = arith.constant 0 : index
    %32 = vector.load %arg4[%c0_14, %c0_15, %c0_16] : memref<1x1x128xf32, #tpu.memory_space<vmem>>, vector<1x1x128xf32>
    tpu.vector_store %arg4[%c0_14, %c0_15, %c0_16], %31 {strides = array<i32>} : memref<1x1x128xf32, #tpu.memory_space<vmem>>, vector<1x1x128xf32>,
    %33 = arith.mulf %28, %28 : vector<256x128xf32>
    %cst_17 = arith.constant dense<0.000000e+00> : vector<128xf32>
    %34 = vector.multi_reduction <add>, %33, %cst_17 [0] : vector<256x128xf32> to vector<128xf32>
    %35 = vector.shape_cast %34 : vector<128xf32> to vector<1x128xf32>
    %36 = vector.shape_cast %35 : vector<1x128xf32> to vector<1x1x128xf32>
    %c0_18 = arith.constant 0 : index
    %c0_19 = arith.constant 0 : index
    %c0_20 = arith.constant 0 : index
    %37 = vector.load %arg5[%c0_18, %c0_19, %c0_20] : memref<1x1x128xf32, #tpu.memory_space<vmem>>, vector<1x1x128xf32>
    tpu.vector_store %arg5[%c0_18, %c0_19, %c0_20], %36 {strides = array<i32>} : memref<1x1x128xf32, #tpu.memory_space<vmem>>, vector<1x1x128xf32>,
    return
  }
  func.func @transform_0(%arg0: i32) -> (i32, i32) {
    %c0_i32 = arith.constant 0 : i32
    %c0_i32_0 = arith.constant 0 : i32
    return %arg0, %c0_i32 : i32, i32
  }
  func.func @transform_1(%arg0: i32) -> (i32, i32) {
    %c0_i32 = arith.constant 0 : i32
    %c0_i32_0 = arith.constant 0 : i32
    %c0_i32_1 = arith.constant 0 : i32
    return %c0_i32, %c0_i32_0 : i32, i32
  }
  func.func @transform_2(%arg0: i32) -> (i32, i32) {
    %c0_i32 = arith.constant 0 : i32
    %c0_i32_0 = arith.constant 0 : i32
    return %arg0, %c0_i32 : i32, i32
  }
  func.func @transform_3(%arg0: i32) -> (i32, i32, i32) {
    %c0_i32 = arith.constant 0 : i32
    %c0_i32_0 = arith.constant 0 : i32
    %c0_i32_1 = arith.constant 0 : i32
    return %arg0, %c0_i32, %c0_i32_0 : i32, i32, i32
  }
  func.func @transform_4(%arg0: i32) -> (i32, i32, i32) {
    %c0_i32 = arith.constant 0 : i32
    %c0_i32_0 = arith.constant 0 : i32
    %c0_i32_1 = arith.constant 0 : i32
    return %arg0, %c0_i32, %c0_i32_0 : i32, i32, i32
  }
}

module attributes {stable_mosaic.version = 11 : i64} {
  func.func @_binact_conv3x3_bn_kernel(%arg0: i32, %arg1: memref<1x14x14x128xbf16, #tpu.memory_space<vmem>>, %arg2: memref<1x128xf32, #tpu.memory_space<vmem>>, %arg3: memref<1x128xf32, #tpu.memory_space<vmem>>, %arg4: memref<1152x128xbf16, #tpu.memory_space<vmem>>, %arg5: memref<1x14x14x128xbf16, #tpu.memory_space<vmem>>, %arg6: memref<1x1x128xf32, #tpu.memory_space<vmem>>, %arg7: memref<1x1x128xf32, #tpu.memory_space<vmem>>) attributes {dimension_semantics = [#tpu.dimension_semantics<parallel>], iteration_bounds = array<i64: 2>, scalar_prefetch = 0 : i64, scratch_operands = 0 : i64, tpu.core_type = #tpu.core_type<tc>, window_params = [{transform_indices = @transform_0, window_bounds = array<i64: 1, 14, 14, 128>}, {pipeline_mode = #tpu.pipeline_mode<synchronous>, transform_indices = @transform_1, window_bounds = array<i64: 1, 128>}, {pipeline_mode = #tpu.pipeline_mode<synchronous>, transform_indices = @transform_2, window_bounds = array<i64: 1, 128>}, {pipeline_mode = #tpu.pipeline_mode<synchronous>, transform_indices = @transform_3, window_bounds = array<i64: 1152, 128>}, {transform_indices = @transform_4, window_bounds = array<i64: 1, 14, 14, 128>}, {transform_indices = @transform_5, window_bounds = array<i64: 1, 1, 128>}, {transform_indices = @transform_6, window_bounds = array<i64: 1, 1, 128>}]} {
    %c0 = arith.constant 0 : index
    %c0_0 = arith.constant 0 : index
    %c0_1 = arith.constant 0 : index
    %c0_2 = arith.constant 0 : index
    %0 = vector.load %arg1[%c0, %c0_0, %c0_1, %c0_2] : memref<1x14x14x128xbf16, #tpu.memory_space<vmem>>, vector<1x14x14x128xbf16>
    %1 = vector.shape_cast %0 : vector<1x14x14x128xbf16> to vector<14x14x128xbf16>
    %2 = arith.extf %1 : vector<14x14x128xbf16> to vector<14x14x128xf32>
    %c0_3 = arith.constant 0 : index
    %c0_4 = arith.constant 0 : index
    %3 = vector.load %arg2[%c0_3, %c0_4] : memref<1x128xf32, #tpu.memory_space<vmem>>, vector<1x128xf32>
    %4 = vector.shape_cast %3 : vector<1x128xf32> to vector<1x1x128xf32>
    %5 = vector.broadcast %4 : vector<1x1x128xf32> to vector<14x14x128xf32>
    %6 = arith.mulf %2, %5 : vector<14x14x128xf32>
    %c0_5 = arith.constant 0 : index
    %c0_6 = arith.constant 0 : index
    %7 = vector.load %arg3[%c0_5, %c0_6] : memref<1x128xf32, #tpu.memory_space<vmem>>, vector<1x128xf32>
    %8 = vector.shape_cast %7 : vector<1x128xf32> to vector<1x1x128xf32>
    %9 = vector.broadcast %8 : vector<1x1x128xf32> to vector<14x14x128xf32>
    %10 = arith.addf %6, %9 : vector<14x14x128xf32>
    %cst = arith.constant 0.000000e+00 : f32
    %11 = vector.broadcast %cst : f32 to vector<14x14x128xf32>
    %12 = arith.cmpf ogt, %10, %11 : vector<14x14x128xf32>
    %cst_7 = arith.constant 0.000000e+00 : f32
    %13 = vector.broadcast %cst_7 : f32 to vector<14x14x128xf32>
    %14 = arith.cmpf olt, %10, %13 : vector<14x14x128xf32>
    %cst_8 = arith.constant -1.000000e+00 : f32
    %cst_9 = arith.constant 0.000000e+00 : f32
    %15 = vector.broadcast %cst_8 : f32 to vector<14x14x128xf32>
    %16 = vector.broadcast %cst_9 : f32 to vector<14x14x128xf32>
    %17 = arith.select %14, %15, %16 : vector<14x14x128xi1>, vector<14x14x128xf32>
    %cst_10 = arith.constant 1.000000e+00 : f32
    %18 = vector.broadcast %cst_10 : f32 to vector<14x14x128xf32>
    %19 = arith.select %12, %18, %17 : vector<14x14x128xi1>, vector<14x14x128xf32>
    %20 = arith.mulf %10, %19 : vector<14x14x128xf32>
    %cst_11 = arith.constant dense<0.000000e+00> : vector<14x14xf32>
    %21 = vector.multi_reduction <add>, %20, %cst_11 [2] : vector<14x14x128xf32> to vector<14x14xf32>
    %22 = vector.shape_cast %21 : vector<14x14xf32> to vector<14x14x1xf32>
    %cst_12 = arith.constant 2.500000e-01 : f32
    %23 = vector.broadcast %cst_12 : f32 to vector<14x14x1xf32>
    %24 = arith.mulf %22, %23 : vector<14x14x1xf32>
    %25 = arith.truncf %19 : vector<14x14x128xf32> to vector<14x14x128xbf16>
    %cst_13 = arith.constant 0.000000e+00 : bf16
    %26 = vector.broadcast %cst_13 : bf16 to vector<1x14x128xbf16>
    %cst_14 = arith.constant 0.000000e+00 : bf16
    %27 = vector.broadcast %cst_14 : bf16 to vector<16x1x128xbf16>
    %28 = tpu.concatenate %26, %25, %26 in 0 : vector<1x14x128xbf16>, vector<14x14x128xbf16>, vector<1x14x128xbf16> -> vector<16x14x128xbf16>
    %29 = tpu.concatenate %27, %28, %27 in 1 : vector<16x1x128xbf16>, vector<16x14x128xbf16>, vector<16x1x128xbf16> -> vector<16x16x128xbf16>
    %cst_15 = arith.constant 0.000000e+00 : f32
    %30 = vector.broadcast %cst_15 : f32 to vector<1x14x1xf32>
    %cst_16 = arith.constant 0.000000e+00 : f32
    %31 = vector.broadcast %cst_16 : f32 to vector<16x1x1xf32>
    %32 = tpu.concatenate %30, %24, %30 in 0 : vector<1x14x1xf32>, vector<14x14x1xf32>, vector<1x14x1xf32> -> vector<16x14x1xf32>
    %33 = tpu.concatenate %31, %32, %31 in 1 : vector<16x1x1xf32>, vector<16x14x1xf32>, vector<16x1x1xf32> -> vector<16x16x1xf32>
    %cst_17 = arith.constant 0.000000e+00 : f32
    %34 = vector.broadcast %cst_17 : f32 to vector<196x128xf32>
    %cst_18 = arith.constant 0.000000e+00 : f32
    %35 = vector.broadcast %cst_18 : f32 to vector<14x14x1xf32>
    %36 = vector.extract_strided_slice %29 {offsets = [0, 0, 0], sizes = [14, 14, 128], strides = [1, 1, 1]} : vector<16x16x128xbf16> to vector<14x14x128xbf16>
    %37 = vector.shape_cast %36 : vector<14x14x128xbf16> to vector<196x128xbf16>
    %c0_19 = arith.constant 0 : index
    %c0_20 = arith.constant 0 : index
    %38 = vector.load %arg4[%c0_19, %c0_20] : memref<1152x128xbf16, #tpu.memory_space<vmem>>, vector<128x128xbf16>
    %cst_21 = arith.constant dense<0.000000e+00> : vector<196x128xf32>
    %39 = tpu.matmul %37, %38, %cst_21 {dimension_numbers = #tpu.dot_dimension_numbers<[1], [0], [0], [1], [0, 0, 1, 1], [], []>} : vector<196x128xbf16>, vector<128x128xbf16>, vector<196x128xf32> -> vector<196x128xf32>
    %40 = arith.addf %34, %39 : vector<196x128xf32>
    %41 = vector.extract_strided_slice %33 {offsets = [0, 0, 0], sizes = [14, 14, 1], strides = [1, 1, 1]} : vector<16x16x1xf32> to vector<14x14x1xf32>
    %42 = arith.addf %35, %41 : vector<14x14x1xf32>
    %43 = vector.extract_strided_slice %29 {offsets = [0, 1, 0], sizes = [14, 14, 128], strides = [1, 1, 1]} : vector<16x16x128xbf16> to vector<14x14x128xbf16>
    %44 = vector.shape_cast %43 : vector<14x14x128xbf16> to vector<196x128xbf16>
    %c128 = arith.constant 128 : index
    %c0_22 = arith.constant 0 : index
    %45 = vector.load %arg4[%c128, %c0_22] : memref<1152x128xbf16, #tpu.memory_space<vmem>>, vector<128x128xbf16>
    %cst_23 = arith.constant dense<0.000000e+00> : vector<196x128xf32>
    %46 = tpu.matmul %44, %45, %cst_23 {dimension_numbers = #tpu.dot_dimension_numbers<[1], [0], [0], [1], [0, 0, 1, 1], [], []>} : vector<196x128xbf16>, vector<128x128xbf16>, vector<196x128xf32> -> vector<196x128xf32>
    %47 = arith.addf %40, %46 : vector<196x128xf32>
    %48 = vector.extract_strided_slice %33 {offsets = [0, 1, 0], sizes = [14, 14, 1], strides = [1, 1, 1]} : vector<16x16x1xf32> to vector<14x14x1xf32>
    %49 = arith.addf %42, %48 : vector<14x14x1xf32>
    %50 = vector.extract_strided_slice %29 {offsets = [0, 2, 0], sizes = [14, 14, 128], strides = [1, 1, 1]} : vector<16x16x128xbf16> to vector<14x14x128xbf16>
    %51 = vector.shape_cast %50 : vector<14x14x128xbf16> to vector<196x128xbf16>
    %c256 = arith.constant 256 : index
    %c0_24 = arith.constant 0 : index
    %52 = vector.load %arg4[%c256, %c0_24] : memref<1152x128xbf16, #tpu.memory_space<vmem>>, vector<128x128xbf16>
    %cst_25 = arith.constant dense<0.000000e+00> : vector<196x128xf32>
    %53 = tpu.matmul %51, %52, %cst_25 {dimension_numbers = #tpu.dot_dimension_numbers<[1], [0], [0], [1], [0, 0, 1, 1], [], []>} : vector<196x128xbf16>, vector<128x128xbf16>, vector<196x128xf32> -> vector<196x128xf32>
    %54 = arith.addf %47, %53 : vector<196x128xf32>
    %55 = vector.extract_strided_slice %33 {offsets = [0, 2, 0], sizes = [14, 14, 1], strides = [1, 1, 1]} : vector<16x16x1xf32> to vector<14x14x1xf32>
    %56 = arith.addf %49, %55 : vector<14x14x1xf32>
    %57 = vector.extract_strided_slice %29 {offsets = [1, 0, 0], sizes = [14, 14, 128], strides = [1, 1, 1]} : vector<16x16x128xbf16> to vector<14x14x128xbf16>
    %58 = vector.shape_cast %57 : vector<14x14x128xbf16> to vector<196x128xbf16>
    %c384 = arith.constant 384 : index
    %c0_26 = arith.constant 0 : index
    %59 = vector.load %arg4[%c384, %c0_26] : memref<1152x128xbf16, #tpu.memory_space<vmem>>, vector<128x128xbf16>
    %cst_27 = arith.constant dense<0.000000e+00> : vector<196x128xf32>
    %60 = tpu.matmul %58, %59, %cst_27 {dimension_numbers = #tpu.dot_dimension_numbers<[1], [0], [0], [1], [0, 0, 1, 1], [], []>} : vector<196x128xbf16>, vector<128x128xbf16>, vector<196x128xf32> -> vector<196x128xf32>
    %61 = arith.addf %54, %60 : vector<196x128xf32>
    %62 = vector.extract_strided_slice %33 {offsets = [1, 0, 0], sizes = [14, 14, 1], strides = [1, 1, 1]} : vector<16x16x1xf32> to vector<14x14x1xf32>
    %63 = arith.addf %56, %62 : vector<14x14x1xf32>
    %64 = vector.extract_strided_slice %29 {offsets = [1, 1, 0], sizes = [14, 14, 128], strides = [1, 1, 1]} : vector<16x16x128xbf16> to vector<14x14x128xbf16>
    %65 = vector.shape_cast %64 : vector<14x14x128xbf16> to vector<196x128xbf16>
    %c512 = arith.constant 512 : index
    %c0_28 = arith.constant 0 : index
    %66 = vector.load %arg4[%c512, %c0_28] : memref<1152x128xbf16, #tpu.memory_space<vmem>>, vector<128x128xbf16>
    %cst_29 = arith.constant dense<0.000000e+00> : vector<196x128xf32>
    %67 = tpu.matmul %65, %66, %cst_29 {dimension_numbers = #tpu.dot_dimension_numbers<[1], [0], [0], [1], [0, 0, 1, 1], [], []>} : vector<196x128xbf16>, vector<128x128xbf16>, vector<196x128xf32> -> vector<196x128xf32>
    %68 = arith.addf %61, %67 : vector<196x128xf32>
    %69 = vector.extract_strided_slice %33 {offsets = [1, 1, 0], sizes = [14, 14, 1], strides = [1, 1, 1]} : vector<16x16x1xf32> to vector<14x14x1xf32>
    %70 = arith.addf %63, %69 : vector<14x14x1xf32>
    %71 = vector.extract_strided_slice %29 {offsets = [1, 2, 0], sizes = [14, 14, 128], strides = [1, 1, 1]} : vector<16x16x128xbf16> to vector<14x14x128xbf16>
    %72 = vector.shape_cast %71 : vector<14x14x128xbf16> to vector<196x128xbf16>
    %c640 = arith.constant 640 : index
    %c0_30 = arith.constant 0 : index
    %73 = vector.load %arg4[%c640, %c0_30] : memref<1152x128xbf16, #tpu.memory_space<vmem>>, vector<128x128xbf16>
    %cst_31 = arith.constant dense<0.000000e+00> : vector<196x128xf32>
    %74 = tpu.matmul %72, %73, %cst_31 {dimension_numbers = #tpu.dot_dimension_numbers<[1], [0], [0], [1], [0, 0, 1, 1], [], []>} : vector<196x128xbf16>, vector<128x128xbf16>, vector<196x128xf32> -> vector<196x128xf32>
    %75 = arith.addf %68, %74 : vector<196x128xf32>
    %76 = vector.extract_strided_slice %33 {offsets = [1, 2, 0], sizes = [14, 14, 1], strides = [1, 1, 1]} : vector<16x16x1xf32> to vector<14x14x1xf32>
    %77 = arith.addf %70, %76 : vector<14x14x1xf32>
    %78 = vector.extract_strided_slice %29 {offsets = [2, 0, 0], sizes = [14, 14, 128], strides = [1, 1, 1]} : vector<16x16x128xbf16> to vector<14x14x128xbf16>
    %79 = vector.shape_cast %78 : vector<14x14x128xbf16> to vector<196x128xbf16>
    %c768 = arith.constant 768 : index
    %c0_32 = arith.constant 0 : index
    %80 = vector.load %arg4[%c768, %c0_32] : memref<1152x128xbf16, #tpu.memory_space<vmem>>, vector<128x128xbf16>
    %cst_33 = arith.constant dense<0.000000e+00> : vector<196x128xf32>
    %81 = tpu.matmul %79, %80, %cst_33 {dimension_numbers = #tpu.dot_dimension_numbers<[1], [0], [0], [1], [0, 0, 1, 1], [], []>} : vector<196x128xbf16>, vector<128x128xbf16>, vector<196x128xf32> -> vector<196x128xf32>
    %82 = arith.addf %75, %81 : vector<196x128xf32>
    %83 = vector.extract_strided_slice %33 {offsets = [2, 0, 0], sizes = [14, 14, 1], strides = [1, 1, 1]} : vector<16x16x1xf32> to vector<14x14x1xf32>
    %84 = arith.addf %77, %83 : vector<14x14x1xf32>
    %85 = vector.extract_strided_slice %29 {offsets = [2, 1, 0], sizes = [14, 14, 128], strides = [1, 1, 1]} : vector<16x16x128xbf16> to vector<14x14x128xbf16>
    %86 = vector.shape_cast %85 : vector<14x14x128xbf16> to vector<196x128xbf16>
    %c896 = arith.constant 896 : index
    %c0_34 = arith.constant 0 : index
    %87 = vector.load %arg4[%c896, %c0_34] : memref<1152x128xbf16, #tpu.memory_space<vmem>>, vector<128x128xbf16>
    %cst_35 = arith.constant dense<0.000000e+00> : vector<196x128xf32>
    %88 = tpu.matmul %86, %87, %cst_35 {dimension_numbers = #tpu.dot_dimension_numbers<[1], [0], [0], [1], [0, 0, 1, 1], [], []>} : vector<196x128xbf16>, vector<128x128xbf16>, vector<196x128xf32> -> vector<196x128xf32>
    %89 = arith.addf %82, %88 : vector<196x128xf32>
    %90 = vector.extract_strided_slice %33 {offsets = [2, 1, 0], sizes = [14, 14, 1], strides = [1, 1, 1]} : vector<16x16x1xf32> to vector<14x14x1xf32>
    %91 = arith.addf %84, %90 : vector<14x14x1xf32>
    %92 = vector.extract_strided_slice %29 {offsets = [2, 2, 0], sizes = [14, 14, 128], strides = [1, 1, 1]} : vector<16x16x128xbf16> to vector<14x14x128xbf16>
    %93 = vector.shape_cast %92 : vector<14x14x128xbf16> to vector<196x128xbf16>
    %c1024 = arith.constant 1024 : index
    %c0_36 = arith.constant 0 : index
    %94 = vector.load %arg4[%c1024, %c0_36] : memref<1152x128xbf16, #tpu.memory_space<vmem>>, vector<128x128xbf16>
    %cst_37 = arith.constant dense<0.000000e+00> : vector<196x128xf32>
    %95 = tpu.matmul %93, %94, %cst_37 {dimension_numbers = #tpu.dot_dimension_numbers<[1], [0], [0], [1], [0, 0, 1, 1], [], []>} : vector<196x128xbf16>, vector<128x128xbf16>, vector<196x128xf32> -> vector<196x128xf32>
    %96 = arith.addf %89, %95 : vector<196x128xf32>
    %97 = vector.extract_strided_slice %33 {offsets = [2, 2, 0], sizes = [14, 14, 1], strides = [1, 1, 1]} : vector<16x16x1xf32> to vector<14x14x1xf32>
    %98 = arith.addf %91, %97 : vector<14x14x1xf32>
    %cst_38 = arith.constant 0.111111112 : f32
    %99 = vector.broadcast %cst_38 : f32 to vector<14x14x1xf32>
    %100 = arith.mulf %98, %99 : vector<14x14x1xf32>
    %101 = vector.shape_cast %100 : vector<14x14x1xf32> to vector<196x1xf32>
    %102 = vector.broadcast %101 : vector<196x1xf32> to vector<196x128xf32>
    %103 = arith.mulf %96, %102 : vector<196x128xf32>
    %104 = vector.shape_cast %103 : vector<196x128xf32> to vector<1x14x14x128xf32>
    %105 = arith.truncf %104 : vector<1x14x14x128xf32> to vector<1x14x14x128xbf16>
    %c0_39 = arith.constant 0 : index
    %c0_40 = arith.constant 0 : index
    %c0_41 = arith.constant 0 : index
    %c0_42 = arith.constant 0 : index
    %106 = vector.load %arg5[%c0_39, %c0_40, %c0_41, %c0_42] : memref<1x14x14x128xbf16, #tpu.memory_space<vmem>>, vector<1x14x14x128xbf16>
    tpu.vector_store %arg5[%c0_39, %c0_40, %c0_41, %c0_42], %105 {strides = array<i32>} : memref<1x14x14x128xbf16, #tpu.memory_space<vmem>>, vector<1x14x14x128xbf16>,
    %cst_43 = arith.constant dense<0.000000e+00> : vector<128xf32>
    %107 = vector.multi_reduction <add>, %103, %cst_43 [0] : vector<196x128xf32> to vector<128xf32>
    %108 = vector.shape_cast %107 : vector<128xf32> to vector<1x128xf32>
    %109 = vector.shape_cast %108 : vector<1x128xf32> to vector<1x1x128xf32>
    %c0_44 = arith.constant 0 : index
    %c0_45 = arith.constant 0 : index
    %c0_46 = arith.constant 0 : index
    %110 = vector.load %arg6[%c0_44, %c0_45, %c0_46] : memref<1x1x128xf32, #tpu.memory_space<vmem>>, vector<1x1x128xf32>
    tpu.vector_store %arg6[%c0_44, %c0_45, %c0_46], %109 {strides = array<i32>} : memref<1x1x128xf32, #tpu.memory_space<vmem>>, vector<1x1x128xf32>,
    %111 = arith.mulf %103, %103 : vector<196x128xf32>
    %cst_47 = arith.constant dense<0.000000e+00> : vector<128xf32>
    %112 = vector.multi_reduction <add>, %111, %cst_47 [0] : vector<196x128xf32> to vector<128xf32>
    %113 = vector.shape_cast %112 : vector<128xf32> to vector<1x128xf32>
    %114 = vector.shape_cast %113 : vector<1x128xf32> to vector<1x1x128xf32>
    %c0_48 = arith.constant 0 : index
    %c0_49 = arith.constant 0 : index
    %c0_50 = arith.constant 0 : index
    %115 = vector.load %arg7[%c0_48, %c0_49, %c0_50] : memref<1x1x128xf32, #tpu.memory_space<vmem>>, vector<1x1x128xf32>
    tpu.vector_store %arg7[%c0_48, %c0_49, %c0_50], %114 {strides = array<i32>} : memref<1x1x128xf32, #tpu.memory_space<vmem>>, vector<1x1x128xf32>,
    return
  }
  func.func @transform_0(%arg0: i32) -> (i32, i32, i32, i32) {
    %c0_i32 = arith.constant 0 : i32
    %c0_i32_0 = arith.constant 0 : i32
    %c0_i32_1 = arith.constant 0 : i32
    %c0_i32_2 = arith.constant 0 : i32
    return %arg0, %c0_i32, %c0_i32_0, %c0_i32_1 : i32, i32, i32, i32
  }
  func.func @transform_1(%arg0: i32) -> (i32, i32) {
    %c0_i32 = arith.constant 0 : i32
    %c0_i32_0 = arith.constant 0 : i32
    %c0_i32_1 = arith.constant 0 : i32
    return %c0_i32, %c0_i32_0 : i32, i32
  }
  func.func @transform_2(%arg0: i32) -> (i32, i32) {
    %c0_i32 = arith.constant 0 : i32
    %c0_i32_0 = arith.constant 0 : i32
    %c0_i32_1 = arith.constant 0 : i32
    return %c0_i32, %c0_i32_0 : i32, i32
  }
  func.func @transform_3(%arg0: i32) -> (i32, i32) {
    %c0_i32 = arith.constant 0 : i32
    %c0_i32_0 = arith.constant 0 : i32
    %c0_i32_1 = arith.constant 0 : i32
    return %c0_i32, %c0_i32_0 : i32, i32
  }
  func.func @transform_4(%arg0: i32) -> (i32, i32, i32, i32) {
    %c0_i32 = arith.constant 0 : i32
    %c0_i32_0 = arith.constant 0 : i32
    %c0_i32_1 = arith.constant 0 : i32
    %c0_i32_2 = arith.constant 0 : i32
    return %arg0, %c0_i32, %c0_i32_0, %c0_i32_1 : i32, i32, i32, i32
  }
  func.func @transform_5(%arg0: i32) -> (i32, i32, i32) {
    %c0_i32 = arith.constant 0 : i32
    %c0_i32_0 = arith.constant 0 : i32
    %c0_i32_1 = arith.constant 0 : i32
    return %arg0, %c0_i32, %c0_i32_0 : i32, i32, i32
  }
  func.func @transform_6(%arg0: i32) -> (i32, i32, i32) {
    %c0_i32 = arith.constant 0 : i32
    %c0_i32_0 = arith.constant 0 : i32
    %c0_i32_1 = arith.constant 0 : i32
    return %arg0, %c0_i32, %c0_i32_0 : i32, i32, i32
  }
}

module attributes {stable_mosaic.version = 11 : i64} {
  func.func @_binact_conv1x1_bn_add_kernel(%arg0: i32, %arg1: memref<256x128xbf16, #tpu.memory_space<vmem>>, %arg2: memref<1x128xf32, #tpu.memory_space<vmem>>, %arg3: memref<1x128xf32, #tpu.memory_space<vmem>>, %arg4: memref<128x16xbf16, #tpu.memory_space<vmem>>, %arg5: memref<256x16xf32, #tpu.memory_space<vmem>>, %arg6: memref<256x16xf32, #tpu.memory_space<vmem>>) attributes {dimension_semantics = [#tpu.dimension_semantics<parallel>], iteration_bounds = array<i64: 2>, scalar_prefetch = 0 : i64, scratch_operands = 0 : i64, tpu.core_type = #tpu.core_type<tc>, window_params = [{transform_indices = @transform_0, window_bounds = array<i64: 256, 128>}, {pipeline_mode = #tpu.pipeline_mode<synchronous>, transform_indices = @transform_1, window_bounds = array<i64: 1, 128>}, {pipeline_mode = #tpu.pipeline_mode<synchronous>, transform_indices = @transform_2, window_bounds = array<i64: 1, 128>}, {pipeline_mode = #tpu.pipeline_mode<synchronous>, transform_indices = @transform_3, window_bounds = array<i64: 128, 16>}, {transform_indices = @transform_4, window_bounds = array<i64: 256, 16>}, {transform_indices = @transform_5, window_bounds = array<i64: 256, 16>}]} {
    %c0 = arith.constant 0 : index
    %c0_0 = arith.constant 0 : index
    %0 = vector.load %arg1[%c0, %c0_0] : memref<256x128xbf16, #tpu.memory_space<vmem>>, vector<256x128xbf16>
    %1 = arith.extf %0 : vector<256x128xbf16> to vector<256x128xf32>
    %c0_1 = arith.constant 0 : index
    %c0_2 = arith.constant 0 : index
    %2 = vector.load %arg2[%c0_1, %c0_2] : memref<1x128xf32, #tpu.memory_space<vmem>>, vector<1x128xf32>
    %3 = vector.broadcast %2 : vector<1x128xf32> to vector<256x128xf32>
    %4 = arith.mulf %1, %3 : vector<256x128xf32>
    %c0_3 = arith.constant 0 : index
    %c0_4 = arith.constant 0 : index
    %5 = vector.load %arg3[%c0_3, %c0_4] : memref<1x128xf32, #tpu.memory_space<vmem>>, vector<1x128xf32>
    %6 = vector.broadcast %5 : vector<1x128xf32> to vector<256x128xf32>
    %7 = arith.addf %4, %6 : vector<256x128xf32>
    %cst = arith.constant 0.000000e+00 : f32
    %8 = vector.broadcast %cst : f32 to vector<256x128xf32>
    %9 = arith.cmpf ogt, %7, %8 : vector<256x128xf32>
    %cst_5 = arith.constant 0.000000e+00 : f32
    %10 = vector.broadcast %cst_5 : f32 to vector<256x128xf32>
    %11 = arith.cmpf olt, %7, %10 : vector<256x128xf32>
    %cst_6 = arith.constant -1.000000e+00 : f32
    %cst_7 = arith.constant 0.000000e+00 : f32
    %12 = vector.broadcast %cst_6 : f32 to vector<256x128xf32>
    %13 = vector.broadcast %cst_7 : f32 to vector<256x128xf32>
    %14 = arith.select %11, %12, %13 : vector<256x128xi1>, vector<256x128xf32>
    %cst_8 = arith.constant 1.000000e+00 : f32
    %15 = vector.broadcast %cst_8 : f32 to vector<256x128xf32>
    %16 = arith.select %9, %15, %14 : vector<256x128xi1>, vector<256x128xf32>
    %17 = arith.mulf %7, %16 : vector<256x128xf32>
    %cst_9 = arith.constant dense<0.000000e+00> : vector<256xf32>
    %18 = vector.multi_reduction <add>, %17, %cst_9 [1] : vector<256x128xf32> to vector<256xf32>
    %19 = vector.shape_cast %18 : vector<256xf32> to vector<256x1xf32>
    %cst_10 = arith.constant 2.500000e-01 : f32
    %20 = vector.broadcast %cst_10 : f32 to vector<256x1xf32>
    %21 = arith.mulf %19, %20 : vector<256x1xf32>
    %22 = arith.truncf %16 : vector<256x128xf32> to vector<256x128xbf16>
    %c0_11 = arith.constant 0 : index
    %c0_12 = arith.constant 0 : index
    %23 = vector.load %arg4[%c0_11, %c0_12] : memref<128x16xbf16, #tpu.memory_space<vmem>>, vector<128x16xbf16>
    %cst_13 = arith.constant dense<0.000000e+00> : vector<256x16xf32>
    %24 = tpu.matmul %22, %23, %cst_13 {dimension_numbers = #tpu.dot_dimension_numbers<[1], [0], [0], [1], [0, 0, 1, 1], [], []>} : vector<256x128xbf16>, vector<128x16xbf16>, vector<256x16xf32> -> vector<256x16xf32>
    %25 = vector.broadcast %21 : vector<256x1xf32> to vector<256x16xf32>
    %26 = arith.mulf %24, %25 : vector<256x16xf32>
    %c0_14 = arith.constant 0 : index
    %c0_15 = arith.constant 0 : index
    %27 = vector.load %arg5[%c0_14, %c0_15] : memref<256x16xf32, #tpu.memory_space<vmem>>, vector<256x16xf32>
    %28 = arith.addf %26, %27 : vector<256x16xf32>
    %c0_16 = arith.constant 0 : index
    %c0_17 = arith.constant 0 : index
    %29 = vector.load %arg6[%c0_16, %c0_17] : memref<256x16xf32, #tpu.memory_space<vmem>>, vector<256x16xf32>
    tpu.vector_store %arg6[%c0_16, %c0_17], %28 {strides = array<i32>} : memref<256x16xf32, #tpu.memory_space<vmem>>, vector<256x16xf32>,
    return
  }
  func.func @transform_0(%arg0: i32) -> (i32, i32) {
    %c0_i32 = arith.constant 0 : i32
    %c0_i32_0 = arith.constant 0 : i32
    return %arg0, %c0_i32 : i32, i32
  }
  func.func @transform_1(%arg0: i32) -> (i32, i32) {
    %c0_i32 = arith.constant 0 : i32
    %c0_i32_0 = arith.constant 0 : i32
    %c0_i32_1 = arith.constant 0 : i32
    return %c0_i32, %c0_i32_0 : i32, i32
  }
  func.func @transform_2(%arg0: i32) -> (i32, i32) {
    %c0_i32 = arith.constant 0 : i32
    %c0_i32_0 = arith.constant 0 : i32
    %c0_i32_1 = arith.constant 0 : i32
    return %c0_i32, %c0_i32_0 : i32, i32
  }
  func.func @transform_3(%arg0: i32) -> (i32, i32) {
    %c0_i32 = arith.constant 0 : i32
    %c0_i32_0 = arith.constant 0 : i32
    %c0_i32_1 = arith.constant 0 : i32
    return %c0_i32, %c0_i32_0 : i32, i32
  }
  func.func @transform_4(%arg0: i32) -> (i32, i32) {
    %c0_i32 = arith.constant 0 : i32
    %c0_i32_0 = arith.constant 0 : i32
    return %arg0, %c0_i32 : i32, i32
  }
  func.func @transform_5(%arg0: i32) -> (i32, i32) {
    %c0_i32 = arith.constant 0 : i32
    %c0_i32_0 = arith.constant 0 : i32
    return %arg0, %c0_i32 : i32, i32
  }
}

</mosaic_0001>

<llo_original>
// kernel: bottleneck_forward.3
$region0: #{bottleneck_forward.3}
  #allocation0 [shape = 'u32[]', space=smem, size = 0x4, offset = 0x4, fixed_abs, tag = 'smem constant byte address 0x4 - core index']
  #allocation1 [shape = 'u32[72,128]{1,0:T(1,128)}', space=vmem, size = 0x9000, scoped, tag = 'internal scratch']
  %s0 = inlined_call_operand.vmem [shape: f32[392,16], index: 0, kind: input, shape index: {}]
  %s1 = inlined_call_operand.vmem [shape: bf16[16,128], index: 1, kind: input, shape index: {}]
  %s2 = inlined_call_operand.vmem [shape: bf16[392,128], index: 2, kind: output, shape index: {0}]
  %s3 = inlined_call_operand.vmem [shape: f32[2,1,128], index: 3, kind: output, shape index: {1}]
  %s4 = inlined_call_operand.vmem [shape: f32[2,1,128], index: 4, kind: output, shape index: {2}]
  %5 = xla_tuple %s2, %s3, %s4
  %s6 = sld [smem:[#allocation0]]
  $region101: #{bottleneck_forward.3} parent=0
    _
  %s8 = ssub.s32 1, %s6
  %s9 = scalar_select 0, %s8, %s6
  $region1: #{bottleneck_forward.3} parent=0
    #allocation2 [shape = 'u8[131072]{0}', space=vmem, size = 0x20000, scoped, tag = 'output window, operand 0']
    loop: start=0, step=1, limit=4
    $region2: #{bottleneck_forward.3} parent=1 // loop_pre_header
      _
    $region3: #{bottleneck_forward.3} parent=1 // loop_header
      %s11 = sphi 0, %s15
      %p12 = scmp.ge.s32.totalorder %s11, 4
      %s21 = sphi 0, %s23
      %s24 = sphi 0, %s21
      %s25 = sphi 0, %s24
      %s41 = sphi 0, %s25
      %s45 = sphi 0, %s45
      %s47 = sphi 0, %s45
      %s48 = sphi 0, %s47
      %s62 = sphi 0, %s48
      %s68 = sphi 0, %s70
      %s71 = sphi 0, %s68
      %s72 = sphi 0, %s71
      %s88 = sphi 0, %s72
      %s94 = sphi 0, %s96
      %s97 = sphi 0, %s94
      %s98 = sphi 0, %s97
      %s114 = sphi 0, %s98
      %s120 = sphi 0, %s122
      %s123 = sphi 0, %s120
      %s124 = sphi 0, %s123
      %s140 = sphi 0, %s124
    $region4: #{bottleneck_forward.3} parent=1 // loop_header_branch
      %14 = sbr.rel (%p12) target = $region8
    $region5: #{bottleneck_forward.3} parent=1 // loop_body
      %s16 = ssub.s32 %s11, 1
      %s17 = ssub.s32 %s11, 2
      %s18 = sadd.s32 %s11, 1
      %s19 = ssub.s32 %s11, %s18
      %p20 = scmp.eq.s32.totalorder %s19, 0
      %s22 = sadd.s32 %s21, 1
      %s23 = scalar_select %p20, %s21, %s22
      %p26 = pneg %p20
      %p27 = scmp.eq.s32.totalorder %s11, 1
      %p28 = por %p26, %p27
      %p29 = scmp.ne.s32.totalorder %s21, %s24
      %p30 = scmp.eq.s32.totalorder %s11, 0
      %p31 = por %p29, %p30
      %p32 = scmp.ne.s32.totalorder %s21, %s24
      %p33 = scmp.eq.s32.totalorder %s16, 1
      %p34 = por %p32, %p33
      %p35 = scmp.ne.s32.totalorder %s24, %s25
      %p36 = scmp.eq.s32.totalorder %s16, 0
      %p37 = por %p35, %p36
      %p38 = scmp.ne.s32.totalorder %s24, %s25
      %p39 = scmp.eq.s32.totalorder %s17, 1
      %p40 = por %p38, %p39
      %p42 = scmp.ne.s32.totalorder %s25, %s41
      %p43 = scmp.eq.s32.totalorder %s17, 0
      %p44 = por %p42, %p43
      %s46 = sadd.s32 %s45, 1
      %p49 = scmp.eq.s32.totalorder %s11, 1
      %p50 = scmp.ne.s32.totalorder %s45, %s47
      %p51 = scmp.eq.s32.totalorder %s11, 0
      %p52 = por %p50, %p51
      %p53 = scmp.ne.s32.totalorder %s45, %s47
      %p54 = scmp.eq.s32.totalorder %s16, 1
      %p55 = por %p53, %p54
      %p56 = scmp.ne.s32.totalorder %s47, %s48
      %p57 = scmp.eq.s32.totalorder %s16, 0
      %p58 = por %p56, %p57
      %p59 = scmp.ne.s32.totalorder %s47, %s48
      %p60 = scmp.eq.s32.totalorder %s17, 1
      %p61 = por %p59, %p60
      %p63 = scmp.ne.s32.totalorder %s48, %s62
      %p64 = scmp.eq.s32.totalorder %s17, 0
      %p65 = por %p63, %p64
      %s66 = ssub.s32 %s11, %s18
      %p67 = scmp.eq.s32.totalorder %s66, 0
      %s69 = sadd.s32 %s68, 1
      %s70 = scalar_select %p67, %s68, %s69
      %p73 = pneg %p67
      %p74 = scmp.eq.s32.totalorder %s11, 1
      %p75 = por %p73, %p74
      %p76 = scmp.ne.s32.totalorder %s68, %s71
      %p77 = scmp.eq.s32.totalorder %s11, 0
      %p78 = por %p76, %p77
      %p79 = scmp.ne.s32.totalorder %s68, %s71
      %p80 = scmp.eq.s32.totalorder %s16, 1
      %p81 = por %p79, %p80
      %p82 = scmp.ne.s32.totalorder %s71, %s72
      %p83 = scmp.eq.s32.totalorder %s16, 0
      %p84 = por %p82, %p83
      %p85 = scmp.ne.s32.totalorder %s71, %s72
      %p86 = scmp.eq.s32.totalorder %s17, 1
      %p87 = por %p85, %p86
      %p89 = scmp.ne.s32.totalorder %s72, %s88
      %p90 = scmp.eq.s32.totalorder %s17, 0
      %p91 = por %p89, %p90
      %s92 = ssub.s32 %s11, %s18
      %p93 = scmp.eq.s32.totalorder %s92, 0
      %s95 = sadd.s32 %s94, 1
      %s96 = scalar_select %p93, %s94, %s95
      %p99 = pneg %p93
      %p100 = scmp.eq.s32.totalorder %s11, 1
      %p101 = por %p99, %p100
      %p102 = scmp.ne.s32.totalorder %s94, %s97
      %p103 = scmp.eq.s32.totalorder %s11, 0
      %p104 = por %p102, %p103
      %p105 = scmp.ne.s32.totalorder %s94, %s97
      %p106 = scmp.eq.s32.totalorder %s16, 1
      %p107 = por %p105, %p106
      %p108 = scmp.ne.s32.totalorder %s97, %s98
      %p109 = scmp.eq.s32.totalorder %s16, 0
      %p110 = por %p108, %p109
      %p111 = scmp.ne.s32.totalorder %s97, %s98
      %p112 = scmp.eq.s32.totalorder %s17, 1
      %p113 = por %p111, %p112
      %p115 = scmp.ne.s32.totalorder %s98, %s114
      %p116 = scmp.eq.s32.totalorder %s17, 0
      %p117 = por %p115, %p116
      %s118 = ssub.s32 %s11, %s18
      %p119 = scmp.eq.s32.totalorder %s118, 0
      %s121 = sadd.s32 %s120, 1
      %s122 = scalar_select %p119, %s120, %s121
      %p125 = pneg %p119
      %p126 = scmp.eq.s32.totalorder %s11, 1
      %p127 = por %p125, %p126
      %p128 = scmp.ne.s32.totalorder %s120, %s123
      %p129 = scmp.eq.s32.totalorder %s11, 0
      %p130 = por %p128, %p129
      %p131 = scmp.ne.s32.totalorder %s120, %s123
      %p132 = scmp.eq.s32.totalorder %s16, 1
      %p133 = por %p131, %p132
      %p134 = scmp.ne.s32.totalorder %s123, %s124
      %p135 = scmp.eq.s32.totalorder %s16, 0
      %p136 = por %p134, %p135
      %p137 = scmp.ne.s32.totalorder %s123, %s124
      %p138 = scmp.eq.s32.totalorder %s17, 1
      %p139 = por %p137, %p138
      %p141 = scmp.ne.s32.totalorder %s124, %s140
      %p142 = scmp.eq.s32.totalorder %s17, 0
      %p143 = por %p141, %p142
      %p144 = scmp.le.s32.totalorder 1, %s11
      %p145 = scmp.lt.s32.totalorder %s11, 3
      %p146 = pnand %p144, %p145
      %p147 = pneg %p146
      // Predicated region
      $region9: #{bottleneck_forward.3} parent=5 // pred_check
        _
      $region10: #{bottleneck_forward.3} parent=5 // pred_check_branch
        %149 = sbr.rel (%p146) target = $region12
      $region11: #{bottleneck_forward.3} parent=5 // pred_region
        %s150 = ssub.s32 %s11, 1
        // Predicated region
        $region13: #{bottleneck_forward.3} parent=11 // pred_check
          %p151 = pneg %p58
        $region14: #{bottleneck_forward.3} parent=11 // pred_check_branch
          %153 = sbr.rel (%p151) target = $region16
        $region15: #{bottleneck_forward.3} parent=11 // pred_region
          _
        $region16: #{bottleneck_forward.3} parent=11 // pred_fallthru
          _
      $region12: #{bottleneck_forward.3} parent=5 // pred_fallthru
        _
      %p154 = scmp.lt.s32.totalorder %s11, 2
      // Predicated region
      $region17: #{bottleneck_forward.3} parent=5 // pred_check
        %p155 = pneg %p154
      $region18: #{bottleneck_forward.3} parent=5 // pred_check_branch
        %157 = sbr.rel (%p155) target = $region20
      $region19: #{bottleneck_forward.3} parent=5 // pred_region
        // Predicated region
        $region21: #{bottleneck_forward.3} parent=19 // pred_check
          %p158 = pneg %p31
        $region22: #{bottleneck_forward.3} parent=19 // pred_check_branch
          %160 = sbr.rel (%p158) target = $region24
        $region23: #{bottleneck_forward.3} parent=19 // pred_region
          %s161 = smul.u32 32, %s11
          %s162 = ssub.s32 49, %s161
          %p163 = scmp.lt.s32.totalorder %s162, 32
          %s164 = scalar_select %p163, %s162, 32
          %s165 = smul.u32 8, %s164
          %p166 = scmp.lt.s32.totalorder %s161, 48
          %s167 = scalar_select %p166, %s161, 48
          %s168 = smul.addr %s167, 8
          %s169 = scalar_lea.vmem %s0, %s168
          %s170 = smul.u32 32, %s11
          %s171 = ssub.s32 49, %s170
          %p172 = scmp.lt.s32.totalorder %s171, 32
          %s173 = scalar_select %p172, %s171, 32
          %s174 = smul.u32 8, %s173
        $region24: #{bottleneck_forward.3} parent=19 // pred_fallthru
          _
      $region20: #{bottleneck_forward.3} parent=5 // pred_fallthru
        _
      %p175 = scmp.le.s32.totalorder 1, %s11
      %p176 = scmp.lt.s32.totalorder %s11, 3
      %p177 = pnand %p175, %p176
      %p178 = pneg %p177
      // Predicated region
      $region25: #{bottleneck_forward.3} parent=5 // pred_check
        _
      $region26: #{bottleneck_forward.3} parent=5 // pred_check_branch
        %180 = sbr.rel (%p177) target = $region28
      $region27: #{bottleneck_forward.3} parent=5 // pred_region
        %s181 = ssub.s32 %s11, 1
        %s182 = smul.u32 32, %s16
        %s183 = ssub.s32 49, %s182
        %p184 = scmp.lt.s32.totalorder %s183, 32
        %s185 = scalar_select %p184, %s183, 32
        %s186 = smul.u32 8, %s185
        %p187 = scmp.lt.s32.totalorder %s182, 48
        %s188 = scalar_select %p187, %s182, 48
        %s189 = smul.addr %s188, 8
        %s190 = scalar_lea.vmem %s0, %s189
        %p191 = pneg %p37
        %p192 = pneg %p34
        %p193 = pneg %p58
        %p194 = pneg %p55
        %p195 = pneg %p84
        %p196 = pneg %p81
        %s197 = sand.u32 %s71, 1
        %s198 = sand.u32 %s71, 1
        %s199 = smul.addr %s198, 128
        %s200 = scalar_lea.vmem [#allocation2], %s199
        %p201 = pneg %p110
        %p202 = pneg %p107
        %p203 = scmp.lt.s32.totalorder %s16, 1
        %s204 = scalar_select %p203, %s16, 1
        %s205 = scalar_lea.vmem %s3, %s204
        %p206 = pneg %p136
        %p207 = pneg %p133
        %p208 = scmp.lt.s32.totalorder %s16, 1
        %s209 = scalar_select %p208, %s16, 1
        %s210 = scalar_lea.vmem %s4, %s209
        %s211 = smul.u32 32, %s16
        %s212 = ssub.s32 49, %s211
        %p213 = scmp.lt.s32.totalorder %s212, 32
        %s214 = scalar_select %p213, %s212, 32
        %s215 = smul.u32 8, %s214
        %p216 = scmp.lt.s32.totalorder %s211, 48
        %s217 = scalar_select %p216, %s211, 48
        %s218 = smul.addr %s217, 8
        %s219 = scalar_lea.vmem %s0, %s218
        %s220 = smul.u32 32, %s16
        %s221 = ssub.s32 49, %s220
        %p222 = scmp.lt.s32.totalorder %s221, 32
        %s223 = scalar_select %p222, %s221, 32
        %s224 = smul.u32 8, %s223
        %s225 = smul.u32 32, %s16
        %s226 = ssub.s32 49, %s225
        %p227 = scmp.lt.s32.totalorder %s226, 32
        %s228 = scalar_select %p227, %s226, 32
        %s229 = smul.u32 4, %s228
        %p230 = scmp.lt.s32.totalorder %s16, 1
        %s231 = scalar_select %p230, %s16, 1
        %s232 = scalar_lea.vmem %s3, %s231
        %p233 = scmp.lt.s32.totalorder %s16, 1
        %s234 = scalar_select %p233, %s16, 1
        %s235 = scalar_lea.vmem %s4, %s234
        %v237 = vld [vmem:[%s219] sm:$0xff]
        %v238 = vld [vmem:[%s219 + $0x8] sm:$0xff]
        %v239 = vld [vmem:[%s219 + $0x10] sm:$0xff]
        %v240 = vld [vmem:[%s219 + $0x18] sm:$0xff]
        %v241 = vld [vmem:[%s219 + $0x20] sm:$0xff]
        %v242 = vld [vmem:[%s219 + $0x28] sm:$0xff]
        %v243 = vld [vmem:[%s219 + $0x30] sm:$0xff]
        %v244 = vld [vmem:[%s219 + $0x38] sm:$0xff]
        %v245 = vld [vmem:[%s219 + $0x40] sm:$0xff]
        %v246 = vld [vmem:[%s219 + $0x48] sm:$0xff]
        %v247 = vld [vmem:[%s219 + $0x50] sm:$0xff]
        %v248 = vld [vmem:[%s219 + $0x58] sm:$0xff]
        %v249 = vld [vmem:[%s219 + $0x60] sm:$0xff]
        %v250 = vld [vmem:[%s219 + $0x68] sm:$0xff]
        %v251 = vld [vmem:[%s219 + $0x70] sm:$0xff]
        %v252 = vld [vmem:[%s219 + $0x78] sm:$0xff]
        %v253 = vld [vmem:[%s219 + $0x80] sm:$0xff]
        %v254 = vld [vmem:[%s219 + $0x88] sm:$0xff]
        %v255 = vld [vmem:[%s219 + $0x90] sm:$0xff]
        %v256 = vld [vmem:[%s219 + $0x98] sm:$0xff]
        %v257 = vld [vmem:[%s219 + $0xa0] sm:$0xff]
        %v258 = vld [vmem:[%s219 + $0xa8] sm:$0xff]
        %v259 = vld [vmem:[%s219 + $0xb0] sm:$0xff]
        %v260 = vld [vmem:[%s219 + $0xb8] sm:$0xff]
        %v261 = vld [vmem:[%s219 + $0xc0] sm:$0xff]
        %v262 = vld [vmem:[%s219 + $0xc8] sm:$0xff]
        %v263 = vld [vmem:[%s219 + $0xd0] sm:$0xff]
        %v264 = vld [vmem:[%s219 + $0xd8] sm:$0xff]
        %v265 = vld [vmem:[%s219 + $0xe0] sm:$0xff]
        %v266 = vld [vmem:[%s219 + $0xe8] sm:$0xff]
        %v267 = vld [vmem:[%s219 + $0xf0] sm:$0xff]
        %v268 = vld [vmem:[%s219 + $0xf8] sm:$0xff]
        %vm269 = vcmp.gt.f32.partialorder %v237, 0.0
        %vm270 = vcmp.gt.f32.partialorder %v238, 0.0
        %vm271 = vcmp.gt.f32.partialorder %v239, 0.0
        %vm272 = vcmp.gt.f32.partialorder %v240, 0.0
        %vm273 = vcmp.gt.f32.partialorder %v241, 0.0
        %vm274 = vcmp.gt.f32.partialorder %v242, 0.0
        %vm275 = vcmp.gt.f32.partialorder %v243, 0.0
        %vm276 = vcmp.gt.f32.partialorder %v244, 0.0
        %vm277 = vcmp.gt.f32.partialorder %v245, 0.0
        %vm278 = vcmp.gt.f32.partialorder %v246, 0.0
        %vm279 = vcmp.gt.f32.partialorder %v247, 0.0
        %vm280 = vcmp.gt.f32.partialorder %v248, 0.0
        %vm281 = vcmp.gt.f32.partialorder %v249, 0.0
        %vm282 = vcmp.gt.f32.partialorder %v250, 0.0
        %vm283 = vcmp.gt.f32.partialorder %v251, 0.0
        %vm284 = vcmp.gt.f32.partialorder %v252, 0.0
        %vm285 = vcmp.gt.f32.partialorder %v253, 0.0
        %vm286 = vcmp.gt.f32.partialorder %v254, 0.0
        %vm287 = vcmp.gt.f32.partialorder %v255, 0.0
        %vm288 = vcmp.gt.f32.partialorder %v256, 0.0
        %vm289 = vcmp.gt.f32.partialorder %v257, 0.0
        %vm290 = vcmp.gt.f32.partialorder %v258, 0.0
        %vm291 = vcmp.gt.f32.partialorder %v259, 0.0
        %vm292 = vcmp.gt.f32.partialorder %v260, 0.0
        %vm293 = vcmp.gt.f32.partialorder %v261, 0.0
        %vm294 = vcmp.gt.f32.partialorder %v262, 0.0
        %vm295 = vcmp.gt.f32.partialorder %v263, 0.0
        %vm296 = vcmp.gt.f32.partialorder %v264, 0.0
        %vm297 = vcmp.gt.f32.partialorder %v265, 0.0
        %vm298 = vcmp.gt.f32.partialorder %v266, 0.0
        %vm299 = vcmp.gt.f32.partialorder %v267, 0.0
        %vm300 = vcmp.gt.f32.partialorder %v268, 0.0
        %vm301 = vcmp.lt.f32.partialorder %v237, 0.0
        %vm302 = vcmp.lt.f32.partialorder %v238, 0.0
        %vm303 = vcmp.lt.f32.partialorder %v239, 0.0
        %vm304 = vcmp.lt.f32.partialorder %v240, 0.0
        %vm305 = vcmp.lt.f32.partialorder %v241, 0.0
        %vm306 = vcmp.lt.f32.partialorder %v242, 0.0
        %vm307 = vcmp.lt.f32.partialorder %v243, 0.0
        %vm308 = vcmp.lt.f32.partialorder %v244, 0.0
        %vm309 = vcmp.lt.f32.partialorder %v245, 0.0
        %vm310 = vcmp.lt.f32.partialorder %v246, 0.0
        %vm311 = vcmp.lt.f32.partialorder %v247, 0.0
        %vm312 = vcmp.lt.f32.partialorder %v248, 0.0
        %vm313 = vcmp.lt.f32.partialorder %v249, 0.0
        %vm314 = vcmp.lt.f32.partialorder %v250, 0.0
        %vm315 = vcmp.lt.f32.partialorder %v251, 0.0
        %vm316 = vcmp.lt.f32.partialorder %v252, 0.0
        %vm317 = vcmp.lt.f32.partialorder %v253, 0.0
        %vm318 = vcmp.lt.f32.partialorder %v254, 0.0
        %vm319 = vcmp.lt.f32.partialorder %v255, 0.0
        %vm320 = vcmp.lt.f32.partialorder %v256, 0.0
        %vm321 = vcmp.lt.f32.partialorder %v257, 0.0
        %vm322 = vcmp.lt.f32.partialorder %v258, 0.0
        %vm323 = vcmp.lt.f32.partialorder %v259, 0.0
        %vm324 = vcmp.lt.f32.partialorder %v260, 0.0
        %vm325 = vcmp.lt.f32.partialorder %v261, 0.0
        %vm326 = vcmp.lt.f32.partialorder %v262, 0.0
        %vm327 = vcmp.lt.f32.partialorder %v263, 0.0
        %vm328 = vcmp.lt.f32.partialorder %v264, 0.0
        %vm329 = vcmp.lt.f32.partialorder %v265, 0.0
        %vm330 = vcmp.lt.f32.partialorder %v266, 0.0
        %vm331 = vcmp.lt.f32.partialorder %v267, 0.0
        %vm332 = vcmp.lt.f32.partialorder %v268, 0.0
        %v333 = vsel %vm301, -1.0, 0.0
        %v334 = vsel %vm302, -1.0, 0.0
        %v335 = vsel %vm303, -1.0, 0.0
        %v336 = vsel %vm304, -1.0, 0.0
        %v337 = vsel %vm305, -1.0, 0.0
        %v338 = vsel %vm306, -1.0, 0.0
        %v339 = vsel %vm307, -1.0, 0.0
        %v340 = vsel %vm308, -1.0, 0.0
        %v341 = vsel %vm309, -1.0, 0.0
        %v342 = vsel %vm310, -1.0, 0.0
        %v343 = vsel %vm311, -1.0, 0.0
        %v344 = vsel %vm312, -1.0, 0.0
        %v345 = vsel %vm313, -1.0, 0.0
        %v346 = vsel %vm314, -1.0, 0.0
        %v347 = vsel %vm315, -1.0, 0.0
        %v348 = vsel %vm316, -1.0, 0.0
        %v349 = vsel %vm317, -1.0, 0.0
        %v350 = vsel %vm318, -1.0, 0.0
        %v351 = vsel %vm319, -1.0, 0.0
        %v352 = vsel %vm320, -1.0, 0.0
        %v353 = vsel %vm321, -1.0, 0.0
        %v354 = vsel %vm322, -1.0, 0.0
        %v355 = vsel %vm323, -1.0, 0.0
        %v356 = vsel %vm324, -1.0, 0.0
        %v357 = vsel %vm325, -1.0, 0.0
        %v358 = vsel %vm326, -1.0, 0.0
        %v359 = vsel %vm327, -1.0, 0.0
        %v360 = vsel %vm328, -1.0, 0.0
        %v361 = vsel %vm329, -1.0, 0.0
        %v362 = vsel %vm330, -1.0, 0.0
        %v363 = vsel %vm331, -1.0, 0.0
        %v364 = vsel %vm332, -1.0, 0.0
        %v365 = vsel %vm269, 1.0, %v333
        %v366 = vsel %vm270, 1.0, %v334
        %v367 = vsel %vm271, 1.0, %v335
        %v368 = vsel %vm272, 1.0, %v336
        %v369 = vsel %vm273, 1.0, %v337
        %v370 = vsel %vm274, 1.0, %v338
        %v371 = vsel %vm275, 1.0, %v339
        %v372 = vsel %vm276, 1.0, %v340
        %v373 = vsel %vm277, 1.0, %v341
        %v374 = vsel %vm278, 1.0, %v342
        %v375 = vsel %vm279, 1.0, %v343
        %v376 = vsel %vm280, 1.0, %v344
        %v377 = vsel %vm281, 1.0, %v345
        %v378 = vsel %vm282, 1.0, %v346
        %v379 = vsel %vm283, 1.0, %v347
        %v380 = vsel %vm284, 1.0, %v348
        %v381 = vsel %vm285, 1.0, %v349
        %v382 = vsel %vm286, 1.0, %v350
        %v383 = vsel %vm287, 1.0, %v351
        %v384 = vsel %vm288, 1.0, %v352
        %v385 = vsel %vm289, 1.0, %v353
        %v386 = vsel %vm290, 1.0, %v354
        %v387 = vsel %vm291, 1.0, %v355
        %v388 = vsel %vm292, 1.0, %v356
        %v389 = vsel %vm293, 1.0, %v357
        %v390 = vsel %vm294, 1.0, %v358
        %v391 = vsel %vm295, 1.0, %v359
        %v392 = vsel %vm296, 1.0, %v360
        %v393 = vsel %vm297, 1.0, %v361
        %v394 = vsel %vm298, 1.0, %v362
        %v395 = vsel %vm299, 1.0, %v363
        %v396 = vsel %vm300, 1.0, %v364
        %v397 = vmul.f32 %v237, %v365
        %v398 = vmul.f32 %v238, %v366
        %v399 = vmul.f32 %v239, %v367
        %v400 = vmul.f32 %v240, %v368
        %v401 = vmul.f32 %v241, %v369
        %v402 = vmul.f32 %v242, %v370
        %v403 = vmul.f32 %v243, %v371
        %v404 = vmul.f32 %v244, %v372
        %v405 = vmul.f32 %v245, %v373
        %v406 = vmul.f32 %v246, %v374
        %v407 = vmul.f32 %v247, %v375
        %v408 = vmul.f32 %v248, %v376
        %v409 = vmul.f32 %v249, %v377
        %v410 = vmul.f32 %v250, %v378
        %v411 = vmul.f32 %v251, %v379
        %v412 = vmul.f32 %v252, %v380
        %v413 = vmul.f32 %v253, %v381
        %v414 = vmul.f32 %v254, %v382
        %v415 = vmul.f32 %v255, %v383
        %v416 = vmul.f32 %v256, %v384
        %v417 = vmul.f32 %v257, %v385
        %v418 = vmul.f32 %v258, %v386
        %v419 = vmul.f32 %v259, %v387
        %v420 = vmul.f32 %v260, %v388
        %v421 = vmul.f32 %v261, %v389
        %v422 = vmul.f32 %v262, %v390
        %v423 = vmul.f32 %v263, %v391
        %v424 = vmul.f32 %v264, %v392
        %v425 = vmul.f32 %v265, %v393
        %v426 = vmul.f32 %v266, %v394
        %v427 = vmul.f32 %v267, %v395
        %v428 = vmul.f32 %v268, %v396
        %vm429 = vcmask 130048
        %v430 = vsel %vm429, %v397, 0.0
        %431 = vadd.xlane.f32.xlu0 %v430
        %v432 = vpop.xlane.xlu0 %431
        %v433 = vsel %vm429, %v398, 0.0
        %434 = vadd.xlane.f32.xlu0 %v433
        %v435 = vpop.xlane.xlu0 %434
        %v436 = vsel %vm429, %v399, 0.0
        %437 = vadd.xlane.f32.xlu0 %v436
        %v438 = vpop.xlane.xlu0 %437
        %v439 = vsel %vm429, %v400, 0.0
        %440 = vadd.xlane.f32.xlu0 %v439
        %v441 = vpop.xlane.xlu0 %440
        %v442 = vsel %vm429, %v401, 0.0
        %443 = vadd.xlane.f32.xlu0 %v442
        %v444 = vpop.xlane.xlu0 %443
        %v445 = vsel %vm429, %v402, 0.0
        %446 = vadd.xlane.f32.xlu0 %v445
        %v447 = vpop.xlane.xlu0 %446
        %v448 = vsel %vm429, %v403, 0.0
        %449 = vadd.xlane.f32.xlu0 %v448
        %v450 = vpop.xlane.xlu0 %449
        %v451 = vsel %vm429, %v404, 0.0
        %452 = vadd.xlane.f32.xlu0 %v451
        %v453 = vpop.xlane.xlu0 %452
        %v454 = vsel %vm429, %v405, 0.0
        %455 = vadd.xlane.f32.xlu0 %v454
        %v456 = vpop.xlane.xlu0 %455
        %v457 = vsel %vm429, %v406, 0.0
        %458 = vadd.xlane.f32.xlu0 %v457
        %v459 = vpop.xlane.xlu0 %458
        %v460 = vsel %vm429, %v407, 0.0
        %461 = vadd.xlane.f32.xlu0 %v460
        %v462 = vpop.xlane.xlu0 %461
        %v463 = vsel %vm429, %v408, 0.0
        %464 = vadd.xlane.f32.xlu0 %v463
        %v465 = vpop.xlane.xlu0 %464
        %v466 = vsel %vm429, %v409, 0.0
        %467 = vadd.xlane.f32.xlu0 %v466
        %v468 = vpop.xlane.xlu0 %467
        %v469 = vsel %vm429, %v410, 0.0
        %470 = vadd.xlane.f32.xlu0 %v469
        %v471 = vpop.xlane.xlu0 %470
        %v472 = vsel %vm429, %v411, 0.0
        %473 = vadd.xlane.f32.xlu0 %v472
        %v474 = vpop.xlane.xlu0 %473
        %v475 = vsel %vm429, %v412, 0.0
        %476 = vadd.xlane.f32.xlu0 %v475
        %v477 = vpop.xlane.xlu0 %476
        %v478 = vsel %vm429, %v413, 0.0
        %479 = vadd.xlane.f32.xlu0 %v478
        %v480 = vpop.xlane.xlu0 %479
        %v481 = vsel %vm429, %v414, 0.0
        %482 = vadd.xlane.f32.xlu0 %v481
        %v483 = vpop.xlane.xlu0 %482
        %v484 = vsel %vm429, %v415, 0.0
        %485 = vadd.xlane.f32.xlu0 %v484
        %v486 = vpop.xlane.xlu0 %485
        %v487 = vsel %vm429, %v416, 0.0
        %488 = vadd.xlane.f32.xlu0 %v487
        %v489 = vpop.xlane.xlu0 %488
        %v490 = vsel %vm429, %v417, 0.0
        %491 = vadd.xlane.f32.xlu0 %v490
        %v492 = vpop.xlane.xlu0 %491
        %v493 = vsel %vm429, %v418, 0.0
        %494 = vadd.xlane.f32.xlu0 %v493
        %v495 = vpop.xlane.xlu0 %494
        %v496 = vsel %vm429, %v419, 0.0
        %497 = vadd.xlane.f32.xlu0 %v496
        %v498 = vpop.xlane.xlu0 %497
        %v499 = vsel %vm429, %v420, 0.0
        %500 = vadd.xlane.f32.xlu0 %v499
        %v501 = vpop.xlane.xlu0 %500
        %v502 = vsel %vm429, %v421, 0.0
        %503 = vadd.xlane.f32.xlu0 %v502
        %v504 = vpop.xlane.xlu0 %503
        %v505 = vsel %vm429, %v422, 0.0
        %506 = vadd.xlane.f32.xlu0 %v505
        %v507 = vpop.xlane.xlu0 %506
        %v508 = vsel %vm429, %v423, 0.0
        %509 = vadd.xlane.f32.xlu0 %v508
        %v510 = vpop.xlane.xlu0 %509
        %v511 = vsel %vm429, %v424, 0.0
        %512 = vadd.xlane.f32.xlu0 %v511
        %v513 = vpop.xlane.xlu0 %512
        %v514 = vsel %vm429, %v425, 0.0
        %515 = vadd.xlane.f32.xlu0 %v514
        %v516 = vpop.xlane.xlu0 %515
        %v517 = vsel %vm429, %v426, 0.0
        %518 = vadd.xlane.f32.xlu0 %v517
        %v519 = vpop.xlane.xlu0 %518
        %v520 = vsel %vm429, %v427, 0.0
        %521 = vadd.xlane.f32.xlu0 %v520
        %v522 = vpop.xlane.xlu0 %521
        %v523 = vsel %vm429, %v428, 0.0
        %524 = vadd.xlane.f32.xlu0 %v523
        %v525 = vpop.xlane.xlu0 %524
        %v526 = vmul.f32 %v432, 0.0625
        %v527 = vmul.f32 %v435, 0.0625
        %v528 = vmul.f32 %v438, 0.0625
        %v529 = vmul.f32 %v441, 0.0625
        %v530 = vmul.f32 %v444, 0.0625
        %v531 = vmul.f32 %v447, 0.0625
        %v532 = vmul.f32 %v450, 0.0625
        %v533 = vmul.f32 %v453, 0.0625
        %v534 = vmul.f32 %v456, 0.0625
        %v535 = vmul.f32 %v459, 0.0625
        %v536 = vmul.f32 %v462, 0.0625
        %v537 = vmul.f32 %v465, 0.0625
        %v538 = vmul.f32 %v468, 0.0625
        %v539 = vmul.f32 %v471, 0.0625
        %v540 = vmul.f32 %v474, 0.0625
        %v541 = vmul.f32 %v477, 0.0625
        %v542 = vmul.f32 %v480, 0.0625
        %v543 = vmul.f32 %v483, 0.0625
        %v544 = vmul.f32 %v486, 0.0625
        %v545 = vmul.f32 %v489, 0.0625
        %v546 = vmul.f32 %v492, 0.0625
        %v547 = vmul.f32 %v495, 0.0625
        %v548 = vmul.f32 %v498, 0.0625
        %v549 = vmul.f32 %v501, 0.0625
        %v550 = vmul.f32 %v504, 0.0625
        %v551 = vmul.f32 %v507, 0.0625
        %v552 = vmul.f32 %v510, 0.0625
        %v553 = vmul.f32 %v513, 0.0625
        %v554 = vmul.f32 %v516, 0.0625
        %v555 = vmul.f32 %v519, 0.0625
        %v556 = vmul.f32 %v522, 0.0625
        %v557 = vmul.f32 %v525, 0.0625
        %v558 = vpack.c.bf16 %v366, %v365
        %v559 = vpack.c.bf16 %v368, %v367
        %v560 = vpack.c.bf16 %v370, %v369
        %v561 = vpack.c.bf16 %v372, %v371
        %v562 = vpack.c.bf16 %v374, %v373
        %v563 = vpack.c.bf16 %v376, %v375
        %v564 = vpack.c.bf16 %v378, %v377
        %v565 = vpack.c.bf16 %v380, %v379
        %v566 = vpack.c.bf16 %v382, %v381
        %v567 = vpack.c.bf16 %v384, %v383
        %v568 = vpack.c.bf16 %v386, %v385
        %v569 = vpack.c.bf16 %v388, %v387
        %v570 = vpack.c.bf16 %v390, %v389
        %v571 = vpack.c.bf16 %v392, %v391
        %v572 = vpack.c.bf16 %v394, %v393
        %v573 = vpack.c.bf16 %v396, %v395
        %v574 = vld [vmem:[%s1] sm:$0xf]
        %v575 = vld [vmem:[%s1 + $0x4] sm:$0xf]
        %v578 = vunpack.c.l.b16 %v574
        %v579 = vunpack.c.l.b16 %v575
        %v580 = vpack.c.b16 %v579, %v578
        %v583 = vsel %vm429, %v558, 0
        %v586 = vsel %vm429, %v559, 0
        %v589 = vsel %vm429, %v560, 0
        %v592 = vsel %vm429, %v561, 0
        %v595 = vsel %vm429, %v562, 0
        %v598 = vsel %vm429, %v563, 0
        %v601 = vsel %vm429, %v564, 0
        %v604 = vsel %vm429, %v565, 0
        %v607 = vsel %vm429, %v566, 0
        %v610 = vsel %vm429, %v567, 0
        %v613 = vsel %vm429, %v568, 0
        %v616 = vsel %vm429, %v569, 0
        %v619 = vsel %vm429, %v570, 0
        %v622 = vsel %vm429, %v571, 0
        %v625 = vsel %vm429, %v572, 0
        %v628 = vsel %vm429, %v573, 0
        %630 = vmatpush.bf16.msra.mxu0 0
        %631 = vmatpush.bf16.msra.mxu0 0
        %632 = vmatpush.bf16.msra.mxu0 0
        %633 = vmatpush.bf16.msra.mxu0 0
        %634 = vmatpush.bf16.msra.mxu0 0
        %635 = vmatpush.bf16.msra.mxu0 0
        %636 = vmatpush.bf16.msra.mxu0 0
        %637 = vmatpush.bf16.msra.mxu0 %v580
        %638 = vmatmul.bf16.gmra.mxu0 %v583
        %v639 = vpop.f32.mrf.mxu0
        %v640 = vadd.f32 0.0, %v639
        %v641 = vpop.f32.mrf.mxu0
        %v642 = vadd.f32 0.0, %v641
        %643 = vmatmul.bf16.gmra.mxu0 %v586
        %v644 = vpop.f32.mrf.mxu0
        %v645 = vadd.f32 0.0, %v644
        %v646 = vpop.f32.mrf.mxu0
        %v647 = vadd.f32 0.0, %v646
        %648 = vmatmul.bf16.gmra.mxu0 %v589
        %v649 = vpop.f32.mrf.mxu0
        %v650 = vadd.f32 0.0, %v649
        %v651 = vpop.f32.mrf.mxu0
        %v652 = vadd.f32 0.0, %v651
        %653 = vmatmul.bf16.gmra.mxu0 %v592
        %v654 = vpop.f32.mrf.mxu0
        %v655 = vadd.f32 0.0, %v654
        %v656 = vpop.f32.mrf.mxu0
        %v657 = vadd.f32 0.0, %v656
        %658 = vmatmul.bf16.gmra.mxu0 %v595
        %v659 = vpop.f32.mrf.mxu0
        %v660 = vadd.f32 0.0, %v659
        %v661 = vpop.f32.mrf.mxu0
        %v662 = vadd.f32 0.0, %v661
        %663 = vmatmul.bf16.gmra.mxu0 %v598
        %v664 = vpop.f32.mrf.mxu0
        %v665 = vadd.f32 0.0, %v664
        %v666 = vpop.f32.mrf.mxu0
        %v667 = vadd.f32 0.0, %v666
        %668 = vmatmul.bf16.gmra.mxu0 %v601
        %v669 = vpop.f32.mrf.mxu0
        %v670 = vadd.f32 0.0, %v669
        %v671 = vpop.f32.mrf.mxu0
        %v672 = vadd.f32 0.0, %v671
        %673 = vmatmul.bf16.gmra.mxu0 %v604
        %v674 = vpop.f32.mrf.mxu0
        %v675 = vadd.f32 0.0, %v674
        %v676 = vpop.f32.mrf.mxu0
        %v677 = vadd.f32 0.0, %v676
        %678 = vmatmul.bf16.gmra.mxu0 %v607
        %v679 = vpop.f32.mrf.mxu0
        %v680 = vadd.f32 0.0, %v679
        %v681 = vpop.f32.mrf.mxu0
        %v682 = vadd.f32 0.0, %v681
        %683 = vmatmul.bf16.gmra.mxu0 %v610
        %v684 = vpop.f32.mrf.mxu0
        %v685 = vadd.f32 0.0, %v684
        %v686 = vpop.f32.mrf.mxu0
        %v687 = vadd.f32 0.0, %v686
        %688 = vmatmul.bf16.gmra.mxu0 %v613
        %v689 = vpop.f32.mrf.mxu0
        %v690 = vadd.f32 0.0, %v689
        %v691 = vpop.f32.mrf.mxu0
        %v692 = vadd.f32 0.0, %v691
        %693 = vmatmul.bf16.gmra.mxu0 %v616
        %v694 = vpop.f32.mrf.mxu0
        %v695 = vadd.f32 0.0, %v694
        %v696 = vpop.f32.mrf.mxu0
        %v697 = vadd.f32 0.0, %v696
        %698 = vmatmul.bf16.gmra.mxu0 %v619
        %v699 = vpop.f32.mrf.mxu0
        %v700 = vadd.f32 0.0, %v699
        %v701 = vpop.f32.mrf.mxu0
        %v702 = vadd.f32 0.0, %v701
        %703 = vmatmul.bf16.gmra.mxu0 %v622
        %v704 = vpop.f32.mrf.mxu0
        %v705 = vadd.f32 0.0, %v704
        %v706 = vpop.f32.mrf.mxu0
        %v707 = vadd.f32 0.0, %v706
        %708 = vmatmul.bf16.gmra.mxu0 %v625
        %v709 = vpop.f32.mrf.mxu0
        %v710 = vadd.f32 0.0, %v709
        %v711 = vpop.f32.mrf.mxu0
        %v712 = vadd.f32 0.0, %v711
        %713 = vmatmul.bf16.gmra.mxu0 %v628
        %v714 = vpop.f32.mrf.mxu0
        %v715 = vadd.f32 0.0, %v714
        %v716 = vpop.f32.mrf.mxu0
        %v717 = vadd.f32 0.0, %v716
        %718 = vdwg.mxu0
        %v719 = vmul.f32 %v640, %v526
        %v720 = vmul.f32 %v642, %v527
        %v721 = vmul.f32 %v645, %v528
        %v722 = vmul.f32 %v647, %v529
        %v723 = vmul.f32 %v650, %v530
        %v724 = vmul.f32 %v652, %v531
        %v725 = vmul.f32 %v655, %v532
        %v726 = vmul.f32 %v657, %v533
        %v727 = vmul.f32 %v660, %v534
        %v728 = vmul.f32 %v662, %v535
        %v729 = vmul.f32 %v665, %v536
        %v730 = vmul.f32 %v667, %v537
        %v731 = vmul.f32 %v670, %v538
        %v732 = vmul.f32 %v672, %v539
        %v733 = vmul.f32 %v675, %v540
        %v734 = vmul.f32 %v677, %v541
        %v735 = vmul.f32 %v680, %v542
        %v736 = vmul.f32 %v682, %v543
        %v737 = vmul.f32 %v685, %v544
        %v738 = vmul.f32 %v687, %v545
        %v739 = vmul.f32 %v690, %v546
        %v740 = vmul.f32 %v692, %v547
        %v741 = vmul.f32 %v695, %v548
        %v742 = vmul.f32 %v697, %v549
        %v743 = vmul.f32 %v700, %v550
        %v744 = vmul.f32 %v702, %v551
        %v745 = vmul.f32 %v705, %v552
        %v746 = vmul.f32 %v707, %v553
        %v747 = vmul.f32 %v710, %v554
        %v748 = vmul.f32 %v712, %v555
        %v749 = vmul.f32 %v715, %v556
        %v750 = vmul.f32 %v717, %v557
        %v751 = vpack.c.bf16 %v719, %v719
        %v752 = vpack.c.bf16 %v720, %v720
        %v753 = vpack.c.bf16 %v721, %v721
        %v754 = vpack.c.bf16 %v722, %v722
        %v755 = vpack.c.bf16 %v723, %v723
        %v756 = vpack.c.bf16 %v724, %v724
        %v757 = vpack.c.bf16 %v725, %v725
        %v758 = vpack.c.bf16 %v726, %v726
        %v759 = vpack.c.bf16 %v727, %v727
        %v760 = vpack.c.bf16 %v728, %v728
        %v761 = vpack.c.bf16 %v729, %v729
        %v762 = vpack.c.bf16 %v730, %v730
        %v763 = vpack.c.bf16 %v731, %v731
        %v764 = vpack.c.bf16 %v732, %v732
        %v765 = vpack.c.bf16 %v733, %v733
        %v766 = vpack.c.bf16 %v734, %v734
        %v767 = vpack.c.bf16 %v735, %v735
        %v768 = vpack.c.bf16 %v736, %v736
        %v769 = vpack.c.bf16 %v737, %v737
        %v770 = vpack.c.bf16 %v738, %v738
        %v771 = vpack.c.bf16 %v739, %v739
        %v772 = vpack.c.bf16 %v740, %v740
        %v773 = vpack.c.bf16 %v741, %v741
        %v774 = vpack.c.bf16 %v742, %v742
        %v775 = vpack.c.bf16 %v743, %v743
        %v776 = vpack.c.bf16 %v744, %v744
        %v777 = vpack.c.bf16 %v745, %v745
        %v778 = vpack.c.bf16 %v746, %v746
        %v779 = vpack.c.bf16 %v747, %v747
        %v780 = vpack.c.bf16 %v748, %v748
        %v781 = vpack.c.bf16 %v749, %v749
        %v782 = vpack.c.bf16 %v750, %v750
        %783 = vst [vmem:[%s200] sm:$0xf] %v751
        %784 = vst [vmem:[%s200 + $0x4] sm:$0xf] %v752
        %785 = vst [vmem:[%s200 + $0x8] sm:$0xf] %v753
        %786 = vst [vmem:[%s200 + $0xc] sm:$0xf] %v754
        %787 = vst [vmem:[%s200 + $0x10] sm:$0xf] %v755
        %788 = vst [vmem:[%s200 + $0x14] sm:$0xf] %v756
        %789 = vst [vmem:[%s200 + $0x18] sm:$0xf] %v757
        %790 = vst [vmem:[%s200 + $0x1c] sm:$0xf] %v758
        %791 = vst [vmem:[%s200 + $0x20] sm:$0xf] %v759
        %792 = vst [vmem:[%s200 + $0x24] sm:$0xf] %v760
        %793 = vst [vmem:[%s200 + $0x28] sm:$0xf] %v761
        %794 = vst [vmem:[%s200 + $0x2c] sm:$0xf] %v762
        %795 = vst [vmem:[%s200 + $0x30] sm:$0xf] %v763
        %796 = vst [vmem:[%s200 + $0x34] sm:$0xf] %v764
        %797 = vst [vmem:[%s200 + $0x38] sm:$0xf] %v765
        %798 = vst [vmem:[%s200 + $0x3c] sm:$0xf] %v766
        %799 = vst [vmem:[%s200 + $0x40] sm:$0xf] %v767
        %800 = vst [vmem:[%s200 + $0x44] sm:$0xf] %v768
        %801 = vst [vmem:[%s200 + $0x48] sm:$0xf] %v769
        %802 = vst [vmem:[%s200 + $0x4c] sm:$0xf] %v770
        %803 = vst [vmem:[%s200 + $0x50] sm:$0xf] %v771
        %804 = vst [vmem:[%s200 + $0x54] sm:$0xf] %v772
        %805 = vst [vmem:[%s200 + $0x58] sm:$0xf] %v773
        %806 = vst [vmem:[%s200 + $0x5c] sm:$0xf] %v774
        %807 = vst [vmem:[%s200 + $0x60] sm:$0xf] %v775
        %808 = vst [vmem:[%s200 + $0x64] sm:$0xf] %v776
        %809 = vst [vmem:[%s200 + $0x68] sm:$0xf] %v777
        %810 = vst [vmem:[%s200 + $0x6c] sm:$0xf] %v778
        %811 = vst [vmem:[%s200 + $0x70] sm:$0xf] %v779
        %812 = vst [vmem:[%s200 + $0x74] sm:$0xf] %v780
        %813 = vst [vmem:[%s200 + $0x78] sm:$0xf] %v781
        %814 = vst [vmem:[%s200 + $0x7c] sm:$0xf] %v782
        %s815 = smul.u32 %s16, 256
        %s816 = ssub.s32 392, %s815
        %v817 = vlaneseq
        %v818 = vshrl.u32 %v817, 7
        %v819 = vadd.s32 %v818, 8
        %v820 = vadd.s32 %v818, 16
        %v821 = vadd.s32 %v818, 24
        %v822 = vadd.s32 %v818, 32
        %v823 = vadd.s32 %v818, 40
        %v824 = vadd.s32 %v818, 48
        %v825 = vadd.s32 %v818, 56
        %v826 = vadd.s32 %v818, 64
        %v827 = vadd.s32 %v818, 72
        %v828 = vadd.s32 %v818, 80
        %v829 = vadd.s32 %v818, 88
        %v830 = vadd.s32 %v818, 96
        %v831 = vadd.s32 %v818, 104
        %v832 = vadd.s32 %v818, 112
        %v833 = vadd.s32 %v818, 120
        %v834 = vadd.s32 %v818, 128
        %v835 = vadd.s32 %v818, 136
        %v836 = vadd.s32 %v818, 144
        %v837 = vadd.s32 %v818, 152
        %v838 = vadd.s32 %v818, 160
        %v839 = vadd.s32 %v818, 168
        %v840 = vadd.s32 %v818, 176
        %v841 = vadd.s32 %v818, 184
        %v842 = vadd.s32 %v818, 192
        %v843 = vadd.s32 %v818, 200
        %v844 = vadd.s32 %v818, 208
        %v845 = vadd.s32 %v818, 216
        %v846 = vadd.s32 %v818, 224
        %v847 = vadd.s32 %v818, 232
        %v848 = vadd.s32 %v818, 240
        %v849 = vadd.s32 %v818, 248
        %v850 = vstv %s816
        %vm851 = vcmp.lt.s32.totalorder %v818, %v850
        %vm852 = vcmp.lt.s32.totalorder %v819, %v850
        %vm853 = vcmp.lt.s32.totalorder %v820, %v850
        %vm854 = vcmp.lt.s32.totalorder %v821, %v850
        %vm855 = vcmp.lt.s32.totalorder %v822, %v850
        %vm856 = vcmp.lt.s32.totalorder %v823, %v850
        %vm857 = vcmp.lt.s32.totalorder %v824, %v850
        %vm858 = vcmp.lt.s32.totalorder %v825, %v850
        %vm859 = vcmp.lt.s32.totalorder %v826, %v850
        %vm860 = vcmp.lt.s32.totalorder %v827, %v850
        %vm861 = vcmp.lt.s32.totalorder %v828, %v850
        %vm862 = vcmp.lt.s32.totalorder %v829, %v850
        %vm863 = vcmp.lt.s32.totalorder %v830, %v850
        %vm864 = vcmp.lt.s32.totalorder %v831, %v850
        %vm865 = vcmp.lt.s32.totalorder %v832, %v850
        %vm866 = vcmp.lt.s32.totalorder %v833, %v850
        %vm867 = vcmp.lt.s32.totalorder %v834, %v850
        %vm868 = vcmp.lt.s32.totalorder %v835, %v850
        %vm869 = vcmp.lt.s32.totalorder %v836, %v850
        %vm870 = vcmp.lt.s32.totalorder %v837, %v850
        %vm871 = vcmp.lt.s32.totalorder %v838, %v850
        %vm872 = vcmp.lt.s32.totalorder %v839, %v850
        %vm873 = vcmp.lt.s32.totalorder %v840, %v850
        %vm874 = vcmp.lt.s32.totalorder %v841, %v850
        %vm875 = vcmp.lt.s32.totalorder %v842, %v850
        %vm876 = vcmp.lt.s32.totalorder %v843, %v850
        %vm877 = vcmp.lt.s32.totalorder %v844, %v850
        %vm878 = vcmp.lt.s32.totalorder %v845, %v850
        %vm879 = vcmp.lt.s32.totalorder %v846, %v850
        %vm880 = vcmp.lt.s32.totalorder %v847, %v850
        %vm881 = vcmp.lt.s32.totalorder %v848, %v850
        %vm882 = vcmp.lt.s32.totalorder %v849, %v850
        %v883 = vsel %vm851, %v719, 0.0
        %v884 = vsel %vm852, %v720, 0.0
        %v885 = vsel %vm853, %v721, 0.0
        %v886 = vsel %vm854, %v722, 0.0
        %v887 = vsel %vm855, %v723, 0.0
        %v888 = vsel %vm856, %v724, 0.0
        %v889 = vsel %vm857, %v725, 0.0
        %v890 = vsel %vm858, %v726, 0.0
        %v891 = vsel %vm859, %v727, 0.0
        %v892 = vsel %vm860, %v728, 0.0
        %v893 = vsel %vm861, %v729, 0.0
        %v894 = vsel %vm862, %v730, 0.0
        %v895 = vsel %vm863, %v731, 0.0
        %v896 = vsel %vm864, %v732, 0.0
        %v897 = vsel %vm865, %v733, 0.0
        %v898 = vsel %vm866, %v734, 0.0
        %v899 = vsel %vm867, %v735, 0.0
        %v900 = vsel %vm868, %v736, 0.0
        %v901 = vsel %vm869, %v737, 0.0
        %v902 = vsel %vm870, %v738, 0.0
        %v903 = vsel %vm871, %v739, 0.0
        %v904 = vsel %vm872, %v740, 0.0
        %v905 = vsel %vm873, %v741, 0.0
        %v906 = vsel %vm874, %v742, 0.0
        %v907 = vsel %vm875, %v743, 0.0
        %v908 = vsel %vm876, %v744, 0.0
        %v909 = vsel %vm877, %v745, 0.0
        %v910 = vsel %vm878, %v746, 0.0
        %v911 = vsel %vm879, %v747, 0.0
        %v912 = vsel %vm880, %v748, 0.0
        %v913 = vsel %vm881, %v749, 0.0
        %v914 = vsel %vm882, %v750, 0.0
        %v915 = vadd.f32 %v883, %v884
        %v916 = vadd.f32 %v915, %v885
        %v917 = vadd.f32 %v916, %v886
        %v918 = vadd.f32 %v917, %v887
        %v919 = vadd.f32 %v918, %v888
        %v920 = vadd.f32 %v919, %v889
        %v921 = vadd.f32 %v920, %v890
        %v922 = vadd.f32 %v921, %v891
        %v923 = vadd.f32 %v922, %v892
        %v924 = vadd.f32 %v923, %v893
        %v925 = vadd.f32 %v924, %v894
        %v926 = vadd.f32 %v925, %v895
        %v927 = vadd.f32 %v926, %v896
        %v928 = vadd.f32 %v927, %v897
        %v929 = vadd.f32 %v928, %v898
        %v930 = vadd.f32 %v929, %v899
        %v931 = vadd.f32 %v930, %v900
        %v932 = vadd.f32 %v931, %v901
        %v933 = vadd.f32 %v932, %v902
        %v934 = vadd.f32 %v933, %v903
        %v935 = vadd.f32 %v934, %v904
        %v936 = vadd.f32 %v935, %v905
        %v937 = vadd.f32 %v936, %v906
        %v938 = vadd.f32 %v937, %v907
        %v939 = vadd.f32 %v938, %v908
        %v940 = vadd.f32 %v939, %v909
        %v941 = vadd.f32 %v940, %v910
        %v942 = vadd.f32 %v941, %v911
        %v943 = vadd.f32 %v942, %v912
        %v944 = vadd.f32 %v943, %v913
        %v945 = vadd.f32 %v944, %v914
        %v946 = vrot.slane %v945, 4
        %v947 = vadd.f32 %v945, %v946
        %v948 = vrot.slane %v947, 2
        %v949 = vadd.f32 %v947, %v948
        %v950 = vrot.slane %v949, 1
        %v951 = vadd.f32 %v949, %v950
        %952 = vst [vmem:[%s232] sm:$0x1] %v951
        %v953 = vmul.f32 %v883, %v883
        %v954 = vmul.f32 %v884, %v884
        %v955 = vmul.f32 %v885, %v885
        %v956 = vmul.f32 %v886, %v886
        %v957 = vmul.f32 %v887, %v887
        %v958 = vmul.f32 %v888, %v888
        %v959 = vmul.f32 %v889, %v889
        %v960 = vmul.f32 %v890, %v890
        %v961 = vmul.f32 %v891, %v891
        %v962 = vmul.f32 %v892, %v892
        %v963 = vmul.f32 %v893, %v893
        %v964 = vmul.f32 %v894, %v894
        %v965 = vmul.f32 %v895, %v895
        %v966 = vmul.f32 %v896, %v896
        %v967 = vmul.f32 %v897, %v897
        %v968 = vmul.f32 %v898, %v898
        %v969 = vmul.f32 %v899, %v899
        %v970 = vmul.f32 %v900, %v900
        %v971 = vmul.f32 %v901, %v901
        %v972 = vmul.f32 %v902, %v902
        %v973 = vmul.f32 %v903, %v903
        %v974 = vmul.f32 %v904, %v904
        %v975 = vmul.f32 %v905, %v905
        %v976 = vmul.f32 %v906, %v906
        %v977 = vmul.f32 %v907, %v907
        %v978 = vmul.f32 %v908, %v908
        %v979 = vmul.f32 %v909, %v909
        %v980 = vmul.f32 %v910, %v910
        %v981 = vmul.f32 %v911, %v911
        %v982 = vmul.f32 %v912, %v912
        %v983 = vmul.f32 %v913, %v913
        %v984 = vmul.f32 %v914, %v914
        %v985 = vadd.f32 %v953, %v954
        %v986 = vadd.f32 %v985, %v955
        %v987 = vadd.f32 %v986, %v956
        %v988 = vadd.f32 %v987, %v957
        %v989 = vadd.f32 %v988, %v958
        %v990 = vadd.f32 %v989, %v959
        %v991 = vadd.f32 %v990, %v960
        %v992 = vadd.f32 %v991, %v961
        %v993 = vadd.f32 %v992, %v962
        %v994 = vadd.f32 %v993, %v963
        %v995 = vadd.f32 %v994, %v964
        %v996 = vadd.f32 %v995, %v965
        %v997 = vadd.f32 %v996, %v966
        %v998 = vadd.f32 %v997, %v967
        %v999 = vadd.f32 %v998, %v968
        %v1000 = vadd.f32 %v999, %v969
        %v1001 = vadd.f32 %v1000, %v970
        %v1002 = vadd.f32 %v1001, %v971
        %v1003 = vadd.f32 %v1002, %v972
        %v1004 = vadd.f32 %v1003, %v973
        %v1005 = vadd.f32 %v1004, %v974
        %v1006 = vadd.f32 %v1005, %v975
        %v1007 = vadd.f32 %v1006, %v976
        %v1008 = vadd.f32 %v1007, %v977
        %v1009 = vadd.f32 %v1008, %v978
        %v1010 = vadd.f32 %v1009, %v979
        %v1011 = vadd.f32 %v1010, %v980
        %v1012 = vadd.f32 %v1011, %v981
        %v1013 = vadd.f32 %v1012, %v982
        %v1014 = vadd.f32 %v1013, %v983
        %v1015 = vadd.f32 %v1014, %v984
        %v1016 = vrot.slane %v1015, 4
        %v1017 = vadd.f32 %v1015, %v1016
        %v1018 = vrot.slane %v1017, 2
        %v1019 = vadd.f32 %v1017, %v1018
        %v1020 = vrot.slane %v1019, 1
        %v1021 = vadd.f32 %v1019, %v1020
        %1022 = vst [vmem:[%s235] sm:$0x1] %v1021
        %s1023 = sand.u32 %s71, 1
        %s1024 = sand.u32 %s71, 1
        %s1025 = smul.addr %s1024, 128
        %s1026 = scalar_lea.vmem [#allocation2], %s1025
        %p1027 = scmp.lt.s32.totalorder %s16, 1
        %s1028 = scalar_select %p1027, %s16, 1
        %s1029 = scalar_lea.vmem %s3, %s1028
        %p1030 = scmp.lt.s32.totalorder %s16, 1
        %s1031 = scalar_select %p1030, %s16, 1
        %s1032 = scalar_lea.vmem %s4, %s1031
        // Predicated region
        $region29: #{bottleneck_forward.3} parent=27 // pred_check
          %p1033 = pneg %p81
        $region30: #{bottleneck_forward.3} parent=27 // pred_check_branch
          %1035 = sbr.rel (%p1033) target = $region32
        $region31: #{bottleneck_forward.3} parent=27 // pred_region
          %s1036 = smul.u32 32, %s16
          %s1037 = ssub.s32 49, %s1036
          %p1038 = scmp.lt.s32.totalorder %s1037, 32
          %s1039 = scalar_select %p1038, %s1037, 32
          %s1040 = smul.u32 4, %s1039
          %p1041 = scmp.ne.s32.totalorder 0, %s1040
          %s1042 = smul.addr %s1036, 4
          %s1043 = scalar_lea.vmem %s2, %s1042
          // Predicated region
          $region33: #{bottleneck_forward.3} parent=31 // pred_check
            %p1044 = pneg %p1041
          $region34: #{bottleneck_forward.3} parent=31 // pred_check_branch
            %1046 = sbr.rel (%p1044) target = $region36
          $region35: #{bottleneck_forward.3} parent=31 // pred_region
            // Predicated region
            $region37: #{bottleneck_forward.3} parent=35 // pred_check
              _
            $region38: #{bottleneck_forward.3} parent=35 // pred_check_branch
              %1048 = sbr.rel target = $region40
            $region39: #{bottleneck_forward.3} parent=35 // pred_region
              // Predicated region
              $region59: #{bottleneck_forward.3} parent=39 // pred_check
                _
              $region60: #{bottleneck_forward.3} parent=39 // pred_check_branch
                %1160 = sbr.rel (0) target = $region62
              $region61: #{bottleneck_forward.3} parent=39 // pred_region
                %s1162 = ssub.s32 16, 1
                %s1163 = sshrl.u32 %s1039, 5
                // While loop
                $region63: #{bottleneck_forward.3} parent=61 // loop_pre_header
                  _
                $region64: #{bottleneck_forward.3} parent=61 // loop_header
                  %s1165 = sphi 0, %s1167
                  %p1166 = scmp.ge.s32.totalorder %s1165, %s1163
                  %s1170 = sphi 0, %s1239
                  %s1171 = sphi %s1026, %s1242
                  %s1172 = sphi %s1043, %s1243
                $region65: #{bottleneck_forward.3} parent=61 // loop_header_branch
                  %1169 = sbr.rel (%p1166) target = $region69
                $region66: #{bottleneck_forward.3} parent=61 // loop_body
                  %v1173 = vld [vmem:[%s1171] sm:%s1162]
                  %1174 = vst [vmem:[%s1172] sm:%s1162] %v1173
                  %v1175 = vld [vmem:[%s1171 + $0x4] sm:%s1162]
                  %1176 = vst [vmem:[%s1172 + $0x4] sm:%s1162] %v1175
                  %v1177 = vld [vmem:[%s1171 + $0x8] sm:%s1162]
                  %1178 = vst [vmem:[%s1172 + $0x8] sm:%s1162] %v1177
                  %v1179 = vld [vmem:[%s1171 + $0xc] sm:%s1162]
                  %1180 = vst [vmem:[%s1172 + $0xc] sm:%s1162] %v1179
                  %v1181 = vld [vmem:[%s1171 + $0x10] sm:%s1162]
                  %1182 = vst [vmem:[%s1172 + $0x10] sm:%s1162] %v1181
                  %v1183 = vld [vmem:[%s1171 + $0x14] sm:%s1162]
                  %1184 = vst [vmem:[%s1172 + $0x14] sm:%s1162] %v1183
                  %v1185 = vld [vmem:[%s1171 + $0x18] sm:%s1162]
                  %1186 = vst [vmem:[%s1172 + $0x18] sm:%s1162] %v1185
                  %v1187 = vld [vmem:[%s1171 + $0x1c] sm:%s1162]
                  %1188 = vst [vmem:[%s1172 + $0x1c] sm:%s1162] %v1187
                  %v1189 = vld [vmem:[%s1171 + $0x20] sm:%s1162]
                  %1190 = vst [vmem:[%s1172 + $0x20] sm:%s1162] %v1189
                  %v1191 = vld [vmem:[%s1171 + $0x24] sm:%s1162]
                  %1192 = vst [vmem:[%s1172 + $0x24] sm:%s1162] %v1191
                  %v1193 = vld [vmem:[%s1171 + $0x28] sm:%s1162]
                  %1194 = vst [vmem:[%s1172 + $0x28] sm:%s1162] %v1193
                  %v1195 = vld [vmem:[%s1171 + $0x2c] sm:%s1162]
                  %1196 = vst [vmem:[%s1172 + $0x2c] sm:%s1162] %v1195
                  %v1197 = vld [vmem:[%s1171 + $0x30] sm:%s1162]
                  %1198 = vst [vmem:[%s1172 + $0x30] sm:%s1162] %v1197
                  %v1199 = vld [vmem:[%s1171 + $0x34] sm:%s1162]
                  %1200 = vst [vmem:[%s1172 + $0x34] sm:%s1162] %v1199
                  %v1201 = vld [vmem:[%s1171 + $0x38] sm:%s1162]
                  %1202 = vst [vmem:[%s1172 + $0x38] sm:%s1162] %v1201
                  %v1203 = vld [vmem:[%s1171 + $0x3c] sm:%s1162]
                  %1204 = vst [vmem:[%s1172 + $0x3c] sm:%s1162] %v1203
                  %v1205 = vld [vmem:[%s1171 + $0x40] sm:%s1162]
                  %1206 = vst [vmem:[%s1172 + $0x40] sm:%s1162] %v1205
                  %v1207 = vld [vmem:[%s1171 + $0x44] sm:%s1162]
                  %1208 = vst [vmem:[%s1172 + $0x44] sm:%s1162] %v1207
                  %v1209 = vld [vmem:[%s1171 + $0x48] sm:%s1162]
                  %1210 = vst [vmem:[%s1172 + $0x48] sm:%s1162] %v1209
                  %v1211 = vld [vmem:[%s1171 + $0x4c] sm:%s1162]
                  %1212 = vst [vmem:[%s1172 + $0x4c] sm:%s1162] %v1211
                  %v1213 = vld [vmem:[%s1171 + $0x50] sm:%s1162]
                  %1214 = vst [vmem:[%s1172 + $0x50] sm:%s1162] %v1213
                  %v1215 = vld [vmem:[%s1171 + $0x54] sm:%s1162]
                  %1216 = vst [vmem:[%s1172 + $0x54] sm:%s1162] %v1215
                  %v1217 = vld [vmem:[%s1171 + $0x58] sm:%s1162]
                  %1218 = vst [vmem:[%s1172 + $0x58] sm:%s1162] %v1217
                  %v1219 = vld [vmem:[%s1171 + $0x5c] sm:%s1162]
                  %1220 = vst [vmem:[%s1172 + $0x5c] sm:%s1162] %v1219
                  %v1221 = vld [vmem:[%s1171 + $0x60] sm:%s1162]
                  %1222 = vst [vmem:[%s1172 + $0x60] sm:%s1162] %v1221
                  %v1223 = vld [vmem:[%s1171 + $0x64] sm:%s1162]
                  %1224 = vst [vmem:[%s1172 + $0x64] sm:%s1162] %v1223
                  %v1225 = vld [vmem:[%s1171 + $0x68] sm:%s1162]
                  %1226 = vst [vmem:[%s1172 + $0x68] sm:%s1162] %v1225
                  %v1227 = vld [vmem:[%s1171 + $0x6c] sm:%s1162]
                  %1228 = vst [vmem:[%s1172 + $0x6c] sm:%s1162] %v1227
                  %v1229 = vld [vmem:[%s1171 + $0x70] sm:%s1162]
                  %1230 = vst [vmem:[%s1172 + $0x70] sm:%s1162] %v1229
                  %v1231 = vld [vmem:[%s1171 + $0x74] sm:%s1162]
                  %1232 = vst [vmem:[%s1172 + $0x74] sm:%s1162] %v1231
                  %v1233 = vld [vmem:[%s1171 + $0x78] sm:%s1162]
                  %1234 = vst [vmem:[%s1172 + $0x78] sm:%s1162] %v1233
                  %v1235 = vld [vmem:[%s1171 + $0x7c] sm:%s1162]
                  %1236 = vst [vmem:[%s1172 + $0x7c] sm:%s1162] %v1235
                  %s1237 = sadd.s32 1, %s1170
                  %p1238 = scmp.ge.s32.totalorder %s1237, %s1163
                  %s1239 = scalar_select %p1238, 0, %s1237
                  %s1240 = smul.u32 %s1239, 128
                  %s1241 = smul.u32 %s1239, 128
                  %s1242 = scalar_lea.vmem %s1026, %s1240 [#allocation2]
                  %s1243 = scalar_lea.vmem %s1043, %s1241
                $region67: #{bottleneck_forward.3} parent=61 // loop_footer
                  %s1167 = sadd.s32 %s1165, 1
                $region68: #{bottleneck_forward.3} parent=61 // loop_footer_branch
                  %1164 = sbr.rel target = $region64
                $region69: #{bottleneck_forward.3} parent=61 // loop_exit
                  _
                %s1244 = sshrl.u32 %s1039, 5
                %s1245 = sand.u32 %s1039, 31
                %s1246 = smul.u32 %s1244, 32
                %s1247 = smul.u32 4, %s1246
                %s1248 = scalar_lea.vmem %s1026, %s1247 [#allocation2]
                %s1249 = smul.u32 4, %s1246
                %s1250 = scalar_lea.vmem %s1043, %s1249
                // While loop
                $region70: #{bottleneck_forward.3} parent=61 // loop_pre_header
                  _
                $region71: #{bottleneck_forward.3} parent=61 // loop_header
                  %s1252 = sphi 0, %s1254
                  %p1253 = scmp.ge.s32.totalorder %s1252, %s1245
                  %s1257 = sphi 0, %s1264
                  %s1258 = sphi %s1248, %s1267
                  %s1259 = sphi %s1250, %s1268
                $region72: #{bottleneck_forward.3} parent=61 // loop_header_branch
                  %1256 = sbr.rel (%p1253) target = $region76
                $region73: #{bottleneck_forward.3} parent=61 // loop_body
                  %v1260 = vld [vmem:[%s1258] sm:%s1162]
                  %1261 = vst [vmem:[%s1259] sm:%s1162] %v1260
                  %s1262 = sadd.s32 1, %s1257
                  %p1263 = scmp.ge.s32.totalorder %s1262, %s1245
                  %s1264 = scalar_select %p1263, 0, %s1262
                  %s1265 = smul.u32 %s1264, 4
                  %s1266 = smul.u32 %s1264, 4
                  %s1267 = scalar_lea.vmem %s1248, %s1265 [#allocation2]
                  %s1268 = scalar_lea.vmem %s1250, %s1266
                $region74: #{bottleneck_forward.3} parent=61 // loop_footer
                  %s1254 = sadd.s32 %s1252, 1
                $region75: #{bottleneck_forward.3} parent=61 // loop_footer_branch
                  %1251 = sbr.rel target = $region71
                $region76: #{bottleneck_forward.3} parent=61 // loop_exit
                  _
              $region62: #{bottleneck_forward.3} parent=39 // pred_fallthru
                _
            $region40: #{bottleneck_forward.3} parent=35 // pred_fallthru
              _
            // Predicated region
            $region41: #{bottleneck_forward.3} parent=35 // pred_check
              _
            $region42: #{bottleneck_forward.3} parent=35 // pred_check_branch
              %1050 = sbr.rel (0) target = $region44
            $region43: #{bottleneck_forward.3} parent=35 // pred_region
              %s1052 = ssub.s32 16, 1
              %s1053 = sshrl.u32 %s1039, 5
              // While loop
              $region45: #{bottleneck_forward.3} parent=43 // loop_pre_header
                _
              $region46: #{bottleneck_forward.3} parent=43 // loop_header
                %s1055 = sphi 0, %s1057
                %p1056 = scmp.ge.s32.totalorder %s1055, %s1053
                %s1060 = sphi 0, %s1129
                %s1061 = sphi %s1026, %s1132
                %s1062 = sphi %s1043, %s1133
              $region47: #{bottleneck_forward.3} parent=43 // loop_header_branch
                %1059 = sbr.rel (%p1056) target = $region51
              $region48: #{bottleneck_forward.3} parent=43 // loop_body
                %v1063 = vld [vmem:[%s1061] sm:%s1052]
                %1064 = vst [vmem:[%s1062] sm:%s1052] %v1063
                %v1065 = vld [vmem:[%s1061 + $0x4] sm:%s1052]
                %1066 = vst [vmem:[%s1062 + $0x4] sm:%s1052] %v1065
                %v1067 = vld [vmem:[%s1061 + $0x8] sm:%s1052]
                %1068 = vst [vmem:[%s1062 + $0x8] sm:%s1052] %v1067
                %v1069 = vld [vmem:[%s1061 + $0xc] sm:%s1052]
                %1070 = vst [vmem:[%s1062 + $0xc] sm:%s1052] %v1069
                %v1071 = vld [vmem:[%s1061 + $0x10] sm:%s1052]
                %1072 = vst [vmem:[%s1062 + $0x10] sm:%s1052] %v1071
                %v1073 = vld [vmem:[%s1061 + $0x14] sm:%s1052]
                %1074 = vst [vmem:[%s1062 + $0x14] sm:%s1052] %v1073
                %v1075 = vld [vmem:[%s1061 + $0x18] sm:%s1052]
                %1076 = vst [vmem:[%s1062 + $0x18] sm:%s1052] %v1075
                %v1077 = vld [vmem:[%s1061 + $0x1c] sm:%s1052]
                %1078 = vst [vmem:[%s1062 + $0x1c] sm:%s1052] %v1077
                %v1079 = vld [vmem:[%s1061 + $0x20] sm:%s1052]
                %1080 = vst [vmem:[%s1062 + $0x20] sm:%s1052] %v1079
                %v1081 = vld [vmem:[%s1061 + $0x24] sm:%s1052]
                %1082 = vst [vmem:[%s1062 + $0x24] sm:%s1052] %v1081
                %v1083 = vld [vmem:[%s1061 + $0x28] sm:%s1052]
                %1084 = vst [vmem:[%s1062 + $0x28] sm:%s1052] %v1083
                %v1085 = vld [vmem:[%s1061 + $0x2c] sm:%s1052]
                %1086 = vst [vmem:[%s1062 + $0x2c] sm:%s1052] %v1085
                %v1087 = vld [vmem:[%s1061 + $0x30] sm:%s1052]
                %1088 = vst [vmem:[%s1062 + $0x30] sm:%s1052] %v1087
                %v1089 = vld [vmem:[%s1061 + $0x34] sm:%s1052]
                %1090 = vst [vmem:[%s1062 + $0x34] sm:%s1052] %v1089
                %v1091 = vld [vmem:[%s1061 + $0x38] sm:%s1052]
                %1092 = vst [vmem:[%s1062 + $0x38] sm:%s1052] %v1091
                %v1093 = vld [vmem:[%s1061 + $0x3c] sm:%s1052]
                %1094 = vst [vmem:[%s1062 + $0x3c] sm:%s1052] %v1093
                %v1095 = vld [vmem:[%s1061 + $0x40] sm:%s1052]
                %1096 = vst [vmem:[%s1062 + $0x40] sm:%s1052] %v1095
                %v1097 = vld [vmem:[%s1061 + $0x44] sm:%s1052]
                %1098 = vst [vmem:[%s1062 + $0x44] sm:%s1052] %v1097
                %v1099 = vld [vmem:[%s1061 + $0x48] sm:%s1052]
                %1100 = vst [vmem:[%s1062 + $0x48] sm:%s1052] %v1099
                %v1101 = vld [vmem:[%s1061 + $0x4c] sm:%s1052]
                %1102 = vst [vmem:[%s1062 + $0x4c] sm:%s1052] %v1101
                %v1103 = vld [vmem:[%s1061 + $0x50] sm:%s1052]
                %1104 = vst [vmem:[%s1062 + $0x50] sm:%s1052] %v1103
                %v1105 = vld [vmem:[%s1061 + $0x54] sm:%s1052]
                %1106 = vst [vmem:[%s1062 + $0x54] sm:%s1052] %v1105
                %v1107 = vld [vmem:[%s1061 + $0x58] sm:%s1052]
                %1108 = vst [vmem:[%s1062 + $0x58] sm:%s1052] %v1107
                %v1109 = vld [vmem:[%s1061 + $0x5c] sm:%s1052]
                %1110 = vst [vmem:[%s1062 + $0x5c] sm:%s1052] %v1109
                %v1111 = vld [vmem:[%s1061 + $0x60] sm:%s1052]
                %1112 = vst [vmem:[%s1062 + $0x60] sm:%s1052] %v1111
                %v1113 = vld [vmem:[%s1061 + $0x64] sm:%s1052]
                %1114 = vst [vmem:[%s1062 + $0x64] sm:%s1052] %v1113
                %v1115 = vld [vmem:[%s1061 + $0x68] sm:%s1052]
                %1116 = vst [vmem:[%s1062 + $0x68] sm:%s1052] %v1115
                %v1117 = vld [vmem:[%s1061 + $0x6c] sm:%s1052]
                %1118 = vst [vmem:[%s1062 + $0x6c] sm:%s1052] %v1117
                %v1119 = vld [vmem:[%s1061 + $0x70] sm:%s1052]
                %1120 = vst [vmem:[%s1062 + $0x70] sm:%s1052] %v1119
                %v1121 = vld [vmem:[%s1061 + $0x74] sm:%s1052]
                %1122 = vst [vmem:[%s1062 + $0x74] sm:%s1052] %v1121
                %v1123 = vld [vmem:[%s1061 + $0x78] sm:%s1052]
                %1124 = vst [vmem:[%s1062 + $0x78] sm:%s1052] %v1123
                %v1125 = vld [vmem:[%s1061 + $0x7c] sm:%s1052]
                %1126 = vst [vmem:[%s1062 + $0x7c] sm:%s1052] %v1125
                %s1127 = sadd.s32 1, %s1060
                %p1128 = scmp.ge.s32.totalorder %s1127, %s1053
                %s1129 = scalar_select %p1128, 0, %s1127
                %s1130 = smul.u32 %s1129, 128
                %s1131 = smul.u32 %s1129, 128
                %s1132 = scalar_lea.vmem %s1026, %s1130 [#allocation2]
                %s1133 = scalar_lea.vmem %s1043, %s1131
              $region49: #{bottleneck_forward.3} parent=43 // loop_footer
                %s1057 = sadd.s32 %s1055, 1
              $region50: #{bottleneck_forward.3} parent=43 // loop_footer_branch
                %1054 = sbr.rel target = $region46
              $region51: #{bottleneck_forward.3} parent=43 // loop_exit
                _
              %s1134 = sshrl.u32 %s1039, 5
              %s1135 = sand.u32 %s1039, 31
              %s1136 = smul.u32 %s1134, 32
              %s1137 = smul.u32 4, %s1136
              %s1138 = scalar_lea.vmem %s1026, %s1137 [#allocation2]
              %s1139 = smul.u32 4, %s1136
              %s1140 = scalar_lea.vmem %s1043, %s1139
              // While loop
              $region52: #{bottleneck_forward.3} parent=43 // loop_pre_header
                _
              $region53: #{bottleneck_forward.3} parent=43 // loop_header
                %s1142 = sphi 0, %s1144
                %p1143 = scmp.ge.s32.totalorder %s1142, %s1135
                %s1147 = sphi 0, %s1154
                %s1148 = sphi %s1138, %s1157
                %s1149 = sphi %s1140, %s1158
              $region54: #{bottleneck_forward.3} parent=43 // loop_header_branch
                %1146 = sbr.rel (%p1143) target = $region58
              $region55: #{bottleneck_forward.3} parent=43 // loop_body
                %v1150 = vld [vmem:[%s1148] sm:%s1052]
                %1151 = vst [vmem:[%s1149] sm:%s1052] %v1150
                %s1152 = sadd.s32 1, %s1147
                %p1153 = scmp.ge.s32.totalorder %s1152, %s1135
                %s1154 = scalar_select %p1153, 0, %s1152
                %s1155 = smul.u32 %s1154, 4
                %s1156 = smul.u32 %s1154, 4
                %s1157 = scalar_lea.vmem %s1138, %s1155 [#allocation2]
                %s1158 = scalar_lea.vmem %s1140, %s1156
              $region56: #{bottleneck_forward.3} parent=43 // loop_footer
                %s1144 = sadd.s32 %s1142, 1
              $region57: #{bottleneck_forward.3} parent=43 // loop_footer_branch
                %1141 = sbr.rel target = $region53
              $region58: #{bottleneck_forward.3} parent=43 // loop_exit
                _
            $region44: #{bottleneck_forward.3} parent=35 // pred_fallthru
              _
          $region36: #{bottleneck_forward.3} parent=31 // pred_fallthru
            _
          %1269 = vnop
        $region32: #{bottleneck_forward.3} parent=27 // pred_fallthru
          _
        // Predicated region
        $region77: #{bottleneck_forward.3} parent=27 // pred_check
          %p1270 = pneg %p107
        $region78: #{bottleneck_forward.3} parent=27 // pred_check_branch
          %1272 = sbr.rel (%p1270) target = $region80
        $region79: #{bottleneck_forward.3} parent=27 // pred_region
          _
        $region80: #{bottleneck_forward.3} parent=27 // pred_fallthru
          _
        // Predicated region
        $region81: #{bottleneck_forward.3} parent=27 // pred_check
          %p1273 = pneg %p133
        $region82: #{bottleneck_forward.3} parent=27 // pred_check_branch
          %1275 = sbr.rel (%p1273) target = $region84
        $region83: #{bottleneck_forward.3} parent=27 // pred_region
          _
        $region84: #{bottleneck_forward.3} parent=27 // pred_fallthru
          _
      $region28: #{bottleneck_forward.3} parent=5 // pred_fallthru
        _
      %p1276 = scmp.le.s32.totalorder 2, %s11
      // Predicated region
      $region85: #{bottleneck_forward.3} parent=5 // pred_check
        %p1277 = pneg %p1276
      $region86: #{bottleneck_forward.3} parent=5 // pred_check_branch
        %1279 = sbr.rel (%p1277) target = $region88
      $region87: #{bottleneck_forward.3} parent=5 // pred_region
        %s1280 = ssub.s32 %s11, 2
        // Predicated region
        $region89: #{bottleneck_forward.3} parent=87 // pred_check
          %p1281 = pneg %p87
        $region90: #{bottleneck_forward.3} parent=87 // pred_check_branch
          %1283 = sbr.rel (%p1281) target = $region92
        $region91: #{bottleneck_forward.3} parent=87 // pred_region
          %s1284 = sand.u32 %s72, 1
          %s1285 = sand.u32 %s72, 1
          %s1286 = smul.addr %s1285, 128
          %s1287 = scalar_lea.vmem [#allocation2], %s1286
        $region92: #{bottleneck_forward.3} parent=87 // pred_fallthru
          _
        // Predicated region
        $region93: #{bottleneck_forward.3} parent=87 // pred_check
          %p1288 = pneg %p113
        $region94: #{bottleneck_forward.3} parent=87 // pred_check_branch
          %1290 = sbr.rel (%p1288) target = $region96
        $region95: #{bottleneck_forward.3} parent=87 // pred_region
          %p1291 = scmp.lt.s32.totalorder %s17, 1
          %s1292 = scalar_select %p1291, %s17, 1
          %s1293 = scalar_lea.vmem %s3, %s1292
        $region96: #{bottleneck_forward.3} parent=87 // pred_fallthru
          _
        // Predicated region
        $region97: #{bottleneck_forward.3} parent=87 // pred_check
          %p1294 = pneg %p139
        $region98: #{bottleneck_forward.3} parent=87 // pred_check_branch
          %1296 = sbr.rel (%p1294) target = $region100
        $region99: #{bottleneck_forward.3} parent=87 // pred_region
          %p1297 = scmp.lt.s32.totalorder %s17, 1
          %s1298 = scalar_select %p1297, %s17, 1
          %s1299 = scalar_lea.vmem %s4, %s1298
        $region100: #{bottleneck_forward.3} parent=87 // pred_fallthru
          _
      $region88: #{bottleneck_forward.3} parent=5 // pred_fallthru
        _
    $region6: #{bottleneck_forward.3} parent=1 // loop_footer
      %s15 = sadd.s32 1, %s11
    $region7: #{bottleneck_forward.3} parent=1 // loop_footer_branch
      %10 = sbr.rel target = $region3
    $region8: #{bottleneck_forward.3} parent=1 // loop_exit
      _

// kernel: bottleneck_forward.5
$region0: #{bottleneck_forward.5}
  #allocation0 [shape = 'u32[]', space=smem, size = 0x4, offset = 0x4, fixed_abs, tag = 'smem constant byte address 0x4 - core index']
  #allocation1 [shape = 'u32[72,128]{1,0:T(1,128)}', space=vmem, size = 0x9000, scoped, tag = 'internal scratch']
  %s0 = inlined_call_operand.vmem [shape: bf16[392,128], index: 0, kind: input, shape index: {}]
  %s1 = inlined_call_operand.vmem [shape: f32[1,128], index: 1, kind: input, shape index: {}]
  %s2 = inlined_call_operand.vmem [shape: f32[1,128], index: 2, kind: input, shape index: {}]
  %s3 = inlined_call_operand.vmem [shape: bf16[128,16], index: 3, kind: input, shape index: {}]
  %s4 = inlined_call_operand.vmem [shape: f32[392,16], index: 4, kind: input, shape index: {}]
  %s5 = inlined_call_operand.vmem [shape: f32[392,16], index: 5, kind: output, shape index: {}]
  %s6 = sld [smem:[#allocation0]]
  $region101: #{bottleneck_forward.5} parent=0
    _
  %s8 = ssub.s32 1, %s6
  %s9 = scalar_select 0, %s8, %s6
  $region1: #{bottleneck_forward.5} parent=0
    #allocation2 [shape = 'u8[262144]{0}', space=vmem, size = 0x40000, scoped, tag = 'output window, operand 0']
    loop: start=0, step=1, limit=4
    $region2: #{bottleneck_forward.5} parent=1 // loop_pre_header
      _
    $region3: #{bottleneck_forward.5} parent=1 // loop_header
      %s11 = sphi 0, %s15
      %p12 = scmp.ge.s32.totalorder %s11, 4
      %s21 = sphi 0, %s23
      %s24 = sphi 0, %s21
      %s25 = sphi 0, %s24
      %s41 = sphi 0, %s25
      %s45 = sphi 0, %s45
      %s47 = sphi 0, %s45
      %s48 = sphi 0, %s47
      %s62 = sphi 0, %s48
      %s66 = sphi 0, %s66
      %s68 = sphi 0, %s66
      %s69 = sphi 0, %s68
      %s83 = sphi 0, %s69
      %s87 = sphi 0, %s87
      %s89 = sphi 0, %s87
      %s90 = sphi 0, %s89
      %s104 = sphi 0, %s90
      %s110 = sphi 0, %s112
      %s113 = sphi 0, %s110
      %s114 = sphi 0, %s113
      %s130 = sphi 0, %s114
      %s136 = sphi 0, %s138
      %s139 = sphi 0, %s136
      %s140 = sphi 0, %s139
      %s156 = sphi 0, %s140
    $region4: #{bottleneck_forward.5} parent=1 // loop_header_branch
      %14 = sbr.rel (%p12) target = $region8
    $region5: #{bottleneck_forward.5} parent=1 // loop_body
      %s16 = ssub.s32 %s11, 1
      %s17 = ssub.s32 %s11, 2
      %s18 = sadd.s32 %s11, 1
      %s19 = ssub.s32 %s11, %s18
      %p20 = scmp.eq.s32.totalorder %s19, 0
      %s22 = sadd.s32 %s21, 1
      %s23 = scalar_select %p20, %s21, %s22
      %p26 = pneg %p20
      %p27 = scmp.eq.s32.totalorder %s11, 1
      %p28 = por %p26, %p27
      %p29 = scmp.ne.s32.totalorder %s21, %s24
      %p30 = scmp.eq.s32.totalorder %s11, 0
      %p31 = por %p29, %p30
      %p32 = scmp.ne.s32.totalorder %s21, %s24
      %p33 = scmp.eq.s32.totalorder %s16, 1
      %p34 = por %p32, %p33
      %p35 = scmp.ne.s32.totalorder %s24, %s25
      %p36 = scmp.eq.s32.totalorder %s16, 0
      %p37 = por %p35, %p36
      %p38 = scmp.ne.s32.totalorder %s24, %s25
      %p39 = scmp.eq.s32.totalorder %s17, 1
      %p40 = por %p38, %p39
      %p42 = scmp.ne.s32.totalorder %s25, %s41
      %p43 = scmp.eq.s32.totalorder %s17, 0
      %p44 = por %p42, %p43
      %s46 = sadd.s32 %s45, 1
      %p49 = scmp.eq.s32.totalorder %s11, 1
      %p50 = scmp.ne.s32.totalorder %s45, %s47
      %p51 = scmp.eq.s32.totalorder %s11, 0
      %p52 = por %p50, %p51
      %p53 = scmp.ne.s32.totalorder %s45, %s47
      %p54 = scmp.eq.s32.totalorder %s16, 1
      %p55 = por %p53, %p54
      %p56 = scmp.ne.s32.totalorder %s47, %s48
      %p57 = scmp.eq.s32.totalorder %s16, 0
      %p58 = por %p56, %p57
      %p59 = scmp.ne.s32.totalorder %s47, %s48
      %p60 = scmp.eq.s32.totalorder %s17, 1
      %p61 = por %p59, %p60
      %p63 = scmp.ne.s32.totalorder %s48, %s62
      %p64 = scmp.eq.s32.totalorder %s17, 0
      %p65 = por %p63, %p64
      %s67 = sadd.s32 %s66, 1
      %p70 = scmp.eq.s32.totalorder %s11, 1
      %p71 = scmp.ne.s32.totalorder %s66, %s68
      %p72 = scmp.eq.s32.totalorder %s11, 0
      %p73 = por %p71, %p72
      %p74 = scmp.ne.s32.totalorder %s66, %s68
      %p75 = scmp.eq.s32.totalorder %s16, 1
      %p76 = por %p74, %p75
      %p77 = scmp.ne.s32.totalorder %s68, %s69
      %p78 = scmp.eq.s32.totalorder %s16, 0
      %p79 = por %p77, %p78
      %p80 = scmp.ne.s32.totalorder %s68, %s69
      %p81 = scmp.eq.s32.totalorder %s17, 1
      %p82 = por %p80, %p81
      %p84 = scmp.ne.s32.totalorder %s69, %s83
      %p85 = scmp.eq.s32.totalorder %s17, 0
      %p86 = por %p84, %p85
      %s88 = sadd.s32 %s87, 1
      %p91 = scmp.eq.s32.totalorder %s11, 1
      %p92 = scmp.ne.s32.totalorder %s87, %s89
      %p93 = scmp.eq.s32.totalorder %s11, 0
      %p94 = por %p92, %p93
      %p95 = scmp.ne.s32.totalorder %s87, %s89
      %p96 = scmp.eq.s32.totalorder %s16, 1
      %p97 = por %p95, %p96
      %p98 = scmp.ne.s32.totalorder %s89, %s90
      %p99 = scmp.eq.s32.totalorder %s16, 0
      %p100 = por %p98, %p99
      %p101 = scmp.ne.s32.totalorder %s89, %s90
      %p102 = scmp.eq.s32.totalorder %s17, 1
      %p103 = por %p101, %p102
      %p105 = scmp.ne.s32.totalorder %s90, %s104
      %p106 = scmp.eq.s32.totalorder %s17, 0
      %p107 = por %p105, %p106
      %s108 = ssub.s32 %s11, %s18
      %p109 = scmp.eq.s32.totalorder %s108, 0
      %s111 = sadd.s32 %s110, 1
      %s112 = scalar_select %p109, %s110, %s111
      %p115 = pneg %p109
      %p116 = scmp.eq.s32.totalorder %s11, 1
      %p117 = por %p115, %p116
      %p118 = scmp.ne.s32.totalorder %s110, %s113
      %p119 = scmp.eq.s32.totalorder %s11, 0
      %p120 = por %p118, %p119
      %p121 = scmp.ne.s32.totalorder %s110, %s113
      %p122 = scmp.eq.s32.totalorder %s16, 1
      %p123 = por %p121, %p122
      %p124 = scmp.ne.s32.totalorder %s113, %s114
      %p125 = scmp.eq.s32.totalorder %s16, 0
      %p126 = por %p124, %p125
      %p127 = scmp.ne.s32.totalorder %s113, %s114
      %p128 = scmp.eq.s32.totalorder %s17, 1
      %p129 = por %p127, %p128
      %p131 = scmp.ne.s32.totalorder %s114, %s130
      %p132 = scmp.eq.s32.totalorder %s17, 0
      %p133 = por %p131, %p132
      %s134 = ssub.s32 %s11, %s18
      %p135 = scmp.eq.s32.totalorder %s134, 0
      %s137 = sadd.s32 %s136, 1
      %s138 = scalar_select %p135, %s136, %s137
      %p141 = pneg %p135
      %p142 = scmp.eq.s32.totalorder %s11, 1
      %p143 = por %p141, %p142
      %p144 = scmp.ne.s32.totalorder %s136, %s139
      %p145 = scmp.eq.s32.totalorder %s11, 0
      %p146 = por %p144, %p145
      %p147 = scmp.ne.s32.totalorder %s136, %s139
      %p148 = scmp.eq.s32.totalorder %s16, 1
      %p149 = por %p147, %p148
      %p150 = scmp.ne.s32.totalorder %s139, %s140
      %p151 = scmp.eq.s32.totalorder %s16, 0
      %p152 = por %p150, %p151
      %p153 = scmp.ne.s32.totalorder %s139, %s140
      %p154 = scmp.eq.s32.totalorder %s17, 1
      %p155 = por %p153, %p154
      %p157 = scmp.ne.s32.totalorder %s140, %s156
      %p158 = scmp.eq.s32.totalorder %s17, 0
      %p159 = por %p157, %p158
      %p160 = scmp.le.s32.totalorder 1, %s11
      %p161 = scmp.lt.s32.totalorder %s11, 3
      %p162 = pnand %p160, %p161
      %p163 = pneg %p162
      // Predicated region
      $region9: #{bottleneck_forward.5} parent=5 // pred_check
        _
      $region10: #{bottleneck_forward.5} parent=5 // pred_check_branch
        %165 = sbr.rel (%p162) target = $region12
      $region11: #{bottleneck_forward.5} parent=5 // pred_region
        %s166 = ssub.s32 %s11, 1
        // Predicated region
        $region13: #{bottleneck_forward.5} parent=11 // pred_check
          %p167 = pneg %p58
        $region14: #{bottleneck_forward.5} parent=11 // pred_check_branch
          %169 = sbr.rel (%p167) target = $region16
        $region15: #{bottleneck_forward.5} parent=11 // pred_region
          _
        $region16: #{bottleneck_forward.5} parent=11 // pred_fallthru
          _
        // Predicated region
        $region17: #{bottleneck_forward.5} parent=11 // pred_check
          %p170 = pneg %p79
        $region18: #{bottleneck_forward.5} parent=11 // pred_check_branch
          %172 = sbr.rel (%p170) target = $region20
        $region19: #{bottleneck_forward.5} parent=11 // pred_region
          _
        $region20: #{bottleneck_forward.5} parent=11 // pred_fallthru
          _
        // Predicated region
        $region21: #{bottleneck_forward.5} parent=11 // pred_check
          %p173 = pneg %p100
        $region22: #{bottleneck_forward.5} parent=11 // pred_check_branch
          %175 = sbr.rel (%p173) target = $region24
        $region23: #{bottleneck_forward.5} parent=11 // pred_region
          _
        $region24: #{bottleneck_forward.5} parent=11 // pred_fallthru
          _
      $region12: #{bottleneck_forward.5} parent=5 // pred_fallthru
        _
      %p176 = scmp.lt.s32.totalorder %s11, 2
      // Predicated region
      $region25: #{bottleneck_forward.5} parent=5 // pred_check
        %p177 = pneg %p176
      $region26: #{bottleneck_forward.5} parent=5 // pred_check_branch
        %179 = sbr.rel (%p177) target = $region28
      $region27: #{bottleneck_forward.5} parent=5 // pred_region
        // Predicated region
        $region29: #{bottleneck_forward.5} parent=27 // pred_check
          %p180 = pneg %p31
        $region30: #{bottleneck_forward.5} parent=27 // pred_check_branch
          %182 = sbr.rel (%p180) target = $region32
        $region31: #{bottleneck_forward.5} parent=27 // pred_region
          %s183 = smul.u32 32, %s11
          %s184 = ssub.s32 49, %s183
          %p185 = scmp.lt.s32.totalorder %s184, 32
          %s186 = scalar_select %p185, %s184, 32
          %s187 = smul.u32 4, %s186
          %p188 = scmp.lt.s32.totalorder %s183, 48
          %s189 = scalar_select %p188, %s183, 48
          %s190 = smul.addr %s189, 4
          %s191 = scalar_lea.vmem %s0, %s190
          %s192 = smul.u32 32, %s11
          %s193 = ssub.s32 49, %s192
          %p194 = scmp.lt.s32.totalorder %s193, 32
          %s195 = scalar_select %p194, %s193, 32
          %s196 = smul.u32 4, %s195
        $region32: #{bottleneck_forward.5} parent=27 // pred_fallthru
          _
        // Predicated region
        $region33: #{bottleneck_forward.5} parent=27 // pred_check
          %p197 = pneg %p120
        $region34: #{bottleneck_forward.5} parent=27 // pred_check_branch
          %199 = sbr.rel (%p197) target = $region36
        $region35: #{bottleneck_forward.5} parent=27 // pred_region
          %s200 = smul.u32 32, %s11
          %s201 = ssub.s32 49, %s200
          %p202 = scmp.lt.s32.totalorder %s201, 32
          %s203 = scalar_select %p202, %s201, 32
          %s204 = smul.u32 8, %s203
          %p205 = scmp.lt.s32.totalorder %s200, 48
          %s206 = scalar_select %p205, %s200, 48
          %s207 = smul.addr %s206, 8
          %s208 = scalar_lea.vmem %s4, %s207
          %s209 = smul.u32 32, %s11
          %s210 = ssub.s32 49, %s209
          %p211 = scmp.lt.s32.totalorder %s210, 32
          %s212 = scalar_select %p211, %s210, 32
          %s213 = smul.u32 8, %s212
        $region36: #{bottleneck_forward.5} parent=27 // pred_fallthru
          _
      $region28: #{bottleneck_forward.5} parent=5 // pred_fallthru
        _
      %p214 = scmp.le.s32.totalorder 1, %s11
      %p215 = scmp.lt.s32.totalorder %s11, 3
      %p216 = pnand %p214, %p215
      %p217 = pneg %p216
      // Predicated region
      $region37: #{bottleneck_forward.5} parent=5 // pred_check
        _
      $region38: #{bottleneck_forward.5} parent=5 // pred_check_branch
        %219 = sbr.rel (%p216) target = $region40
      $region39: #{bottleneck_forward.5} parent=5 // pred_region
        %s220 = ssub.s32 %s11, 1
        %s221 = smul.u32 32, %s16
        %s222 = ssub.s32 49, %s221
        %p223 = scmp.lt.s32.totalorder %s222, 32
        %s224 = scalar_select %p223, %s222, 32
        %s225 = smul.u32 4, %s224
        %p226 = scmp.lt.s32.totalorder %s221, 48
        %s227 = scalar_select %p226, %s221, 48
        %s228 = smul.addr %s227, 4
        %s229 = scalar_lea.vmem %s0, %s228
        %p230 = pneg %p37
        %p231 = pneg %p34
        %p232 = pneg %p58
        %p233 = pneg %p55
        %p234 = pneg %p79
        %p235 = pneg %p76
        %p236 = pneg %p100
        %p237 = pneg %p97
        %s238 = smul.u32 32, %s16
        %s239 = ssub.s32 49, %s238
        %p240 = scmp.lt.s32.totalorder %s239, 32
        %s241 = scalar_select %p240, %s239, 32
        %s242 = smul.u32 8, %s241
        %p243 = scmp.lt.s32.totalorder %s238, 48
        %s244 = scalar_select %p243, %s238, 48
        %s245 = smul.addr %s244, 8
        %s246 = scalar_lea.vmem %s4, %s245
        %p247 = pneg %p126
        %p248 = pneg %p123
        %p249 = pneg %p152
        %p250 = pneg %p149
        %s251 = sand.u32 %s139, 1
        %s252 = sand.u32 %s139, 1
        %s253 = smul.addr %s252, 256
        %s254 = scalar_lea.vmem [#allocation2], %s253
        %s255 = smul.u32 32, %s16
        %s256 = ssub.s32 49, %s255
        %p257 = scmp.lt.s32.totalorder %s256, 32
        %s258 = scalar_select %p257, %s256, 32
        %s259 = smul.u32 4, %s258
        %p260 = scmp.lt.s32.totalorder %s255, 48
        %s261 = scalar_select %p260, %s255, 48
        %s262 = smul.addr %s261, 4
        %s263 = scalar_lea.vmem %s0, %s262
        %s264 = smul.u32 32, %s16
        %s265 = ssub.s32 49, %s264
        %p266 = scmp.lt.s32.totalorder %s265, 32
        %s267 = scalar_select %p266, %s265, 32
        %s268 = smul.u32 4, %s267
        %s269 = smul.u32 32, %s16
        %s270 = ssub.s32 49, %s269
        %p271 = scmp.lt.s32.totalorder %s270, 32
        %s272 = scalar_select %p271, %s270, 32
        %s273 = smul.u32 8, %s272
        %p274 = scmp.lt.s32.totalorder %s269, 48
        %s275 = scalar_select %p274, %s269, 48
        %s276 = smul.addr %s275, 8
        %s277 = scalar_lea.vmem %s4, %s276
        %s278 = smul.u32 32, %s16
        %s279 = ssub.s32 49, %s278
        %p280 = scmp.lt.s32.totalorder %s279, 32
        %s281 = scalar_select %p280, %s279, 32
        %s282 = smul.u32 8, %s281
        %s283 = smul.u32 32, %s16
        %s284 = ssub.s32 49, %s283
        %p285 = scmp.lt.s32.totalorder %s284, 32
        %s286 = scalar_select %p285, %s284, 32
        %s287 = smul.u32 8, %s286
        %v288 = vld [vmem:[%s263] sm:$0xf]
        %v289 = vld [vmem:[%s263 + $0x4] sm:$0xf]
        %v290 = vld [vmem:[%s263 + $0x8] sm:$0xf]
        %v291 = vld [vmem:[%s263 + $0xc] sm:$0xf]
        %v292 = vld [vmem:[%s263 + $0x10] sm:$0xf]
        %v293 = vld [vmem:[%s263 + $0x14] sm:$0xf]
        %v294 = vld [vmem:[%s263 + $0x18] sm:$0xf]
        %v295 = vld [vmem:[%s263 + $0x1c] sm:$0xf]
        %v296 = vld [vmem:[%s263 + $0x20] sm:$0xf]
        %v297 = vld [vmem:[%s263 + $0x24] sm:$0xf]
        %v298 = vld [vmem:[%s263 + $0x28] sm:$0xf]
        %v299 = vld [vmem:[%s263 + $0x2c] sm:$0xf]
        %v300 = vld [vmem:[%s263 + $0x30] sm:$0xf]
        %v301 = vld [vmem:[%s263 + $0x34] sm:$0xf]
        %v302 = vld [vmem:[%s263 + $0x38] sm:$0xf]
        %v303 = vld [vmem:[%s263 + $0x3c] sm:$0xf]
        %v304 = vld [vmem:[%s263 + $0x40] sm:$0xf]
        %v305 = vld [vmem:[%s263 + $0x44] sm:$0xf]
        %v306 = vld [vmem:[%s263 + $0x48] sm:$0xf]
        %v307 = vld [vmem:[%s263 + $0x4c] sm:$0xf]
        %v308 = vld [vmem:[%s263 + $0x50] sm:$0xf]
        %v309 = vld [vmem:[%s263 + $0x54] sm:$0xf]
        %v310 = vld [vmem:[%s263 + $0x58] sm:$0xf]
        %v311 = vld [vmem:[%s263 + $0x5c] sm:$0xf]
        %v312 = vld [vmem:[%s263 + $0x60] sm:$0xf]
        %v313 = vld [vmem:[%s263 + $0x64] sm:$0xf]
        %v314 = vld [vmem:[%s263 + $0x68] sm:$0xf]
        %v315 = vld [vmem:[%s263 + $0x6c] sm:$0xf]
        %v316 = vld [vmem:[%s263 + $0x70] sm:$0xf]
        %v317 = vld [vmem:[%s263 + $0x74] sm:$0xf]
        %v318 = vld [vmem:[%s263 + $0x78] sm:$0xf]
        %v319 = vld [vmem:[%s263 + $0x7c] sm:$0xf]
        %v320 = vunpack.c.l.bf16 %v288
        %v321 = vunpack.c.l.bf16 %v289
        %v322 = vunpack.c.l.bf16 %v290
        %v323 = vunpack.c.l.bf16 %v291
        %v324 = vunpack.c.l.bf16 %v292
        %v325 = vunpack.c.l.bf16 %v293
        %v326 = vunpack.c.l.bf16 %v294
        %v327 = vunpack.c.l.bf16 %v295
        %v328 = vunpack.c.l.bf16 %v296
        %v329 = vunpack.c.l.bf16 %v297
        %v330 = vunpack.c.l.bf16 %v298
        %v331 = vunpack.c.l.bf16 %v299
        %v332 = vunpack.c.l.bf16 %v300
        %v333 = vunpack.c.l.bf16 %v301
        %v334 = vunpack.c.l.bf16 %v302
        %v335 = vunpack.c.l.bf16 %v303
        %v336 = vunpack.c.l.bf16 %v304
        %v337 = vunpack.c.l.bf16 %v305
        %v338 = vunpack.c.l.bf16 %v306
        %v339 = vunpack.c.l.bf16 %v307
        %v340 = vunpack.c.l.bf16 %v308
        %v341 = vunpack.c.l.bf16 %v309
        %v342 = vunpack.c.l.bf16 %v310
        %v343 = vunpack.c.l.bf16 %v311
        %v344 = vunpack.c.l.bf16 %v312
        %v345 = vunpack.c.l.bf16 %v313
        %v346 = vunpack.c.l.bf16 %v314
        %v347 = vunpack.c.l.bf16 %v315
        %v348 = vunpack.c.l.bf16 %v316
        %v349 = vunpack.c.l.bf16 %v317
        %v350 = vunpack.c.l.bf16 %v318
        %v351 = vunpack.c.l.bf16 %v319
        %v352 = vld [vmem:[%s1] sm:$0x1]
        %v354 = vperm.slane %v352, 0
        %v356 = vmul.f32 %v320, %v354
        %v357 = vmul.f32 %v321, %v354
        %v358 = vmul.f32 %v322, %v354
        %v359 = vmul.f32 %v323, %v354
        %v360 = vmul.f32 %v324, %v354
        %v361 = vmul.f32 %v325, %v354
        %v362 = vmul.f32 %v326, %v354
        %v363 = vmul.f32 %v327, %v354
        %v364 = vmul.f32 %v328, %v354
        %v365 = vmul.f32 %v329, %v354
        %v366 = vmul.f32 %v330, %v354
        %v367 = vmul.f32 %v331, %v354
        %v368 = vmul.f32 %v332, %v354
        %v369 = vmul.f32 %v333, %v354
        %v370 = vmul.f32 %v334, %v354
        %v371 = vmul.f32 %v335, %v354
        %v372 = vmul.f32 %v336, %v354
        %v373 = vmul.f32 %v337, %v354
        %v374 = vmul.f32 %v338, %v354
        %v375 = vmul.f32 %v339, %v354
        %v376 = vmul.f32 %v340, %v354
        %v377 = vmul.f32 %v341, %v354
        %v378 = vmul.f32 %v342, %v354
        %v379 = vmul.f32 %v343, %v354
        %v380 = vmul.f32 %v344, %v354
        %v381 = vmul.f32 %v345, %v354
        %v382 = vmul.f32 %v346, %v354
        %v383 = vmul.f32 %v347, %v354
        %v384 = vmul.f32 %v348, %v354
        %v385 = vmul.f32 %v349, %v354
        %v386 = vmul.f32 %v350, %v354
        %v387 = vmul.f32 %v351, %v354
        %v388 = vld [vmem:[%s2] sm:$0x1]
        %v390 = vperm.slane %v388, 0
        %v392 = vadd.f32 %v356, %v390
        %v393 = vadd.f32 %v357, %v390
        %v394 = vadd.f32 %v358, %v390
        %v395 = vadd.f32 %v359, %v390
        %v396 = vadd.f32 %v360, %v390
        %v397 = vadd.f32 %v361, %v390
        %v398 = vadd.f32 %v362, %v390
        %v399 = vadd.f32 %v363, %v390
        %v400 = vadd.f32 %v364, %v390
        %v401 = vadd.f32 %v365, %v390
        %v402 = vadd.f32 %v366, %v390
        %v403 = vadd.f32 %v367, %v390
        %v404 = vadd.f32 %v368, %v390
        %v405 = vadd.f32 %v369, %v390
        %v406 = vadd.f32 %v370, %v390
        %v407 = vadd.f32 %v371, %v390
        %v408 = vadd.f32 %v372, %v390
        %v409 = vadd.f32 %v373, %v390
        %v410 = vadd.f32 %v374, %v390
        %v411 = vadd.f32 %v375, %v390
        %v412 = vadd.f32 %v376, %v390
        %v413 = vadd.f32 %v377, %v390
        %v414 = vadd.f32 %v378, %v390
        %v415 = vadd.f32 %v379, %v390
        %v416 = vadd.f32 %v380, %v390
        %v417 = vadd.f32 %v381, %v390
        %v418 = vadd.f32 %v382, %v390
        %v419 = vadd.f32 %v383, %v390
        %v420 = vadd.f32 %v384, %v390
        %v421 = vadd.f32 %v385, %v390
        %v422 = vadd.f32 %v386, %v390
        %v423 = vadd.f32 %v387, %v390
        %vm424 = vcmp.gt.f32.partialorder %v392, 0.0
        %vm425 = vcmp.gt.f32.partialorder %v393, 0.0
        %vm426 = vcmp.gt.f32.partialorder %v394, 0.0
        %vm427 = vcmp.gt.f32.partialorder %v395, 0.0
        %vm428 = vcmp.gt.f32.partialorder %v396, 0.0
        %vm429 = vcmp.gt.f32.partialorder %v397, 0.0
        %vm430 = vcmp.gt.f32.partialorder %v398, 0.0
        %vm431 = vcmp.gt.f32.partialorder %v399, 0.0
        %vm432 = vcmp.gt.f32.partialorder %v400, 0.0
        %vm433 = vcmp.gt.f32.partialorder %v401, 0.0
        %vm434 = vcmp.gt.f32.partialorder %v402, 0.0
        %vm435 = vcmp.gt.f32.partialorder %v403, 0.0
        %vm436 = vcmp.gt.f32.partialorder %v404, 0.0
        %vm437 = vcmp.gt.f32.partialorder %v405, 0.0
        %vm438 = vcmp.gt.f32.partialorder %v406, 0.0
        %vm439 = vcmp.gt.f32.partialorder %v407, 0.0
        %vm440 = vcmp.gt.f32.partialorder %v408, 0.0
        %vm441 = vcmp.gt.f32.partialorder %v409, 0.0
        %vm442 = vcmp.gt.f32.partialorder %v410, 0.0
        %vm443 = vcmp.gt.f32.partialorder %v411, 0.0
        %vm444 = vcmp.gt.f32.partialorder %v412, 0.0
        %vm445 = vcmp.gt.f32.partialorder %v413, 0.0
        %vm446 = vcmp.gt.f32.partialorder %v414, 0.0
        %vm447 = vcmp.gt.f32.partialorder %v415, 0.0
        %vm448 = vcmp.gt.f32.partialorder %v416, 0.0
        %vm449 = vcmp.gt.f32.partialorder %v417, 0.0
        %vm450 = vcmp.gt.f32.partialorder %v418, 0.0
        %vm451 = vcmp.gt.f32.partialorder %v419, 0.0
        %vm452 = vcmp.gt.f32.partialorder %v420, 0.0
        %vm453 = vcmp.gt.f32.partialorder %v421, 0.0
        %vm454 = vcmp.gt.f32.partialorder %v422, 0.0
        %vm455 = vcmp.gt.f32.partialorder %v423, 0.0
        %vm456 = vcmp.lt.f32.partialorder %v392, 0.0
        %vm457 = vcmp.lt.f32.partialorder %v393, 0.0
        %vm458 = vcmp.lt.f32.partialorder %v394, 0.0
        %vm459 = vcmp.lt.f32.partialorder %v395, 0.0
        %vm460 = vcmp.lt.f32.partialorder %v396, 0.0
        %vm461 = vcmp.lt.f32.partialorder %v397, 0.0
        %vm462 = vcmp.lt.f32.partialorder %v398, 0.0
        %vm463 = vcmp.lt.f32.partialorder %v399, 0.0
        %vm464 = vcmp.lt.f32.partialorder %v400, 0.0
        %vm465 = vcmp.lt.f32.partialorder %v401, 0.0
        %vm466 = vcmp.lt.f32.partialorder %v402, 0.0
        %vm467 = vcmp.lt.f32.partialorder %v403, 0.0
        %vm468 = vcmp.lt.f32.partialorder %v404, 0.0
        %vm469 = vcmp.lt.f32.partialorder %v405, 0.0
        %vm470 = vcmp.lt.f32.partialorder %v406, 0.0
        %vm471 = vcmp.lt.f32.partialorder %v407, 0.0
        %vm472 = vcmp.lt.f32.partialorder %v408, 0.0
        %vm473 = vcmp.lt.f32.partialorder %v409, 0.0
        %vm474 = vcmp.lt.f32.partialorder %v410, 0.0
        %vm475 = vcmp.lt.f32.partialorder %v411, 0.0
        %vm476 = vcmp.lt.f32.partialorder %v412, 0.0
        %vm477 = vcmp.lt.f32.partialorder %v413, 0.0
        %vm478 = vcmp.lt.f32.partialorder %v414, 0.0
        %vm479 = vcmp.lt.f32.partialorder %v415, 0.0
        %vm480 = vcmp.lt.f32.partialorder %v416, 0.0
        %vm481 = vcmp.lt.f32.partialorder %v417, 0.0
        %vm482 = vcmp.lt.f32.partialorder %v418, 0.0
        %vm483 = vcmp.lt.f32.partialorder %v419, 0.0
        %vm484 = vcmp.lt.f32.partialorder %v420, 0.0
        %vm485 = vcmp.lt.f32.partialorder %v421, 0.0
        %vm486 = vcmp.lt.f32.partialorder %v422, 0.0
        %vm487 = vcmp.lt.f32.partialorder %v423, 0.0
        %v488 = vsel %vm456, -1.0, 0.0
        %v489 = vsel %vm457, -1.0, 0.0
        %v490 = vsel %vm458, -1.0, 0.0
        %v491 = vsel %vm459, -1.0, 0.0
        %v492 = vsel %vm460, -1.0, 0.0
        %v493 = vsel %vm461, -1.0, 0.0
        %v494 = vsel %vm462, -1.0, 0.0
        %v495 = vsel %vm463, -1.0, 0.0
        %v496 = vsel %vm464, -1.0, 0.0
        %v497 = vsel %vm465, -1.0, 0.0
        %v498 = vsel %vm466, -1.0, 0.0
        %v499 = vsel %vm467, -1.0, 0.0
        %v500 = vsel %vm468, -1.0, 0.0
        %v501 = vsel %vm469, -1.0, 0.0
        %v502 = vsel %vm470, -1.0, 0.0
        %v503 = vsel %vm471, -1.0, 0.0
        %v504 = vsel %vm472, -1.0, 0.0
        %v505 = vsel %vm473, -1.0, 0.0
        %v506 = vsel %vm474, -1.0, 0.0
        %v507 = vsel %vm475, -1.0, 0.0
        %v508 = vsel %vm476, -1.0, 0.0
        %v509 = vsel %vm477, -1.0, 0.0
        %v510 = vsel %vm478, -1.0, 0.0
        %v511 = vsel %vm479, -1.0, 0.0
        %v512 = vsel %vm480, -1.0, 0.0
        %v513 = vsel %vm481, -1.0, 0.0
        %v514 = vsel %vm482, -1.0, 0.0
        %v515 = vsel %vm483, -1.0, 0.0
        %v516 = vsel %vm484, -1.0, 0.0
        %v517 = vsel %vm485, -1.0, 0.0
        %v518 = vsel %vm486, -1.0, 0.0
        %v519 = vsel %vm487, -1.0, 0.0
        %v520 = vsel %vm424, 1.0, %v488
        %v521 = vsel %vm425, 1.0, %v489
        %v522 = vsel %vm426, 1.0, %v490
        %v523 = vsel %vm427, 1.0, %v491
        %v524 = vsel %vm428, 1.0, %v492
        %v525 = vsel %vm429, 1.0, %v493
        %v526 = vsel %vm430, 1.0, %v494
        %v527 = vsel %vm431, 1.0, %v495
        %v528 = vsel %vm432, 1.0, %v496
        %v529 = vsel %vm433, 1.0, %v497
        %v530 = vsel %vm434, 1.0, %v498
        %v531 = vsel %vm435, 1.0, %v499
        %v532 = vsel %vm436, 1.0, %v500
        %v533 = vsel %vm437, 1.0, %v501
        %v534 = vsel %vm438, 1.0, %v502
        %v535 = vsel %vm439, 1.0, %v503
        %v536 = vsel %vm440, 1.0, %v504
        %v537 = vsel %vm441, 1.0, %v505
        %v538 = vsel %vm442, 1.0, %v506
        %v539 = vsel %vm443, 1.0, %v507
        %v540 = vsel %vm444, 1.0, %v508
        %v541 = vsel %vm445, 1.0, %v509
        %v542 = vsel %vm446, 1.0, %v510
        %v543 = vsel %vm447, 1.0, %v511
        %v544 = vsel %vm448, 1.0, %v512
        %v545 = vsel %vm449, 1.0, %v513
        %v546 = vsel %vm450, 1.0, %v514
        %v547 = vsel %vm451, 1.0, %v515
        %v548 = vsel %vm452, 1.0, %v516
        %v549 = vsel %vm453, 1.0, %v517
        %v550 = vsel %vm454, 1.0, %v518
        %v551 = vsel %vm455, 1.0, %v519
        %v552 = vmul.f32 %v392, %v520
        %v553 = vmul.f32 %v393, %v521
        %v554 = vmul.f32 %v394, %v522
        %v555 = vmul.f32 %v395, %v523
        %v556 = vmul.f32 %v396, %v524
        %v557 = vmul.f32 %v397, %v525
        %v558 = vmul.f32 %v398, %v526
        %v559 = vmul.f32 %v399, %v527
        %v560 = vmul.f32 %v400, %v528
        %v561 = vmul.f32 %v401, %v529
        %v562 = vmul.f32 %v402, %v530
        %v563 = vmul.f32 %v403, %v531
        %v564 = vmul.f32 %v404, %v532
        %v565 = vmul.f32 %v405, %v533
        %v566 = vmul.f32 %v406, %v534
        %v567 = vmul.f32 %v407, %v535
        %v568 = vmul.f32 %v408, %v536
        %v569 = vmul.f32 %v409, %v537
        %v570 = vmul.f32 %v410, %v538
        %v571 = vmul.f32 %v411, %v539
        %v572 = vmul.f32 %v412, %v540
        %v573 = vmul.f32 %v413, %v541
        %v574 = vmul.f32 %v414, %v542
        %v575 = vmul.f32 %v415, %v543
        %v576 = vmul.f32 %v416, %v544
        %v577 = vmul.f32 %v417, %v545
        %v578 = vmul.f32 %v418, %v546
        %v579 = vmul.f32 %v419, %v547
        %v580 = vmul.f32 %v420, %v548
        %v581 = vmul.f32 %v421, %v549
        %v582 = vmul.f32 %v422, %v550
        %v583 = vmul.f32 %v423, %v551
        %584 = vadd.xlane.f32.xlu0 %v552
        %v585 = vpop.xlane.xlu0 %584
        %586 = vadd.xlane.f32.xlu0 %v553
        %v587 = vpop.xlane.xlu0 %586
        %588 = vadd.xlane.f32.xlu0 %v554
        %v589 = vpop.xlane.xlu0 %588
        %590 = vadd.xlane.f32.xlu0 %v555
        %v591 = vpop.xlane.xlu0 %590
        %592 = vadd.xlane.f32.xlu0 %v556
        %v593 = vpop.xlane.xlu0 %592
        %594 = vadd.xlane.f32.xlu0 %v557
        %v595 = vpop.xlane.xlu0 %594
        %596 = vadd.xlane.f32.xlu0 %v558
        %v597 = vpop.xlane.xlu0 %596
        %598 = vadd.xlane.f32.xlu0 %v559
        %v599 = vpop.xlane.xlu0 %598
        %600 = vadd.xlane.f32.xlu0 %v560
        %v601 = vpop.xlane.xlu0 %600
        %602 = vadd.xlane.f32.xlu0 %v561
        %v603 = vpop.xlane.xlu0 %602
        %604 = vadd.xlane.f32.xlu0 %v562
        %v605 = vpop.xlane.xlu0 %604
        %606 = vadd.xlane.f32.xlu0 %v563
        %v607 = vpop.xlane.xlu0 %606
        %608 = vadd.xlane.f32.xlu0 %v564
        %v609 = vpop.xlane.xlu0 %608
        %610 = vadd.xlane.f32.xlu0 %v565
        %v611 = vpop.xlane.xlu0 %610
        %612 = vadd.xlane.f32.xlu0 %v566
        %v613 = vpop.xlane.xlu0 %612
        %614 = vadd.xlane.f32.xlu0 %v567
        %v615 = vpop.xlane.xlu0 %614
        %616 = vadd.xlane.f32.xlu0 %v568
        %v617 = vpop.xlane.xlu0 %616
        %618 = vadd.xlane.f32.xlu0 %v569
        %v619 = vpop.xlane.xlu0 %618
        %620 = vadd.xlane.f32.xlu0 %v570
        %v621 = vpop.xlane.xlu0 %620
        %622 = vadd.xlane.f32.xlu0 %v571
        %v623 = vpop.xlane.xlu0 %622
        %624 = vadd.xlane.f32.xlu0 %v572
        %v625 = vpop.xlane.xlu0 %624
        %626 = vadd.xlane.f32.xlu0 %v573
        %v627 = vpop.xlane.xlu0 %626
        %628 = vadd.xlane.f32.xlu0 %v574
        %v629 = vpop.xlane.xlu0 %628
        %630 = vadd.xlane.f32.xlu0 %v575
        %v631 = vpop.xlane.xlu0 %630
        %632 = vadd.xlane.f32.xlu0 %v576
        %v633 = vpop.xlane.xlu0 %632
        %634 = vadd.xlane.f32.xlu0 %v577
        %v635 = vpop.xlane.xlu0 %634
        %636 = vadd.xlane.f32.xlu0 %v578
        %v637 = vpop.xlane.xlu0 %636
        %638 = vadd.xlane.f32.xlu0 %v579
        %v639 = vpop.xlane.xlu0 %638
        %640 = vadd.xlane.f32.xlu0 %v580
        %v641 = vpop.xlane.xlu0 %640
        %642 = vadd.xlane.f32.xlu0 %v581
        %v643 = vpop.xlane.xlu0 %642
        %644 = vadd.xlane.f32.xlu0 %v582
        %v645 = vpop.xlane.xlu0 %644
        %646 = vadd.xlane.f32.xlu0 %v583
        %v647 = vpop.xlane.xlu0 %646
        %v648 = vmul.f32 %v585, 0.25
        %v649 = vmul.f32 %v587, 0.25
        %v650 = vmul.f32 %v589, 0.25
        %v651 = vmul.f32 %v591, 0.25
        %v652 = vmul.f32 %v593, 0.25
        %v653 = vmul.f32 %v595, 0.25
        %v654 = vmul.f32 %v597, 0.25
        %v655 = vmul.f32 %v599, 0.25
        %v656 = vmul.f32 %v601, 0.25
        %v657 = vmul.f32 %v603, 0.25
        %v658 = vmul.f32 %v605, 0.25
        %v659 = vmul.f32 %v607, 0.25
        %v660 = vmul.f32 %v609, 0.25
        %v661 = vmul.f32 %v611, 0.25
        %v662 = vmul.f32 %v613, 0.25
        %v663 = vmul.f32 %v615, 0.25
        %v664 = vmul.f32 %v617, 0.25
        %v665 = vmul.f32 %v619, 0.25
        %v666 = vmul.f32 %v621, 0.25
        %v667 = vmul.f32 %v623, 0.25
        %v668 = vmul.f32 %v625, 0.25
        %v669 = vmul.f32 %v627, 0.25
        %v670 = vmul.f32 %v629, 0.25
        %v671 = vmul.f32 %v631, 0.25
        %v672 = vmul.f32 %v633, 0.25
        %v673 = vmul.f32 %v635, 0.25
        %v674 = vmul.f32 %v637, 0.25
        %v675 = vmul.f32 %v639, 0.25
        %v676 = vmul.f32 %v641, 0.25
        %v677 = vmul.f32 %v643, 0.25
        %v678 = vmul.f32 %v645, 0.25
        %v679 = vmul.f32 %v647, 0.25
        %v680 = vpack.c.bf16 %v521, %v520
        %v681 = vpack.c.bf16 %v523, %v522
        %v682 = vpack.c.bf16 %v525, %v524
        %v683 = vpack.c.bf16 %v527, %v526
        %v684 = vpack.c.bf16 %v529, %v528
        %v685 = vpack.c.bf16 %v531, %v530
        %v686 = vpack.c.bf16 %v533, %v532
        %v687 = vpack.c.bf16 %v535, %v534
        %v688 = vpack.c.bf16 %v537, %v536
        %v689 = vpack.c.bf16 %v539, %v538
        %v690 = vpack.c.bf16 %v541, %v540
        %v691 = vpack.c.bf16 %v543, %v542
        %v692 = vpack.c.bf16 %v545, %v544
        %v693 = vpack.c.bf16 %v547, %v546
        %v694 = vpack.c.bf16 %v549, %v548
        %v695 = vpack.c.bf16 %v551, %v550
        %v696 = vld [vmem:[%s3] sm:$0xf]
        %v697 = vld [vmem:[%s3 + $0x4] sm:$0xf]
        %v698 = vld [vmem:[%s3 + $0x8] sm:$0xf]
        %v699 = vld [vmem:[%s3 + $0xc] sm:$0xf]
        %v700 = vld [vmem:[%s3 + $0x10] sm:$0xf]
        %v701 = vld [vmem:[%s3 + $0x14] sm:$0xf]
        %v702 = vld [vmem:[%s3 + $0x18] sm:$0xf]
        %v703 = vld [vmem:[%s3 + $0x1c] sm:$0xf]
        %v704 = vld [vmem:[%s3 + $0x20] sm:$0xf]
        %v705 = vld [vmem:[%s3 + $0x24] sm:$0xf]
        %v706 = vld [vmem:[%s3 + $0x28] sm:$0xf]
        %v707 = vld [vmem:[%s3 + $0x2c] sm:$0xf]
        %v708 = vld [vmem:[%s3 + $0x30] sm:$0xf]
        %v709 = vld [vmem:[%s3 + $0x34] sm:$0xf]
        %v710 = vld [vmem:[%s3 + $0x38] sm:$0xf]
        %v711 = vld [vmem:[%s3 + $0x3c] sm:$0xf]
        %v728 = vunpack.c.l.b16 %v696
        %v729 = vunpack.c.l.b16 %v697
        %v730 = vunpack.c.l.b16 %v698
        %v731 = vunpack.c.l.b16 %v699
        %v732 = vunpack.c.l.b16 %v700
        %v733 = vunpack.c.l.b16 %v701
        %v734 = vunpack.c.l.b16 %v702
        %v735 = vunpack.c.l.b16 %v703
        %v736 = vunpack.c.l.b16 %v704
        %v737 = vunpack.c.l.b16 %v705
        %v738 = vunpack.c.l.b16 %v706
        %v739 = vunpack.c.l.b16 %v707
        %v740 = vunpack.c.l.b16 %v708
        %v741 = vunpack.c.l.b16 %v709
        %v742 = vunpack.c.l.b16 %v710
        %v743 = vunpack.c.l.b16 %v711
        %v744 = vpack.c.b16 %v729, %v728
        %v745 = vpack.c.b16 %v731, %v730
        %v746 = vpack.c.b16 %v733, %v732
        %v747 = vpack.c.b16 %v735, %v734
        %v748 = vpack.c.b16 %v737, %v736
        %v749 = vpack.c.b16 %v739, %v738
        %v750 = vpack.c.b16 %v741, %v740
        %v751 = vpack.c.b16 %v743, %v742
        %760 = vmatpush.bf16.msra.mxu0 %v751
        %761 = vmatpush.bf16.msra.mxu0 %v750
        %762 = vmatpush.bf16.msra.mxu0 %v749
        %763 = vmatpush.bf16.msra.mxu0 %v748
        %764 = vmatpush.bf16.msra.mxu0 %v747
        %765 = vmatpush.bf16.msra.mxu0 %v746
        %766 = vmatpush.bf16.msra.mxu0 %v745
        %767 = vmatpush.bf16.msra.mxu0 %v744
        %768 = vmatmul.bf16.gmra.mxu0 %v680
        %v769 = vpop.f32.mrf.mxu0
        %v770 = vadd.f32 0.0, %v769
        %v771 = vpop.f32.mrf.mxu0
        %v772 = vadd.f32 0.0, %v771
        %773 = vmatmul.bf16.gmra.mxu0 %v681
        %v774 = vpop.f32.mrf.mxu0
        %v775 = vadd.f32 0.0, %v774
        %v776 = vpop.f32.mrf.mxu0
        %v777 = vadd.f32 0.0, %v776
        %778 = vmatmul.bf16.gmra.mxu0 %v682
        %v779 = vpop.f32.mrf.mxu0
        %v780 = vadd.f32 0.0, %v779
        %v781 = vpop.f32.mrf.mxu0
        %v782 = vadd.f32 0.0, %v781
        %783 = vmatmul.bf16.gmra.mxu0 %v683
        %v784 = vpop.f32.mrf.mxu0
        %v785 = vadd.f32 0.0, %v784
        %v786 = vpop.f32.mrf.mxu0
        %v787 = vadd.f32 0.0, %v786
        %788 = vmatmul.bf16.gmra.mxu0 %v684
        %v789 = vpop.f32.mrf.mxu0
        %v790 = vadd.f32 0.0, %v789
        %v791 = vpop.f32.mrf.mxu0
        %v792 = vadd.f32 0.0, %v791
        %793 = vmatmul.bf16.gmra.mxu0 %v685
        %v794 = vpop.f32.mrf.mxu0
        %v795 = vadd.f32 0.0, %v794
        %v796 = vpop.f32.mrf.mxu0
        %v797 = vadd.f32 0.0, %v796
        %798 = vmatmul.bf16.gmra.mxu0 %v686
        %v799 = vpop.f32.mrf.mxu0
        %v800 = vadd.f32 0.0, %v799
        %v801 = vpop.f32.mrf.mxu0
        %v802 = vadd.f32 0.0, %v801
        %803 = vmatmul.bf16.gmra.mxu0 %v687
        %v804 = vpop.f32.mrf.mxu0
        %v805 = vadd.f32 0.0, %v804
        %v806 = vpop.f32.mrf.mxu0
        %v807 = vadd.f32 0.0, %v806
        %808 = vmatmul.bf16.gmra.mxu0 %v688
        %v809 = vpop.f32.mrf.mxu0
        %v810 = vadd.f32 0.0, %v809
        %v811 = vpop.f32.mrf.mxu0
        %v812 = vadd.f32 0.0, %v811
        %813 = vmatmul.bf16.gmra.mxu0 %v689
        %v814 = vpop.f32.mrf.mxu0
        %v815 = vadd.f32 0.0, %v814
        %v816 = vpop.f32.mrf.mxu0
        %v817 = vadd.f32 0.0, %v816
        %818 = vmatmul.bf16.gmra.mxu0 %v690
        %v819 = vpop.f32.mrf.mxu0
        %v820 = vadd.f32 0.0, %v819
        %v821 = vpop.f32.mrf.mxu0
        %v822 = vadd.f32 0.0, %v821
        %823 = vmatmul.bf16.gmra.mxu0 %v691
        %v824 = vpop.f32.mrf.mxu0
        %v825 = vadd.f32 0.0, %v824
        %v826 = vpop.f32.mrf.mxu0
        %v827 = vadd.f32 0.0, %v826
        %828 = vmatmul.bf16.gmra.mxu0 %v692
        %v829 = vpop.f32.mrf.mxu0
        %v830 = vadd.f32 0.0, %v829
        %v831 = vpop.f32.mrf.mxu0
        %v832 = vadd.f32 0.0, %v831
        %833 = vmatmul.bf16.gmra.mxu0 %v693
        %v834 = vpop.f32.mrf.mxu0
        %v835 = vadd.f32 0.0, %v834
        %v836 = vpop.f32.mrf.mxu0
        %v837 = vadd.f32 0.0, %v836
        %838 = vmatmul.bf16.gmra.mxu0 %v694
        %v839 = vpop.f32.mrf.mxu0
        %v840 = vadd.f32 0.0, %v839
        %v841 = vpop.f32.mrf.mxu0
        %v842 = vadd.f32 0.0, %v841
        %843 = vmatmul.bf16.gmra.mxu0 %v695
        %v844 = vpop.f32.mrf.mxu0
        %v845 = vadd.f32 0.0, %v844
        %v846 = vpop.f32.mrf.mxu0
        %v847 = vadd.f32 0.0, %v846
        %848 = vdwg.mxu0
        %v849 = vmul.f32 %v770, %v648
        %v850 = vmul.f32 %v772, %v649
        %v851 = vmul.f32 %v775, %v650
        %v852 = vmul.f32 %v777, %v651
        %v853 = vmul.f32 %v780, %v652
        %v854 = vmul.f32 %v782, %v653
        %v855 = vmul.f32 %v785, %v654
        %v856 = vmul.f32 %v787, %v655
        %v857 = vmul.f32 %v790, %v656
        %v858 = vmul.f32 %v792, %v657
        %v859 = vmul.f32 %v795, %v658
        %v860 = vmul.f32 %v797, %v659
        %v861 = vmul.f32 %v800, %v660
        %v862 = vmul.f32 %v802, %v661
        %v863 = vmul.f32 %v805, %v662
        %v864 = vmul.f32 %v807, %v663
        %v865 = vmul.f32 %v810, %v664
        %v866 = vmul.f32 %v812, %v665
        %v867 = vmul.f32 %v815, %v666
        %v868 = vmul.f32 %v817, %v667
        %v869 = vmul.f32 %v820, %v668
        %v870 = vmul.f32 %v822, %v669
        %v871 = vmul.f32 %v825, %v670
        %v872 = vmul.f32 %v827, %v671
        %v873 = vmul.f32 %v830, %v672
        %v874 = vmul.f32 %v832, %v673
        %v875 = vmul.f32 %v835, %v674
        %v876 = vmul.f32 %v837, %v675
        %v877 = vmul.f32 %v840, %v676
        %v878 = vmul.f32 %v842, %v677
        %v879 = vmul.f32 %v845, %v678
        %v880 = vmul.f32 %v847, %v679
        %v881 = vld [vmem:[%s277] sm:$0xff]
        %v882 = vld [vmem:[%s277 + $0x8] sm:$0xff]
        %v883 = vld [vmem:[%s277 + $0x10] sm:$0xff]
        %v884 = vld [vmem:[%s277 + $0x18] sm:$0xff]
        %v885 = vld [vmem:[%s277 + $0x20] sm:$0xff]
        %v886 = vld [vmem:[%s277 + $0x28] sm:$0xff]
        %v887 = vld [vmem:[%s277 + $0x30] sm:$0xff]
        %v888 = vld [vmem:[%s277 + $0x38] sm:$0xff]
        %v889 = vld [vmem:[%s277 + $0x40] sm:$0xff]
        %v890 = vld [vmem:[%s277 + $0x48] sm:$0xff]
        %v891 = vld [vmem:[%s277 + $0x50] sm:$0xff]
        %v892 = vld [vmem:[%s277 + $0x58] sm:$0xff]
        %v893 = vld [vmem:[%s277 + $0x60] sm:$0xff]
        %v894 = vld [vmem:[%s277 + $0x68] sm:$0xff]
        %v895 = vld [vmem:[%s277 + $0x70] sm:$0xff]
        %v896 = vld [vmem:[%s277 + $0x78] sm:$0xff]
        %v897 = vld [vmem:[%s277 + $0x80] sm:$0xff]
        %v898 = vld [vmem:[%s277 + $0x88] sm:$0xff]
        %v899 = vld [vmem:[%s277 + $0x90] sm:$0xff]
        %v900 = vld [vmem:[%s277 + $0x98] sm:$0xff]
        %v901 = vld [vmem:[%s277 + $0xa0] sm:$0xff]
        %v902 = vld [vmem:[%s277 + $0xa8] sm:$0xff]
        %v903 = vld [vmem:[%s277 + $0xb0] sm:$0xff]
        %v904 = vld [vmem:[%s277 + $0xb8] sm:$0xff]
        %v905 = vld [vmem:[%s277 + $0xc0] sm:$0xff]
        %v906 = vld [vmem:[%s277 + $0xc8] sm:$0xff]
        %v907 = vld [vmem:[%s277 + $0xd0] sm:$0xff]
        %v908 = vld [vmem:[%s277 + $0xd8] sm:$0xff]
        %v909 = vld [vmem:[%s277 + $0xe0] sm:$0xff]
        %v910 = vld [vmem:[%s277 + $0xe8] sm:$0xff]
        %v911 = vld [vmem:[%s277 + $0xf0] sm:$0xff]
        %v912 = vld [vmem:[%s277 + $0xf8] sm:$0xff]
        %v913 = vadd.f32 %v849, %v881
        %v914 = vadd.f32 %v850, %v882
        %v915 = vadd.f32 %v851, %v883
        %v916 = vadd.f32 %v852, %v884
        %v917 = vadd.f32 %v853, %v885
        %v918 = vadd.f32 %v854, %v886
        %v919 = vadd.f32 %v855, %v887
        %v920 = vadd.f32 %v856, %v888
        %v921 = vadd.f32 %v857, %v889
        %v922 = vadd.f32 %v858, %v890
        %v923 = vadd.f32 %v859, %v891
        %v924 = vadd.f32 %v860, %v892
        %v925 = vadd.f32 %v861, %v893
        %v926 = vadd.f32 %v862, %v894
        %v927 = vadd.f32 %v863, %v895
        %v928 = vadd.f32 %v864, %v896
        %v929 = vadd.f32 %v865, %v897
        %v930 = vadd.f32 %v866, %v898
        %v931 = vadd.f32 %v867, %v899
        %v932 = vadd.f32 %v868, %v900
        %v933 = vadd.f32 %v869, %v901
        %v934 = vadd.f32 %v870, %v902
        %v935 = vadd.f32 %v871, %v903
        %v936 = vadd.f32 %v872, %v904
        %v937 = vadd.f32 %v873, %v905
        %v938 = vadd.f32 %v874, %v906
        %v939 = vadd.f32 %v875, %v907
        %v940 = vadd.f32 %v876, %v908
        %v941 = vadd.f32 %v877, %v909
        %v942 = vadd.f32 %v878, %v910
        %v943 = vadd.f32 %v879, %v911
        %v944 = vadd.f32 %v880, %v912
        %vm945 = vcmask 130048
        %946 = vst.msk [vmem:[%s254] sm:$0xff] %vm945, %v913
        %947 = vst.msk [vmem:[%s254 + $0x8] sm:$0xff] %vm945, %v914
        %948 = vst.msk [vmem:[%s254 + $0x10] sm:$0xff] %vm945, %v915
        %949 = vst.msk [vmem:[%s254 + $0x18] sm:$0xff] %vm945, %v916
        %950 = vst.msk [vmem:[%s254 + $0x20] sm:$0xff] %vm945, %v917
        %951 = vst.msk [vmem:[%s254 + $0x28] sm:$0xff] %vm945, %v918
        %952 = vst.msk [vmem:[%s254 + $0x30] sm:$0xff] %vm945, %v919
        %953 = vst.msk [vmem:[%s254 + $0x38] sm:$0xff] %vm945, %v920
        %954 = vst.msk [vmem:[%s254 + $0x40] sm:$0xff] %vm945, %v921
        %955 = vst.msk [vmem:[%s254 + $0x48] sm:$0xff] %vm945, %v922
        %956 = vst.msk [vmem:[%s254 + $0x50] sm:$0xff] %vm945, %v923
        %957 = vst.msk [vmem:[%s254 + $0x58] sm:$0xff] %vm945, %v924
        %958 = vst.msk [vmem:[%s254 + $0x60] sm:$0xff] %vm945, %v925
        %959 = vst.msk [vmem:[%s254 + $0x68] sm:$0xff] %vm945, %v926
        %960 = vst.msk [vmem:[%s254 + $0x70] sm:$0xff] %vm945, %v927
        %961 = vst.msk [vmem:[%s254 + $0x78] sm:$0xff] %vm945, %v928
        %962 = vst.msk [vmem:[%s254 + $0x80] sm:$0xff] %vm945, %v929
        %963 = vst.msk [vmem:[%s254 + $0x88] sm:$0xff] %vm945, %v930
        %964 = vst.msk [vmem:[%s254 + $0x90] sm:$0xff] %vm945, %v931
        %965 = vst.msk [vmem:[%s254 + $0x98] sm:$0xff] %vm945, %v932
        %966 = vst.msk [vmem:[%s254 + $0xa0] sm:$0xff] %vm945, %v933
        %967 = vst.msk [vmem:[%s254 + $0xa8] sm:$0xff] %vm945, %v934
        %968 = vst.msk [vmem:[%s254 + $0xb0] sm:$0xff] %vm945, %v935
        %969 = vst.msk [vmem:[%s254 + $0xb8] sm:$0xff] %vm945, %v936
        %970 = vst.msk [vmem:[%s254 + $0xc0] sm:$0xff] %vm945, %v937
        %971 = vst.msk [vmem:[%s254 + $0xc8] sm:$0xff] %vm945, %v938
        %972 = vst.msk [vmem:[%s254 + $0xd0] sm:$0xff] %vm945, %v939
        %973 = vst.msk [vmem:[%s254 + $0xd8] sm:$0xff] %vm945, %v940
        %974 = vst.msk [vmem:[%s254 + $0xe0] sm:$0xff] %vm945, %v941
        %975 = vst.msk [vmem:[%s254 + $0xe8] sm:$0xff] %vm945, %v942
        %976 = vst.msk [vmem:[%s254 + $0xf0] sm:$0xff] %vm945, %v943
        %977 = vst.msk [vmem:[%s254 + $0xf8] sm:$0xff] %vm945, %v944
        %s978 = sand.u32 %s139, 1
        %s979 = sand.u32 %s139, 1
        %s980 = smul.addr %s979, 256
        %s981 = scalar_lea.vmem [#allocation2], %s980
        // Predicated region
        $region41: #{bottleneck_forward.5} parent=39 // pred_check
          %p982 = pneg %p149
        $region42: #{bottleneck_forward.5} parent=39 // pred_check_branch
          %984 = sbr.rel (%p982) target = $region44
        $region43: #{bottleneck_forward.5} parent=39 // pred_region
          %s985 = smul.u32 32, %s16
          %s986 = ssub.s32 49, %s985
          %p987 = scmp.lt.s32.totalorder %s986, 32
          %s988 = scalar_select %p987, %s986, 32
          %s989 = smul.u32 8, %s988
          %p990 = scmp.ne.s32.totalorder 0, %s989
          %s991 = smul.addr %s985, 8
          %s992 = scalar_lea.vmem %s5, %s991
          // Predicated region
          $region45: #{bottleneck_forward.5} parent=43 // pred_check
            %p993 = pneg %p990
          $region46: #{bottleneck_forward.5} parent=43 // pred_check_branch
            %995 = sbr.rel (%p993) target = $region48
          $region47: #{bottleneck_forward.5} parent=43 // pred_region
            // Predicated region
            $region49: #{bottleneck_forward.5} parent=47 // pred_check
              _
            $region50: #{bottleneck_forward.5} parent=47 // pred_check_branch
              %997 = sbr.rel (0) target = $region52
            $region51: #{bottleneck_forward.5} parent=47 // pred_region
              // Predicated region
              $region71: #{bottleneck_forward.5} parent=51 // pred_check
                _
              $region72: #{bottleneck_forward.5} parent=51 // pred_check_branch
                %1109 = sbr.rel (0) target = $region74
              $region73: #{bottleneck_forward.5} parent=51 // pred_region
                %s1110 = sshrl.u32 %s988, 5
                // While loop
                $region75: #{bottleneck_forward.5} parent=73 // loop_pre_header
                  _
                $region76: #{bottleneck_forward.5} parent=73 // loop_header
                  %s1112 = sphi 0, %s1114
                  %p1113 = scmp.ge.s32.totalorder %s1112, %s1110
                  %s1117 = sphi 0, %s1186
                  %s1118 = sphi %s981, %s1189
                  %s1119 = sphi %s992, %s1190
                $region77: #{bottleneck_forward.5} parent=73 // loop_header_branch
                  %1116 = sbr.rel (%p1113) target = $region81
                $region78: #{bottleneck_forward.5} parent=73 // loop_body
                  %v1120 = vld [vmem:[%s1118] sm:$0xff]
                  %1121 = vst [vmem:[%s1119] sm:$0xff] %v1120
                  %v1122 = vld [vmem:[%s1118 + $0x8] sm:$0xff]
                  %1123 = vst [vmem:[%s1119 + $0x8] sm:$0xff] %v1122
                  %v1124 = vld [vmem:[%s1118 + $0x10] sm:$0xff]
                  %1125 = vst [vmem:[%s1119 + $0x10] sm:$0xff] %v1124
                  %v1126 = vld [vmem:[%s1118 + $0x18] sm:$0xff]
                  %1127 = vst [vmem:[%s1119 + $0x18] sm:$0xff] %v1126
                  %v1128 = vld [vmem:[%s1118 + $0x20] sm:$0xff]
                  %1129 = vst [vmem:[%s1119 + $0x20] sm:$0xff] %v1128
                  %v1130 = vld [vmem:[%s1118 + $0x28] sm:$0xff]
                  %1131 = vst [vmem:[%s1119 + $0x28] sm:$0xff] %v1130
                  %v1132 = vld [vmem:[%s1118 + $0x30] sm:$0xff]
                  %1133 = vst [vmem:[%s1119 + $0x30] sm:$0xff] %v1132
                  %v1134 = vld [vmem:[%s1118 + $0x38] sm:$0xff]
                  %1135 = vst [vmem:[%s1119 + $0x38] sm:$0xff] %v1134
                  %v1136 = vld [vmem:[%s1118 + $0x40] sm:$0xff]
                  %1137 = vst [vmem:[%s1119 + $0x40] sm:$0xff] %v1136
                  %v1138 = vld [vmem:[%s1118 + $0x48] sm:$0xff]
                  %1139 = vst [vmem:[%s1119 + $0x48] sm:$0xff] %v1138
                  %v1140 = vld [vmem:[%s1118 + $0x50] sm:$0xff]
                  %1141 = vst [vmem:[%s1119 + $0x50] sm:$0xff] %v1140
                  %v1142 = vld [vmem:[%s1118 + $0x58] sm:$0xff]
                  %1143 = vst [vmem:[%s1119 + $0x58] sm:$0xff] %v1142
                  %v1144 = vld [vmem:[%s1118 + $0x60] sm:$0xff]
                  %1145 = vst [vmem:[%s1119 + $0x60] sm:$0xff] %v1144
                  %v1146 = vld [vmem:[%s1118 + $0x68] sm:$0xff]
                  %1147 = vst [vmem:[%s1119 + $0x68] sm:$0xff] %v1146
                  %v1148 = vld [vmem:[%s1118 + $0x70] sm:$0xff]
                  %1149 = vst [vmem:[%s1119 + $0x70] sm:$0xff] %v1148
                  %v1150 = vld [vmem:[%s1118 + $0x78] sm:$0xff]
                  %1151 = vst [vmem:[%s1119 + $0x78] sm:$0xff] %v1150
                  %v1152 = vld [vmem:[%s1118 + $0x80] sm:$0xff]
                  %1153 = vst [vmem:[%s1119 + $0x80] sm:$0xff] %v1152
                  %v1154 = vld [vmem:[%s1118 + $0x88] sm:$0xff]
                  %1155 = vst [vmem:[%s1119 + $0x88] sm:$0xff] %v1154
                  %v1156 = vld [vmem:[%s1118 + $0x90] sm:$0xff]
                  %1157 = vst [vmem:[%s1119 + $0x90] sm:$0xff] %v1156
                  %v1158 = vld [vmem:[%s1118 + $0x98] sm:$0xff]
                  %1159 = vst [vmem:[%s1119 + $0x98] sm:$0xff] %v1158
                  %v1160 = vld [vmem:[%s1118 + $0xa0] sm:$0xff]
                  %1161 = vst [vmem:[%s1119 + $0xa0] sm:$0xff] %v1160
                  %v1162 = vld [vmem:[%s1118 + $0xa8] sm:$0xff]
                  %1163 = vst [vmem:[%s1119 + $0xa8] sm:$0xff] %v1162
                  %v1164 = vld [vmem:[%s1118 + $0xb0] sm:$0xff]
                  %1165 = vst [vmem:[%s1119 + $0xb0] sm:$0xff] %v1164
                  %v1166 = vld [vmem:[%s1118 + $0xb8] sm:$0xff]
                  %1167 = vst [vmem:[%s1119 + $0xb8] sm:$0xff] %v1166
                  %v1168 = vld [vmem:[%s1118 + $0xc0] sm:$0xff]
                  %1169 = vst [vmem:[%s1119 + $0xc0] sm:$0xff] %v1168
                  %v1170 = vld [vmem:[%s1118 + $0xc8] sm:$0xff]
                  %1171 = vst [vmem:[%s1119 + $0xc8] sm:$0xff] %v1170
                  %v1172 = vld [vmem:[%s1118 + $0xd0] sm:$0xff]
                  %1173 = vst [vmem:[%s1119 + $0xd0] sm:$0xff] %v1172
                  %v1174 = vld [vmem:[%s1118 + $0xd8] sm:$0xff]
                  %1175 = vst [vmem:[%s1119 + $0xd8] sm:$0xff] %v1174
                  %v1176 = vld [vmem:[%s1118 + $0xe0] sm:$0xff]
                  %1177 = vst [vmem:[%s1119 + $0xe0] sm:$0xff] %v1176
                  %v1178 = vld [vmem:[%s1118 + $0xe8] sm:$0xff]
                  %1179 = vst [vmem:[%s1119 + $0xe8] sm:$0xff] %v1178
                  %v1180 = vld [vmem:[%s1118 + $0xf0] sm:$0xff]
                  %1181 = vst [vmem:[%s1119 + $0xf0] sm:$0xff] %v1180
                  %v1182 = vld [vmem:[%s1118 + $0xf8] sm:$0xff]
                  %1183 = vst [vmem:[%s1119 + $0xf8] sm:$0xff] %v1182
                  %s1184 = sadd.s32 1, %s1117
                  %p1185 = scmp.ge.s32.totalorder %s1184, %s1110
                  %s1186 = scalar_select %p1185, 0, %s1184
                  %s1187 = smul.u32 %s1186, 256
                  %s1188 = smul.u32 %s1186, 256
                  %s1189 = scalar_lea.vmem %s981, %s1187 [#allocation2]
                  %s1190 = scalar_lea.vmem %s992, %s1188
                $region79: #{bottleneck_forward.5} parent=73 // loop_footer
                  %s1114 = sadd.s32 %s1112, 1
                $region80: #{bottleneck_forward.5} parent=73 // loop_footer_branch
                  %1111 = sbr.rel target = $region76
                $region81: #{bottleneck_forward.5} parent=73 // loop_exit
                  _
                %s1191 = sshrl.u32 %s988, 5
                %s1192 = sand.u32 %s988, 31
                %s1193 = smul.u32 %s1191, 32
                %s1194 = smul.u32 8, %s1193
                %s1195 = scalar_lea.vmem %s981, %s1194 [#allocation2]
                %s1196 = smul.u32 8, %s1193
                %s1197 = scalar_lea.vmem %s992, %s1196
                // While loop
                $region82: #{bottleneck_forward.5} parent=73 // loop_pre_header
                  _
                $region83: #{bottleneck_forward.5} parent=73 // loop_header
                  %s1199 = sphi 0, %s1201
                  %p1200 = scmp.ge.s32.totalorder %s1199, %s1192
                  %s1204 = sphi 0, %s1211
                  %s1205 = sphi %s1195, %s1214
                  %s1206 = sphi %s1197, %s1215
                $region84: #{bottleneck_forward.5} parent=73 // loop_header_branch
                  %1203 = sbr.rel (%p1200) target = $region88
                $region85: #{bottleneck_forward.5} parent=73 // loop_body
                  %v1207 = vld [vmem:[%s1205] sm:$0xff]
                  %1208 = vst [vmem:[%s1206] sm:$0xff] %v1207
                  %s1209 = sadd.s32 1, %s1204
                  %p1210 = scmp.ge.s32.totalorder %s1209, %s1192
                  %s1211 = scalar_select %p1210, 0, %s1209
                  %s1212 = smul.u32 %s1211, 8
                  %s1213 = smul.u32 %s1211, 8
                  %s1214 = scalar_lea.vmem %s1195, %s1212 [#allocation2]
                  %s1215 = scalar_lea.vmem %s1197, %s1213
                $region86: #{bottleneck_forward.5} parent=73 // loop_footer
                  %s1201 = sadd.s32 %s1199, 1
                $region87: #{bottleneck_forward.5} parent=73 // loop_footer_branch
                  %1198 = sbr.rel target = $region83
                $region88: #{bottleneck_forward.5} parent=73 // loop_exit
                  _
              $region74: #{bottleneck_forward.5} parent=51 // pred_fallthru
                _
              // Predicated region
              $region89: #{bottleneck_forward.5} parent=51 // pred_check
                _
              $region90: #{bottleneck_forward.5} parent=51 // pred_check_branch
                %1217 = sbr.rel target = $region92
              $region91: #{bottleneck_forward.5} parent=51 // pred_region
                _
              $region92: #{bottleneck_forward.5} parent=51 // pred_fallthru
                _
            $region52: #{bottleneck_forward.5} parent=47 // pred_fallthru
              _
            // Predicated region
            $region53: #{bottleneck_forward.5} parent=47 // pred_check
              _
            $region54: #{bottleneck_forward.5} parent=47 // pred_check_branch
              %999 = sbr.rel target = $region56
            $region55: #{bottleneck_forward.5} parent=47 // pred_region
              %s1001 = ssub.s32 256, 1
              %s1002 = sshrl.u32 %s988, 5
              // While loop
              $region57: #{bottleneck_forward.5} parent=55 // loop_pre_header
                _
              $region58: #{bottleneck_forward.5} parent=55 // loop_header
                %s1004 = sphi 0, %s1006
                %p1005 = scmp.ge.s32.totalorder %s1004, %s1002
                %s1009 = sphi 0, %s1078
                %s1010 = sphi %s981, %s1081
                %s1011 = sphi %s992, %s1082
              $region59: #{bottleneck_forward.5} parent=55 // loop_header_branch
                %1008 = sbr.rel (%p1005) target = $region63
              $region60: #{bottleneck_forward.5} parent=55 // loop_body
                %v1012 = vld [vmem:[%s1010] sm:%s1001]
                %1013 = vst [vmem:[%s1011] sm:%s1001] %v1012
                %v1014 = vld [vmem:[%s1010 + $0x8] sm:%s1001]
                %1015 = vst [vmem:[%s1011 + $0x8] sm:%s1001] %v1014
                %v1016 = vld [vmem:[%s1010 + $0x10] sm:%s1001]
                %1017 = vst [vmem:[%s1011 + $0x10] sm:%s1001] %v1016
                %v1018 = vld [vmem:[%s1010 + $0x18] sm:%s1001]
                %1019 = vst [vmem:[%s1011 + $0x18] sm:%s1001] %v1018
                %v1020 = vld [vmem:[%s1010 + $0x20] sm:%s1001]
                %1021 = vst [vmem:[%s1011 + $0x20] sm:%s1001] %v1020
                %v1022 = vld [vmem:[%s1010 + $0x28] sm:%s1001]
                %1023 = vst [vmem:[%s1011 + $0x28] sm:%s1001] %v1022
                %v1024 = vld [vmem:[%s1010 + $0x30] sm:%s1001]
                %1025 = vst [vmem:[%s1011 + $0x30] sm:%s1001] %v1024
                %v1026 = vld [vmem:[%s1010 + $0x38] sm:%s1001]
                %1027 = vst [vmem:[%s1011 + $0x38] sm:%s1001] %v1026
                %v1028 = vld [vmem:[%s1010 + $0x40] sm:%s1001]
                %1029 = vst [vmem:[%s1011 + $0x40] sm:%s1001] %v1028
                %v1030 = vld [vmem:[%s1010 + $0x48] sm:%s1001]
                %1031 = vst [vmem:[%s1011 + $0x48] sm:%s1001] %v1030
                %v1032 = vld [vmem:[%s1010 + $0x50] sm:%s1001]
                %1033 = vst [vmem:[%s1011 + $0x50] sm:%s1001] %v1032
                %v1034 = vld [vmem:[%s1010 + $0x58] sm:%s1001]
                %1035 = vst [vmem:[%s1011 + $0x58] sm:%s1001] %v1034
                %v1036 = vld [vmem:[%s1010 + $0x60] sm:%s1001]
                %1037 = vst [vmem:[%s1011 + $0x60] sm:%s1001] %v1036
                %v1038 = vld [vmem:[%s1010 + $0x68] sm:%s1001]
                %1039 = vst [vmem:[%s1011 + $0x68] sm:%s1001] %v1038
                %v1040 = vld [vmem:[%s1010 + $0x70] sm:%s1001]
                %1041 = vst [vmem:[%s1011 + $0x70] sm:%s1001] %v1040
                %v1042 = vld [vmem:[%s1010 + $0x78] sm:%s1001]
                %1043 = vst [vmem:[%s1011 + $0x78] sm:%s1001] %v1042
                %v1044 = vld [vmem:[%s1010 + $0x80] sm:%s1001]
                %1045 = vst [vmem:[%s1011 + $0x80] sm:%s1001] %v1044
                %v1046 = vld [vmem:[%s1010 + $0x88] sm:%s1001]
                %1047 = vst [vmem:[%s1011 + $0x88] sm:%s1001] %v1046
                %v1048 = vld [vmem:[%s1010 + $0x90] sm:%s1001]
                %1049 = vst [vmem:[%s1011 + $0x90] sm:%s1001] %v1048
                %v1050 = vld [vmem:[%s1010 + $0x98] sm:%s1001]
                %1051 = vst [vmem:[%s1011 + $0x98] sm:%s1001] %v1050
                %v1052 = vld [vmem:[%s1010 + $0xa0] sm:%s1001]
                %1053 = vst [vmem:[%s1011 + $0xa0] sm:%s1001] %v1052
                %v1054 = vld [vmem:[%s1010 + $0xa8] sm:%s1001]
                %1055 = vst [vmem:[%s1011 + $0xa8] sm:%s1001] %v1054
                %v1056 = vld [vmem:[%s1010 + $0xb0] sm:%s1001]
                %1057 = vst [vmem:[%s1011 + $0xb0] sm:%s1001] %v1056
                %v1058 = vld [vmem:[%s1010 + $0xb8] sm:%s1001]
                %1059 = vst [vmem:[%s1011 + $0xb8] sm:%s1001] %v1058
                %v1060 = vld [vmem:[%s1010 + $0xc0] sm:%s1001]
                %1061 = vst [vmem:[%s1011 + $0xc0] sm:%s1001] %v1060
                %v1062 = vld [vmem:[%s1010 + $0xc8] sm:%s1001]
                %1063 = vst [vmem:[%s1011 + $0xc8] sm:%s1001] %v1062
                %v1064 = vld [vmem:[%s1010 + $0xd0] sm:%s1001]
                %1065 = vst [vmem:[%s1011 + $0xd0] sm:%s1001] %v1064
                %v1066 = vld [vmem:[%s1010 + $0xd8] sm:%s1001]
                %1067 = vst [vmem:[%s1011 + $0xd8] sm:%s1001] %v1066
                %v1068 = vld [vmem:[%s1010 + $0xe0] sm:%s1001]
                %1069 = vst [vmem:[%s1011 + $0xe0] sm:%s1001] %v1068
                %v1070 = vld [vmem:[%s1010 + $0xe8] sm:%s1001]
                %1071 = vst [vmem:[%s1011 + $0xe8] sm:%s1001] %v1070
                %v1072 = vld [vmem:[%s1010 + $0xf0] sm:%s1001]
                %1073 = vst [vmem:[%s1011 + $0xf0] sm:%s1001] %v1072
                %v1074 = vld [vmem:[%s1010 + $0xf8] sm:%s1001]
                %1075 = vst [vmem:[%s1011 + $0xf8] sm:%s1001] %v1074
                %s1076 = sadd.s32 1, %s1009
                %p1077 = scmp.ge.s32.totalorder %s1076, %s1002
                %s1078 = scalar_select %p1077, 0, %s1076
                %s1079 = smul.u32 %s1078, 256
                %s1080 = smul.u32 %s1078, 256
                %s1081 = scalar_lea.vmem %s981, %s1079 [#allocation2]
                %s1082 = scalar_lea.vmem %s992, %s1080
              $region61: #{bottleneck_forward.5} parent=55 // loop_footer
                %s1006 = sadd.s32 %s1004, 1
              $region62: #{bottleneck_forward.5} parent=55 // loop_footer_branch
                %1003 = sbr.rel target = $region58
              $region63: #{bottleneck_forward.5} parent=55 // loop_exit
                _
              %s1083 = sshrl.u32 %s988, 5
              %s1084 = sand.u32 %s988, 31
              %s1085 = smul.u32 %s1083, 32
              %s1086 = smul.u32 8, %s1085
              %s1087 = scalar_lea.vmem %s981, %s1086 [#allocation2]
              %s1088 = smul.u32 8, %s1085
              %s1089 = scalar_lea.vmem %s992, %s1088
              // While loop
              $region64: #{bottleneck_forward.5} parent=55 // loop_pre_header
                _
              $region65: #{bottleneck_forward.5} parent=55 // loop_header
                %s1091 = sphi 0, %s1093
                %p1092 = scmp.ge.s32.totalorder %s1091, %s1084
                %s1096 = sphi 0, %s1103
                %s1097 = sphi %s1087, %s1106
                %s1098 = sphi %s1089, %s1107
              $region66: #{bottleneck_forward.5} parent=55 // loop_header_branch
                %1095 = sbr.rel (%p1092) target = $region70
              $region67: #{bottleneck_forward.5} parent=55 // loop_body
                %v1099 = vld [vmem:[%s1097] sm:%s1001]
                %1100 = vst [vmem:[%s1098] sm:%s1001] %v1099
                %s1101 = sadd.s32 1, %s1096
                %p1102 = scmp.ge.s32.totalorder %s1101, %s1084
                %s1103 = scalar_select %p1102, 0, %s1101
                %s1104 = smul.u32 %s1103, 8
                %s1105 = smul.u32 %s1103, 8
                %s1106 = scalar_lea.vmem %s1087, %s1104 [#allocation2]
                %s1107 = scalar_lea.vmem %s1089, %s1105
              $region68: #{bottleneck_forward.5} parent=55 // loop_footer
                %s1093 = sadd.s32 %s1091, 1
              $region69: #{bottleneck_forward.5} parent=55 // loop_footer_branch
                %1090 = sbr.rel target = $region65
              $region70: #{bottleneck_forward.5} parent=55 // loop_exit
                _
            $region56: #{bottleneck_forward.5} parent=47 // pred_fallthru
              _
          $region48: #{bottleneck_forward.5} parent=43 // pred_fallthru
            _
          %1218 = vnop
        $region44: #{bottleneck_forward.5} parent=39 // pred_fallthru
          _
      $region40: #{bottleneck_forward.5} parent=5 // pred_fallthru
        _
      %p1219 = scmp.le.s32.totalorder 2, %s11
      // Predicated region
      $region93: #{bottleneck_forward.5} parent=5 // pred_check
        %p1220 = pneg %p1219
      $region94: #{bottleneck_forward.5} parent=5 // pred_check_branch
        %1222 = sbr.rel (%p1220) target = $region96
      $region95: #{bottleneck_forward.5} parent=5 // pred_region
        %s1223 = ssub.s32 %s11, 2
        // Predicated region
        $region97: #{bottleneck_forward.5} parent=95 // pred_check
          %p1224 = pneg %p155
        $region98: #{bottleneck_forward.5} parent=95 // pred_check_branch
          %1226 = sbr.rel (%p1224) target = $region100
        $region99: #{bottleneck_forward.5} parent=95 // pred_region
          %s1227 = sand.u32 %s140, 1
          %s1228 = sand.u32 %s140, 1
          %s1229 = smul.addr %s1228, 256
          %s1230 = scalar_lea.vmem [#allocation2], %s1229
        $region100: #{bottleneck_forward.5} parent=95 // pred_fallthru
          _
      $region96: #{bottleneck_forward.5} parent=5 // pred_fallthru
        _
    $region6: #{bottleneck_forward.5} parent=1 // loop_footer
      %s15 = sadd.s32 1, %s11
    $region7: #{bottleneck_forward.5} parent=1 // loop_footer_branch
      %10 = sbr.rel target = $region3
    $region8: #{bottleneck_forward.5} parent=1 // loop_exit
      _

// kernel: bottleneck_forward.4
$region0: #{bottleneck_forward.4}
  #allocation0 [shape = 'u32[]', space=smem, size = 0x4, offset = 0x4, fixed_abs, tag = 'smem constant byte address 0x4 - core index']
  #allocation1 [shape = 'u32[72,128]{1,0:T(1,128)}', space=vmem, size = 0x9000, scoped, tag = 'internal scratch']
  %s0 = inlined_call_operand.vmem [shape: bf16[2,14,14,128], index: 0, kind: input, shape index: {}]
  %s1 = inlined_call_operand.vmem [shape: f32[1,128], index: 1, kind: input, shape index: {}]
  %s2 = inlined_call_operand.vmem [shape: f32[1,128], index: 2, kind: input, shape index: {}]
  %s3 = inlined_call_operand.vmem [shape: bf16[1152,128], index: 3, kind: input, shape index: {}]
  %s4 = inlined_call_operand.vmem [shape: bf16[2,14,14,128], index: 4, kind: output, shape index: {0}]
  %s5 = inlined_call_operand.vmem [shape: f32[2,1,128], index: 5, kind: output, shape index: {1}]
  %s6 = inlined_call_operand.vmem [shape: f32[2,1,128], index: 6, kind: output, shape index: {2}]
  %7 = xla_tuple %s4, %s5, %s6
  %s8 = sld [smem:[#allocation0]]
  $region65: #{bottleneck_forward.4} parent=0
    _
  %s10 = ssub.s32 1, %s8
  %s11 = scalar_select 0, %s10, %s8
  loop: start=0, step=1, limit=4
  $region2: #{bottleneck_forward.4} parent=0 // loop_pre_header
    _
  $region3: #{bottleneck_forward.4} parent=0 // loop_header
    %s13 = sphi 0, %s17
    %p14 = scmp.ge.s32.totalorder %s13, 4
    %s23 = sphi 0, %s25
    %s26 = sphi 0, %s23
    %s27 = sphi 0, %s26
    %s43 = sphi 0, %s27
    %s47 = sphi 0, %s47
    %s49 = sphi 0, %s47
    %s50 = sphi 0, %s49
    %s64 = sphi 0, %s50
    %s68 = sphi 0, %s68
    %s70 = sphi 0, %s68
    %s71 = sphi 0, %s70
    %s85 = sphi 0, %s71
    %s89 = sphi 0, %s89
    %s91 = sphi 0, %s89
    %s92 = sphi 0, %s91
    %s106 = sphi 0, %s92
    %s112 = sphi 0, %s114
    %s115 = sphi 0, %s112
    %s116 = sphi 0, %s115
    %s132 = sphi 0, %s116
    %s138 = sphi 0, %s140
    %s141 = sphi 0, %s138
    %s142 = sphi 0, %s141
    %s158 = sphi 0, %s142
    %s164 = sphi 0, %s166
    %s167 = sphi 0, %s164
    %s168 = sphi 0, %s167
    %s184 = sphi 0, %s168
  $region4: #{bottleneck_forward.4} parent=0 // loop_header_branch
    %16 = sbr.rel (%p14) target = $region8
  $region5: #{bottleneck_forward.4} parent=0 // loop_body
    %s18 = ssub.s32 %s13, 1
    %s19 = ssub.s32 %s13, 2
    %s20 = sadd.s32 %s13, 1
    %s21 = ssub.s32 %s13, %s20
    %p22 = scmp.eq.s32.totalorder %s21, 0
    %s24 = sadd.s32 %s23, 1
    %s25 = scalar_select %p22, %s23, %s24
    %p28 = pneg %p22
    %p29 = scmp.eq.s32.totalorder %s13, 1
    %p30 = por %p28, %p29
    %p31 = scmp.ne.s32.totalorder %s23, %s26
    %p32 = scmp.eq.s32.totalorder %s13, 0
    %p33 = por %p31, %p32
    %p34 = scmp.ne.s32.totalorder %s23, %s26
    %p35 = scmp.eq.s32.totalorder %s18, 1
    %p36 = por %p34, %p35
    %p37 = scmp.ne.s32.totalorder %s26, %s27
    %p38 = scmp.eq.s32.totalorder %s18, 0
    %p39 = por %p37, %p38
    %p40 = scmp.ne.s32.totalorder %s26, %s27
    %p41 = scmp.eq.s32.totalorder %s19, 1
    %p42 = por %p40, %p41
    %p44 = scmp.ne.s32.totalorder %s27, %s43
    %p45 = scmp.eq.s32.totalorder %s19, 0
    %p46 = por %p44, %p45
    %s48 = sadd.s32 %s47, 1
    %p51 = scmp.eq.s32.totalorder %s13, 1
    %p52 = scmp.ne.s32.totalorder %s47, %s49
    %p53 = scmp.eq.s32.totalorder %s13, 0
    %p54 = por %p52, %p53
    %p55 = scmp.ne.s32.totalorder %s47, %s49
    %p56 = scmp.eq.s32.totalorder %s18, 1
    %p57 = por %p55, %p56
    %p58 = scmp.ne.s32.totalorder %s49, %s50
    %p59 = scmp.eq.s32.totalorder %s18, 0
    %p60 = por %p58, %p59
    %p61 = scmp.ne.s32.totalorder %s49, %s50
    %p62 = scmp.eq.s32.totalorder %s19, 1
    %p63 = por %p61, %p62
    %p65 = scmp.ne.s32.totalorder %s50, %s64
    %p66 = scmp.eq.s32.totalorder %s19, 0
    %p67 = por %p65, %p66
    %s69 = sadd.s32 %s68, 1
    %p72 = scmp.eq.s32.totalorder %s13, 1
    %p73 = scmp.ne.s32.totalorder %s68, %s70
    %p74 = scmp.eq.s32.totalorder %s13, 0
    %p75 = por %p73, %p74
    %p76 = scmp.ne.s32.totalorder %s68, %s70
    %p77 = scmp.eq.s32.totalorder %s18, 1
    %p78 = por %p76, %p77
    %p79 = scmp.ne.s32.totalorder %s70, %s71
    %p80 = scmp.eq.s32.totalorder %s18, 0
    %p81 = por %p79, %p80
    %p82 = scmp.ne.s32.totalorder %s70, %s71
    %p83 = scmp.eq.s32.totalorder %s19, 1
    %p84 = por %p82, %p83
    %p86 = scmp.ne.s32.totalorder %s71, %s85
    %p87 = scmp.eq.s32.totalorder %s19, 0
    %p88 = por %p86, %p87
    %s90 = sadd.s32 %s89, 1
    %p93 = scmp.eq.s32.totalorder %s13, 1
    %p94 = scmp.ne.s32.totalorder %s89, %s91
    %p95 = scmp.eq.s32.totalorder %s13, 0
    %p96 = por %p94, %p95
    %p97 = scmp.ne.s32.totalorder %s89, %s91
    %p98 = scmp.eq.s32.totalorder %s18, 1
    %p99 = por %p97, %p98
    %p100 = scmp.ne.s32.totalorder %s91, %s92
    %p101 = scmp.eq.s32.totalorder %s18, 0
    %p102 = por %p100, %p101
    %p103 = scmp.ne.s32.totalorder %s91, %s92
    %p104 = scmp.eq.s32.totalorder %s19, 1
    %p105 = por %p103, %p104
    %p107 = scmp.ne.s32.totalorder %s92, %s106
    %p108 = scmp.eq.s32.totalorder %s19, 0
    %p109 = por %p107, %p108
    %s110 = ssub.s32 %s13, %s20
    %p111 = scmp.eq.s32.totalorder %s110, 0
    %s113 = sadd.s32 %s112, 1
    %s114 = scalar_select %p111, %s112, %s113
    %p117 = pneg %p111
    %p118 = scmp.eq.s32.totalorder %s13, 1
    %p119 = por %p117, %p118
    %p120 = scmp.ne.s32.totalorder %s112, %s115
    %p121 = scmp.eq.s32.totalorder %s13, 0
    %p122 = por %p120, %p121
    %p123 = scmp.ne.s32.totalorder %s112, %s115
    %p124 = scmp.eq.s32.totalorder %s18, 1
    %p125 = por %p123, %p124
    %p126 = scmp.ne.s32.totalorder %s115, %s116
    %p127 = scmp.eq.s32.totalorder %s18, 0
    %p128 = por %p126, %p127
    %p129 = scmp.ne.s32.totalorder %s115, %s116
    %p130 = scmp.eq.s32.totalorder %s19, 1
    %p131 = por %p129, %p130
    %p133 = scmp.ne.s32.totalorder %s116, %s132
    %p134 = scmp.eq.s32.totalorder %s19, 0
    %p135 = por %p133, %p134
    %s136 = ssub.s32 %s13, %s20
    %p137 = scmp.eq.s32.totalorder %s136, 0
    %s139 = sadd.s32 %s138, 1
    %s140 = scalar_select %p137, %s138, %s139
    %p143 = pneg %p137
    %p144 = scmp.eq.s32.totalorder %s13, 1
    %p145 = por %p143, %p144
    %p146 = scmp.ne.s32.totalorder %s138, %s141
    %p147 = scmp.eq.s32.totalorder %s13, 0
    %p148 = por %p146, %p147
    %p149 = scmp.ne.s32.totalorder %s138, %s141
    %p150 = scmp.eq.s32.totalorder %s18, 1
    %p151 = por %p149, %p150
    %p152 = scmp.ne.s32.totalorder %s141, %s142
    %p153 = scmp.eq.s32.totalorder %s18, 0
    %p154 = por %p152, %p153
    %p155 = scmp.ne.s32.totalorder %s141, %s142
    %p156 = scmp.eq.s32.totalorder %s19, 1
    %p157 = por %p155, %p156
    %p159 = scmp.ne.s32.totalorder %s142, %s158
    %p160 = scmp.eq.s32.totalorder %s19, 0
    %p161 = por %p159, %p160
    %s162 = ssub.s32 %s13, %s20
    %p163 = scmp.eq.s32.totalorder %s162, 0
    %s165 = sadd.s32 %s164, 1
    %s166 = scalar_select %p163, %s164, %s165
    %p169 = pneg %p163
    %p170 = scmp.eq.s32.totalorder %s13, 1
    %p171 = por %p169, %p170
    %p172 = scmp.ne.s32.totalorder %s164, %s167
    %p173 = scmp.eq.s32.totalorder %s13, 0
    %p174 = por %p172, %p173
    %p175 = scmp.ne.s32.totalorder %s164, %s167
    %p176 = scmp.eq.s32.totalorder %s18, 1
    %p177 = por %p175, %p176
    %p178 = scmp.ne.s32.totalorder %s167, %s168
    %p179 = scmp.eq.s32.totalorder %s18, 0
    %p180 = por %p178, %p179
    %p181 = scmp.ne.s32.totalorder %s167, %s168
    %p182 = scmp.eq.s32.totalorder %s19, 1
    %p183 = por %p181, %p182
    %p185 = scmp.ne.s32.totalorder %s168, %s184
    %p186 = scmp.eq.s32.totalorder %s19, 0
    %p187 = por %p185, %p186
    %p188 = scmp.le.s32.totalorder 1, %s13
    %p189 = scmp.lt.s32.totalorder %s13, 3
    %p190 = pnand %p188, %p189
    %p191 = pneg %p190
    // Predicated region
    $region9: #{bottleneck_forward.4} parent=5 // pred_check
      _
    $region10: #{bottleneck_forward.4} parent=5 // pred_check_branch
      %193 = sbr.rel (%p190) target = $region12
    $region11: #{bottleneck_forward.4} parent=5 // pred_region
      %s194 = ssub.s32 %s13, 1
      // Predicated region
      $region13: #{bottleneck_forward.4} parent=11 // pred_check
        %p195 = pneg %p60
      $region14: #{bottleneck_forward.4} parent=11 // pred_check_branch
        %197 = sbr.rel (%p195) target = $region16
      $region15: #{bottleneck_forward.4} parent=11 // pred_region
        _
      $region16: #{bottleneck_forward.4} parent=11 // pred_fallthru
        _
      // Predicated region
      $region17: #{bottleneck_forward.4} parent=11 // pred_check
        %p198 = pneg %p81
      $region18: #{bottleneck_forward.4} parent=11 // pred_check_branch
        %200 = sbr.rel (%p198) target = $region20
      $region19: #{bottleneck_forward.4} parent=11 // pred_region
        _
      $region20: #{bottleneck_forward.4} parent=11 // pred_fallthru
        _
      // Predicated region
      $region21: #{bottleneck_forward.4} parent=11 // pred_check
        %p201 = pneg %p102
      $region22: #{bottleneck_forward.4} parent=11 // pred_check_branch
        %203 = sbr.rel (%p201) target = $region24
      $region23: #{bottleneck_forward.4} parent=11 // pred_region
        _
      $region24: #{bottleneck_forward.4} parent=11 // pred_fallthru
        _
    $region12: #{bottleneck_forward.4} parent=5 // pred_fallthru
      _
    %p204 = scmp.lt.s32.totalorder %s13, 2
    // Predicated region
    $region25: #{bottleneck_forward.4} parent=5 // pred_check
      %p205 = pneg %p204
    $region26: #{bottleneck_forward.4} parent=5 // pred_check_branch
      %207 = sbr.rel (%p205) target = $region28
    $region27: #{bottleneck_forward.4} parent=5 // pred_region
      // Predicated region
      $region29: #{bottleneck_forward.4} parent=27 // pred_check
        %p208 = pneg %p33
      $region30: #{bottleneck_forward.4} parent=27 // pred_check_branch
        %210 = sbr.rel (%p208) target = $region32
      $region31: #{bottleneck_forward.4} parent=27 // pred_region
        %p211 = scmp.lt.s32.totalorder %s13, 1
        %s212 = scalar_select %p211, %s13, 1
        %s213 = smul.addr %s212, 28
        %s214 = smul.addr %s213, 4
        %s215 = scalar_lea.vmem %s0, %s214
      $region32: #{bottleneck_forward.4} parent=27 // pred_fallthru
        _
    $region28: #{bottleneck_forward.4} parent=5 // pred_fallthru
      _
    %p216 = scmp.le.s32.totalorder 1, %s13
    %p217 = scmp.lt.s32.totalorder %s13, 3
    %p218 = pnand %p216, %p217
    %p219 = pneg %p218
    // Predicated region
    $region33: #{bottleneck_forward.4} parent=5 // pred_check
      _
    $region34: #{bottleneck_forward.4} parent=5 // pred_check_branch
      %221 = sbr.rel (%p218) target = $region36
    $region35: #{bottleneck_forward.4} parent=5 // pred_region
      %s222 = ssub.s32 %s13, 1
      %p223 = scmp.lt.s32.totalorder %s18, 1
      %s224 = scalar_select %p223, %s18, 1
      %s225 = smul.addr %s224, 28
      %s226 = smul.addr %s225, 4
      %s227 = scalar_lea.vmem %s0, %s226
      %p228 = pneg %p39
      %p229 = pneg %p36
      %p230 = pneg %p60
      %p231 = pneg %p57
      %p232 = pneg %p81
      %p233 = pneg %p78
      %p234 = pneg %p102
      %p235 = pneg %p99
      %p236 = pneg %p128
      %p237 = pneg %p125
      %p238 = scmp.lt.s32.totalorder %s18, 1
      %s239 = scalar_select %p238, %s18, 1
      %s240 = smul.addr %s239, 28
      %s241 = smul.addr %s240, 4
      %s242 = scalar_lea.vmem %s4, %s241
      %p243 = pneg %p154
      %p244 = pneg %p151
      %p245 = scmp.lt.s32.totalorder %s18, 1
      %s246 = scalar_select %p245, %s18, 1
      %s247 = scalar_lea.vmem %s5, %s246
      %p248 = pneg %p180
      %p249 = pneg %p177
      %p250 = scmp.lt.s32.totalorder %s18, 1
      %s251 = scalar_select %p250, %s18, 1
      %s252 = scalar_lea.vmem %s6, %s251
      %p253 = scmp.lt.s32.totalorder %s18, 1
      %s254 = scalar_select %p253, %s18, 1
      %s255 = smul.addr %s254, 28
      %s256 = smul.addr %s255, 4
      %s257 = scalar_lea.vmem %s0, %s256
      %p258 = scmp.lt.s32.totalorder %s18, 1
      %s259 = scalar_select %p258, %s18, 1
      %s260 = smul.addr %s259, 28
      %s261 = smul.addr %s260, 4
      %s262 = scalar_lea.vmem %s4, %s261
      %p263 = scmp.lt.s32.totalorder %s18, 1
      %s264 = scalar_select %p263, %s18, 1
      %s265 = scalar_lea.vmem %s5, %s264
      %p266 = scmp.lt.s32.totalorder %s18, 1
      %s267 = scalar_select %p266, %s18, 1
      %s268 = scalar_lea.vmem %s6, %s267
      %v270 = vld [vmem:[%s257] sm:$0xf]
      %v271 = vld [vmem:[%s257 + $0x4] sm:$0x7]
      %v272 = vld [vmem:[%s257 + $0x8] sm:$0xf]
      %v273 = vld [vmem:[%s257 + $0xc] sm:$0x7]
      %v274 = vld [vmem:[%s257 + $0x10] sm:$0xf]
      %v275 = vld [vmem:[%s257 + $0x14] sm:$0x7]
      %v276 = vld [vmem:[%s257 + $0x18] sm:$0xf]
      %v277 = vld [vmem:[%s257 + $0x1c] sm:$0x7]
      %v278 = vld [vmem:[%s257 + $0x20] sm:$0xf]
      %v279 = vld [vmem:[%s257 + $0x24] sm:$0x7]
      %v280 = vld [vmem:[%s257 + $0x28] sm:$0xf]
      %v281 = vld [vmem:[%s257 + $0x2c] sm:$0x7]
      %v282 = vld [vmem:[%s257 + $0x30] sm:$0xf]
      %v283 = vld [vmem:[%s257 + $0x34] sm:$0x7]
      %v284 = vld [vmem:[%s257 + $0x38] sm:$0xf]
      %v285 = vld [vmem:[%s257 + $0x3c] sm:$0x7]
      %v286 = vld [vmem:[%s257 + $0x40] sm:$0xf]
      %v287 = vld [vmem:[%s257 + $0x44] sm:$0x7]
      %v288 = vld [vmem:[%s257 + $0x48] sm:$0xf]
      %v289 = vld [vmem:[%s257 + $0x4c] sm:$0x7]
      %v290 = vld [vmem:[%s257 + $0x50] sm:$0xf]
      %v291 = vld [vmem:[%s257 + $0x54] sm:$0x7]
      %v292 = vld [vmem:[%s257 + $0x58] sm:$0xf]
      %v293 = vld [vmem:[%s257 + $0x5c] sm:$0x7]
      %v294 = vld [vmem:[%s257 + $0x60] sm:$0xf]
      %v295 = vld [vmem:[%s257 + $0x64] sm:$0x7]
      %v296 = vld [vmem:[%s257 + $0x68] sm:$0xf]
      %v297 = vld [vmem:[%s257 + $0x6c] sm:$0x7]
      %v298 = vunpack.c.l.bf16 %v270
      %v299 = vunpack.c.l.bf16 %v271
      %v300 = vunpack.c.l.bf16 %v272
      %v301 = vunpack.c.l.bf16 %v273
      %v302 = vunpack.c.l.bf16 %v274
      %v303 = vunpack.c.l.bf16 %v275
      %v304 = vunpack.c.l.bf16 %v276
      %v305 = vunpack.c.l.bf16 %v277
      %v306 = vunpack.c.l.bf16 %v278
      %v307 = vunpack.c.l.bf16 %v279
      %v308 = vunpack.c.l.bf16 %v280
      %v309 = vunpack.c.l.bf16 %v281
      %v310 = vunpack.c.l.bf16 %v282
      %v311 = vunpack.c.l.bf16 %v283
      %v312 = vunpack.c.l.bf16 %v284
      %v313 = vunpack.c.l.bf16 %v285
      %v314 = vunpack.c.l.bf16 %v286
      %v315 = vunpack.c.l.bf16 %v287
      %v316 = vunpack.c.l.bf16 %v288
      %v317 = vunpack.c.l.bf16 %v289
      %v318 = vunpack.c.l.bf16 %v290
      %v319 = vunpack.c.l.bf16 %v291
      %v320 = vunpack.c.l.bf16 %v292
      %v321 = vunpack.c.l.bf16 %v293
      %v322 = vunpack.c.l.bf16 %v294
      %v323 = vunpack.c.l.bf16 %v295
      %v324 = vunpack.c.l.bf16 %v296
      %v325 = vunpack.c.l.bf16 %v297
      %v326 = vld [vmem:[%s1] sm:$0x1]
      %v328 = vperm.slane %v326, 0
      %v330 = vmul.f32 %v298, %v328
      %v331 = vmul.f32 %v299, %v328
      %v332 = vmul.f32 %v300, %v328
      %v333 = vmul.f32 %v301, %v328
      %v334 = vmul.f32 %v302, %v328
      %v335 = vmul.f32 %v303, %v328
      %v336 = vmul.f32 %v304, %v328
      %v337 = vmul.f32 %v305, %v328
      %v338 = vmul.f32 %v306, %v328
      %v339 = vmul.f32 %v307, %v328
      %v340 = vmul.f32 %v308, %v328
      %v341 = vmul.f32 %v309, %v328
      %v342 = vmul.f32 %v310, %v328
      %v343 = vmul.f32 %v311, %v328
      %v344 = vmul.f32 %v312, %v328
      %v345 = vmul.f32 %v313, %v328
      %v346 = vmul.f32 %v314, %v328
      %v347 = vmul.f32 %v315, %v328
      %v348 = vmul.f32 %v316, %v328
      %v349 = vmul.f32 %v317, %v328
      %v350 = vmul.f32 %v318, %v328
      %v351 = vmul.f32 %v319, %v328
      %v352 = vmul.f32 %v320, %v328
      %v353 = vmul.f32 %v321, %v328
      %v354 = vmul.f32 %v322, %v328
      %v355 = vmul.f32 %v323, %v328
      %v356 = vmul.f32 %v324, %v328
      %v357 = vmul.f32 %v325, %v328
      %v358 = vld [vmem:[%s2] sm:$0x1]
      %v360 = vperm.slane %v358, 0
      %v362 = vadd.f32 %v330, %v360
      %v363 = vadd.f32 %v331, %v360
      %v364 = vadd.f32 %v332, %v360
      %v365 = vadd.f32 %v333, %v360
      %v366 = vadd.f32 %v334, %v360
      %v367 = vadd.f32 %v335, %v360
      %v368 = vadd.f32 %v336, %v360
      %v369 = vadd.f32 %v337, %v360
      %v370 = vadd.f32 %v338, %v360
      %v371 = vadd.f32 %v339, %v360
      %v372 = vadd.f32 %v340, %v360
      %v373 = vadd.f32 %v341, %v360
      %v374 = vadd.f32 %v342, %v360
      %v375 = vadd.f32 %v343, %v360
      %v376 = vadd.f32 %v344, %v360
      %v377 = vadd.f32 %v345, %v360
      %v378 = vadd.f32 %v346, %v360
      %v379 = vadd.f32 %v347, %v360
      %v380 = vadd.f32 %v348, %v360
      %v381 = vadd.f32 %v349, %v360
      %v382 = vadd.f32 %v350, %v360
      %v383 = vadd.f32 %v351, %v360
      %v384 = vadd.f32 %v352, %v360
      %v385 = vadd.f32 %v353, %v360
      %v386 = vadd.f32 %v354, %v360
      %v387 = vadd.f32 %v355, %v360
      %v388 = vadd.f32 %v356, %v360
      %v389 = vadd.f32 %v357, %v360
      %vm390 = vcmp.gt.f32.partialorder %v362, 0.0
      %vm391 = vcmp.gt.f32.partialorder %v363, 0.0
      %vm392 = vcmp.gt.f32.partialorder %v364, 0.0
      %vm393 = vcmp.gt.f32.partialorder %v365, 0.0
      %vm394 = vcmp.gt.f32.partialorder %v366, 0.0
      %vm395 = vcmp.gt.f32.partialorder %v367, 0.0
      %vm396 = vcmp.gt.f32.partialorder %v368, 0.0
      %vm397 = vcmp.gt.f32.partialorder %v369, 0.0
      %vm398 = vcmp.gt.f32.partialorder %v370, 0.0
      %vm399 = vcmp.gt.f32.partialorder %v371, 0.0
      %vm400 = vcmp.gt.f32.partialorder %v372, 0.0
      %vm401 = vcmp.gt.f32.partialorder %v373, 0.0
      %vm402 = vcmp.gt.f32.partialorder %v374, 0.0
      %vm403 = vcmp.gt.f32.partialorder %v375, 0.0
      %vm404 = vcmp.gt.f32.partialorder %v376, 0.0
      %vm405 = vcmp.gt.f32.partialorder %v377, 0.0
      %vm406 = vcmp.gt.f32.partialorder %v378, 0.0
      %vm407 = vcmp.gt.f32.partialorder %v379, 0.0
      %vm408 = vcmp.gt.f32.partialorder %v380, 0.0
      %vm409 = vcmp.gt.f32.partialorder %v381, 0.0
      %vm410 = vcmp.gt.f32.partialorder %v382, 0.0
      %vm411 = vcmp.gt.f32.partialorder %v383, 0.0
      %vm412 = vcmp.gt.f32.partialorder %v384, 0.0
      %vm413 = vcmp.gt.f32.partialorder %v385, 0.0
      %vm414 = vcmp.gt.f32.partialorder %v386, 0.0
      %vm415 = vcmp.gt.f32.partialorder %v387, 0.0
      %vm416 = vcmp.gt.f32.partialorder %v388, 0.0
      %vm417 = vcmp.gt.f32.partialorder %v389, 0.0
      %vm418 = vcmp.lt.f32.partialorder %v362, 0.0
      %vm419 = vcmp.lt.f32.partialorder %v363, 0.0
      %vm420 = vcmp.lt.f32.partialorder %v364, 0.0
      %vm421 = vcmp.lt.f32.partialorder %v365, 0.0
      %vm422 = vcmp.lt.f32.partialorder %v366, 0.0
      %vm423 = vcmp.lt.f32.partialorder %v367, 0.0
      %vm424 = vcmp.lt.f32.partialorder %v368, 0.0
      %vm425 = vcmp.lt.f32.partialorder %v369, 0.0
      %vm426 = vcmp.lt.f32.partialorder %v370, 0.0
      %vm427 = vcmp.lt.f32.partialorder %v371, 0.0
      %vm428 = vcmp.lt.f32.partialorder %v372, 0.0
      %vm429 = vcmp.lt.f32.partialorder %v373, 0.0
      %vm430 = vcmp.lt.f32.partialorder %v374, 0.0
      %vm431 = vcmp.lt.f32.partialorder %v375, 0.0
      %vm432 = vcmp.lt.f32.partialorder %v376, 0.0
      %vm433 = vcmp.lt.f32.partialorder %v377, 0.0
      %vm434 = vcmp.lt.f32.partialorder %v378, 0.0
      %vm435 = vcmp.lt.f32.partialorder %v379, 0.0
      %vm436 = vcmp.lt.f32.partialorder %v380, 0.0
      %vm437 = vcmp.lt.f32.partialorder %v381, 0.0
      %vm438 = vcmp.lt.f32.partialorder %v382, 0.0
      %vm439 = vcmp.lt.f32.partialorder %v383, 0.0
      %vm440 = vcmp.lt.f32.partialorder %v384, 0.0
      %vm441 = vcmp.lt.f32.partialorder %v385, 0.0
      %vm442 = vcmp.lt.f32.partialorder %v386, 0.0
      %vm443 = vcmp.lt.f32.partialorder %v387, 0.0
      %vm444 = vcmp.lt.f32.partialorder %v388, 0.0
      %vm445 = vcmp.lt.f32.partialorder %v389, 0.0
      %v446 = vsel %vm418, -1.0, 0.0
      %v447 = vsel %vm419, -1.0, 0.0
      %v448 = vsel %vm420, -1.0, 0.0
      %v449 = vsel %vm421, -1.0, 0.0
      %v450 = vsel %vm422, -1.0, 0.0
      %v451 = vsel %vm423, -1.0, 0.0
      %v452 = vsel %vm424, -1.0, 0.0
      %v453 = vsel %vm425, -1.0, 0.0
      %v454 = vsel %vm426, -1.0, 0.0
      %v455 = vsel %vm427, -1.0, 0.0
      %v456 = vsel %vm428, -1.0, 0.0
      %v457 = vsel %vm429, -1.0, 0.0
      %v458 = vsel %vm430, -1.0, 0.0
      %v459 = vsel %vm431, -1.0, 0.0
      %v460 = vsel %vm432, -1.0, 0.0
      %v461 = vsel %vm433, -1.0, 0.0
      %v462 = vsel %vm434, -1.0, 0.0
      %v463 = vsel %vm435, -1.0, 0.0
      %v464 = vsel %vm436, -1.0, 0.0
      %v465 = vsel %vm437, -1.0, 0.0
      %v466 = vsel %vm438, -1.0, 0.0
      %v467 = vsel %vm439, -1.0, 0.0
      %v468 = vsel %vm440, -1.0, 0.0
      %v469 = vsel %vm441, -1.0, 0.0
      %v470 = vsel %vm442, -1.0, 0.0
      %v471 = vsel %vm443, -1.0, 0.0
      %v472 = vsel %vm444, -1.0, 0.0
      %v473 = vsel %vm445, -1.0, 0.0
      %v474 = vsel %vm390, 1.0, %v446
      %v475 = vsel %vm391, 1.0, %v447
      %v476 = vsel %vm392, 1.0, %v448
      %v477 = vsel %vm393, 1.0, %v449
      %v478 = vsel %vm394, 1.0, %v450
      %v479 = vsel %vm395, 1.0, %v451
      %v480 = vsel %vm396, 1.0, %v452
      %v481 = vsel %vm397, 1.0, %v453
      %v482 = vsel %vm398, 1.0, %v454
      %v483 = vsel %vm399, 1.0, %v455
      %v484 = vsel %vm400, 1.0, %v456
      %v485 = vsel %vm401, 1.0, %v457
      %v486 = vsel %vm402, 1.0, %v458
      %v487 = vsel %vm403, 1.0, %v459
      %v488 = vsel %vm404, 1.0, %v460
      %v489 = vsel %vm405, 1.0, %v461
      %v490 = vsel %vm406, 1.0, %v462
      %v491 = vsel %vm407, 1.0, %v463
      %v492 = vsel %vm408, 1.0, %v464
      %v493 = vsel %vm409, 1.0, %v465
      %v494 = vsel %vm410, 1.0, %v466
      %v495 = vsel %vm411, 1.0, %v467
      %v496 = vsel %vm412, 1.0, %v468
      %v497 = vsel %vm413, 1.0, %v469
      %v498 = vsel %vm414, 1.0, %v470
      %v499 = vsel %vm415, 1.0, %v471
      %v500 = vsel %vm416, 1.0, %v472
      %v501 = vsel %vm417, 1.0, %v473
      %v502 = vmul.f32 %v362, %v474
      %v503 = vmul.f32 %v363, %v475
      %v504 = vmul.f32 %v364, %v476
      %v505 = vmul.f32 %v365, %v477
      %v506 = vmul.f32 %v366, %v478
      %v507 = vmul.f32 %v367, %v479
      %v508 = vmul.f32 %v368, %v480
      %v509 = vmul.f32 %v369, %v481
      %v510 = vmul.f32 %v370, %v482
      %v511 = vmul.f32 %v371, %v483
      %v512 = vmul.f32 %v372, %v484
      %v513 = vmul.f32 %v373, %v485
      %v514 = vmul.f32 %v374, %v486
      %v515 = vmul.f32 %v375, %v487
      %v516 = vmul.f32 %v376, %v488
      %v517 = vmul.f32 %v377, %v489
      %v518 = vmul.f32 %v378, %v490
      %v519 = vmul.f32 %v379, %v491
      %v520 = vmul.f32 %v380, %v492
      %v521 = vmul.f32 %v381, %v493
      %v522 = vmul.f32 %v382, %v494
      %v523 = vmul.f32 %v383, %v495
      %v524 = vmul.f32 %v384, %v496
      %v525 = vmul.f32 %v385, %v497
      %v526 = vmul.f32 %v386, %v498
      %v527 = vmul.f32 %v387, %v499
      %v528 = vmul.f32 %v388, %v500
      %v529 = vmul.f32 %v389, %v501
      %530 = vadd.xlane.f32.xlu0 %v502
      %v531 = vpop.xlane.xlu0 %530
      %vm532 = vcmask 1045504
      %v533 = vsel %vm532, %v503, 0.0
      %534 = vadd.xlane.f32.xlu0 %v533
      %v535 = vpop.xlane.xlu0 %534
      %536 = vadd.xlane.f32.xlu0 %v504
      %v537 = vpop.xlane.xlu0 %536
      %v538 = vsel %vm532, %v505, 0.0
      %539 = vadd.xlane.f32.xlu0 %v538
      %v540 = vpop.xlane.xlu0 %539
      %541 = vadd.xlane.f32.xlu0 %v506
      %v542 = vpop.xlane.xlu0 %541
      %v543 = vsel %vm532, %v507, 0.0
      %544 = vadd.xlane.f32.xlu0 %v543
      %v545 = vpop.xlane.xlu0 %544
      %546 = vadd.xlane.f32.xlu0 %v508
      %v547 = vpop.xlane.xlu0 %546
      %v548 = vsel %vm532, %v509, 0.0
      %549 = vadd.xlane.f32.xlu0 %v548
      %v550 = vpop.xlane.xlu0 %549
      %551 = vadd.xlane.f32.xlu0 %v510
      %v552 = vpop.xlane.xlu0 %551
      %v553 = vsel %vm532, %v511, 0.0
      %554 = vadd.xlane.f32.xlu0 %v553
      %v555 = vpop.xlane.xlu0 %554
      %556 = vadd.xlane.f32.xlu0 %v512
      %v557 = vpop.xlane.xlu0 %556
      %v558 = vsel %vm532, %v513, 0.0
      %559 = vadd.xlane.f32.xlu0 %v558
      %v560 = vpop.xlane.xlu0 %559
      %561 = vadd.xlane.f32.xlu0 %v514
      %v562 = vpop.xlane.xlu0 %561
      %v563 = vsel %vm532, %v515, 0.0
      %564 = vadd.xlane.f32.xlu0 %v563
      %v565 = vpop.xlane.xlu0 %564
      %566 = vadd.xlane.f32.xlu0 %v516
      %v567 = vpop.xlane.xlu0 %566
      %v568 = vsel %vm532, %v517, 0.0
      %569 = vadd.xlane.f32.xlu0 %v568
      %v570 = vpop.xlane.xlu0 %569
      %571 = vadd.xlane.f32.xlu0 %v518
      %v572 = vpop.xlane.xlu0 %571
      %v573 = vsel %vm532, %v519, 0.0
      %574 = vadd.xlane.f32.xlu0 %v573
      %v575 = vpop.xlane.xlu0 %574
      %576 = vadd.xlane.f32.xlu0 %v520
      %v577 = vpop.xlane.xlu0 %576
      %v578 = vsel %vm532, %v521, 0.0
      %579 = vadd.xlane.f32.xlu0 %v578
      %v580 = vpop.xlane.xlu0 %579
      %581 = vadd.xlane.f32.xlu0 %v522
      %v582 = vpop.xlane.xlu0 %581
      %v583 = vsel %vm532, %v523, 0.0
      %584 = vadd.xlane.f32.xlu0 %v583
      %v585 = vpop.xlane.xlu0 %584
      %586 = vadd.xlane.f32.xlu0 %v524
      %v587 = vpop.xlane.xlu0 %586
      %v588 = vsel %vm532, %v525, 0.0
      %589 = vadd.xlane.f32.xlu0 %v588
      %v590 = vpop.xlane.xlu0 %589
      %591 = vadd.xlane.f32.xlu0 %v526
      %v592 = vpop.xlane.xlu0 %591
      %v593 = vsel %vm532, %v527, 0.0
      %594 = vadd.xlane.f32.xlu0 %v593
      %v595 = vpop.xlane.xlu0 %594
      %596 = vadd.xlane.f32.xlu0 %v528
      %v597 = vpop.xlane.xlu0 %596
      %v598 = vsel %vm532, %v529, 0.0
      %599 = vadd.xlane.f32.xlu0 %v598
      %v600 = vpop.xlane.xlu0 %599
      %v601 = vmul.f32 %v531, 0.25
      %v602 = vmul.f32 %v535, 0.25
      %v603 = vmul.f32 %v537, 0.25
      %v604 = vmul.f32 %v540, 0.25
      %v605 = vmul.f32 %v542, 0.25
      %v606 = vmul.f32 %v545, 0.25
      %v607 = vmul.f32 %v547, 0.25
      %v608 = vmul.f32 %v550, 0.25
      %v609 = vmul.f32 %v552, 0.25
      %v610 = vmul.f32 %v555, 0.25
      %v611 = vmul.f32 %v557, 0.25
      %v612 = vmul.f32 %v560, 0.25
      %v613 = vmul.f32 %v562, 0.25
      %v614 = vmul.f32 %v565, 0.25
      %v615 = vmul.f32 %v567, 0.25
      %v616 = vmul.f32 %v570, 0.25
      %v617 = vmul.f32 %v572, 0.25
      %v618 = vmul.f32 %v575, 0.25
      %v619 = vmul.f32 %v577, 0.25
      %v620 = vmul.f32 %v580, 0.25
      %v621 = vmul.f32 %v582, 0.25
      %v622 = vmul.f32 %v585, 0.25
      %v623 = vmul.f32 %v587, 0.25
      %v624 = vmul.f32 %v590, 0.25
      %v625 = vmul.f32 %v592, 0.25
      %v626 = vmul.f32 %v595, 0.25
      %v627 = vmul.f32 %v597, 0.25
      %v628 = vmul.f32 %v600, 0.25
      %v629 = vpack.c.bf16 %v474, %v474
      %v630 = vpack.c.bf16 %v475, %v475
      %v631 = vpack.c.bf16 %v476, %v476
      %v632 = vpack.c.bf16 %v477, %v477
      %v633 = vpack.c.bf16 %v478, %v478
      %v634 = vpack.c.bf16 %v479, %v479
      %v635 = vpack.c.bf16 %v480, %v480
      %v636 = vpack.c.bf16 %v481, %v481
      %v637 = vpack.c.bf16 %v482, %v482
      %v638 = vpack.c.bf16 %v483, %v483
      %v639 = vpack.c.bf16 %v484, %v484
      %v640 = vpack.c.bf16 %v485, %v485
      %v641 = vpack.c.bf16 %v486, %v486
      %v642 = vpack.c.bf16 %v487, %v487
      %v643 = vpack.c.bf16 %v488, %v488
      %v644 = vpack.c.bf16 %v489, %v489
      %v645 = vpack.c.bf16 %v490, %v490
      %v646 = vpack.c.bf16 %v491, %v491
      %v647 = vpack.c.bf16 %v492, %v492
      %v648 = vpack.c.bf16 %v493, %v493
      %v649 = vpack.c.bf16 %v494, %v494
      %v650 = vpack.c.bf16 %v495, %v495
      %v651 = vpack.c.bf16 %v496, %v496
      %v652 = vpack.c.bf16 %v497, %v497
      %v653 = vpack.c.bf16 %v498, %v498
      %v654 = vpack.c.bf16 %v499, %v499
      %v655 = vpack.c.bf16 %v500, %v500
      %v656 = vpack.c.bf16 %v501, %v501
      %v685 = vunpack.c.l.b16 %v629
      %v686 = vunpack.c.l.b16 %v630
      %v687 = vunpack.c.l.b16 %v631
      %v688 = vunpack.c.l.b16 %v632
      %v689 = vunpack.c.l.b16 %v633
      %v690 = vunpack.c.l.b16 %v634
      %v691 = vunpack.c.l.b16 %v635
      %v692 = vunpack.c.l.b16 %v636
      %v693 = vunpack.c.l.b16 %v637
      %v694 = vunpack.c.l.b16 %v638
      %v695 = vunpack.c.l.b16 %v639
      %v696 = vunpack.c.l.b16 %v640
      %v697 = vunpack.c.l.b16 %v641
      %v698 = vunpack.c.l.b16 %v642
      %v699 = vunpack.c.l.b16 %v643
      %v700 = vunpack.c.l.b16 %v644
      %v701 = vunpack.c.l.b16 %v645
      %v702 = vunpack.c.l.b16 %v646
      %v703 = vunpack.c.l.b16 %v647
      %v704 = vunpack.c.l.b16 %v648
      %v705 = vunpack.c.l.b16 %v649
      %v706 = vunpack.c.l.b16 %v650
      %v707 = vunpack.c.l.b16 %v651
      %v708 = vunpack.c.l.b16 %v652
      %v709 = vunpack.c.l.b16 %v653
      %v710 = vunpack.c.l.b16 %v654
      %v711 = vunpack.c.l.b16 %v655
      %v712 = vunpack.c.l.b16 %v656
      %v713 = vpack.c.b16 %v686, %v685
      %v714 = vpack.c.b16 %v688, %v687
      %v715 = vpack.c.b16 %v690, %v689
      %v716 = vpack.c.b16 %v692, %v691
      %v717 = vpack.c.b16 %v694, %v693
      %v718 = vpack.c.b16 %v696, %v695
      %v719 = vpack.c.b16 %v698, %v697
      %v720 = vpack.c.b16 %v700, %v699
      %v721 = vpack.c.b16 %v702, %v701
      %v722 = vpack.c.b16 %v704, %v703
      %v723 = vpack.c.b16 %v706, %v705
      %v724 = vpack.c.b16 %v708, %v707
      %v725 = vpack.c.b16 %v710, %v709
      %v726 = vpack.c.b16 %v712, %v711
      %v728 = vshrl.u32 0, 16
      %v730 = vrot.slane %v728, 7
      %v731 = vshll.u32 0, 16
      %v733 = vor.u32 %v730, %v731
      %v735 = vshrl.u32 %v713, 16
      %v737 = vrot.slane %v735, 7
      %v738 = vshll.u32 %v713, 16
      %v740 = vor.u32 %v737, %v738
      %v742 = vshrl.u32 %v714, 16
      %v744 = vrot.slane %v742, 7
      %v745 = vshll.u32 %v714, 16
      %v747 = vor.u32 %v744, %v745
      %v749 = vshrl.u32 %v715, 16
      %v751 = vrot.slane %v749, 7
      %v752 = vshll.u32 %v715, 16
      %v754 = vor.u32 %v751, %v752
      %v756 = vshrl.u32 %v716, 16
      %v758 = vrot.slane %v756, 7
      %v759 = vshll.u32 %v716, 16
      %v761 = vor.u32 %v758, %v759
      %v763 = vshrl.u32 %v717, 16
      %v765 = vrot.slane %v763, 7
      %v766 = vshll.u32 %v717, 16
      %v768 = vor.u32 %v765, %v766
      %v770 = vshrl.u32 %v718, 16
      %v772 = vrot.slane %v770, 7
      %v773 = vshll.u32 %v718, 16
      %v775 = vor.u32 %v772, %v773
      %v777 = vshrl.u32 %v719, 16
      %v779 = vrot.slane %v777, 7
      %v780 = vshll.u32 %v719, 16
      %v782 = vor.u32 %v779, %v780
      %v784 = vshrl.u32 %v720, 16
      %v786 = vrot.slane %v784, 7
      %v787 = vshll.u32 %v720, 16
      %v789 = vor.u32 %v786, %v787
      %v791 = vshrl.u32 %v721, 16
      %v793 = vrot.slane %v791, 7
      %v794 = vshll.u32 %v721, 16
      %v796 = vor.u32 %v793, %v794
      %v798 = vshrl.u32 %v722, 16
      %v800 = vrot.slane %v798, 7
      %v801 = vshll.u32 %v722, 16
      %v803 = vor.u32 %v800, %v801
      %v805 = vshrl.u32 %v723, 16
      %v807 = vrot.slane %v805, 7
      %v808 = vshll.u32 %v723, 16
      %v810 = vor.u32 %v807, %v808
      %v812 = vshrl.u32 %v724, 16
      %v814 = vrot.slane %v812, 7
      %v815 = vshll.u32 %v724, 16
      %v817 = vor.u32 %v814, %v815
      %v819 = vshrl.u32 %v725, 16
      %v821 = vrot.slane %v819, 7
      %v822 = vshll.u32 %v725, 16
      %v824 = vor.u32 %v821, %v822
      %v826 = vshrl.u32 %v726, 16
      %v828 = vrot.slane %v826, 7
      %v829 = vshll.u32 %v726, 16
      %v831 = vor.u32 %v828, %v829
      %vm847 = vcmask 1040384
      %vm848 = vsmask.f32 256
      %vm849 = vmand %vm847, %vm848
      %v850 = vsel %vm849, 0, %v733
      %v851 = vsel %vm849, 0, %v740
      %v852 = vsel %vm849, 0, %v747
      %v853 = vsel %vm849, 0, %v754
      %v854 = vsel %vm849, 0, %v761
      %v855 = vsel %vm849, 0, %v768
      %v856 = vsel %vm849, 0, %v775
      %v857 = vsel %vm849, 0, %v782
      %v858 = vsel %vm849, 0, %v789
      %v859 = vsel %vm849, 0, %v796
      %v860 = vsel %vm849, 0, %v803
      %v861 = vsel %vm849, 0, %v810
      %v862 = vsel %vm849, 0, %v817
      %v863 = vsel %vm849, 0, %v824
      %v864 = vsel %vm849, 0, %v831
      %vm865 = vcmask 1047552
      %vm866 = vsmask.f32 7424
      %vm867 = vmand %vm865, %vm866
      %v868 = vsel %vm867, %v850, 0
      %v869 = vsel %vm867, %v851, 0
      %v870 = vsel %vm867, %v852, 0
      %v871 = vsel %vm867, %v853, 0
      %v872 = vsel %vm867, %v854, 0
      %v873 = vsel %vm867, %v855, 0
      %v874 = vsel %vm867, %v856, 0
      %v875 = vsel %vm867, %v857, 0
      %v876 = vsel %vm867, %v858, 0
      %v877 = vsel %vm867, %v859, 0
      %v878 = vsel %vm867, %v860, 0
      %v879 = vsel %vm867, %v861, 0
      %v880 = vsel %vm867, %v862, 0
      %v881 = vsel %vm867, %v863, 0
      %v882 = vsel %vm867, %v864, 0
      %vm912 = vcmask 1040384
      %v913 = vrot.slane 0.0, 7
      %v914 = vsel %vm912, %v913, %v913
      %v915 = vrot.slane %v601, 7
      %v916 = vrot.slane %v602, 7
      %v917 = vsel %vm912, %v915, %v916
      %v918 = vrot.slane %v603, 7
      %v919 = vrot.slane %v604, 7
      %v920 = vsel %vm912, %v918, %v919
      %v921 = vrot.slane %v605, 7
      %v922 = vrot.slane %v606, 7
      %v923 = vsel %vm912, %v921, %v922
      %v924 = vrot.slane %v607, 7
      %v925 = vrot.slane %v608, 7
      %v926 = vsel %vm912, %v924, %v925
      %v927 = vrot.slane %v609, 7
      %v928 = vrot.slane %v610, 7
      %v929 = vsel %vm912, %v927, %v928
      %v930 = vrot.slane %v611, 7
      %v931 = vrot.slane %v612, 7
      %v932 = vsel %vm912, %v930, %v931
      %v933 = vrot.slane %v613, 7
      %v934 = vrot.slane %v614, 7
      %v935 = vsel %vm912, %v933, %v934
      %v936 = vrot.slane %v615, 7
      %v937 = vrot.slane %v616, 7
      %v938 = vsel %vm912, %v936, %v937
      %v939 = vrot.slane %v617, 7
      %v940 = vrot.slane %v618, 7
      %v941 = vsel %vm912, %v939, %v940
      %v942 = vrot.slane %v619, 7
      %v943 = vrot.slane %v620, 7
      %v944 = vsel %vm912, %v942, %v943
      %v945 = vrot.slane %v621, 7
      %v946 = vrot.slane %v622, 7
      %v947 = vsel %vm912, %v945, %v946
      %v948 = vrot.slane %v623, 7
      %v949 = vrot.slane %v624, 7
      %v950 = vsel %vm912, %v948, %v949
      %v951 = vrot.slane %v625, 7
      %v952 = vrot.slane %v626, 7
      %v953 = vsel %vm912, %v951, %v952
      %v954 = vrot.slane %v627, 7
      %v955 = vrot.slane %v628, 7
      %v956 = vsel %vm912, %v954, %v955
      %v987 = vsel %vm912, 0.0, %v913
      %v988 = vsel %vm912, 0.0, %v915
      %v989 = vsel %vm912, 0.0, %v918
      %v990 = vsel %vm912, 0.0, %v921
      %v991 = vsel %vm912, 0.0, %v924
      %v992 = vsel %vm912, 0.0, %v927
      %v993 = vsel %vm912, 0.0, %v930
      %v994 = vsel %vm912, 0.0, %v933
      %v995 = vsel %vm912, 0.0, %v936
      %v996 = vsel %vm912, 0.0, %v939
      %v997 = vsel %vm912, 0.0, %v942
      %v998 = vsel %vm912, 0.0, %v945
      %v999 = vsel %vm912, 0.0, %v948
      %v1000 = vsel %vm912, 0.0, %v951
      %v1001 = vsel %vm912, 0.0, %v954
      %vm1002 = vcmask 1046528
      %v1003 = vsel %vm1002, %v914, 0.0
      %v1004 = vsel %vm1002, %v917, 0.0
      %v1005 = vsel %vm1002, %v920, 0.0
      %v1006 = vsel %vm1002, %v923, 0.0
      %v1007 = vsel %vm1002, %v926, 0.0
      %v1008 = vsel %vm1002, %v929, 0.0
      %v1009 = vsel %vm1002, %v932, 0.0
      %v1010 = vsel %vm1002, %v935, 0.0
      %v1011 = vsel %vm1002, %v938, 0.0
      %v1012 = vsel %vm1002, %v941, 0.0
      %v1013 = vsel %vm1002, %v944, 0.0
      %v1014 = vsel %vm1002, %v947, 0.0
      %v1015 = vsel %vm1002, %v950, 0.0
      %v1016 = vsel %vm1002, %v953, 0.0
      %v1017 = vsel %vm1002, %v956, 0.0
      %v1032 = vrot.slane %v868, 1
      %v1033 = vrot.slane %v868, 2
      %v1034 = vrot.slane %v868, 3
      %v1035 = vrot.slane %v868, 4
      %v1036 = vrot.slane %v868, 5
      %v1037 = vrot.slane %v868, 6
      %v1038 = vrot.slane %v869, 1
      %v1039 = vrot.slane %v869, 2
      %v1040 = vrot.slane %v869, 3
      %v1041 = vrot.slane %v869, 4
      %v1042 = vrot.slane %v869, 5
      %v1043 = vrot.slane %v869, 6
      %v1044 = vrot.slane %v870, 1
      %v1045 = vrot.slane %v870, 2
      %v1046 = vrot.slane %v870, 3
      %v1047 = vrot.slane %v870, 4
      %v1048 = vrot.slane %v870, 5
      %v1049 = vrot.slane %v870, 6
      %v1050 = vrot.slane %v871, 1
      %v1051 = vrot.slane %v871, 2
      %v1052 = vrot.slane %v871, 3
      %v1053 = vrot.slane %v871, 4
      %v1054 = vrot.slane %v871, 5
      %v1055 = vrot.slane %v871, 6
      %v1056 = vrot.slane %v872, 1
      %v1057 = vrot.slane %v872, 2
      %v1058 = vrot.slane %v872, 3
      %v1059 = vrot.slane %v872, 4
      %v1060 = vrot.slane %v872, 5
      %v1061 = vrot.slane %v872, 6
      %v1062 = vrot.slane %v873, 1
      %v1063 = vrot.slane %v873, 2
      %v1064 = vrot.slane %v873, 3
      %v1065 = vrot.slane %v873, 4
      %v1066 = vrot.slane %v873, 5
      %v1067 = vrot.slane %v873, 6
      %v1068 = vrot.slane %v874, 1
      %v1069 = vrot.slane %v874, 2
      %v1070 = vrot.slane %v874, 3
      %v1071 = vrot.slane %v874, 4
      %v1072 = vrot.slane %v874, 5
      %v1073 = vrot.slane %v874, 6
      %v1074 = vrot.slane %v875, 1
      %v1075 = vrot.slane %v875, 2
      %v1076 = vrot.slane %v875, 3
      %v1077 = vrot.slane %v875, 4
      %v1078 = vrot.slane %v875, 5
      %v1079 = vrot.slane %v875, 6
      %v1080 = vrot.slane %v876, 1
      %v1081 = vrot.slane %v876, 2
      %v1082 = vrot.slane %v876, 3
      %v1083 = vrot.slane %v876, 4
      %v1084 = vrot.slane %v876, 5
      %v1085 = vrot.slane %v876, 6
      %v1086 = vrot.slane %v877, 1
      %v1087 = vrot.slane %v877, 2
      %v1088 = vrot.slane %v877, 3
      %v1089 = vrot.slane %v877, 4
      %v1090 = vrot.slane %v877, 5
      %v1091 = vrot.slane %v877, 6
      %v1092 = vrot.slane %v878, 1
      %v1093 = vrot.slane %v878, 2
      %v1094 = vrot.slane %v878, 3
      %v1095 = vrot.slane %v878, 4
      %v1096 = vrot.slane %v878, 5
      %v1097 = vrot.slane %v878, 6
      %v1098 = vrot.slane %v879, 1
      %v1099 = vrot.slane %v879, 2
      %v1100 = vrot.slane %v879, 3
      %v1101 = vrot.slane %v879, 4
      %v1102 = vrot.slane %v879, 5
      %v1103 = vrot.slane %v879, 6
      %v1104 = vrot.slane %v880, 1
      %v1105 = vrot.slane %v880, 2
      %v1106 = vrot.slane %v880, 3
      %v1107 = vrot.slane %v880, 4
      %v1108 = vrot.slane %v880, 5
      %v1109 = vrot.slane %v880, 6
      %v1110 = vrot.slane %v881, 1
      %v1111 = vrot.slane %v881, 2
      %v1112 = vrot.slane %v881, 3
      %v1113 = vrot.slane %v881, 4
      %v1114 = vrot.slane %v881, 5
      %v1115 = vrot.slane %v881, 6
      %v1116 = vld [vmem:[%s3] sm:$0xf]
      %v1117 = vld [vmem:[%s3 + $0x4] sm:$0xf]
      %v1118 = vld [vmem:[%s3 + $0x8] sm:$0xf]
      %v1119 = vld [vmem:[%s3 + $0xc] sm:$0xf]
      %v1120 = vld [vmem:[%s3 + $0x10] sm:$0xf]
      %v1121 = vld [vmem:[%s3 + $0x14] sm:$0xf]
      %v1122 = vld [vmem:[%s3 + $0x18] sm:$0xf]
      %v1123 = vld [vmem:[%s3 + $0x1c] sm:$0xf]
      %v1124 = vld [vmem:[%s3 + $0x20] sm:$0xf]
      %v1125 = vld [vmem:[%s3 + $0x24] sm:$0xf]
      %v1126 = vld [vmem:[%s3 + $0x28] sm:$0xf]
      %v1127 = vld [vmem:[%s3 + $0x2c] sm:$0xf]
      %v1128 = vld [vmem:[%s3 + $0x30] sm:$0xf]
      %v1129 = vld [vmem:[%s3 + $0x34] sm:$0xf]
      %v1130 = vld [vmem:[%s3 + $0x38] sm:$0xf]
      %v1131 = vld [vmem:[%s3 + $0x3c] sm:$0xf]
      %v1132 = vadd.f32 %v987, 0.0
      %v1133 = vadd.f32 %v1003, 0.0
      %v1134 = vadd.f32 %v988, 0.0
      %v1135 = vadd.f32 %v1004, 0.0
      %v1136 = vadd.f32 %v989, 0.0
      %v1137 = vadd.f32 %v1005, 0.0
      %v1138 = vadd.f32 %v990, 0.0
      %v1139 = vadd.f32 %v1006, 0.0
      %v1140 = vadd.f32 %v991, 0.0
      %v1141 = vadd.f32 %v1007, 0.0
      %v1142 = vadd.f32 %v992, 0.0
      %v1143 = vadd.f32 %v1008, 0.0
      %v1144 = vadd.f32 %v993, 0.0
      %v1145 = vadd.f32 %v1009, 0.0
      %v1146 = vadd.f32 %v994, 0.0
      %v1147 = vadd.f32 %v1010, 0.0
      %v1148 = vadd.f32 %v995, 0.0
      %v1149 = vadd.f32 %v1011, 0.0
      %v1150 = vadd.f32 %v996, 0.0
      %v1151 = vadd.f32 %v1012, 0.0
      %v1152 = vadd.f32 %v997, 0.0
      %v1153 = vadd.f32 %v1013, 0.0
      %v1154 = vadd.f32 %v998, 0.0
      %v1155 = vadd.f32 %v1014, 0.0
      %v1156 = vadd.f32 %v999, 0.0
      %v1157 = vadd.f32 %v1015, 0.0
      %v1158 = vadd.f32 %v1000, 0.0
      %v1159 = vadd.f32 %v1016, 0.0
      %v1160 = vrot.slane %v868, 7
      %v1161 = vrot.slane %v869, 7
      %v1162 = vrot.slane %v870, 7
      %v1163 = vrot.slane %v871, 7
      %v1164 = vrot.slane %v872, 7
      %v1165 = vrot.slane %v873, 7
      %v1166 = vrot.slane %v874, 7
      %v1167 = vrot.slane %v875, 7
      %v1168 = vrot.slane %v876, 7
      %v1169 = vrot.slane %v877, 7
      %v1170 = vrot.slane %v878, 7
      %v1171 = vrot.slane %v879, 7
      %v1172 = vrot.slane %v880, 7
      %v1173 = vrot.slane %v881, 7
      %vm1174 = vsmask.f32 1284
      %vm1175 = vmor %vm848, %vm1174
      %vm1176 = vsmask.f32 2312
      %vm1177 = vmor %vm1175, %vm1176
      %vm1178 = vsmask.f32 3340
      %vm1179 = vmor %vm1177, %vm1178
      %vm1180 = vsmask.f32 4368
      %vm1181 = vmor %vm1179, %vm1180
      %vm1182 = vsmask.f32 5396
      %vm1183 = vmor %vm1181, %vm1182
      %vm1184 = vsmask.f32 6424
      %vm1185 = vmor %vm1183, %vm1184
      %vm1186 = vsmask.f32 7452
      %vm1187 = vmor %vm1185, %vm1186
      %v1189 = vshrl.u32 %v868, 16
      %v1191 = vrot.slane %v1189, 7
      %v1192 = vrot.slane %v1191, 1
      %v1194 = vshll.u32 %v1032, 16
      %v1196 = vsel %vm1187, %v1192, %v1194
      %v1197 = vshrl.u32 %v1032, 16
      %v1199 = vrot.slane %v1197, 7
      %v1200 = vrot.slane %v1199, 1
      %v1202 = vshll.u32 %v1033, 16
      %v1204 = vsel %vm1187, %v1200, %v1202
      %v1205 = vshrl.u32 %v1033, 16
      %v1207 = vrot.slane %v1205, 7
      %v1208 = vrot.slane %v1207, 1
      %v1210 = vshll.u32 %v1034, 16
      %v1212 = vsel %vm1187, %v1208, %v1210
      %v1213 = vshrl.u32 %v1034, 16
      %v1215 = vrot.slane %v1213, 7
      %v1216 = vrot.slane %v1215, 1
      %v1218 = vshll.u32 %v1035, 16
      %v1220 = vsel %vm1187, %v1216, %v1218
      %v1221 = vshrl.u32 %v1035, 16
      %v1223 = vrot.slane %v1221, 7
      %v1224 = vrot.slane %v1223, 1
      %v1226 = vshll.u32 %v1036, 16
      %v1228 = vsel %vm1187, %v1224, %v1226
      %v1229 = vshrl.u32 %v1036, 16
      %v1231 = vrot.slane %v1229, 7
      %v1232 = vrot.slane %v1231, 1
      %v1234 = vshll.u32 %v1037, 16
      %v1236 = vsel %vm1187, %v1232, %v1234
      %v1237 = vshrl.u32 %v1037, 16
      %v1239 = vrot.slane %v1237, 7
      %v1240 = vrot.slane %v1239, 1
      %v1242 = vshll.u32 %v1160, 16
      %v1244 = vsel %vm1187, %v1240, %v1242
      %v1246 = vshrl.u32 %v869, 16
      %v1248 = vrot.slane %v1246, 7
      %v1249 = vrot.slane %v1248, 1
      %v1251 = vshll.u32 %v1038, 16
      %v1253 = vsel %vm1187, %v1249, %v1251
      %v1254 = vshrl.u32 %v1038, 16
      %v1256 = vrot.slane %v1254, 7
      %v1257 = vrot.slane %v1256, 1
      %v1259 = vshll.u32 %v1039, 16
      %v1261 = vsel %vm1187, %v1257, %v1259
      %v1262 = vshrl.u32 %v1039, 16
      %v1264 = vrot.slane %v1262, 7
      %v1265 = vrot.slane %v1264, 1
      %v1267 = vshll.u32 %v1040, 16
      %v1269 = vsel %vm1187, %v1265, %v1267
      %v1270 = vshrl.u32 %v1040, 16
      %v1272 = vrot.slane %v1270, 7
      %v1273 = vrot.slane %v1272, 1
      %v1275 = vshll.u32 %v1041, 16
      %v1277 = vsel %vm1187, %v1273, %v1275
      %v1278 = vshrl.u32 %v1041, 16
      %v1280 = vrot.slane %v1278, 7
      %v1281 = vrot.slane %v1280, 1
      %v1283 = vshll.u32 %v1042, 16
      %v1285 = vsel %vm1187, %v1281, %v1283
      %v1286 = vshrl.u32 %v1042, 16
      %v1288 = vrot.slane %v1286, 7
      %v1289 = vrot.slane %v1288, 1
      %v1291 = vshll.u32 %v1043, 16
      %v1293 = vsel %vm1187, %v1289, %v1291
      %v1294 = vshrl.u32 %v1043, 16
      %v1296 = vrot.slane %v1294, 7
      %v1297 = vrot.slane %v1296, 1
      %v1299 = vshll.u32 %v1161, 16
      %v1301 = vsel %vm1187, %v1297, %v1299
      %v1303 = vshrl.u32 %v870, 16
      %v1305 = vrot.slane %v1303, 7
      %v1306 = vrot.slane %v1305, 1
      %v1308 = vshll.u32 %v1044, 16
      %v1310 = vsel %vm1187, %v1306, %v1308
      %v1311 = vshrl.u32 %v1044, 16
      %v1313 = vrot.slane %v1311, 7
      %v1314 = vrot.slane %v1313, 1
      %v1316 = vshll.u32 %v1045, 16
      %v1318 = vsel %vm1187, %v1314, %v1316
      %v1319 = vshrl.u32 %v1045, 16
      %v1321 = vrot.slane %v1319, 7
      %v1322 = vrot.slane %v1321, 1
      %v1324 = vshll.u32 %v1046, 16
      %v1326 = vsel %vm1187, %v1322, %v1324
      %v1327 = vshrl.u32 %v1046, 16
      %v1329 = vrot.slane %v1327, 7
      %v1330 = vrot.slane %v1329, 1
      %v1332 = vshll.u32 %v1047, 16
      %v1334 = vsel %vm1187, %v1330, %v1332
      %v1335 = vshrl.u32 %v1047, 16
      %v1337 = vrot.slane %v1335, 7
      %v1338 = vrot.slane %v1337, 1
      %v1340 = vshll.u32 %v1048, 16
      %v1342 = vsel %vm1187, %v1338, %v1340
      %v1343 = vshrl.u32 %v1048, 16
      %v1345 = vrot.slane %v1343, 7
      %v1346 = vrot.slane %v1345, 1
      %v1348 = vshll.u32 %v1049, 16
      %v1350 = vsel %vm1187, %v1346, %v1348
      %v1351 = vshrl.u32 %v1049, 16
      %v1353 = vrot.slane %v1351, 7
      %v1354 = vrot.slane %v1353, 1
      %v1356 = vshll.u32 %v1162, 16
      %v1358 = vsel %vm1187, %v1354, %v1356
      %v1360 = vshrl.u32 %v871, 16
      %v1362 = vrot.slane %v1360, 7
      %v1363 = vrot.slane %v1362, 1
      %v1365 = vshll.u32 %v1050, 16
      %v1367 = vsel %vm1187, %v1363, %v1365
      %v1368 = vshrl.u32 %v1050, 16
      %v1370 = vrot.slane %v1368, 7
      %v1371 = vrot.slane %v1370, 1
      %v1373 = vshll.u32 %v1051, 16
      %v1375 = vsel %vm1187, %v1371, %v1373
      %v1376 = vshrl.u32 %v1051, 16
      %v1378 = vrot.slane %v1376, 7
      %v1379 = vrot.slane %v1378, 1
      %v1381 = vshll.u32 %v1052, 16
      %v1383 = vsel %vm1187, %v1379, %v1381
      %v1384 = vshrl.u32 %v1052, 16
      %v1386 = vrot.slane %v1384, 7
      %v1387 = vrot.slane %v1386, 1
      %v1389 = vshll.u32 %v1053, 16
      %v1391 = vsel %vm1187, %v1387, %v1389
      %v1392 = vshrl.u32 %v1053, 16
      %v1394 = vrot.slane %v1392, 7
      %v1395 = vrot.slane %v1394, 1
      %v1397 = vshll.u32 %v1054, 16
      %v1399 = vsel %vm1187, %v1395, %v1397
      %v1400 = vshrl.u32 %v1054, 16
      %v1402 = vrot.slane %v1400, 7
      %v1403 = vrot.slane %v1402, 1
      %v1405 = vshll.u32 %v1055, 16
      %v1407 = vsel %vm1187, %v1403, %v1405
      %v1408 = vshrl.u32 %v1055, 16
      %v1410 = vrot.slane %v1408, 7
      %v1411 = vrot.slane %v1410, 1
      %v1413 = vshll.u32 %v1163, 16
      %v1415 = vsel %vm1187, %v1411, %v1413
      %v1417 = vshrl.u32 %v872, 16
      %v1419 = vrot.slane %v1417, 7
      %v1420 = vrot.slane %v1419, 1
      %v1422 = vshll.u32 %v1056, 16
      %v1424 = vsel %vm1187, %v1420, %v1422
      %v1425 = vshrl.u32 %v1056, 16
      %v1427 = vrot.slane %v1425, 7
      %v1428 = vrot.slane %v1427, 1
      %v1430 = vshll.u32 %v1057, 16
      %v1432 = vsel %vm1187, %v1428, %v1430
      %v1433 = vshrl.u32 %v1057, 16
      %v1435 = vrot.slane %v1433, 7
      %v1436 = vrot.slane %v1435, 1
      %v1438 = vshll.u32 %v1058, 16
      %v1440 = vsel %vm1187, %v1436, %v1438
      %v1441 = vshrl.u32 %v1058, 16
      %v1443 = vrot.slane %v1441, 7
      %v1444 = vrot.slane %v1443, 1
      %v1446 = vshll.u32 %v1059, 16
      %v1448 = vsel %vm1187, %v1444, %v1446
      %v1449 = vshrl.u32 %v1059, 16
      %v1451 = vrot.slane %v1449, 7
      %v1452 = vrot.slane %v1451, 1
      %v1454 = vshll.u32 %v1060, 16
      %v1456 = vsel %vm1187, %v1452, %v1454
      %v1457 = vshrl.u32 %v1060, 16
      %v1459 = vrot.slane %v1457, 7
      %v1460 = vrot.slane %v1459, 1
      %v1462 = vshll.u32 %v1061, 16
      %v1464 = vsel %vm1187, %v1460, %v1462
      %v1465 = vshrl.u32 %v1061, 16
      %v1467 = vrot.slane %v1465, 7
      %v1468 = vrot.slane %v1467, 1
      %v1470 = vshll.u32 %v1164, 16
      %v1472 = vsel %vm1187, %v1468, %v1470
      %v1474 = vshrl.u32 %v873, 16
      %v1476 = vrot.slane %v1474, 7
      %v1477 = vrot.slane %v1476, 1
      %v1479 = vshll.u32 %v1062, 16
      %v1481 = vsel %vm1187, %v1477, %v1479
      %v1482 = vshrl.u32 %v1062, 16
      %v1484 = vrot.slane %v1482, 7
      %v1485 = vrot.slane %v1484, 1
      %v1487 = vshll.u32 %v1063, 16
      %v1489 = vsel %vm1187, %v1485, %v1487
      %v1490 = vshrl.u32 %v1063, 16
      %v1492 = vrot.slane %v1490, 7
      %v1493 = vrot.slane %v1492, 1
      %v1495 = vshll.u32 %v1064, 16
      %v1497 = vsel %vm1187, %v1493, %v1495
      %v1498 = vshrl.u32 %v1064, 16
      %v1500 = vrot.slane %v1498, 7
      %v1501 = vrot.slane %v1500, 1
      %v1503 = vshll.u32 %v1065, 16
      %v1505 = vsel %vm1187, %v1501, %v1503
      %v1506 = vshrl.u32 %v1065, 16
      %v1508 = vrot.slane %v1506, 7
      %v1509 = vrot.slane %v1508, 1
      %v1511 = vshll.u32 %v1066, 16
      %v1513 = vsel %vm1187, %v1509, %v1511
      %v1514 = vshrl.u32 %v1066, 16
      %v1516 = vrot.slane %v1514, 7
      %v1517 = vrot.slane %v1516, 1
      %v1519 = vshll.u32 %v1067, 16
      %v1521 = vsel %vm1187, %v1517, %v1519
      %v1522 = vshrl.u32 %v1067, 16
      %v1524 = vrot.slane %v1522, 7
      %v1525 = vrot.slane %v1524, 1
      %v1527 = vshll.u32 %v1165, 16
      %v1529 = vsel %vm1187, %v1525, %v1527
      %v1531 = vshrl.u32 %v874, 16
      %v1533 = vrot.slane %v1531, 7
      %v1534 = vrot.slane %v1533, 1
      %v1536 = vshll.u32 %v1068, 16
      %v1538 = vsel %vm1187, %v1534, %v1536
      %v1539 = vshrl.u32 %v1068, 16
      %v1541 = vrot.slane %v1539, 7
      %v1542 = vrot.slane %v1541, 1
      %v1544 = vshll.u32 %v1069, 16
      %v1546 = vsel %vm1187, %v1542, %v1544
      %v1547 = vshrl.u32 %v1069, 16
      %v1549 = vrot.slane %v1547, 7
      %v1550 = vrot.slane %v1549, 1
      %v1552 = vshll.u32 %v1070, 16
      %v1554 = vsel %vm1187, %v1550, %v1552
      %v1555 = vshrl.u32 %v1070, 16
      %v1557 = vrot.slane %v1555, 7
      %v1558 = vrot.slane %v1557, 1
      %v1560 = vshll.u32 %v1071, 16
      %v1562 = vsel %vm1187, %v1558, %v1560
      %v1563 = vshrl.u32 %v1071, 16
      %v1565 = vrot.slane %v1563, 7
      %v1566 = vrot.slane %v1565, 1
      %v1568 = vshll.u32 %v1072, 16
      %v1570 = vsel %vm1187, %v1566, %v1568
      %v1571 = vshrl.u32 %v1072, 16
      %v1573 = vrot.slane %v1571, 7
      %v1574 = vrot.slane %v1573, 1
      %v1576 = vshll.u32 %v1073, 16
      %v1578 = vsel %vm1187, %v1574, %v1576
      %v1579 = vshrl.u32 %v1073, 16
      %v1581 = vrot.slane %v1579, 7
      %v1582 = vrot.slane %v1581, 1
      %v1584 = vshll.u32 %v1166, 16
      %v1586 = vsel %vm1187, %v1582, %v1584
      %v1588 = vshrl.u32 %v875, 16
      %v1590 = vrot.slane %v1588, 7
      %v1591 = vrot.slane %v1590, 1
      %v1593 = vshll.u32 %v1074, 16
      %v1595 = vsel %vm1187, %v1591, %v1593
      %v1596 = vshrl.u32 %v1074, 16
      %v1598 = vrot.slane %v1596, 7
      %v1599 = vrot.slane %v1598, 1
      %v1601 = vshll.u32 %v1075, 16
      %v1603 = vsel %vm1187, %v1599, %v1601
      %v1604 = vshrl.u32 %v1075, 16
      %v1606 = vrot.slane %v1604, 7
      %v1607 = vrot.slane %v1606, 1
      %v1609 = vshll.u32 %v1076, 16
      %v1611 = vsel %vm1187, %v1607, %v1609
      %v1612 = vshrl.u32 %v1076, 16
      %v1614 = vrot.slane %v1612, 7
      %v1615 = vrot.slane %v1614, 1
      %v1617 = vshll.u32 %v1077, 16
      %v1619 = vsel %vm1187, %v1615, %v1617
      %v1620 = vshrl.u32 %v1077, 16
      %v1622 = vrot.slane %v1620, 7
      %v1623 = vrot.slane %v1622, 1
      %v1625 = vshll.u32 %v1078, 16
      %v1627 = vsel %vm1187, %v1623, %v1625
      %v1628 = vshrl.u32 %v1078, 16
      %v1630 = vrot.slane %v1628, 7
      %v1631 = vrot.slane %v1630, 1
      %v1633 = vshll.u32 %v1079, 16
      %v1635 = vsel %vm1187, %v1631, %v1633
      %v1636 = vshrl.u32 %v1079, 16
      %v1638 = vrot.slane %v1636, 7
      %v1639 = vrot.slane %v1638, 1
      %v1641 = vshll.u32 %v1167, 16
      %v1643 = vsel %vm1187, %v1639, %v1641
      %v1645 = vshrl.u32 %v876, 16
      %v1647 = vrot.slane %v1645, 7
      %v1648 = vrot.slane %v1647, 1
      %v1650 = vshll.u32 %v1080, 16
      %v1652 = vsel %vm1187, %v1648, %v1650
      %v1653 = vshrl.u32 %v1080, 16
      %v1655 = vrot.slane %v1653, 7
      %v1656 = vrot.slane %v1655, 1
      %v1658 = vshll.u32 %v1081, 16
      %v1660 = vsel %vm1187, %v1656, %v1658
      %v1661 = vshrl.u32 %v1081, 16
      %v1663 = vrot.slane %v1661, 7
      %v1664 = vrot.slane %v1663, 1
      %v1666 = vshll.u32 %v1082, 16
      %v1668 = vsel %vm1187, %v1664, %v1666
      %v1669 = vshrl.u32 %v1082, 16
      %v1671 = vrot.slane %v1669, 7
      %v1672 = vrot.slane %v1671, 1
      %v1674 = vshll.u32 %v1083, 16
      %v1676 = vsel %vm1187, %v1672, %v1674
      %v1677 = vshrl.u32 %v1083, 16
      %v1679 = vrot.slane %v1677, 7
      %v1680 = vrot.slane %v1679, 1
      %v1682 = vshll.u32 %v1084, 16
      %v1684 = vsel %vm1187, %v1680, %v1682
      %v1685 = vshrl.u32 %v1084, 16
      %v1687 = vrot.slane %v1685, 7
      %v1688 = vrot.slane %v1687, 1
      %v1690 = vshll.u32 %v1085, 16
      %v1692 = vsel %vm1187, %v1688, %v1690
      %v1693 = vshrl.u32 %v1085, 16
      %v1695 = vrot.slane %v1693, 7
      %v1696 = vrot.slane %v1695, 1
      %v1698 = vshll.u32 %v1168, 16
      %v1700 = vsel %vm1187, %v1696, %v1698
      %v1702 = vshrl.u32 %v877, 16
      %v1704 = vrot.slane %v1702, 7
      %v1705 = vrot.slane %v1704, 1
      %v1707 = vshll.u32 %v1086, 16
      %v1709 = vsel %vm1187, %v1705, %v1707
      %v1710 = vshrl.u32 %v1086, 16
      %v1712 = vrot.slane %v1710, 7
      %v1713 = vrot.slane %v1712, 1
      %v1715 = vshll.u32 %v1087, 16
      %v1717 = vsel %vm1187, %v1713, %v1715
      %v1718 = vshrl.u32 %v1087, 16
      %v1720 = vrot.slane %v1718, 7
      %v1721 = vrot.slane %v1720, 1
      %v1723 = vshll.u32 %v1088, 16
      %v1725 = vsel %vm1187, %v1721, %v1723
      %v1726 = vshrl.u32 %v1088, 16
      %v1728 = vrot.slane %v1726, 7
      %v1729 = vrot.slane %v1728, 1
      %v1731 = vshll.u32 %v1089, 16
      %v1733 = vsel %vm1187, %v1729, %v1731
      %v1734 = vshrl.u32 %v1089, 16
      %v1736 = vrot.slane %v1734, 7
      %v1737 = vrot.slane %v1736, 1
      %v1739 = vshll.u32 %v1090, 16
      %v1741 = vsel %vm1187, %v1737, %v1739
      %v1742 = vshrl.u32 %v1090, 16
      %v1744 = vrot.slane %v1742, 7
      %v1745 = vrot.slane %v1744, 1
      %v1747 = vshll.u32 %v1091, 16
      %v1749 = vsel %vm1187, %v1745, %v1747
      %v1750 = vshrl.u32 %v1091, 16
      %v1752 = vrot.slane %v1750, 7
      %v1753 = vrot.slane %v1752, 1
      %v1755 = vshll.u32 %v1169, 16
      %v1757 = vsel %vm1187, %v1753, %v1755
      %v1759 = vshrl.u32 %v878, 16
      %v1761 = vrot.slane %v1759, 7
      %v1762 = vrot.slane %v1761, 1
      %v1764 = vshll.u32 %v1092, 16
      %v1766 = vsel %vm1187, %v1762, %v1764
      %v1767 = vshrl.u32 %v1092, 16
      %v1769 = vrot.slane %v1767, 7
      %v1770 = vrot.slane %v1769, 1
      %v1772 = vshll.u32 %v1093, 16
      %v1774 = vsel %vm1187, %v1770, %v1772
      %v1775 = vshrl.u32 %v1093, 16
      %v1777 = vrot.slane %v1775, 7
      %v1778 = vrot.slane %v1777, 1
      %v1780 = vshll.u32 %v1094, 16
      %v1782 = vsel %vm1187, %v1778, %v1780
      %v1783 = vshrl.u32 %v1094, 16
      %v1785 = vrot.slane %v1783, 7
      %v1786 = vrot.slane %v1785, 1
      %v1788 = vshll.u32 %v1095, 16
      %v1790 = vsel %vm1187, %v1786, %v1788
      %v1791 = vshrl.u32 %v1095, 16
      %v1793 = vrot.slane %v1791, 7
      %v1794 = vrot.slane %v1793, 1
      %v1796 = vshll.u32 %v1096, 16
      %v1798 = vsel %vm1187, %v1794, %v1796
      %v1799 = vshrl.u32 %v1096, 16
      %v1801 = vrot.slane %v1799, 7
      %v1802 = vrot.slane %v1801, 1
      %v1804 = vshll.u32 %v1097, 16
      %v1806 = vsel %vm1187, %v1802, %v1804
      %v1807 = vshrl.u32 %v1097, 16
      %v1809 = vrot.slane %v1807, 7
      %v1810 = vrot.slane %v1809, 1
      %v1812 = vshll.u32 %v1170, 16
      %v1814 = vsel %vm1187, %v1810, %v1812
      %v1816 = vshrl.u32 %v879, 16
      %v1818 = vrot.slane %v1816, 7
      %v1819 = vrot.slane %v1818, 1
      %v1821 = vshll.u32 %v1098, 16
      %v1823 = vsel %vm1187, %v1819, %v1821
      %v1824 = vshrl.u32 %v1098, 16
      %v1826 = vrot.slane %v1824, 7
      %v1827 = vrot.slane %v1826, 1
      %v1829 = vshll.u32 %v1099, 16
      %v1831 = vsel %vm1187, %v1827, %v1829
      %v1832 = vshrl.u32 %v1099, 16
      %v1834 = vrot.slane %v1832, 7
      %v1835 = vrot.slane %v1834, 1
      %v1837 = vshll.u32 %v1100, 16
      %v1839 = vsel %vm1187, %v1835, %v1837
      %v1840 = vshrl.u32 %v1100, 16
      %v1842 = vrot.slane %v1840, 7
      %v1843 = vrot.slane %v1842, 1
      %v1845 = vshll.u32 %v1101, 16
      %v1847 = vsel %vm1187, %v1843, %v1845
      %v1848 = vshrl.u32 %v1101, 16
      %v1850 = vrot.slane %v1848, 7
      %v1851 = vrot.slane %v1850, 1
      %v1853 = vshll.u32 %v1102, 16
      %v1855 = vsel %vm1187, %v1851, %v1853
      %v1856 = vshrl.u32 %v1102, 16
      %v1858 = vrot.slane %v1856, 7
      %v1859 = vrot.slane %v1858, 1
      %v1861 = vshll.u32 %v1103, 16
      %v1863 = vsel %vm1187, %v1859, %v1861
      %v1864 = vshrl.u32 %v1103, 16
      %v1866 = vrot.slane %v1864, 7
      %v1867 = vrot.slane %v1866, 1
      %v1869 = vshll.u32 %v1171, 16
      %v1871 = vsel %vm1187, %v1867, %v1869
      %v1873 = vshrl.u32 %v880, 16
      %v1875 = vrot.slane %v1873, 7
      %v1876 = vrot.slane %v1875, 1
      %v1878 = vshll.u32 %v1104, 16
      %v1880 = vsel %vm1187, %v1876, %v1878
      %v1881 = vshrl.u32 %v1104, 16
      %v1883 = vrot.slane %v1881, 7
      %v1884 = vrot.slane %v1883, 1
      %v1886 = vshll.u32 %v1105, 16
      %v1888 = vsel %vm1187, %v1884, %v1886
      %v1889 = vshrl.u32 %v1105, 16
      %v1891 = vrot.slane %v1889, 7
      %v1892 = vrot.slane %v1891, 1
      %v1894 = vshll.u32 %v1106, 16
      %v1896 = vsel %vm1187, %v1892, %v1894
      %v1897 = vshrl.u32 %v1106, 16
      %v1899 = vrot.slane %v1897, 7
      %v1900 = vrot.slane %v1899, 1
      %v1902 = vshll.u32 %v1107, 16
      %v1904 = vsel %vm1187, %v1900, %v1902
      %v1905 = vshrl.u32 %v1107, 16
      %v1907 = vrot.slane %v1905, 7
      %v1908 = vrot.slane %v1907, 1
      %v1910 = vshll.u32 %v1108, 16
      %v1912 = vsel %vm1187, %v1908, %v1910
      %v1913 = vshrl.u32 %v1108, 16
      %v1915 = vrot.slane %v1913, 7
      %v1916 = vrot.slane %v1915, 1
      %v1918 = vshll.u32 %v1109, 16
      %v1920 = vsel %vm1187, %v1916, %v1918
      %v1921 = vshrl.u32 %v1109, 16
      %v1923 = vrot.slane %v1921, 7
      %v1924 = vrot.slane %v1923, 1
      %v1926 = vshll.u32 %v1172, 16
      %v1928 = vsel %vm1187, %v1924, %v1926
      %v1930 = vshrl.u32 %v881, 16
      %v1932 = vrot.slane %v1930, 7
      %v1933 = vrot.slane %v1932, 1
      %v1935 = vshll.u32 %v1110, 16
      %v1937 = vsel %vm1187, %v1933, %v1935
      %v1938 = vshrl.u32 %v1110, 16
      %v1940 = vrot.slane %v1938, 7
      %v1941 = vrot.slane %v1940, 1
      %v1943 = vshll.u32 %v1111, 16
      %v1945 = vsel %vm1187, %v1941, %v1943
      %v1946 = vshrl.u32 %v1111, 16
      %v1948 = vrot.slane %v1946, 7
      %v1949 = vrot.slane %v1948, 1
      %v1951 = vshll.u32 %v1112, 16
      %v1953 = vsel %vm1187, %v1949, %v1951
      %v1954 = vshrl.u32 %v1112, 16
      %v1956 = vrot.slane %v1954, 7
      %v1957 = vrot.slane %v1956, 1
      %v1959 = vshll.u32 %v1113, 16
      %v1961 = vsel %vm1187, %v1957, %v1959
      %v1962 = vshrl.u32 %v1113, 16
      %v1964 = vrot.slane %v1962, 7
      %v1965 = vrot.slane %v1964, 1
      %v1967 = vshll.u32 %v1114, 16
      %v1969 = vsel %vm1187, %v1965, %v1967
      %v1970 = vshrl.u32 %v1114, 16
      %v1972 = vrot.slane %v1970, 7
      %v1973 = vrot.slane %v1972, 1
      %v1975 = vshll.u32 %v1115, 16
      %v1977 = vsel %vm1187, %v1973, %v1975
      %v1978 = vshrl.u32 %v1115, 16
      %v1980 = vrot.slane %v1978, 7
      %v1981 = vrot.slane %v1980, 1
      %v1983 = vshll.u32 %v1173, 16
      %v1985 = vsel %vm1187, %v1981, %v1983
      %v1986 = vld [vmem:[%s3 + $0x40] sm:$0xf]
      %v1987 = vld [vmem:[%s3 + $0x44] sm:$0xf]
      %v1988 = vld [vmem:[%s3 + $0x48] sm:$0xf]
      %v1989 = vld [vmem:[%s3 + $0x4c] sm:$0xf]
      %v1990 = vld [vmem:[%s3 + $0x50] sm:$0xf]
      %v1991 = vld [vmem:[%s3 + $0x54] sm:$0xf]
      %v1992 = vld [vmem:[%s3 + $0x58] sm:$0xf]
      %v1993 = vld [vmem:[%s3 + $0x5c] sm:$0xf]
      %v1994 = vld [vmem:[%s3 + $0x60] sm:$0xf]
      %v1995 = vld [vmem:[%s3 + $0x64] sm:$0xf]
      %v1996 = vld [vmem:[%s3 + $0x68] sm:$0xf]
      %v1997 = vld [vmem:[%s3 + $0x6c] sm:$0xf]
      %v1998 = vld [vmem:[%s3 + $0x70] sm:$0xf]
      %v1999 = vld [vmem:[%s3 + $0x74] sm:$0xf]
      %v2000 = vld [vmem:[%s3 + $0x78] sm:$0xf]
      %v2001 = vld [vmem:[%s3 + $0x7c] sm:$0xf]
      %2003 = vst [vmem:[#allocation1] ss:$9 sm:$0xff] %v1196
      %s2005 = scalar_lea.vmem [#allocation1], 1
      %2006 = vst [vmem:[%s2005] ss:$9 sm:$0xff] %v1204
      %s2008 = scalar_lea.vmem [#allocation1], 2
      %2009 = vst [vmem:[%s2008] ss:$9 sm:$0xff] %v1212
      %s2011 = scalar_lea.vmem [#allocation1], 3
      %2012 = vst [vmem:[%s2011] ss:$9 sm:$0xff] %v1220
      %s2014 = scalar_lea.vmem [#allocation1], 4
      %2015 = vst [vmem:[%s2014] ss:$9 sm:$0xff] %v1228
      %s2017 = scalar_lea.vmem [#allocation1], 5
      %2018 = vst [vmem:[%s2017] ss:$9 sm:$0xff] %v1236
      %s2020 = scalar_lea.vmem [#allocation1], 6
      %2021 = vst [vmem:[%s2020] ss:$9 sm:$0xff] %v1244
      %s2023 = scalar_lea.vmem [#allocation1], 7
      %2024 = vst [vmem:[%s2023] ss:$9 sm:$0xff] %v1253
      %v2025 = vld [vmem:[#allocation1] sm:$0xff]
      %2027 = vst [vmem:[#allocation1] ss:$9 sm:$0xff] %v1261
      %2029 = vst [vmem:[%s2005] ss:$9 sm:$0xff] %v1269
      %2031 = vst [vmem:[%s2008] ss:$9 sm:$0xff] %v1277
      %2033 = vst [vmem:[%s2011] ss:$9 sm:$0xff] %v1285
      %2035 = vst [vmem:[%s2014] ss:$9 sm:$0xff] %v1293
      %2037 = vst [vmem:[%s2017] ss:$9 sm:$0xff] %v1301
      %2039 = vst [vmem:[%s2020] ss:$9 sm:$0xff] %v1310
      %2041 = vst [vmem:[%s2023] ss:$9 sm:$0xff] %v1318
      %v2042 = vld [vmem:[#allocation1] sm:$0xff]
      %2044 = vst [vmem:[#allocation1] ss:$9 sm:$0xff] %v1326
      %2046 = vst [vmem:[%s2005] ss:$9 sm:$0xff] %v1334
      %2048 = vst [vmem:[%s2008] ss:$9 sm:$0xff] %v1342
      %2050 = vst [vmem:[%s2011] ss:$9 sm:$0xff] %v1350
      %2052 = vst [vmem:[%s2014] ss:$9 sm:$0xff] %v1358
      %2054 = vst [vmem:[%s2017] ss:$9 sm:$0xff] %v1367
      %2056 = vst [vmem:[%s2020] ss:$9 sm:$0xff] %v1375
      %2058 = vst [vmem:[%s2023] ss:$9 sm:$0xff] %v1383
      %v2059 = vld [vmem:[#allocation1] sm:$0xff]
      %2061 = vst [vmem:[#allocation1] ss:$9 sm:$0xff] %v1391
      %2063 = vst [vmem:[%s2005] ss:$9 sm:$0xff] %v1399
      %2065 = vst [vmem:[%s2008] ss:$9 sm:$0xff] %v1407
      %2067 = vst [vmem:[%s2011] ss:$9 sm:$0xff] %v1415
      %2069 = vst [vmem:[%s2014] ss:$9 sm:$0xff] %v1424
      %2071 = vst [vmem:[%s2017] ss:$9 sm:$0xff] %v1432
      %2073 = vst [vmem:[%s2020] ss:$9 sm:$0xff] %v1440
      %2075 = vst [vmem:[%s2023] ss:$9 sm:$0xff] %v1448
      %v2076 = vld [vmem:[#allocation1] sm:$0xff]
      %2078 = vst [vmem:[#allocation1] ss:$9 sm:$0xff] %v1456
      %2080 = vst [vmem:[%s2005] ss:$9 sm:$0xff] %v1464
      %2082 = vst [vmem:[%s2008] ss:$9 sm:$0xff] %v1472
      %2084 = vst [vmem:[%s2011] ss:$9 sm:$0xff] %v1481
      %2086 = vst [vmem:[%s2014] ss:$9 sm:$0xff] %v1489
      %2088 = vst [vmem:[%s2017] ss:$9 sm:$0xff] %v1497
      %2090 = vst [vmem:[%s2020] ss:$9 sm:$0xff] %v1505
      %2092 = vst [vmem:[%s2023] ss:$9 sm:$0xff] %v1513
      %v2093 = vld [vmem:[#allocation1] sm:$0xff]
      %2095 = vst [vmem:[#allocation1] ss:$9 sm:$0xff] %v1521
      %2097 = vst [vmem:[%s2005] ss:$9 sm:$0xff] %v1529
      %2099 = vst [vmem:[%s2008] ss:$9 sm:$0xff] %v1538
      %2101 = vst [vmem:[%s2011] ss:$9 sm:$0xff] %v1546
      %2103 = vst [vmem:[%s2014] ss:$9 sm:$0xff] %v1554
      %2105 = vst [vmem:[%s2017] ss:$9 sm:$0xff] %v1562
      %2107 = vst [vmem:[%s2020] ss:$9 sm:$0xff] %v1570
      %2109 = vst [vmem:[%s2023] ss:$9 sm:$0xff] %v1578
      %v2110 = vld [vmem:[#allocation1] sm:$0xff]
      %2112 = vst [vmem:[#allocation1] ss:$9 sm:$0xff] %v1586
      %2114 = vst [vmem:[%s2005] ss:$9 sm:$0xff] %v1595
      %2116 = vst [vmem:[%s2008] ss:$9 sm:$0xff] %v1603
      %2118 = vst [vmem:[%s2011] ss:$9 sm:$0xff] %v1611
      %2120 = vst [vmem:[%s2014] ss:$9 sm:$0xff] %v1619
      %2122 = vst [vmem:[%s2017] ss:$9 sm:$0xff] %v1627
      %2124 = vst [vmem:[%s2020] ss:$9 sm:$0xff] %v1635
      %2126 = vst [vmem:[%s2023] ss:$9 sm:$0xff] %v1643
      %v2127 = vld [vmem:[#allocation1] sm:$0xff]
      %2129 = vst [vmem:[#allocation1] ss:$9 sm:$0xff] %v1652
      %2131 = vst [vmem:[%s2005] ss:$9 sm:$0xff] %v1660
      %2133 = vst [vmem:[%s2008] ss:$9 sm:$0xff] %v1668
      %2135 = vst [vmem:[%s2011] ss:$9 sm:$0xff] %v1676
      %2137 = vst [vmem:[%s2014] ss:$9 sm:$0xff] %v1684
      %2139 = vst [vmem:[%s2017] ss:$9 sm:$0xff] %v1692
      %2141 = vst [vmem:[%s2020] ss:$9 sm:$0xff] %v1700
      %2143 = vst [vmem:[%s2023] ss:$9 sm:$0xff] %v1709
      %v2144 = vld [vmem:[#allocation1] sm:$0xff]
      %2146 = vst [vmem:[#allocation1] ss:$9 sm:$0xff] %v1717
      %2148 = vst [vmem:[%s2005] ss:$9 sm:$0xff] %v1725
      %2150 = vst [vmem:[%s2008] ss:$9 sm:$0xff] %v1733
      %2152 = vst [vmem:[%s2011] ss:$9 sm:$0xff] %v1741
      %2154 = vst [vmem:[%s2014] ss:$9 sm:$0xff] %v1749
      %2156 = vst [vmem:[%s2017] ss:$9 sm:$0xff] %v1757
      %2158 = vst [vmem:[%s2020] ss:$9 sm:$0xff] %v1766
      %2160 = vst [vmem:[%s2023] ss:$9 sm:$0xff] %v1774
      %v2161 = vld [vmem:[#allocation1] sm:$0xff]
      %2163 = vst [vmem:[#allocation1] ss:$9 sm:$0xff] %v1782
      %2165 = vst [vmem:[%s2005] ss:$9 sm:$0xff] %v1790
      %2167 = vst [vmem:[%s2008] ss:$9 sm:$0xff] %v1798
      %2169 = vst [vmem:[%s2011] ss:$9 sm:$0xff] %v1806
      %2171 = vst [vmem:[%s2014] ss:$9 sm:$0xff] %v1814
      %2173 = vst [vmem:[%s2017] ss:$9 sm:$0xff] %v1823
      %2175 = vst [vmem:[%s2020] ss:$9 sm:$0xff] %v1831
      %2177 = vst [vmem:[%s2023] ss:$9 sm:$0xff] %v1839
      %v2178 = vld [vmem:[#allocation1] sm:$0xff]
      %2180 = vst [vmem:[#allocation1] ss:$9 sm:$0xff] %v1847
      %2182 = vst [vmem:[%s2005] ss:$9 sm:$0xff] %v1855
      %2184 = vst [vmem:[%s2008] ss:$9 sm:$0xff] %v1863
      %2186 = vst [vmem:[%s2011] ss:$9 sm:$0xff] %v1871
      %2188 = vst [vmem:[%s2014] ss:$9 sm:$0xff] %v1880
      %2190 = vst [vmem:[%s2017] ss:$9 sm:$0xff] %v1888
      %2192 = vst [vmem:[%s2020] ss:$9 sm:$0xff] %v1896
      %2194 = vst [vmem:[%s2023] ss:$9 sm:$0xff] %v1904
      %v2195 = vld [vmem:[#allocation1] sm:$0xff]
      %2197 = vst [vmem:[#allocation1] ss:$9 sm:$0xff] %v1912
      %2199 = vst [vmem:[%s2005] ss:$9 sm:$0xff] %v1920
      %2201 = vst [vmem:[%s2008] ss:$9 sm:$0xff] %v1928
      %2203 = vst [vmem:[%s2011] ss:$9 sm:$0xff] %v1937
      %2205 = vst [vmem:[%s2014] ss:$9 sm:$0xff] %v1945
      %2207 = vst [vmem:[%s2017] ss:$9 sm:$0xff] %v1953
      %2209 = vst [vmem:[%s2020] ss:$9 sm:$0xff] %v1961
      %2211 = vst [vmem:[%s2023] ss:$9 sm:$0xff] %v1969
      %v2212 = vld [vmem:[#allocation1] sm:$0xff]
      %2214 = vst [vmem:[#allocation1] ss:$9 sm:$0xff] %v1977
      %2216 = vst [vmem:[%s2005] ss:$9 sm:$0xff] %v1985
      %v2217 = vld [vmem:[#allocation1] sm:$0xff]
      %v2247 = vunpack.c.l.b16 %v1986
      %v2248 = vunpack.c.l.b16 %v1987
      %v2249 = vunpack.c.l.b16 %v1988
      %v2250 = vunpack.c.l.b16 %v1989
      %v2251 = vunpack.c.l.b16 %v1990
      %v2252 = vunpack.c.l.b16 %v1991
      %v2253 = vunpack.c.l.b16 %v1992
      %v2254 = vunpack.c.l.b16 %v1993
      %v2255 = vunpack.c.l.b16 %v1994
      %v2256 = vunpack.c.l.b16 %v1995
      %v2257 = vunpack.c.l.b16 %v1996
      %v2258 = vunpack.c.l.b16 %v1997
      %v2259 = vunpack.c.l.b16 %v1998
      %v2260 = vunpack.c.l.b16 %v1999
      %v2261 = vunpack.c.l.b16 %v2000
      %v2262 = vunpack.c.l.b16 %v2001
      %v2263 = vpack.c.b16 %v2248, %v2247
      %v2264 = vpack.c.b16 %v2250, %v2249
      %v2265 = vpack.c.b16 %v2252, %v2251
      %v2266 = vpack.c.b16 %v2254, %v2253
      %v2267 = vpack.c.b16 %v2256, %v2255
      %v2268 = vpack.c.b16 %v2258, %v2257
      %v2269 = vpack.c.b16 %v2260, %v2259
      %v2270 = vpack.c.b16 %v2262, %v2261
      %2279 = vmatpush.bf16.msra.mxu0 %v2270
      %2280 = vmatpush.bf16.msra.mxu0 %v2269
      %2281 = vmatpush.bf16.msra.mxu0 %v2268
      %2282 = vmatpush.bf16.msra.mxu0 %v2267
      %2283 = vmatpush.bf16.msra.mxu0 %v2266
      %2284 = vmatpush.bf16.msra.mxu0 %v2265
      %2285 = vmatpush.bf16.msra.mxu0 %v2264
      %2286 = vmatpush.bf16.msra.mxu0 %v2263
      %2287 = vmatmul.bf16.gmra.mxu0 %v2025
      %v2288 = vpop.f32.mrf.mxu0
      %v2289 = vadd.f32 0.0, %v2288
      %v2290 = vpop.f32.mrf.mxu0
      %v2291 = vadd.f32 0.0, %v2290
      %2292 = vmatmul.bf16.gmra.mxu0 %v2042
      %v2293 = vpop.f32.mrf.mxu0
      %v2294 = vadd.f32 0.0, %v2293
      %v2295 = vpop.f32.mrf.mxu0
      %v2296 = vadd.f32 0.0, %v2295
      %2297 = vmatmul.bf16.gmra.mxu0 %v2059
      %v2298 = vpop.f32.mrf.mxu0
      %v2299 = vadd.f32 0.0, %v2298
      %v2300 = vpop.f32.mrf.mxu0
      %v2301 = vadd.f32 0.0, %v2300
      %2302 = vmatmul.bf16.gmra.mxu0 %v2076
      %v2303 = vpop.f32.mrf.mxu0
      %v2304 = vadd.f32 0.0, %v2303
      %v2305 = vpop.f32.mrf.mxu0
      %v2306 = vadd.f32 0.0, %v2305
      %2307 = vmatmul.bf16.gmra.mxu0 %v2093
      %v2308 = vpop.f32.mrf.mxu0
      %v2309 = vadd.f32 0.0, %v2308
      %v2310 = vpop.f32.mrf.mxu0
      %v2311 = vadd.f32 0.0, %v2310
      %2312 = vmatmul.bf16.gmra.mxu0 %v2110
      %v2313 = vpop.f32.mrf.mxu0
      %v2314 = vadd.f32 0.0, %v2313
      %v2315 = vpop.f32.mrf.mxu0
      %v2316 = vadd.f32 0.0, %v2315
      %2317 = vmatmul.bf16.gmra.mxu0 %v2127
      %v2318 = vpop.f32.mrf.mxu0
      %v2319 = vadd.f32 0.0, %v2318
      %v2320 = vpop.f32.mrf.mxu0
      %v2321 = vadd.f32 0.0, %v2320
      %2322 = vmatmul.bf16.gmra.mxu0 %v2144
      %v2323 = vpop.f32.mrf.mxu0
      %v2324 = vadd.f32 0.0, %v2323
      %v2325 = vpop.f32.mrf.mxu0
      %v2326 = vadd.f32 0.0, %v2325
      %2327 = vmatmul.bf16.gmra.mxu0 %v2161
      %v2328 = vpop.f32.mrf.mxu0
      %v2329 = vadd.f32 0.0, %v2328
      %v2330 = vpop.f32.mrf.mxu0
      %v2331 = vadd.f32 0.0, %v2330
      %2332 = vmatmul.bf16.gmra.mxu0 %v2178
      %v2333 = vpop.f32.mrf.mxu0
      %v2334 = vadd.f32 0.0, %v2333
      %v2335 = vpop.f32.mrf.mxu0
      %v2336 = vadd.f32 0.0, %v2335
      %2337 = vmatmul.bf16.gmra.mxu0 %v2195
      %v2338 = vpop.f32.mrf.mxu0
      %v2339 = vadd.f32 0.0, %v2338
      %v2340 = vpop.f32.mrf.mxu0
      %v2341 = vadd.f32 0.0, %v2340
      %2342 = vmatmul.bf16.gmra.mxu0 %v2212
      %v2343 = vpop.f32.mrf.mxu0
      %v2344 = vadd.f32 0.0, %v2343
      %v2345 = vpop.f32.mrf.mxu0
      %v2346 = vadd.f32 0.0, %v2345
      %2347 = vmatmul.bf16.gmra.mxu0 %v2217
      %v2348 = vpop.f32.mrf.mxu0
      %v2349 = vadd.f32 0.0, %v2348
      %v2350 = vpop.f32.mrf.mxu0
      %2351 = vdwg.mxu0
      %2352 = vst [vmem:[#allocation1] ss:$9 sm:$0xff] %v868
      %s2353 = scalar_lea.vmem [#allocation1], 1
      %2354 = vst [vmem:[%s2353] ss:$9 sm:$0xff] %v1032
      %s2355 = scalar_lea.vmem [#allocation1], 2
      %2356 = vst [vmem:[%s2355] ss:$9 sm:$0xff] %v1033
      %s2357 = scalar_lea.vmem [#allocation1], 3
      %2358 = vst [vmem:[%s2357] ss:$9 sm:$0xff] %v1034
      %s2359 = scalar_lea.vmem [#allocation1], 4
      %2360 = vst [vmem:[%s2359] ss:$9 sm:$0xff] %v1035
      %s2361 = scalar_lea.vmem [#allocation1], 5
      %2362 = vst [vmem:[%s2361] ss:$9 sm:$0xff] %v1036
      %s2363 = scalar_lea.vmem [#allocation1], 6
      %2364 = vst [vmem:[%s2363] ss:$9 sm:$0xff] %v1037
      %s2365 = scalar_lea.vmem [#allocation1], 7
      %2366 = vst [vmem:[%s2365] ss:$9 sm:$0xff] %v869
      %v2367 = vld [vmem:[#allocation1] sm:$0xff]
      %2368 = vst [vmem:[#allocation1] ss:$9 sm:$0xff] %v1038
      %2369 = vst [vmem:[%s2353] ss:$9 sm:$0xff] %v1039
      %2370 = vst [vmem:[%s2355] ss:$9 sm:$0xff] %v1040
      %2371 = vst [vmem:[%s2357] ss:$9 sm:$0xff] %v1041
      %2372 = vst [vmem:[%s2359] ss:$9 sm:$0xff] %v1042
      %2373 = vst [vmem:[%s2361] ss:$9 sm:$0xff] %v1043
      %2374 = vst [vmem:[%s2363] ss:$9 sm:$0xff] %v870
      %2375 = vst [vmem:[%s2365] ss:$9 sm:$0xff] %v1044
      %v2376 = vld [vmem:[#allocation1] sm:$0xff]
      %2377 = vst [vmem:[#allocation1] ss:$9 sm:$0xff] %v1045
      %2378 = vst [vmem:[%s2353] ss:$9 sm:$0xff] %v1046
      %2379 = vst [vmem:[%s2355] ss:$9 sm:$0xff] %v1047
      %2380 = vst [vmem:[%s2357] ss:$9 sm:$0xff] %v1048
      %2381 = vst [vmem:[%s2359] ss:$9 sm:$0xff] %v1049
      %2382 = vst [vmem:[%s2361] ss:$9 sm:$0xff] %v871
      %2383 = vst [vmem:[%s2363] ss:$9 sm:$0xff] %v1050
      %2384 = vst [vmem:[%s2365] ss:$9 sm:$0xff] %v1051
      %v2385 = vld [vmem:[#allocation1] sm:$0xff]
      %2386 = vst [vmem:[#allocation1] ss:$9 sm:$0xff] %v1052
      %2387 = vst [vmem:[%s2353] ss:$9 sm:$0xff] %v1053
      %2388 = vst [vmem:[%s2355] ss:$9 sm:$0xff] %v1054
      %2389 = vst [vmem:[%s2357] ss:$9 sm:$0xff] %v1055
      %2390 = vst [vmem:[%s2359] ss:$9 sm:$0xff] %v872
      %2391 = vst [vmem:[%s2361] ss:$9 sm:$0xff] %v1056
      %2392 = vst [vmem:[%s2363] ss:$9 sm:$0xff] %v1057
      %2393 = vst [vmem:[%s2365] ss:$9 sm:$0xff] %v1058
      %v2394 = vld [vmem:[#allocation1] sm:$0xff]
      %2395 = vst [vmem:[#allocation1] ss:$9 sm:$0xff] %v1059
      %2396 = vst [vmem:[%s2353] ss:$9 sm:$0xff] %v1060
      %2397 = vst [vmem:[%s2355] ss:$9 sm:$0xff] %v1061
      %2398 = vst [vmem:[%s2357] ss:$9 sm:$0xff] %v873
      %2399 = vst [vmem:[%s2359] ss:$9 sm:$0xff] %v1062
      %2400 = vst [vmem:[%s2361] ss:$9 sm:$0xff] %v1063
      %2401 = vst [vmem:[%s2363] ss:$9 sm:$0xff] %v1064
      %2402 = vst [vmem:[%s2365] ss:$9 sm:$0xff] %v1065
      %v2403 = vld [vmem:[#allocation1] sm:$0xff]
      %2404 = vst [vmem:[#allocation1] ss:$9 sm:$0xff] %v1066
      %2405 = vst [vmem:[%s2353] ss:$9 sm:$0xff] %v1067
      %2406 = vst [vmem:[%s2355] ss:$9 sm:$0xff] %v874
      %2407 = vst [vmem:[%s2357] ss:$9 sm:$0xff] %v1068
      %2408 = vst [vmem:[%s2359] ss:$9 sm:$0xff] %v1069
      %2409 = vst [vmem:[%s2361] ss:$9 sm:$0xff] %v1070
      %2410 = vst [vmem:[%s2363] ss:$9 sm:$0xff] %v1071
      %2411 = vst [vmem:[%s2365] ss:$9 sm:$0xff] %v1072
      %v2412 = vld [vmem:[#allocation1] sm:$0xff]
      %2413 = vst [vmem:[#allocation1] ss:$9 sm:$0xff] %v1073
      %2414 = vst [vmem:[%s2353] ss:$9 sm:$0xff] %v875
      %2415 = vst [vmem:[%s2355] ss:$9 sm:$0xff] %v1074
      %2416 = vst [vmem:[%s2357] ss:$9 sm:$0xff] %v1075
      %2417 = vst [vmem:[%s2359] ss:$9 sm:$0xff] %v1076
      %2418 = vst [vmem:[%s2361] ss:$9 sm:$0xff] %v1077
      %2419 = vst [vmem:[%s2363] ss:$9 sm:$0xff] %v1078
      %2420 = vst [vmem:[%s2365] ss:$9 sm:$0xff] %v1079
      %v2421 = vld [vmem:[#allocation1] sm:$0xff]
      %2422 = vst [vmem:[#allocation1] ss:$9 sm:$0xff] %v876
      %2423 = vst [vmem:[%s2353] ss:$9 sm:$0xff] %v1080
      %2424 = vst [vmem:[%s2355] ss:$9 sm:$0xff] %v1081
      %2425 = vst [vmem:[%s2357] ss:$9 sm:$0xff] %v1082
      %2426 = vst [vmem:[%s2359] ss:$9 sm:$0xff] %v1083
      %2427 = vst [vmem:[%s2361] ss:$9 sm:$0xff] %v1084
      %2428 = vst [vmem:[%s2363] ss:$9 sm:$0xff] %v1085
      %2429 = vst [vmem:[%s2365] ss:$9 sm:$0xff] %v877
      %v2430 = vld [vmem:[#allocation1] sm:$0xff]
      %2431 = vst [vmem:[#allocation1] ss:$9 sm:$0xff] %v1086
      %2432 = vst [vmem:[%s2353] ss:$9 sm:$0xff] %v1087
      %2433 = vst [vmem:[%s2355] ss:$9 sm:$0xff] %v1088
      %2434 = vst [vmem:[%s2357] ss:$9 sm:$0xff] %v1089
      %2435 = vst [vmem:[%s2359] ss:$9 sm:$0xff] %v1090
      %2436 = vst [vmem:[%s2361] ss:$9 sm:$0xff] %v1091
      %2437 = vst [vmem:[%s2363] ss:$9 sm:$0xff] %v878
      %2438 = vst [vmem:[%s2365] ss:$9 sm:$0xff] %v1092
      %v2439 = vld [vmem:[#allocation1] sm:$0xff]
      %2440 = vst [vmem:[#allocation1] ss:$9 sm:$0xff] %v1093
      %2441 = vst [vmem:[%s2353] ss:$9 sm:$0xff] %v1094
      %2442 = vst [vmem:[%s2355] ss:$9 sm:$0xff] %v1095
      %2443 = vst [vmem:[%s2357] ss:$9 sm:$0xff] %v1096
      %2444 = vst [vmem:[%s2359] ss:$9 sm:$0xff] %v1097
      %2445 = vst [vmem:[%s2361] ss:$9 sm:$0xff] %v879
      %2446 = vst [vmem:[%s2363] ss:$9 sm:$0xff] %v1098
      %2447 = vst [vmem:[%s2365] ss:$9 sm:$0xff] %v1099
      %v2448 = vld [vmem:[#allocation1] sm:$0xff]
      %2449 = vst [vmem:[#allocation1] ss:$9 sm:$0xff] %v1100
      %2450 = vst [vmem:[%s2353] ss:$9 sm:$0xff] %v1101
      %2451 = vst [vmem:[%s2355] ss:$9 sm:$0xff] %v1102
      %2452 = vst [vmem:[%s2357] ss:$9 sm:$0xff] %v1103
      %2453 = vst [vmem:[%s2359] ss:$9 sm:$0xff] %v880
      %2454 = vst [vmem:[%s2361] ss:$9 sm:$0xff] %v1104
      %2455 = vst [vmem:[%s2363] ss:$9 sm:$0xff] %v1105
      %2456 = vst [vmem:[%s2365] ss:$9 sm:$0xff] %v1106
      %v2457 = vld [vmem:[#allocation1] sm:$0xff]
      %2458 = vst [vmem:[#allocation1] ss:$9 sm:$0xff] %v1107
      %2459 = vst [vmem:[%s2353] ss:$9 sm:$0xff] %v1108
      %2460 = vst [vmem:[%s2355] ss:$9 sm:$0xff] %v1109
      %2461 = vst [vmem:[%s2357] ss:$9 sm:$0xff] %v881
      %2462 = vst [vmem:[%s2359] ss:$9 sm:$0xff] %v1110
      %2463 = vst [vmem:[%s2361] ss:$9 sm:$0xff] %v1111
      %2464 = vst [vmem:[%s2363] ss:$9 sm:$0xff] %v1112
      %2465 = vst [vmem:[%s2365] ss:$9 sm:$0xff] %v1113
      %v2466 = vld [vmem:[#allocation1] sm:$0xff]
      %2467 = vst [vmem:[#allocation1] ss:$9 sm:$0xff] %v1114
      %2468 = vst [vmem:[%s2353] ss:$9 sm:$0xff] %v1115
      %v2469 = vld [vmem:[#allocation1] sm:$0xff]
      %v2499 = vunpack.c.l.b16 %v1116
      %v2500 = vunpack.c.l.b16 %v1117
      %v2501 = vunpack.c.l.b16 %v1118
      %v2502 = vunpack.c.l.b16 %v1119
      %v2503 = vunpack.c.l.b16 %v1120
      %v2504 = vunpack.c.l.b16 %v1121
      %v2505 = vunpack.c.l.b16 %v1122
      %v2506 = vunpack.c.l.b16 %v1123
      %v2507 = vunpack.c.l.b16 %v1124
      %v2508 = vunpack.c.l.b16 %v1125
      %v2509 = vunpack.c.l.b16 %v1126
      %v2510 = vunpack.c.l.b16 %v1127
      %v2511 = vunpack.c.l.b16 %v1128
      %v2512 = vunpack.c.l.b16 %v1129
      %v2513 = vunpack.c.l.b16 %v1130
      %v2514 = vunpack.c.l.b16 %v1131
      %v2515 = vpack.c.b16 %v2500, %v2499
      %v2516 = vpack.c.b16 %v2502, %v2501
      %v2517 = vpack.c.b16 %v2504, %v2503
      %v2518 = vpack.c.b16 %v2506, %v2505
      %v2519 = vpack.c.b16 %v2508, %v2507
      %v2520 = vpack.c.b16 %v2510, %v2509
      %v2521 = vpack.c.b16 %v2512, %v2511
      %v2522 = vpack.c.b16 %v2514, %v2513
      %2531 = vmatpush.bf16.msra.mxu0 %v2522
      %2532 = vmatpush.bf16.msra.mxu0 %v2521
      %2533 = vmatpush.bf16.msra.mxu0 %v2520
      %2534 = vmatpush.bf16.msra.mxu0 %v2519
      %2535 = vmatpush.bf16.msra.mxu0 %v2518
      %2536 = vmatpush.bf16.msra.mxu0 %v2517
      %2537 = vmatpush.bf16.msra.mxu0 %v2516
      %2538 = vmatpush.bf16.msra.mxu0 %v2515
      %2539 = vmatmul.bf16.gmra.mxu0 %v2367
      %v2540 = vpop.f32.mrf.mxu0
      %v2541 = vadd.f32 %v2289, %v2540
      %v2542 = vpop.f32.mrf.mxu0
      %v2543 = vadd.f32 %v2291, %v2542
      %2544 = vmatmul.bf16.gmra.mxu0 %v2376
      %v2545 = vpop.f32.mrf.mxu0
      %v2546 = vadd.f32 %v2294, %v2545
      %v2547 = vpop.f32.mrf.mxu0
      %v2548 = vadd.f32 %v2296, %v2547
      %2549 = vmatmul.bf16.gmra.mxu0 %v2385
      %v2550 = vpop.f32.mrf.mxu0
      %v2551 = vadd.f32 %v2299, %v2550
      %v2552 = vpop.f32.mrf.mxu0
      %v2553 = vadd.f32 %v2301, %v2552
      %2554 = vmatmul.bf16.gmra.mxu0 %v2394
      %v2555 = vpop.f32.mrf.mxu0
      %v2556 = vadd.f32 %v2304, %v2555
      %v2557 = vpop.f32.mrf.mxu0
      %v2558 = vadd.f32 %v2306, %v2557
      %2559 = vmatmul.bf16.gmra.mxu0 %v2403
      %v2560 = vpop.f32.mrf.mxu0
      %v2561 = vadd.f32 %v2309, %v2560
      %v2562 = vpop.f32.mrf.mxu0
      %v2563 = vadd.f32 %v2311, %v2562
      %2564 = vmatmul.bf16.gmra.mxu0 %v2412
      %v2565 = vpop.f32.mrf.mxu0
      %v2566 = vadd.f32 %v2314, %v2565
      %v2567 = vpop.f32.mrf.mxu0
      %v2568 = vadd.f32 %v2316, %v2567
      %2569 = vmatmul.bf16.gmra.mxu0 %v2421
      %v2570 = vpop.f32.mrf.mxu0
      %v2571 = vadd.f32 %v2319, %v2570
      %v2572 = vpop.f32.mrf.mxu0
      %v2573 = vadd.f32 %v2321, %v2572
      %2574 = vmatmul.bf16.gmra.mxu0 %v2430
      %v2575 = vpop.f32.mrf.mxu0
      %v2576 = vadd.f32 %v2324, %v2575
      %v2577 = vpop.f32.mrf.mxu0
      %v2578 = vadd.f32 %v2326, %v2577
      %2579 = vmatmul.bf16.gmra.mxu0 %v2439
      %v2580 = vpop.f32.mrf.mxu0
      %v2581 = vadd.f32 %v2329, %v2580
      %v2582 = vpop.f32.mrf.mxu0
      %v2583 = vadd.f32 %v2331, %v2582
      %2584 = vmatmul.bf16.gmra.mxu0 %v2448
      %v2585 = vpop.f32.mrf.mxu0
      %v2586 = vadd.f32 %v2334, %v2585
      %v2587 = vpop.f32.mrf.mxu0
      %v2588 = vadd.f32 %v2336, %v2587
      %2589 = vmatmul.bf16.gmra.mxu0 %v2457
      %v2590 = vpop.f32.mrf.mxu0
      %v2591 = vadd.f32 %v2339, %v2590
      %v2592 = vpop.f32.mrf.mxu0
      %v2593 = vadd.f32 %v2341, %v2592
      %2594 = vmatmul.bf16.gmra.mxu0 %v2466
      %v2595 = vpop.f32.mrf.mxu0
      %v2596 = vadd.f32 %v2344, %v2595
      %v2597 = vpop.f32.mrf.mxu0
      %v2598 = vadd.f32 %v2346, %v2597
      %2599 = vmatmul.bf16.gmra.mxu0 %v2469
      %v2600 = vpop.f32.mrf.mxu0
      %v2601 = vadd.f32 %v2349, %v2600
      %v2602 = vpop.f32.mrf.mxu0
      %2603 = vdwg.mxu0
      %v2632 = vrot.slane %v987, 1
      %v2633 = vrot.slane %v1003, 1
      %v2634 = vsel %vm1002, %v2632, %v2633
      %v2635 = vrot.slane %v988, 1
      %v2636 = vrot.slane %v1004, 1
      %v2637 = vsel %vm1002, %v2635, %v2636
      %v2638 = vrot.slane %v989, 1
      %v2639 = vrot.slane %v1005, 1
      %v2640 = vsel %vm1002, %v2638, %v2639
      %v2641 = vrot.slane %v990, 1
      %v2642 = vrot.slane %v1006, 1
      %v2643 = vsel %vm1002, %v2641, %v2642
      %v2644 = vrot.slane %v991, 1
      %v2645 = vrot.slane %v1007, 1
      %v2646 = vsel %vm1002, %v2644, %v2645
      %v2647 = vrot.slane %v992, 1
      %v2648 = vrot.slane %v1008, 1
      %v2649 = vsel %vm1002, %v2647, %v2648
      %v2650 = vrot.slane %v993, 1
      %v2651 = vrot.slane %v1009, 1
      %v2652 = vsel %vm1002, %v2650, %v2651
      %v2653 = vrot.slane %v994, 1
      %v2654 = vrot.slane %v1010, 1
      %v2655 = vsel %vm1002, %v2653, %v2654
      %v2656 = vrot.slane %v995, 1
      %v2657 = vrot.slane %v1011, 1
      %v2658 = vsel %vm1002, %v2656, %v2657
      %v2659 = vrot.slane %v996, 1
      %v2660 = vrot.slane %v1012, 1
      %v2661 = vsel %vm1002, %v2659, %v2660
      %v2662 = vrot.slane %v997, 1
      %v2663 = vrot.slane %v1013, 1
      %v2664 = vsel %vm1002, %v2662, %v2663
      %v2665 = vrot.slane %v998, 1
      %v2666 = vrot.slane %v1014, 1
      %v2667 = vsel %vm1002, %v2665, %v2666
      %v2668 = vrot.slane %v999, 1
      %v2669 = vrot.slane %v1015, 1
      %v2670 = vsel %vm1002, %v2668, %v2669
      %v2671 = vrot.slane %v1000, 1
      %v2672 = vrot.slane %v1016, 1
      %v2673 = vsel %vm1002, %v2671, %v2672
      %v2702 = vadd.f32 %v1132, %v2634
      %v2703 = vadd.f32 %v1133, %v2633
      %v2704 = vadd.f32 %v1134, %v2637
      %v2705 = vadd.f32 %v1135, %v2636
      %v2706 = vadd.f32 %v1136, %v2640
      %v2707 = vadd.f32 %v1137, %v2639
      %v2708 = vadd.f32 %v1138, %v2643
      %v2709 = vadd.f32 %v1139, %v2642
      %v2710 = vadd.f32 %v1140, %v2646
      %v2711 = vadd.f32 %v1141, %v2645
      %v2712 = vadd.f32 %v1142, %v2649
      %v2713 = vadd.f32 %v1143, %v2648
      %v2714 = vadd.f32 %v1144, %v2652
      %v2715 = vadd.f32 %v1145, %v2651
      %v2716 = vadd.f32 %v1146, %v2655
      %v2717 = vadd.f32 %v1147, %v2654
      %v2718 = vadd.f32 %v1148, %v2658
      %v2719 = vadd.f32 %v1149, %v2657
      %v2720 = vadd.f32 %v1150, %v2661
      %v2721 = vadd.f32 %v1151, %v2660
      %v2722 = vadd.f32 %v1152, %v2664
      %v2723 = vadd.f32 %v1153, %v2663
      %v2724 = vadd.f32 %v1154, %v2667
      %v2725 = vadd.f32 %v1155, %v2666
      %v2726 = vadd.f32 %v1156, %v2670
      %v2727 = vadd.f32 %v1157, %v2669
      %v2728 = vadd.f32 %v1158, %v2673
      %v2729 = vadd.f32 %v1159, %v2672
      %2730 = vst [vmem:[#allocation1] sm:$0xff] %v868
      %s2731 = scalar_lea.vmem [#allocation1], 1
      %v2732 = vld [vmem:[%s2731] ss:$9 sm:$0xff]
      %s2733 = scalar_lea.vmem [#allocation1], 2
      %v2734 = vld [vmem:[%s2733] ss:$9 sm:$0xff]
      %s2735 = scalar_lea.vmem [#allocation1], 3
      %v2736 = vld [vmem:[%s2735] ss:$9 sm:$0xff]
      %s2737 = scalar_lea.vmem [#allocation1], 4
      %v2738 = vld [vmem:[%s2737] ss:$9 sm:$0xff]
      %s2739 = scalar_lea.vmem [#allocation1], 5
      %v2740 = vld [vmem:[%s2739] ss:$9 sm:$0xff]
      %s2741 = scalar_lea.vmem [#allocation1], 6
      %v2742 = vld [vmem:[%s2741] ss:$9 sm:$0xff]
      %s2743 = scalar_lea.vmem [#allocation1], 7
      %v2744 = vld [vmem:[%s2743] ss:$9 sm:$0xff]
      %2745 = vst [vmem:[#allocation1] sm:$0xff] %v869
      %v2746 = vld [vmem:[%s2731] ss:$9 sm:$0xff]
      %v2747 = vld [vmem:[%s2733] ss:$9 sm:$0xff]
      %v2748 = vld [vmem:[%s2735] ss:$9 sm:$0xff]
      %v2749 = vld [vmem:[%s2737] ss:$9 sm:$0xff]
      %v2750 = vld [vmem:[%s2739] ss:$9 sm:$0xff]
      %v2751 = vld [vmem:[%s2741] ss:$9 sm:$0xff]
      %v2752 = vld [vmem:[%s2743] ss:$9 sm:$0xff]
      %2753 = vst [vmem:[#allocation1] sm:$0xff] %v870
      %v2754 = vld [vmem:[%s2731] ss:$9 sm:$0xff]
      %v2755 = vld [vmem:[%s2733] ss:$9 sm:$0xff]
      %v2756 = vld [vmem:[%s2735] ss:$9 sm:$0xff]
      %v2757 = vld [vmem:[%s2737] ss:$9 sm:$0xff]
      %v2758 = vld [vmem:[%s2739] ss:$9 sm:$0xff]
      %v2759 = vld [vmem:[%s2741] ss:$9 sm:$0xff]
      %v2760 = vld [vmem:[%s2743] ss:$9 sm:$0xff]
      %2761 = vst [vmem:[#allocation1] sm:$0xff] %v871
      %v2762 = vld [vmem:[%s2731] ss:$9 sm:$0xff]
      %v2763 = vld [vmem:[%s2733] ss:$9 sm:$0xff]
      %v2764 = vld [vmem:[%s2735] ss:$9 sm:$0xff]
      %v2765 = vld [vmem:[%s2737] ss:$9 sm:$0xff]
      %v2766 = vld [vmem:[%s2739] ss:$9 sm:$0xff]
      %v2767 = vld [vmem:[%s2741] ss:$9 sm:$0xff]
      %v2768 = vld [vmem:[%s2743] ss:$9 sm:$0xff]
      %2769 = vst [vmem:[#allocation1] sm:$0xff] %v872
      %v2770 = vld [vmem:[%s2731] ss:$9 sm:$0xff]
      %v2771 = vld [vmem:[%s2733] ss:$9 sm:$0xff]
      %v2772 = vld [vmem:[%s2735] ss:$9 sm:$0xff]
      %v2773 = vld [vmem:[%s2737] ss:$9 sm:$0xff]
      %v2774 = vld [vmem:[%s2739] ss:$9 sm:$0xff]
      %v2775 = vld [vmem:[%s2741] ss:$9 sm:$0xff]
      %v2776 = vld [vmem:[%s2743] ss:$9 sm:$0xff]
      %2777 = vst [vmem:[#allocation1] sm:$0xff] %v873
      %v2778 = vld [vmem:[%s2731] ss:$9 sm:$0xff]
      %v2779 = vld [vmem:[%s2733] ss:$9 sm:$0xff]
      %v2780 = vld [vmem:[%s2735] ss:$9 sm:$0xff]
      %v2781 = vld [vmem:[%s2737] ss:$9 sm:$0xff]
      %v2782 = vld [vmem:[%s2739] ss:$9 sm:$0xff]
      %v2783 = vld [vmem:[%s2741] ss:$9 sm:$0xff]
      %v2784 = vld [vmem:[%s2743] ss:$9 sm:$0xff]
      %2785 = vst [vmem:[#allocation1] sm:$0xff] %v874
      %v2786 = vld [vmem:[%s2731] ss:$9 sm:$0xff]
      %v2787 = vld [vmem:[%s2733] ss:$9 sm:$0xff]
      %v2788 = vld [vmem:[%s2735] ss:$9 sm:$0xff]
      %v2789 = vld [vmem:[%s2737] ss:$9 sm:$0xff]
      %v2790 = vld [vmem:[%s2739] ss:$9 sm:$0xff]
      %v2791 = vld [vmem:[%s2741] ss:$9 sm:$0xff]
      %v2792 = vld [vmem:[%s2743] ss:$9 sm:$0xff]
      %2793 = vst [vmem:[#allocation1] sm:$0xff] %v875
      %v2794 = vld [vmem:[%s2731] ss:$9 sm:$0xff]
      %v2795 = vld [vmem:[%s2733] ss:$9 sm:$0xff]
      %v2796 = vld [vmem:[%s2735] ss:$9 sm:$0xff]
      %v2797 = vld [vmem:[%s2737] ss:$9 sm:$0xff]
      %v2798 = vld [vmem:[%s2739] ss:$9 sm:$0xff]
      %v2799 = vld [vmem:[%s2741] ss:$9 sm:$0xff]
      %v2800 = vld [vmem:[%s2743] ss:$9 sm:$0xff]
      %2801 = vst [vmem:[#allocation1] sm:$0xff] %v876
      %v2802 = vld [vmem:[%s2731] ss:$9 sm:$0xff]
      %v2803 = vld [vmem:[%s2733] ss:$9 sm:$0xff]
      %v2804 = vld [vmem:[%s2735] ss:$9 sm:$0xff]
      %v2805 = vld [vmem:[%s2737] ss:$9 sm:$0xff]
      %v2806 = vld [vmem:[%s2739] ss:$9 sm:$0xff]
      %v2807 = vld [vmem:[%s2741] ss:$9 sm:$0xff]
      %v2808 = vld [vmem:[%s2743] ss:$9 sm:$0xff]
      %2809 = vst [vmem:[#allocation1] sm:$0xff] %v877
      %v2810 = vld [vmem:[%s2731] ss:$9 sm:$0xff]
      %v2811 = vld [vmem:[%s2733] ss:$9 sm:$0xff]
      %v2812 = vld [vmem:[%s2735] ss:$9 sm:$0xff]
      %v2813 = vld [vmem:[%s2737] ss:$9 sm:$0xff]
      %v2814 = vld [vmem:[%s2739] ss:$9 sm:$0xff]
      %v2815 = vld [vmem:[%s2741] ss:$9 sm:$0xff]
      %v2816 = vld [vmem:[%s2743] ss:$9 sm:$0xff]
      %2817 = vst [vmem:[#allocation1] sm:$0xff] %v878
      %v2818 = vld [vmem:[%s2731] ss:$9 sm:$0xff]
      %v2819 = vld [vmem:[%s2733] ss:$9 sm:$0xff]
      %v2820 = vld [vmem:[%s2735] ss:$9 sm:$0xff]
      %v2821 = vld [vmem:[%s2737] ss:$9 sm:$0xff]
      %v2822 = vld [vmem:[%s2739] ss:$9 sm:$0xff]
      %v2823 = vld [vmem:[%s2741] ss:$9 sm:$0xff]
      %v2824 = vld [vmem:[%s2743] ss:$9 sm:$0xff]
      %2825 = vst [vmem:[#allocation1] sm:$0xff] %v879
      %v2826 = vld [vmem:[%s2731] ss:$9 sm:$0xff]
      %v2827 = vld [vmem:[%s2733] ss:$9 sm:$0xff]
      %v2828 = vld [vmem:[%s2735] ss:$9 sm:$0xff]
      %v2829 = vld [vmem:[%s2737] ss:$9 sm:$0xff]
      %v2830 = vld [vmem:[%s2739] ss:$9 sm:$0xff]
      %v2831 = vld [vmem:[%s2741] ss:$9 sm:$0xff]
      %v2832 = vld [vmem:[%s2743] ss:$9 sm:$0xff]
      %2833 = vst [vmem:[#allocation1] sm:$0xff] %v880
      %v2834 = vld [vmem:[%s2731] ss:$9 sm:$0xff]
      %v2835 = vld [vmem:[%s2733] ss:$9 sm:$0xff]
      %v2836 = vld [vmem:[%s2735] ss:$9 sm:$0xff]
      %v2837 = vld [vmem:[%s2737] ss:$9 sm:$0xff]
      %v2838 = vld [vmem:[%s2739] ss:$9 sm:$0xff]
      %v2839 = vld [vmem:[%s2741] ss:$9 sm:$0xff]
      %v2840 = vld [vmem:[%s2743] ss:$9 sm:$0xff]
      %2841 = vst [vmem:[#allocation1] sm:$0xff] %v881
      %v2842 = vld [vmem:[%s2731] ss:$9 sm:$0xff]
      %v2843 = vld [vmem:[%s2733] ss:$9 sm:$0xff]
      %v2844 = vld [vmem:[%s2735] ss:$9 sm:$0xff]
      %v2845 = vld [vmem:[%s2737] ss:$9 sm:$0xff]
      %v2846 = vld [vmem:[%s2739] ss:$9 sm:$0xff]
      %v2847 = vld [vmem:[%s2741] ss:$9 sm:$0xff]
      %v2848 = vld [vmem:[%s2743] ss:$9 sm:$0xff]
      %v2849 = vld [vmem:[%s3 + $0x80] sm:$0xf]
      %v2850 = vld [vmem:[%s3 + $0x84] sm:$0xf]
      %v2851 = vld [vmem:[%s3 + $0x88] sm:$0xf]
      %v2852 = vld [vmem:[%s3 + $0x8c] sm:$0xf]
      %v2853 = vld [vmem:[%s3 + $0x90] sm:$0xf]
      %v2854 = vld [vmem:[%s3 + $0x94] sm:$0xf]
      %v2855 = vld [vmem:[%s3 + $0x98] sm:$0xf]
      %v2856 = vld [vmem:[%s3 + $0x9c] sm:$0xf]
      %v2857 = vld [vmem:[%s3 + $0xa0] sm:$0xf]
      %v2858 = vld [vmem:[%s3 + $0xa4] sm:$0xf]
      %v2859 = vld [vmem:[%s3 + $0xa8] sm:$0xf]
      %v2860 = vld [vmem:[%s3 + $0xac] sm:$0xf]
      %v2861 = vld [vmem:[%s3 + $0xb0] sm:$0xf]
      %v2862 = vld [vmem:[%s3 + $0xb4] sm:$0xf]
      %v2863 = vld [vmem:[%s3 + $0xb8] sm:$0xf]
      %v2864 = vld [vmem:[%s3 + $0xbc] sm:$0xf]
      %2865 = vst [vmem:[#allocation1] ss:$9 sm:$0xff] %v2732
      %s2866 = scalar_lea.vmem [#allocation1], 1
      %2867 = vst [vmem:[%s2866] ss:$9 sm:$0xff] %v2734
      %s2868 = scalar_lea.vmem [#allocation1], 2
      %2869 = vst [vmem:[%s2868] ss:$9 sm:$0xff] %v2736
      %s2870 = scalar_lea.vmem [#allocation1], 3
      %2871 = vst [vmem:[%s2870] ss:$9 sm:$0xff] %v2738
      %s2872 = scalar_lea.vmem [#allocation1], 4
      %2873 = vst [vmem:[%s2872] ss:$9 sm:$0xff] %v2740
      %s2874 = scalar_lea.vmem [#allocation1], 5
      %2875 = vst [vmem:[%s2874] ss:$9 sm:$0xff] %v2742
      %s2876 = scalar_lea.vmem [#allocation1], 6
      %2877 = vst [vmem:[%s2876] ss:$9 sm:$0xff] %v2744
      %s2878 = scalar_lea.vmem [#allocation1], 7
      %2879 = vst [vmem:[%s2878] ss:$9 sm:$0xff] %v2746
      %v2880 = vld [vmem:[#allocation1] sm:$0xff]
      %2881 = vst [vmem:[#allocation1] ss:$9 sm:$0xff] %v2747
      %2882 = vst [vmem:[%s2866] ss:$9 sm:$0xff] %v2748
      %2883 = vst [vmem:[%s2868] ss:$9 sm:$0xff] %v2749
      %2884 = vst [vmem:[%s2870] ss:$9 sm:$0xff] %v2750
      %2885 = vst [vmem:[%s2872] ss:$9 sm:$0xff] %v2751
      %2886 = vst [vmem:[%s2874] ss:$9 sm:$0xff] %v2752
      %2887 = vst [vmem:[%s2876] ss:$9 sm:$0xff] %v2754
      %2888 = vst [vmem:[%s2878] ss:$9 sm:$0xff] %v2755
      %v2889 = vld [vmem:[#allocation1] sm:$0xff]
      %2890 = vst [vmem:[#allocation1] ss:$9 sm:$0xff] %v2756
      %2891 = vst [vmem:[%s2866] ss:$9 sm:$0xff] %v2757
      %2892 = vst [vmem:[%s2868] ss:$9 sm:$0xff] %v2758
      %2893 = vst [vmem:[%s2870] ss:$9 sm:$0xff] %v2759
      %2894 = vst [vmem:[%s2872] ss:$9 sm:$0xff] %v2760
      %2895 = vst [vmem:[%s2874] ss:$9 sm:$0xff] %v2762
      %2896 = vst [vmem:[%s2876] ss:$9 sm:$0xff] %v2763
      %2897 = vst [vmem:[%s2878] ss:$9 sm:$0xff] %v2764
      %v2898 = vld [vmem:[#allocation1] sm:$0xff]
      %2899 = vst [vmem:[#allocation1] ss:$9 sm:$0xff] %v2765
      %2900 = vst [vmem:[%s2866] ss:$9 sm:$0xff] %v2766
      %2901 = vst [vmem:[%s2868] ss:$9 sm:$0xff] %v2767
      %2902 = vst [vmem:[%s2870] ss:$9 sm:$0xff] %v2768
      %2903 = vst [vmem:[%s2872] ss:$9 sm:$0xff] %v2770
      %2904 = vst [vmem:[%s2874] ss:$9 sm:$0xff] %v2771
      %2905 = vst [vmem:[%s2876] ss:$9 sm:$0xff] %v2772
      %2906 = vst [vmem:[%s2878] ss:$9 sm:$0xff] %v2773
      %v2907 = vld [vmem:[#allocation1] sm:$0xff]
      %2908 = vst [vmem:[#allocation1] ss:$9 sm:$0xff] %v2774
      %2909 = vst [vmem:[%s2866] ss:$9 sm:$0xff] %v2775
      %2910 = vst [vmem:[%s2868] ss:$9 sm:$0xff] %v2776
      %2911 = vst [vmem:[%s2870] ss:$9 sm:$0xff] %v2778
      %2912 = vst [vmem:[%s2872] ss:$9 sm:$0xff] %v2779
      %2913 = vst [vmem:[%s2874] ss:$9 sm:$0xff] %v2780
      %2914 = vst [vmem:[%s2876] ss:$9 sm:$0xff] %v2781
      %2915 = vst [vmem:[%s2878] ss:$9 sm:$0xff] %v2782
      %v2916 = vld [vmem:[#allocation1] sm:$0xff]
      %2917 = vst [vmem:[#allocation1] ss:$9 sm:$0xff] %v2783
      %2918 = vst [vmem:[%s2866] ss:$9 sm:$0xff] %v2784
      %2919 = vst [vmem:[%s2868] ss:$9 sm:$0xff] %v2786
      %2920 = vst [vmem:[%s2870] ss:$9 sm:$0xff] %v2787
      %2921 = vst [vmem:[%s2872] ss:$9 sm:$0xff] %v2788
      %2922 = vst [vmem:[%s2874] ss:$9 sm:$0xff] %v2789
      %2923 = vst [vmem:[%s2876] ss:$9 sm:$0xff] %v2790
      %2924 = vst [vmem:[%s2878] ss:$9 sm:$0xff] %v2791
      %v2925 = vld [vmem:[#allocation1] sm:$0xff]
      %2926 = vst [vmem:[#allocation1] ss:$9 sm:$0xff] %v2792
      %2927 = vst [vmem:[%s2866] ss:$9 sm:$0xff] %v2794
      %2928 = vst [vmem:[%s2868] ss:$9 sm:$0xff] %v2795
      %2929 = vst [vmem:[%s2870] ss:$9 sm:$0xff] %v2796
      %2930 = vst [vmem:[%s2872] ss:$9 sm:$0xff] %v2797
      %2931 = vst [vmem:[%s2874] ss:$9 sm:$0xff] %v2798
      %2932 = vst [vmem:[%s2876] ss:$9 sm:$0xff] %v2799
      %2933 = vst [vmem:[%s2878] ss:$9 sm:$0xff] %v2800
      %v2934 = vld [vmem:[#allocation1] sm:$0xff]
      %2935 = vst [vmem:[#allocation1] ss:$9 sm:$0xff] %v2802
      %2936 = vst [vmem:[%s2866] ss:$9 sm:$0xff] %v2803
      %2937 = vst [vmem:[%s2868] ss:$9 sm:$0xff] %v2804
      %2938 = vst [vmem:[%s2870] ss:$9 sm:$0xff] %v2805
      %2939 = vst [vmem:[%s2872] ss:$9 sm:$0xff] %v2806
      %2940 = vst [vmem:[%s2874] ss:$9 sm:$0xff] %v2807
      %2941 = vst [vmem:[%s2876] ss:$9 sm:$0xff] %v2808
      %2942 = vst [vmem:[%s2878] ss:$9 sm:$0xff] %v2810
      %v2943 = vld [vmem:[#allocation1] sm:$0xff]
      %2944 = vst [vmem:[#allocation1] ss:$9 sm:$0xff] %v2811
      %2945 = vst [vmem:[%s2866] ss:$9 sm:$0xff] %v2812
      %2946 = vst [vmem:[%s2868] ss:$9 sm:$0xff] %v2813
      %2947 = vst [vmem:[%s2870] ss:$9 sm:$0xff] %v2814
      %2948 = vst [vmem:[%s2872] ss:$9 sm:$0xff] %v2815
      %2949 = vst [vmem:[%s2874] ss:$9 sm:$0xff] %v2816
      %2950 = vst [vmem:[%s2876] ss:$9 sm:$0xff] %v2818
      %2951 = vst [vmem:[%s2878] ss:$9 sm:$0xff] %v2819
      %v2952 = vld [vmem:[#allocation1] sm:$0xff]
      %2953 = vst [vmem:[#allocation1] ss:$9 sm:$0xff] %v2820
      %2954 = vst [vmem:[%s2866] ss:$9 sm:$0xff] %v2821
      %2955 = vst [vmem:[%s2868] ss:$9 sm:$0xff] %v2822
      %2956 = vst [vmem:[%s2870] ss:$9 sm:$0xff] %v2823
      %2957 = vst [vmem:[%s2872] ss:$9 sm:$0xff] %v2824
      %2958 = vst [vmem:[%s2874] ss:$9 sm:$0xff] %v2826
      %2959 = vst [vmem:[%s2876] ss:$9 sm:$0xff] %v2827
      %2960 = vst [vmem:[%s2878] ss:$9 sm:$0xff] %v2828
      %v2961 = vld [vmem:[#allocation1] sm:$0xff]
      %2962 = vst [vmem:[#allocation1] ss:$9 sm:$0xff] %v2829
      %2963 = vst [vmem:[%s2866] ss:$9 sm:$0xff] %v2830
      %2964 = vst [vmem:[%s2868] ss:$9 sm:$0xff] %v2831
      %2965 = vst [vmem:[%s2870] ss:$9 sm:$0xff] %v2832
      %2966 = vst [vmem:[%s2872] ss:$9 sm:$0xff] %v2834
      %2967 = vst [vmem:[%s2874] ss:$9 sm:$0xff] %v2835
      %2968 = vst [vmem:[%s2876] ss:$9 sm:$0xff] %v2836
      %2969 = vst [vmem:[%s2878] ss:$9 sm:$0xff] %v2837
      %v2970 = vld [vmem:[#allocation1] sm:$0xff]
      %2971 = vst [vmem:[#allocation1] ss:$9 sm:$0xff] %v2838
      %2972 = vst [vmem:[%s2866] ss:$9 sm:$0xff] %v2839
      %2973 = vst [vmem:[%s2868] ss:$9 sm:$0xff] %v2840
      %2974 = vst [vmem:[%s2870] ss:$9 sm:$0xff] %v2842
      %2975 = vst [vmem:[%s2872] ss:$9 sm:$0xff] %v2843
      %2976 = vst [vmem:[%s2874] ss:$9 sm:$0xff] %v2844
      %2977 = vst [vmem:[%s2876] ss:$9 sm:$0xff] %v2845
      %2978 = vst [vmem:[%s2878] ss:$9 sm:$0xff] %v2846
      %v2979 = vld [vmem:[#allocation1] sm:$0xff]
      %2980 = vst [vmem:[#allocation1] ss:$9 sm:$0xff] %v2847
      %2981 = vst [vmem:[%s2866] ss:$9 sm:$0xff] %v2848
      %v2982 = vld [vmem:[#allocation1] sm:$0xff]
      %v3012 = vunpack.c.l.b16 %v2849
      %v3013 = vunpack.c.l.b16 %v2850
      %v3014 = vunpack.c.l.b16 %v2851
      %v3015 = vunpack.c.l.b16 %v2852
      %v3016 = vunpack.c.l.b16 %v2853
      %v3017 = vunpack.c.l.b16 %v2854
      %v3018 = vunpack.c.l.b16 %v2855
      %v3019 = vunpack.c.l.b16 %v2856
      %v3020 = vunpack.c.l.b16 %v2857
      %v3021 = vunpack.c.l.b16 %v2858
      %v3022 = vunpack.c.l.b16 %v2859
      %v3023 = vunpack.c.l.b16 %v2860
      %v3024 = vunpack.c.l.b16 %v2861
      %v3025 = vunpack.c.l.b16 %v2862
      %v3026 = vunpack.c.l.b16 %v2863
      %v3027 = vunpack.c.l.b16 %v2864
      %v3028 = vpack.c.b16 %v3013, %v3012
      %v3029 = vpack.c.b16 %v3015, %v3014
      %v3030 = vpack.c.b16 %v3017, %v3016
      %v3031 = vpack.c.b16 %v3019, %v3018
      %v3032 = vpack.c.b16 %v3021, %v3020
      %v3033 = vpack.c.b16 %v3023, %v3022
      %v3034 = vpack.c.b16 %v3025, %v3024
      %v3035 = vpack.c.b16 %v3027, %v3026
      %3044 = vmatpush.bf16.msra.mxu0 %v3035
      %3045 = vmatpush.bf16.msra.mxu0 %v3034
      %3046 = vmatpush.bf16.msra.mxu0 %v3033
      %3047 = vmatpush.bf16.msra.mxu0 %v3032
      %3048 = vmatpush.bf16.msra.mxu0 %v3031
      %3049 = vmatpush.bf16.msra.mxu0 %v3030
      %3050 = vmatpush.bf16.msra.mxu0 %v3029
      %3051 = vmatpush.bf16.msra.mxu0 %v3028
      %3052 = vmatmul.bf16.gmra.mxu0 %v2880
      %v3053 = vpop.f32.mrf.mxu0
      %v3054 = vadd.f32 0.0, %v3053
      %v3055 = vpop.f32.mrf.mxu0
      %v3056 = vadd.f32 0.0, %v3055
      %3057 = vmatmul.bf16.gmra.mxu0 %v2889
      %v3058 = vpop.f32.mrf.mxu0
      %v3059 = vadd.f32 0.0, %v3058
      %v3060 = vpop.f32.mrf.mxu0
      %v3061 = vadd.f32 0.0, %v3060
      %3062 = vmatmul.bf16.gmra.mxu0 %v2898
      %v3063 = vpop.f32.mrf.mxu0
      %v3064 = vadd.f32 0.0, %v3063
      %v3065 = vpop.f32.mrf.mxu0
      %v3066 = vadd.f32 0.0, %v3065
      %3067 = vmatmul.bf16.gmra.mxu0 %v2907
      %v3068 = vpop.f32.mrf.mxu0
      %v3069 = vadd.f32 0.0, %v3068
      %v3070 = vpop.f32.mrf.mxu0
      %v3071 = vadd.f32 0.0, %v3070
      %3072 = vmatmul.bf16.gmra.mxu0 %v2916
      %v3073 = vpop.f32.mrf.mxu0
      %v3074 = vadd.f32 0.0, %v3073
      %v3075 = vpop.f32.mrf.mxu0
      %v3076 = vadd.f32 0.0, %v3075
      %3077 = vmatmul.bf16.gmra.mxu0 %v2925
      %v3078 = vpop.f32.mrf.mxu0
      %v3079 = vadd.f32 0.0, %v3078
      %v3080 = vpop.f32.mrf.mxu0
      %v3081 = vadd.f32 0.0, %v3080
      %3082 = vmatmul.bf16.gmra.mxu0 %v2934
      %v3083 = vpop.f32.mrf.mxu0
      %v3084 = vadd.f32 0.0, %v3083
      %v3085 = vpop.f32.mrf.mxu0
      %v3086 = vadd.f32 0.0, %v3085
      %3087 = vmatmul.bf16.gmra.mxu0 %v2943
      %v3088 = vpop.f32.mrf.mxu0
      %v3089 = vadd.f32 0.0, %v3088
      %v3090 = vpop.f32.mrf.mxu0
      %v3091 = vadd.f32 0.0, %v3090
      %3092 = vmatmul.bf16.gmra.mxu0 %v2952
      %v3093 = vpop.f32.mrf.mxu0
      %v3094 = vadd.f32 0.0, %v3093
      %v3095 = vpop.f32.mrf.mxu0
      %v3096 = vadd.f32 0.0, %v3095
      %3097 = vmatmul.bf16.gmra.mxu0 %v2961
      %v3098 = vpop.f32.mrf.mxu0
      %v3099 = vadd.f32 0.0, %v3098
      %v3100 = vpop.f32.mrf.mxu0
      %v3101 = vadd.f32 0.0, %v3100
      %3102 = vmatmul.bf16.gmra.mxu0 %v2970
      %v3103 = vpop.f32.mrf.mxu0
      %v3104 = vadd.f32 0.0, %v3103
      %v3105 = vpop.f32.mrf.mxu0
      %v3106 = vadd.f32 0.0, %v3105
      %3107 = vmatmul.bf16.gmra.mxu0 %v2979
      %v3108 = vpop.f32.mrf.mxu0
      %v3109 = vadd.f32 0.0, %v3108
      %v3110 = vpop.f32.mrf.mxu0
      %v3111 = vadd.f32 0.0, %v3110
      %3112 = vmatmul.bf16.gmra.mxu0 %v2982
      %v3113 = vpop.f32.mrf.mxu0
      %v3114 = vadd.f32 0.0, %v3113
      %v3115 = vpop.f32.mrf.mxu0
      %3116 = vdwg.mxu0
      %v3117 = vadd.f32 %v2541, %v3054
      %v3118 = vadd.f32 %v2543, %v3056
      %v3119 = vadd.f32 %v2546, %v3059
      %v3120 = vadd.f32 %v2548, %v3061
      %v3121 = vadd.f32 %v2551, %v3064
      %v3122 = vadd.f32 %v2553, %v3066
      %v3123 = vadd.f32 %v2556, %v3069
      %v3124 = vadd.f32 %v2558, %v3071
      %v3125 = vadd.f32 %v2561, %v3074
      %v3126 = vadd.f32 %v2563, %v3076
      %v3127 = vadd.f32 %v2566, %v3079
      %v3128 = vadd.f32 %v2568, %v3081
      %v3129 = vadd.f32 %v2571, %v3084
      %v3130 = vadd.f32 %v2573, %v3086
      %v3131 = vadd.f32 %v2576, %v3089
      %v3132 = vadd.f32 %v2578, %v3091
      %v3133 = vadd.f32 %v2581, %v3094
      %v3134 = vadd.f32 %v2583, %v3096
      %v3135 = vadd.f32 %v2586, %v3099
      %v3136 = vadd.f32 %v2588, %v3101
      %v3137 = vadd.f32 %v2591, %v3104
      %v3138 = vadd.f32 %v2593, %v3106
      %v3139 = vadd.f32 %v2596, %v3109
      %v3140 = vadd.f32 %v2598, %v3111
      %v3141 = vadd.f32 %v2601, %v3114
      %v3142 = vrot.slane %v987, 2
      %v3143 = vrot.slane %v1003, 2
      %v3144 = vsel %vm532, %v3142, %v3143
      %v3145 = vrot.slane %v988, 2
      %v3146 = vrot.slane %v1004, 2
      %v3147 = vsel %vm532, %v3145, %v3146
      %v3148 = vrot.slane %v989, 2
      %v3149 = vrot.slane %v1005, 2
      %v3150 = vsel %vm532, %v3148, %v3149
      %v3151 = vrot.slane %v990, 2
      %v3152 = vrot.slane %v1006, 2
      %v3153 = vsel %vm532, %v3151, %v3152
      %v3154 = vrot.slane %v991, 2
      %v3155 = vrot.slane %v1007, 2
      %v3156 = vsel %vm532, %v3154, %v3155
      %v3157 = vrot.slane %v992, 2
      %v3158 = vrot.slane %v1008, 2
      %v3159 = vsel %vm532, %v3157, %v3158
      %v3160 = vrot.slane %v993, 2
      %v3161 = vrot.slane %v1009, 2
      %v3162 = vsel %vm532, %v3160, %v3161
      %v3163 = vrot.slane %v994, 2
      %v3164 = vrot.slane %v1010, 2
      %v3165 = vsel %vm532, %v3163, %v3164
      %v3166 = vrot.slane %v995, 2
      %v3167 = vrot.slane %v1011, 2
      %v3168 = vsel %vm532, %v3166, %v3167
      %v3169 = vrot.slane %v996, 2
      %v3170 = vrot.slane %v1012, 2
      %v3171 = vsel %vm532, %v3169, %v3170
      %v3172 = vrot.slane %v997, 2
      %v3173 = vrot.slane %v1013, 2
      %v3174 = vsel %vm532, %v3172, %v3173
      %v3175 = vrot.slane %v998, 2
      %v3176 = vrot.slane %v1014, 2
      %v3177 = vsel %vm532, %v3175, %v3176
      %v3178 = vrot.slane %v999, 2
      %v3179 = vrot.slane %v1015, 2
      %v3180 = vsel %vm532, %v3178, %v3179
      %v3181 = vrot.slane %v1000, 2
      %v3182 = vrot.slane %v1016, 2
      %v3183 = vsel %vm532, %v3181, %v3182
      %v3212 = vadd.f32 %v2702, %v3144
      %v3213 = vadd.f32 %v2703, %v3143
      %v3214 = vadd.f32 %v2704, %v3147
      %v3215 = vadd.f32 %v2705, %v3146
      %v3216 = vadd.f32 %v2706, %v3150
      %v3217 = vadd.f32 %v2707, %v3149
      %v3218 = vadd.f32 %v2708, %v3153
      %v3219 = vadd.f32 %v2709, %v3152
      %v3220 = vadd.f32 %v2710, %v3156
      %v3221 = vadd.f32 %v2711, %v3155
      %v3222 = vadd.f32 %v2712, %v3159
      %v3223 = vadd.f32 %v2713, %v3158
      %v3224 = vadd.f32 %v2714, %v3162
      %v3225 = vadd.f32 %v2715, %v3161
      %v3226 = vadd.f32 %v2716, %v3165
      %v3227 = vadd.f32 %v2717, %v3164
      %v3228 = vadd.f32 %v2718, %v3168
      %v3229 = vadd.f32 %v2719, %v3167
      %v3230 = vadd.f32 %v2720, %v3171
      %v3231 = vadd.f32 %v2721, %v3170
      %v3232 = vadd.f32 %v2722, %v3174
      %v3233 = vadd.f32 %v2723, %v3173
      %v3234 = vadd.f32 %v2724, %v3177
      %v3235 = vadd.f32 %v2725, %v3176
      %v3236 = vadd.f32 %v2726, %v3180
      %v3237 = vadd.f32 %v2727, %v3179
      %v3238 = vadd.f32 %v2728, %v3183
      %v3239 = vadd.f32 %v2729, %v3182
      %v3241 = vrot.slane %v882, 1
      %v3242 = vrot.slane %v882, 2
      %v3243 = vrot.slane %v882, 3
      %v3244 = vrot.slane %v882, 4
      %v3245 = vrot.slane %v882, 5
      %v3246 = vrot.slane %v882, 6
      %v3247 = vld [vmem:[%s3 + $0xc0] sm:$0xf]
      %v3248 = vld [vmem:[%s3 + $0xc4] sm:$0xf]
      %v3249 = vld [vmem:[%s3 + $0xc8] sm:$0xf]
      %v3250 = vld [vmem:[%s3 + $0xcc] sm:$0xf]
      %v3251 = vld [vmem:[%s3 + $0xd0] sm:$0xf]
      %v3252 = vld [vmem:[%s3 + $0xd4] sm:$0xf]
      %v3253 = vld [vmem:[%s3 + $0xd8] sm:$0xf]
      %v3254 = vld [vmem:[%s3 + $0xdc] sm:$0xf]
      %v3255 = vld [vmem:[%s3 + $0xe0] sm:$0xf]
      %v3256 = vld [vmem:[%s3 + $0xe4] sm:$0xf]
      %v3257 = vld [vmem:[%s3 + $0xe8] sm:$0xf]
      %v3258 = vld [vmem:[%s3 + $0xec] sm:$0xf]
      %v3259 = vld [vmem:[%s3 + $0xf0] sm:$0xf]
      %v3260 = vld [vmem:[%s3 + $0xf4] sm:$0xf]
      %v3261 = vld [vmem:[%s3 + $0xf8] sm:$0xf]
      %v3262 = vld [vmem:[%s3 + $0xfc] sm:$0xf]
      %3263 = vst [vmem:[#allocation1] ss:$9 sm:$0xff] %v869
      %s3264 = scalar_lea.vmem [#allocation1], 1
      %3265 = vst [vmem:[%s3264] ss:$9 sm:$0xff] %v1038
      %s3266 = scalar_lea.vmem [#allocation1], 2
      %3267 = vst [vmem:[%s3266] ss:$9 sm:$0xff] %v1039
      %s3268 = scalar_lea.vmem [#allocation1], 3
      %3269 = vst [vmem:[%s3268] ss:$9 sm:$0xff] %v1040
      %s3270 = scalar_lea.vmem [#allocation1], 4
      %3271 = vst [vmem:[%s3270] ss:$9 sm:$0xff] %v1041
      %s3272 = scalar_lea.vmem [#allocation1], 5
      %3273 = vst [vmem:[%s3272] ss:$9 sm:$0xff] %v1042
      %s3274 = scalar_lea.vmem [#allocation1], 6
      %3275 = vst [vmem:[%s3274] ss:$9 sm:$0xff] %v1043
      %s3276 = scalar_lea.vmem [#allocation1], 7
      %3277 = vst [vmem:[%s3276] ss:$9 sm:$0xff] %v870
      %v3278 = vld [vmem:[#allocation1] sm:$0xff]
      %3279 = vst [vmem:[#allocation1] ss:$9 sm:$0xff] %v1044
      %3280 = vst [vmem:[%s3264] ss:$9 sm:$0xff] %v1045
      %3281 = vst [vmem:[%s3266] ss:$9 sm:$0xff] %v1046
      %3282 = vst [vmem:[%s3268] ss:$9 sm:$0xff] %v1047
      %3283 = vst [vmem:[%s3270] ss:$9 sm:$0xff] %v1048
      %3284 = vst [vmem:[%s3272] ss:$9 sm:$0xff] %v1049
      %3285 = vst [vmem:[%s3274] ss:$9 sm:$0xff] %v871
      %3286 = vst [vmem:[%s3276] ss:$9 sm:$0xff] %v1050
      %v3287 = vld [vmem:[#allocation1] sm:$0xff]
      %3288 = vst [vmem:[#allocation1] ss:$9 sm:$0xff] %v1051
      %3289 = vst [vmem:[%s3264] ss:$9 sm:$0xff] %v1052
      %3290 = vst [vmem:[%s3266] ss:$9 sm:$0xff] %v1053
      %3291 = vst [vmem:[%s3268] ss:$9 sm:$0xff] %v1054
      %3292 = vst [vmem:[%s3270] ss:$9 sm:$0xff] %v1055
      %3293 = vst [vmem:[%s3272] ss:$9 sm:$0xff] %v872
      %3294 = vst [vmem:[%s3274] ss:$9 sm:$0xff] %v1056
      %3295 = vst [vmem:[%s3276] ss:$9 sm:$0xff] %v1057
      %v3296 = vld [vmem:[#allocation1] sm:$0xff]
      %3297 = vst [vmem:[#allocation1] ss:$9 sm:$0xff] %v1058
      %3298 = vst [vmem:[%s3264] ss:$9 sm:$0xff] %v1059
      %3299 = vst [vmem:[%s3266] ss:$9 sm:$0xff] %v1060
      %3300 = vst [vmem:[%s3268] ss:$9 sm:$0xff] %v1061
      %3301 = vst [vmem:[%s3270] ss:$9 sm:$0xff] %v873
      %3302 = vst [vmem:[%s3272] ss:$9 sm:$0xff] %v1062
      %3303 = vst [vmem:[%s3274] ss:$9 sm:$0xff] %v1063
      %3304 = vst [vmem:[%s3276] ss:$9 sm:$0xff] %v1064
      %v3305 = vld [vmem:[#allocation1] sm:$0xff]
      %3306 = vst [vmem:[#allocation1] ss:$9 sm:$0xff] %v1065
      %3307 = vst [vmem:[%s3264] ss:$9 sm:$0xff] %v1066
      %3308 = vst [vmem:[%s3266] ss:$9 sm:$0xff] %v1067
      %3309 = vst [vmem:[%s3268] ss:$9 sm:$0xff] %v874
      %3310 = vst [vmem:[%s3270] ss:$9 sm:$0xff] %v1068
      %3311 = vst [vmem:[%s3272] ss:$9 sm:$0xff] %v1069
      %3312 = vst [vmem:[%s3274] ss:$9 sm:$0xff] %v1070
      %3313 = vst [vmem:[%s3276] ss:$9 sm:$0xff] %v1071
      %v3314 = vld [vmem:[#allocation1] sm:$0xff]
      %3315 = vst [vmem:[#allocation1] ss:$9 sm:$0xff] %v1072
      %3316 = vst [vmem:[%s3264] ss:$9 sm:$0xff] %v1073
      %3317 = vst [vmem:[%s3266] ss:$9 sm:$0xff] %v875
      %3318 = vst [vmem:[%s3268] ss:$9 sm:$0xff] %v1074
      %3319 = vst [vmem:[%s3270] ss:$9 sm:$0xff] %v1075
      %3320 = vst [vmem:[%s3272] ss:$9 sm:$0xff] %v1076
      %3321 = vst [vmem:[%s3274] ss:$9 sm:$0xff] %v1077
      %3322 = vst [vmem:[%s3276] ss:$9 sm:$0xff] %v1078
      %v3323 = vld [vmem:[#allocation1] sm:$0xff]
      %3324 = vst [vmem:[#allocation1] ss:$9 sm:$0xff] %v1079
      %3325 = vst [vmem:[%s3264] ss:$9 sm:$0xff] %v876
      %3326 = vst [vmem:[%s3266] ss:$9 sm:$0xff] %v1080
      %3327 = vst [vmem:[%s3268] ss:$9 sm:$0xff] %v1081
      %3328 = vst [vmem:[%s3270] ss:$9 sm:$0xff] %v1082
      %3329 = vst [vmem:[%s3272] ss:$9 sm:$0xff] %v1083
      %3330 = vst [vmem:[%s3274] ss:$9 sm:$0xff] %v1084
      %3331 = vst [vmem:[%s3276] ss:$9 sm:$0xff] %v1085
      %v3332 = vld [vmem:[#allocation1] sm:$0xff]
      %3333 = vst [vmem:[#allocation1] ss:$9 sm:$0xff] %v877
      %3334 = vst [vmem:[%s3264] ss:$9 sm:$0xff] %v1086
      %3335 = vst [vmem:[%s3266] ss:$9 sm:$0xff] %v1087
      %3336 = vst [vmem:[%s3268] ss:$9 sm:$0xff] %v1088
      %3337 = vst [vmem:[%s3270] ss:$9 sm:$0xff] %v1089
      %3338 = vst [vmem:[%s3272] ss:$9 sm:$0xff] %v1090
      %3339 = vst [vmem:[%s3274] ss:$9 sm:$0xff] %v1091
      %3340 = vst [vmem:[%s3276] ss:$9 sm:$0xff] %v878
      %v3341 = vld [vmem:[#allocation1] sm:$0xff]
      %3342 = vst [vmem:[#allocation1] ss:$9 sm:$0xff] %v1092
      %3343 = vst [vmem:[%s3264] ss:$9 sm:$0xff] %v1093
      %3344 = vst [vmem:[%s3266] ss:$9 sm:$0xff] %v1094
      %3345 = vst [vmem:[%s3268] ss:$9 sm:$0xff] %v1095
      %3346 = vst [vmem:[%s3270] ss:$9 sm:$0xff] %v1096
      %3347 = vst [vmem:[%s3272] ss:$9 sm:$0xff] %v1097
      %3348 = vst [vmem:[%s3274] ss:$9 sm:$0xff] %v879
      %3349 = vst [vmem:[%s3276] ss:$9 sm:$0xff] %v1098
      %v3350 = vld [vmem:[#allocation1] sm:$0xff]
      %3351 = vst [vmem:[#allocation1] ss:$9 sm:$0xff] %v1099
      %3352 = vst [vmem:[%s3264] ss:$9 sm:$0xff] %v1100
      %3353 = vst [vmem:[%s3266] ss:$9 sm:$0xff] %v1101
      %3354 = vst [vmem:[%s3268] ss:$9 sm:$0xff] %v1102
      %3355 = vst [vmem:[%s3270] ss:$9 sm:$0xff] %v1103
      %3356 = vst [vmem:[%s3272] ss:$9 sm:$0xff] %v880
      %3357 = vst [vmem:[%s3274] ss:$9 sm:$0xff] %v1104
      %3358 = vst [vmem:[%s3276] ss:$9 sm:$0xff] %v1105
      %v3359 = vld [vmem:[#allocation1] sm:$0xff]
      %3360 = vst [vmem:[#allocation1] ss:$9 sm:$0xff] %v1106
      %3361 = vst [vmem:[%s3264] ss:$9 sm:$0xff] %v1107
      %3362 = vst [vmem:[%s3266] ss:$9 sm:$0xff] %v1108
      %3363 = vst [vmem:[%s3268] ss:$9 sm:$0xff] %v1109
      %3364 = vst [vmem:[%s3270] ss:$9 sm:$0xff] %v881
      %3365 = vst [vmem:[%s3272] ss:$9 sm:$0xff] %v1110
      %3366 = vst [vmem:[%s3274] ss:$9 sm:$0xff] %v1111
      %3367 = vst [vmem:[%s3276] ss:$9 sm:$0xff] %v1112
      %v3368 = vld [vmem:[#allocation1] sm:$0xff]
      %3369 = vst [vmem:[#allocation1] ss:$9 sm:$0xff] %v1113
      %3370 = vst [vmem:[%s3264] ss:$9 sm:$0xff] %v1114
      %3371 = vst [vmem:[%s3266] ss:$9 sm:$0xff] %v1115
      %3373 = vst [vmem:[%s3268] ss:$9 sm:$0xff] %v882
      %3375 = vst [vmem:[%s3270] ss:$9 sm:$0xff] %v3241
      %3377 = vst [vmem:[%s3272] ss:$9 sm:$0xff] %v3242
      %3379 = vst [vmem:[%s3274] ss:$9 sm:$0xff] %v3243
      %3381 = vst [vmem:[%s3276] ss:$9 sm:$0xff] %v3244
      %v3382 = vld [vmem:[#allocation1] sm:$0xff]
      %3384 = vst [vmem:[#allocation1] ss:$9 sm:$0xff] %v3245
      %3386 = vst [vmem:[%s3264] ss:$9 sm:$0xff] %v3246
      %v3387 = vld [vmem:[#allocation1] sm:$0xff]
      %v3417 = vunpack.c.l.b16 %v3247
      %v3418 = vunpack.c.l.b16 %v3248
      %v3419 = vunpack.c.l.b16 %v3249
      %v3420 = vunpack.c.l.b16 %v3250
      %v3421 = vunpack.c.l.b16 %v3251
      %v3422 = vunpack.c.l.b16 %v3252
      %v3423 = vunpack.c.l.b16 %v3253
      %v3424 = vunpack.c.l.b16 %v3254
      %v3425 = vunpack.c.l.b16 %v3255
      %v3426 = vunpack.c.l.b16 %v3256
      %v3427 = vunpack.c.l.b16 %v3257
      %v3428 = vunpack.c.l.b16 %v3258
      %v3429 = vunpack.c.l.b16 %v3259
      %v3430 = vunpack.c.l.b16 %v3260
      %v3431 = vunpack.c.l.b16 %v3261
      %v3432 = vunpack.c.l.b16 %v3262
      %v3433 = vpack.c.b16 %v3418, %v3417
      %v3434 = vpack.c.b16 %v3420, %v3419
      %v3435 = vpack.c.b16 %v3422, %v3421
      %v3436 = vpack.c.b16 %v3424, %v3423
      %v3437 = vpack.c.b16 %v3426, %v3425
      %v3438 = vpack.c.b16 %v3428, %v3427
      %v3439 = vpack.c.b16 %v3430, %v3429
      %v3440 = vpack.c.b16 %v3432, %v3431
      %3449 = vmatpush.bf16.msra.mxu0 %v3440
      %3450 = vmatpush.bf16.msra.mxu0 %v3439
      %3451 = vmatpush.bf16.msra.mxu0 %v3438
      %3452 = vmatpush.bf16.msra.mxu0 %v3437
      %3453 = vmatpush.bf16.msra.mxu0 %v3436
      %3454 = vmatpush.bf16.msra.mxu0 %v3435
      %3455 = vmatpush.bf16.msra.mxu0 %v3434
      %3456 = vmatpush.bf16.msra.mxu0 %v3433
      %3457 = vmatmul.bf16.gmra.mxu0 %v3278
      %v3458 = vpop.f32.mrf.mxu0
      %v3459 = vadd.f32 0.0, %v3458
      %v3460 = vpop.f32.mrf.mxu0
      %v3461 = vadd.f32 0.0, %v3460
      %3462 = vmatmul.bf16.gmra.mxu0 %v3287
      %v3463 = vpop.f32.mrf.mxu0
      %v3464 = vadd.f32 0.0, %v3463
      %v3465 = vpop.f32.mrf.mxu0
      %v3466 = vadd.f32 0.0, %v3465
      %3467 = vmatmul.bf16.gmra.mxu0 %v3296
      %v3468 = vpop.f32.mrf.mxu0
      %v3469 = vadd.f32 0.0, %v3468
      %v3470 = vpop.f32.mrf.mxu0
      %v3471 = vadd.f32 0.0, %v3470
      %3472 = vmatmul.bf16.gmra.mxu0 %v3305
      %v3473 = vpop.f32.mrf.mxu0
      %v3474 = vadd.f32 0.0, %v3473
      %v3475 = vpop.f32.mrf.mxu0
      %v3476 = vadd.f32 0.0, %v3475
      %3477 = vmatmul.bf16.gmra.mxu0 %v3314
      %v3478 = vpop.f32.mrf.mxu0
      %v3479 = vadd.f32 0.0, %v3478
      %v3480 = vpop.f32.mrf.mxu0
      %v3481 = vadd.f32 0.0, %v3480
      %3482 = vmatmul.bf16.gmra.mxu0 %v3323
      %v3483 = vpop.f32.mrf.mxu0
      %v3484 = vadd.f32 0.0, %v3483
      %v3485 = vpop.f32.mrf.mxu0
      %v3486 = vadd.f32 0.0, %v3485
      %3487 = vmatmul.bf16.gmra.mxu0 %v3332
      %v3488 = vpop.f32.mrf.mxu0
      %v3489 = vadd.f32 0.0, %v3488
      %v3490 = vpop.f32.mrf.mxu0
      %v3491 = vadd.f32 0.0, %v3490
      %3492 = vmatmul.bf16.gmra.mxu0 %v3341
      %v3493 = vpop.f32.mrf.mxu0
      %v3494 = vadd.f32 0.0, %v3493
      %v3495 = vpop.f32.mrf.mxu0
      %v3496 = vadd.f32 0.0, %v3495
      %3497 = vmatmul.bf16.gmra.mxu0 %v3350
      %v3498 = vpop.f32.mrf.mxu0
      %v3499 = vadd.f32 0.0, %v3498
      %v3500 = vpop.f32.mrf.mxu0
      %v3501 = vadd.f32 0.0, %v3500
      %3502 = vmatmul.bf16.gmra.mxu0 %v3359
      %v3503 = vpop.f32.mrf.mxu0
      %v3504 = vadd.f32 0.0, %v3503
      %v3505 = vpop.f32.mrf.mxu0
      %v3506 = vadd.f32 0.0, %v3505
      %3507 = vmatmul.bf16.gmra.mxu0 %v3368
      %v3508 = vpop.f32.mrf.mxu0
      %v3509 = vadd.f32 0.0, %v3508
      %v3510 = vpop.f32.mrf.mxu0
      %v3511 = vadd.f32 0.0, %v3510
      %3512 = vmatmul.bf16.gmra.mxu0 %v3382
      %v3513 = vpop.f32.mrf.mxu0
      %v3514 = vadd.f32 0.0, %v3513
      %v3515 = vpop.f32.mrf.mxu0
      %v3516 = vadd.f32 0.0, %v3515
      %3517 = vmatmul.bf16.gmra.mxu0 %v3387
      %v3518 = vpop.f32.mrf.mxu0
      %v3519 = vadd.f32 0.0, %v3518
      %v3520 = vpop.f32.mrf.mxu0
      %3521 = vdwg.mxu0
      %v3522 = vadd.f32 %v3117, %v3459
      %v3523 = vadd.f32 %v3118, %v3461
      %v3524 = vadd.f32 %v3119, %v3464
      %v3525 = vadd.f32 %v3120, %v3466
      %v3526 = vadd.f32 %v3121, %v3469
      %v3527 = vadd.f32 %v3122, %v3471
      %v3528 = vadd.f32 %v3123, %v3474
      %v3529 = vadd.f32 %v3124, %v3476
      %v3530 = vadd.f32 %v3125, %v3479
      %v3531 = vadd.f32 %v3126, %v3481
      %v3532 = vadd.f32 %v3127, %v3484
      %v3533 = vadd.f32 %v3128, %v3486
      %v3534 = vadd.f32 %v3129, %v3489
      %v3535 = vadd.f32 %v3130, %v3491
      %v3536 = vadd.f32 %v3131, %v3494
      %v3537 = vadd.f32 %v3132, %v3496
      %v3538 = vadd.f32 %v3133, %v3499
      %v3539 = vadd.f32 %v3134, %v3501
      %v3540 = vadd.f32 %v3135, %v3504
      %v3541 = vadd.f32 %v3136, %v3506
      %v3542 = vadd.f32 %v3137, %v3509
      %v3543 = vadd.f32 %v3138, %v3511
      %v3544 = vadd.f32 %v3139, %v3514
      %v3545 = vadd.f32 %v3140, %v3516
      %v3546 = vadd.f32 %v3141, %v3519
      %v3547 = vadd.f32 %v3212, %v988
      %v3548 = vadd.f32 %v3213, %v1004
      %v3549 = vadd.f32 %v3214, %v989
      %v3550 = vadd.f32 %v3215, %v1005
      %v3551 = vadd.f32 %v3216, %v990
      %v3552 = vadd.f32 %v3217, %v1006
      %v3553 = vadd.f32 %v3218, %v991
      %v3554 = vadd.f32 %v3219, %v1007
      %v3555 = vadd.f32 %v3220, %v992
      %v3556 = vadd.f32 %v3221, %v1008
      %v3557 = vadd.f32 %v3222, %v993
      %v3558 = vadd.f32 %v3223, %v1009
      %v3559 = vadd.f32 %v3224, %v994
      %v3560 = vadd.f32 %v3225, %v1010
      %v3561 = vadd.f32 %v3226, %v995
      %v3562 = vadd.f32 %v3227, %v1011
      %v3563 = vadd.f32 %v3228, %v996
      %v3564 = vadd.f32 %v3229, %v1012
      %v3565 = vadd.f32 %v3230, %v997
      %v3566 = vadd.f32 %v3231, %v1013
      %v3567 = vadd.f32 %v3232, %v998
      %v3568 = vadd.f32 %v3233, %v1014
      %v3569 = vadd.f32 %v3234, %v999
      %v3570 = vadd.f32 %v3235, %v1015
      %v3571 = vadd.f32 %v3236, %v1000
      %v3572 = vadd.f32 %v3237, %v1016
      %v3573 = vadd.f32 %v3238, %v1001
      %v3574 = vadd.f32 %v3239, %v1017
      %v3575 = vrot.slane %v882, 7
      %v3576 = vshrl.u32 %v882, 16
      %v3578 = vrot.slane %v3576, 7
      %v3579 = vrot.slane %v3578, 1
      %v3580 = vshll.u32 %v3241, 16
      %v3582 = vsel %vm1187, %v3579, %v3580
      %v3583 = vshrl.u32 %v3241, 16
      %v3585 = vrot.slane %v3583, 7
      %v3586 = vrot.slane %v3585, 1
      %v3587 = vshll.u32 %v3242, 16
      %v3589 = vsel %vm1187, %v3586, %v3587
      %v3590 = vshrl.u32 %v3242, 16
      %v3592 = vrot.slane %v3590, 7
      %v3593 = vrot.slane %v3592, 1
      %v3594 = vshll.u32 %v3243, 16
      %v3596 = vsel %vm1187, %v3593, %v3594
      %v3597 = vshrl.u32 %v3243, 16
      %v3599 = vrot.slane %v3597, 7
      %v3600 = vrot.slane %v3599, 1
      %v3601 = vshll.u32 %v3244, 16
      %v3603 = vsel %vm1187, %v3600, %v3601
      %v3604 = vshrl.u32 %v3244, 16
      %v3606 = vrot.slane %v3604, 7
      %v3607 = vrot.slane %v3606, 1
      %v3608 = vshll.u32 %v3245, 16
      %v3610 = vsel %vm1187, %v3607, %v3608
      %v3611 = vshrl.u32 %v3245, 16
      %v3613 = vrot.slane %v3611, 7
      %v3614 = vrot.slane %v3613, 1
      %v3615 = vshll.u32 %v3246, 16
      %v3617 = vsel %vm1187, %v3614, %v3615
      %v3618 = vshrl.u32 %v3246, 16
      %v3620 = vrot.slane %v3618, 7
      %v3621 = vrot.slane %v3620, 1
      %v3623 = vshll.u32 %v3575, 16
      %v3625 = vsel %vm1187, %v3621, %v3623
      %v3626 = vld [vmem:[%s3 + $0x100] sm:$0xf]
      %v3627 = vld [vmem:[%s3 + $0x104] sm:$0xf]
      %v3628 = vld [vmem:[%s3 + $0x108] sm:$0xf]
      %v3629 = vld [vmem:[%s3 + $0x10c] sm:$0xf]
      %v3630 = vld [vmem:[%s3 + $0x110] sm:$0xf]
      %v3631 = vld [vmem:[%s3 + $0x114] sm:$0xf]
      %v3632 = vld [vmem:[%s3 + $0x118] sm:$0xf]
      %v3633 = vld [vmem:[%s3 + $0x11c] sm:$0xf]
      %v3634 = vld [vmem:[%s3 + $0x120] sm:$0xf]
      %v3635 = vld [vmem:[%s3 + $0x124] sm:$0xf]
      %v3636 = vld [vmem:[%s3 + $0x128] sm:$0xf]
      %v3637 = vld [vmem:[%s3 + $0x12c] sm:$0xf]
      %v3638 = vld [vmem:[%s3 + $0x130] sm:$0xf]
      %v3639 = vld [vmem:[%s3 + $0x134] sm:$0xf]
      %v3640 = vld [vmem:[%s3 + $0x138] sm:$0xf]
      %v3641 = vld [vmem:[%s3 + $0x13c] sm:$0xf]
      %3642 = vst [vmem:[#allocation1] ss:$9 sm:$0xff] %v1253
      %s3643 = scalar_lea.vmem [#allocation1], 1
      %3644 = vst [vmem:[%s3643] ss:$9 sm:$0xff] %v1261
      %s3645 = scalar_lea.vmem [#allocation1], 2
      %3646 = vst [vmem:[%s3645] ss:$9 sm:$0xff] %v1269
      %s3647 = scalar_lea.vmem [#allocation1], 3
      %3648 = vst [vmem:[%s3647] ss:$9 sm:$0xff] %v1277
      %s3649 = scalar_lea.vmem [#allocation1], 4
      %3650 = vst [vmem:[%s3649] ss:$9 sm:$0xff] %v1285
      %s3651 = scalar_lea.vmem [#allocation1], 5
      %3652 = vst [vmem:[%s3651] ss:$9 sm:$0xff] %v1293
      %s3653 = scalar_lea.vmem [#allocation1], 6
      %3654 = vst [vmem:[%s3653] ss:$9 sm:$0xff] %v1301
      %s3655 = scalar_lea.vmem [#allocation1], 7
      %3656 = vst [vmem:[%s3655] ss:$9 sm:$0xff] %v1310
      %v3657 = vld [vmem:[#allocation1] sm:$0xff]
      %3658 = vst [vmem:[#allocation1] ss:$9 sm:$0xff] %v1318
      %3659 = vst [vmem:[%s3643] ss:$9 sm:$0xff] %v1326
      %3660 = vst [vmem:[%s3645] ss:$9 sm:$0xff] %v1334
      %3661 = vst [vmem:[%s3647] ss:$9 sm:$0xff] %v1342
      %3662 = vst [vmem:[%s3649] ss:$9 sm:$0xff] %v1350
      %3663 = vst [vmem:[%s3651] ss:$9 sm:$0xff] %v1358
      %3664 = vst [vmem:[%s3653] ss:$9 sm:$0xff] %v1367
      %3665 = vst [vmem:[%s3655] ss:$9 sm:$0xff] %v1375
      %v3666 = vld [vmem:[#allocation1] sm:$0xff]
      %3667 = vst [vmem:[#allocation1] ss:$9 sm:$0xff] %v1383
      %3668 = vst [vmem:[%s3643] ss:$9 sm:$0xff] %v1391
      %3669 = vst [vmem:[%s3645] ss:$9 sm:$0xff] %v1399
      %3670 = vst [vmem:[%s3647] ss:$9 sm:$0xff] %v1407
      %3671 = vst [vmem:[%s3649] ss:$9 sm:$0xff] %v1415
      %3672 = vst [vmem:[%s3651] ss:$9 sm:$0xff] %v1424
      %3673 = vst [vmem:[%s3653] ss:$9 sm:$0xff] %v1432
      %3674 = vst [vmem:[%s3655] ss:$9 sm:$0xff] %v1440
      %v3675 = vld [vmem:[#allocation1] sm:$0xff]
      %3676 = vst [vmem:[#allocation1] ss:$9 sm:$0xff] %v1448
      %3677 = vst [vmem:[%s3643] ss:$9 sm:$0xff] %v1456
      %3678 = vst [vmem:[%s3645] ss:$9 sm:$0xff] %v1464
      %3679 = vst [vmem:[%s3647] ss:$9 sm:$0xff] %v1472
      %3680 = vst [vmem:[%s3649] ss:$9 sm:$0xff] %v1481
      %3681 = vst [vmem:[%s3651] ss:$9 sm:$0xff] %v1489
      %3682 = vst [vmem:[%s3653] ss:$9 sm:$0xff] %v1497
      %3683 = vst [vmem:[%s3655] ss:$9 sm:$0xff] %v1505
      %v3684 = vld [vmem:[#allocation1] sm:$0xff]
      %3685 = vst [vmem:[#allocation1] ss:$9 sm:$0xff] %v1513
      %3686 = vst [vmem:[%s3643] ss:$9 sm:$0xff] %v1521
      %3687 = vst [vmem:[%s3645] ss:$9 sm:$0xff] %v1529
      %3688 = vst [vmem:[%s3647] ss:$9 sm:$0xff] %v1538
      %3689 = vst [vmem:[%s3649] ss:$9 sm:$0xff] %v1546
      %3690 = vst [vmem:[%s3651] ss:$9 sm:$0xff] %v1554
      %3691 = vst [vmem:[%s3653] ss:$9 sm:$0xff] %v1562
      %3692 = vst [vmem:[%s3655] ss:$9 sm:$0xff] %v1570
      %v3693 = vld [vmem:[#allocation1] sm:$0xff]
      %3694 = vst [vmem:[#allocation1] ss:$9 sm:$0xff] %v1578
      %3695 = vst [vmem:[%s3643] ss:$9 sm:$0xff] %v1586
      %3696 = vst [vmem:[%s3645] ss:$9 sm:$0xff] %v1595
      %3697 = vst [vmem:[%s3647] ss:$9 sm:$0xff] %v1603
      %3698 = vst [vmem:[%s3649] ss:$9 sm:$0xff] %v1611
      %3699 = vst [vmem:[%s3651] ss:$9 sm:$0xff] %v1619
      %3700 = vst [vmem:[%s3653] ss:$9 sm:$0xff] %v1627
      %3701 = vst [vmem:[%s3655] ss:$9 sm:$0xff] %v1635
      %v3702 = vld [vmem:[#allocation1] sm:$0xff]
      %3703 = vst [vmem:[#allocation1] ss:$9 sm:$0xff] %v1643
      %3704 = vst [vmem:[%s3643] ss:$9 sm:$0xff] %v1652
      %3705 = vst [vmem:[%s3645] ss:$9 sm:$0xff] %v1660
      %3706 = vst [vmem:[%s3647] ss:$9 sm:$0xff] %v1668
      %3707 = vst [vmem:[%s3649] ss:$9 sm:$0xff] %v1676
      %3708 = vst [vmem:[%s3651] ss:$9 sm:$0xff] %v1684
      %3709 = vst [vmem:[%s3653] ss:$9 sm:$0xff] %v1692
      %3710 = vst [vmem:[%s3655] ss:$9 sm:$0xff] %v1700
      %v3711 = vld [vmem:[#allocation1] sm:$0xff]
      %3712 = vst [vmem:[#allocation1] ss:$9 sm:$0xff] %v1709
      %3713 = vst [vmem:[%s3643] ss:$9 sm:$0xff] %v1717
      %3714 = vst [vmem:[%s3645] ss:$9 sm:$0xff] %v1725
      %3715 = vst [vmem:[%s3647] ss:$9 sm:$0xff] %v1733
      %3716 = vst [vmem:[%s3649] ss:$9 sm:$0xff] %v1741
      %3717 = vst [vmem:[%s3651] ss:$9 sm:$0xff] %v1749
      %3718 = vst [vmem:[%s3653] ss:$9 sm:$0xff] %v1757
      %3719 = vst [vmem:[%s3655] ss:$9 sm:$0xff] %v1766
      %v3720 = vld [vmem:[#allocation1] sm:$0xff]
      %3721 = vst [vmem:[#allocation1] ss:$9 sm:$0xff] %v1774
      %3722 = vst [vmem:[%s3643] ss:$9 sm:$0xff] %v1782
      %3723 = vst [vmem:[%s3645] ss:$9 sm:$0xff] %v1790
      %3724 = vst [vmem:[%s3647] ss:$9 sm:$0xff] %v1798
      %3725 = vst [vmem:[%s3649] ss:$9 sm:$0xff] %v1806
      %3726 = vst [vmem:[%s3651] ss:$9 sm:$0xff] %v1814
      %3727 = vst [vmem:[%s3653] ss:$9 sm:$0xff] %v1823
      %3728 = vst [vmem:[%s3655] ss:$9 sm:$0xff] %v1831
      %v3729 = vld [vmem:[#allocation1] sm:$0xff]
      %3730 = vst [vmem:[#allocation1] ss:$9 sm:$0xff] %v1839
      %3731 = vst [vmem:[%s3643] ss:$9 sm:$0xff] %v1847
      %3732 = vst [vmem:[%s3645] ss:$9 sm:$0xff] %v1855
      %3733 = vst [vmem:[%s3647] ss:$9 sm:$0xff] %v1863
      %3734 = vst [vmem:[%s3649] ss:$9 sm:$0xff] %v1871
      %3735 = vst [vmem:[%s3651] ss:$9 sm:$0xff] %v1880
      %3736 = vst [vmem:[%s3653] ss:$9 sm:$0xff] %v1888
      %3737 = vst [vmem:[%s3655] ss:$9 sm:$0xff] %v1896
      %v3738 = vld [vmem:[#allocation1] sm:$0xff]
      %3739 = vst [vmem:[#allocation1] ss:$9 sm:$0xff] %v1904
      %3740 = vst [vmem:[%s3643] ss:$9 sm:$0xff] %v1912
      %3741 = vst [vmem:[%s3645] ss:$9 sm:$0xff] %v1920
      %3742 = vst [vmem:[%s3647] ss:$9 sm:$0xff] %v1928
      %3743 = vst [vmem:[%s3649] ss:$9 sm:$0xff] %v1937
      %3744 = vst [vmem:[%s3651] ss:$9 sm:$0xff] %v1945
      %3745 = vst [vmem:[%s3653] ss:$9 sm:$0xff] %v1953
      %3746 = vst [vmem:[%s3655] ss:$9 sm:$0xff] %v1961
      %v3747 = vld [vmem:[#allocation1] sm:$0xff]
      %3748 = vst [vmem:[#allocation1] ss:$9 sm:$0xff] %v1969
      %3749 = vst [vmem:[%s3643] ss:$9 sm:$0xff] %v1977
      %3750 = vst [vmem:[%s3645] ss:$9 sm:$0xff] %v1985
      %3752 = vst [vmem:[%s3647] ss:$9 sm:$0xff] %v3582
      %3754 = vst [vmem:[%s3649] ss:$9 sm:$0xff] %v3589
      %3756 = vst [vmem:[%s3651] ss:$9 sm:$0xff] %v3596
      %3758 = vst [vmem:[%s3653] ss:$9 sm:$0xff] %v3603
      %3760 = vst [vmem:[%s3655] ss:$9 sm:$0xff] %v3610
      %v3761 = vld [vmem:[#allocation1] sm:$0xff]
      %3763 = vst [vmem:[#allocation1] ss:$9 sm:$0xff] %v3617
      %3765 = vst [vmem:[%s3643] ss:$9 sm:$0xff] %v3625
      %v3766 = vld [vmem:[#allocation1] sm:$0xff]
      %v3796 = vunpack.c.l.b16 %v3626
      %v3797 = vunpack.c.l.b16 %v3627
      %v3798 = vunpack.c.l.b16 %v3628
      %v3799 = vunpack.c.l.b16 %v3629
      %v3800 = vunpack.c.l.b16 %v3630
      %v3801 = vunpack.c.l.b16 %v3631
      %v3802 = vunpack.c.l.b16 %v3632
      %v3803 = vunpack.c.l.b16 %v3633
      %v3804 = vunpack.c.l.b16 %v3634
      %v3805 = vunpack.c.l.b16 %v3635
      %v3806 = vunpack.c.l.b16 %v3636
      %v3807 = vunpack.c.l.b16 %v3637
      %v3808 = vunpack.c.l.b16 %v3638
      %v3809 = vunpack.c.l.b16 %v3639
      %v3810 = vunpack.c.l.b16 %v3640
      %v3811 = vunpack.c.l.b16 %v3641
      %v3812 = vpack.c.b16 %v3797, %v3796
      %v3813 = vpack.c.b16 %v3799, %v3798
      %v3814 = vpack.c.b16 %v3801, %v3800
      %v3815 = vpack.c.b16 %v3803, %v3802
      %v3816 = vpack.c.b16 %v3805, %v3804
      %v3817 = vpack.c.b16 %v3807, %v3806
      %v3818 = vpack.c.b16 %v3809, %v3808
      %v3819 = vpack.c.b16 %v3811, %v3810
      %3828 = vmatpush.bf16.msra.mxu0 %v3819
      %3829 = vmatpush.bf16.msra.mxu0 %v3818
      %3830 = vmatpush.bf16.msra.mxu0 %v3817
      %3831 = vmatpush.bf16.msra.mxu0 %v3816
      %3832 = vmatpush.bf16.msra.mxu0 %v3815
      %3833 = vmatpush.bf16.msra.mxu0 %v3814
      %3834 = vmatpush.bf16.msra.mxu0 %v3813
      %3835 = vmatpush.bf16.msra.mxu0 %v3812
      %3836 = vmatmul.bf16.gmra.mxu0 %v3657
      %v3837 = vpop.f32.mrf.mxu0
      %v3838 = vadd.f32 0.0, %v3837
      %v3839 = vpop.f32.mrf.mxu0
      %v3840 = vadd.f32 0.0, %v3839
      %3841 = vmatmul.bf16.gmra.mxu0 %v3666
      %v3842 = vpop.f32.mrf.mxu0
      %v3843 = vadd.f32 0.0, %v3842
      %v3844 = vpop.f32.mrf.mxu0
      %v3845 = vadd.f32 0.0, %v3844
      %3846 = vmatmul.bf16.gmra.mxu0 %v3675
      %v3847 = vpop.f32.mrf.mxu0
      %v3848 = vadd.f32 0.0, %v3847
      %v3849 = vpop.f32.mrf.mxu0
      %v3850 = vadd.f32 0.0, %v3849
      %3851 = vmatmul.bf16.gmra.mxu0 %v3684
      %v3852 = vpop.f32.mrf.mxu0
      %v3853 = vadd.f32 0.0, %v3852
      %v3854 = vpop.f32.mrf.mxu0
      %v3855 = vadd.f32 0.0, %v3854
      %3856 = vmatmul.bf16.gmra.mxu0 %v3693
      %v3857 = vpop.f32.mrf.mxu0
      %v3858 = vadd.f32 0.0, %v3857
      %v3859 = vpop.f32.mrf.mxu0
      %v3860 = vadd.f32 0.0, %v3859
      %3861 = vmatmul.bf16.gmra.mxu0 %v3702
      %v3862 = vpop.f32.mrf.mxu0
      %v3863 = vadd.f32 0.0, %v3862
      %v3864 = vpop.f32.mrf.mxu0
      %v3865 = vadd.f32 0.0, %v3864
      %3866 = vmatmul.bf16.gmra.mxu0 %v3711
      %v3867 = vpop.f32.mrf.mxu0
      %v3868 = vadd.f32 0.0, %v3867
      %v3869 = vpop.f32.mrf.mxu0
      %v3870 = vadd.f32 0.0, %v3869
      %3871 = vmatmul.bf16.gmra.mxu0 %v3720
      %v3872 = vpop.f32.mrf.mxu0
      %v3873 = vadd.f32 0.0, %v3872
      %v3874 = vpop.f32.mrf.mxu0
      %v3875 = vadd.f32 0.0, %v3874
      %3876 = vmatmul.bf16.gmra.mxu0 %v3729
      %v3877 = vpop.f32.mrf.mxu0
      %v3878 = vadd.f32 0.0, %v3877
      %v3879 = vpop.f32.mrf.mxu0
      %v3880 = vadd.f32 0.0, %v3879
      %3881 = vmatmul.bf16.gmra.mxu0 %v3738
      %v3882 = vpop.f32.mrf.mxu0
      %v3883 = vadd.f32 0.0, %v3882
      %v3884 = vpop.f32.mrf.mxu0
      %v3885 = vadd.f32 0.0, %v3884
      %3886 = vmatmul.bf16.gmra.mxu0 %v3747
      %v3887 = vpop.f32.mrf.mxu0
      %v3888 = vadd.f32 0.0, %v3887
      %v3889 = vpop.f32.mrf.mxu0
      %v3890 = vadd.f32 0.0, %v3889
      %3891 = vmatmul.bf16.gmra.mxu0 %v3761
      %v3892 = vpop.f32.mrf.mxu0
      %v3893 = vadd.f32 0.0, %v3892
      %v3894 = vpop.f32.mrf.mxu0
      %v3895 = vadd.f32 0.0, %v3894
      %3896 = vmatmul.bf16.gmra.mxu0 %v3766
      %v3897 = vpop.f32.mrf.mxu0
      %v3898 = vadd.f32 0.0, %v3897
      %v3899 = vpop.f32.mrf.mxu0
      %3900 = vdwg.mxu0
      %v3901 = vadd.f32 %v3522, %v3838
      %v3902 = vadd.f32 %v3523, %v3840
      %v3903 = vadd.f32 %v3524, %v3843
      %v3904 = vadd.f32 %v3525, %v3845
      %v3905 = vadd.f32 %v3526, %v3848
      %v3906 = vadd.f32 %v3527, %v3850
      %v3907 = vadd.f32 %v3528, %v3853
      %v3908 = vadd.f32 %v3529, %v3855
      %v3909 = vadd.f32 %v3530, %v3858
      %v3910 = vadd.f32 %v3531, %v3860
      %v3911 = vadd.f32 %v3532, %v3863
      %v3912 = vadd.f32 %v3533, %v3865
      %v3913 = vadd.f32 %v3534, %v3868
      %v3914 = vadd.f32 %v3535, %v3870
      %v3915 = vadd.f32 %v3536, %v3873
      %v3916 = vadd.f32 %v3537, %v3875
      %v3917 = vadd.f32 %v3538, %v3878
      %v3918 = vadd.f32 %v3539, %v3880
      %v3919 = vadd.f32 %v3540, %v3883
      %v3920 = vadd.f32 %v3541, %v3885
      %v3921 = vadd.f32 %v3542, %v3888
      %v3922 = vadd.f32 %v3543, %v3890
      %v3923 = vadd.f32 %v3544, %v3893
      %v3924 = vadd.f32 %v3545, %v3895
      %v3925 = vadd.f32 %v3546, %v3898
      %v3928 = vrot.slane %v1001, 1
      %v3929 = vrot.slane %v1017, 1
      %v3930 = vsel %vm1002, %v3928, %v3929
      %v3933 = vadd.f32 %v3547, %v2637
      %v3934 = vadd.f32 %v3548, %v2636
      %v3935 = vadd.f32 %v3549, %v2640
      %v3936 = vadd.f32 %v3550, %v2639
      %v3937 = vadd.f32 %v3551, %v2643
      %v3938 = vadd.f32 %v3552, %v2642
      %v3939 = vadd.f32 %v3553, %v2646
      %v3940 = vadd.f32 %v3554, %v2645
      %v3941 = vadd.f32 %v3555, %v2649
      %v3942 = vadd.f32 %v3556, %v2648
      %v3943 = vadd.f32 %v3557, %v2652
      %v3944 = vadd.f32 %v3558, %v2651
      %v3945 = vadd.f32 %v3559, %v2655
      %v3946 = vadd.f32 %v3560, %v2654
      %v3947 = vadd.f32 %v3561, %v2658
      %v3948 = vadd.f32 %v3562, %v2657
      %v3949 = vadd.f32 %v3563, %v2661
      %v3950 = vadd.f32 %v3564, %v2660
      %v3951 = vadd.f32 %v3565, %v2664
      %v3952 = vadd.f32 %v3566, %v2663
      %v3953 = vadd.f32 %v3567, %v2667
      %v3954 = vadd.f32 %v3568, %v2666
      %v3955 = vadd.f32 %v3569, %v2670
      %v3956 = vadd.f32 %v3570, %v2669
      %v3957 = vadd.f32 %v3571, %v2673
      %v3958 = vadd.f32 %v3572, %v2672
      %v3959 = vadd.f32 %v3573, %v3930
      %v3960 = vadd.f32 %v3574, %v3929
      %3961 = vst [vmem:[#allocation1] sm:$0xff] %v869
      %s3962 = scalar_lea.vmem [#allocation1], 1
      %v3963 = vld [vmem:[%s3962] ss:$9 sm:$0xff]
      %s3964 = scalar_lea.vmem [#allocation1], 2
      %v3965 = vld [vmem:[%s3964] ss:$9 sm:$0xff]
      %s3966 = scalar_lea.vmem [#allocation1], 3
      %v3967 = vld [vmem:[%s3966] ss:$9 sm:$0xff]
      %s3968 = scalar_lea.vmem [#allocation1], 4
      %v3969 = vld [vmem:[%s3968] ss:$9 sm:$0xff]
      %s3970 = scalar_lea.vmem [#allocation1], 5
      %v3971 = vld [vmem:[%s3970] ss:$9 sm:$0xff]
      %s3972 = scalar_lea.vmem [#allocation1], 6
      %v3973 = vld [vmem:[%s3972] ss:$9 sm:$0xff]
      %s3974 = scalar_lea.vmem [#allocation1], 7
      %v3975 = vld [vmem:[%s3974] ss:$9 sm:$0xff]
      %3976 = vst [vmem:[#allocation1] sm:$0xff] %v870
      %v3977 = vld [vmem:[%s3962] ss:$9 sm:$0xff]
      %v3978 = vld [vmem:[%s3964] ss:$9 sm:$0xff]
      %v3979 = vld [vmem:[%s3966] ss:$9 sm:$0xff]
      %v3980 = vld [vmem:[%s3968] ss:$9 sm:$0xff]
      %v3981 = vld [vmem:[%s3970] ss:$9 sm:$0xff]
      %v3982 = vld [vmem:[%s3972] ss:$9 sm:$0xff]
      %v3983 = vld [vmem:[%s3974] ss:$9 sm:$0xff]
      %3984 = vst [vmem:[#allocation1] sm:$0xff] %v871
      %v3985 = vld [vmem:[%s3962] ss:$9 sm:$0xff]
      %v3986 = vld [vmem:[%s3964] ss:$9 sm:$0xff]
      %v3987 = vld [vmem:[%s3966] ss:$9 sm:$0xff]
      %v3988 = vld [vmem:[%s3968] ss:$9 sm:$0xff]
      %v3989 = vld [vmem:[%s3970] ss:$9 sm:$0xff]
      %v3990 = vld [vmem:[%s3972] ss:$9 sm:$0xff]
      %v3991 = vld [vmem:[%s3974] ss:$9 sm:$0xff]
      %3992 = vst [vmem:[#allocation1] sm:$0xff] %v872
      %v3993 = vld [vmem:[%s3962] ss:$9 sm:$0xff]
      %v3994 = vld [vmem:[%s3964] ss:$9 sm:$0xff]
      %v3995 = vld [vmem:[%s3966] ss:$9 sm:$0xff]
      %v3996 = vld [vmem:[%s3968] ss:$9 sm:$0xff]
      %v3997 = vld [vmem:[%s3970] ss:$9 sm:$0xff]
      %v3998 = vld [vmem:[%s3972] ss:$9 sm:$0xff]
      %v3999 = vld [vmem:[%s3974] ss:$9 sm:$0xff]
      %4000 = vst [vmem:[#allocation1] sm:$0xff] %v873
      %v4001 = vld [vmem:[%s3962] ss:$9 sm:$0xff]
      %v4002 = vld [vmem:[%s3964] ss:$9 sm:$0xff]
      %v4003 = vld [vmem:[%s3966] ss:$9 sm:$0xff]
      %v4004 = vld [vmem:[%s3968] ss:$9 sm:$0xff]
      %v4005 = vld [vmem:[%s3970] ss:$9 sm:$0xff]
      %v4006 = vld [vmem:[%s3972] ss:$9 sm:$0xff]
      %v4007 = vld [vmem:[%s3974] ss:$9 sm:$0xff]
      %4008 = vst [vmem:[#allocation1] sm:$0xff] %v874
      %v4009 = vld [vmem:[%s3962] ss:$9 sm:$0xff]
      %v4010 = vld [vmem:[%s3964] ss:$9 sm:$0xff]
      %v4011 = vld [vmem:[%s3966] ss:$9 sm:$0xff]
      %v4012 = vld [vmem:[%s3968] ss:$9 sm:$0xff]
      %v4013 = vld [vmem:[%s3970] ss:$9 sm:$0xff]
      %v4014 = vld [vmem:[%s3972] ss:$9 sm:$0xff]
      %v4015 = vld [vmem:[%s3974] ss:$9 sm:$0xff]
      %4016 = vst [vmem:[#allocation1] sm:$0xff] %v875
      %v4017 = vld [vmem:[%s3962] ss:$9 sm:$0xff]
      %v4018 = vld [vmem:[%s3964] ss:$9 sm:$0xff]
      %v4019 = vld [vmem:[%s3966] ss:$9 sm:$0xff]
      %v4020 = vld [vmem:[%s3968] ss:$9 sm:$0xff]
      %v4021 = vld [vmem:[%s3970] ss:$9 sm:$0xff]
      %v4022 = vld [vmem:[%s3972] ss:$9 sm:$0xff]
      %v4023 = vld [vmem:[%s3974] ss:$9 sm:$0xff]
      %4024 = vst [vmem:[#allocation1] sm:$0xff] %v876
      %v4025 = vld [vmem:[%s3962] ss:$9 sm:$0xff]
      %v4026 = vld [vmem:[%s3964] ss:$9 sm:$0xff]
      %v4027 = vld [vmem:[%s3966] ss:$9 sm:$0xff]
      %v4028 = vld [vmem:[%s3968] ss:$9 sm:$0xff]
      %v4029 = vld [vmem:[%s3970] ss:$9 sm:$0xff]
      %v4030 = vld [vmem:[%s3972] ss:$9 sm:$0xff]
      %v4031 = vld [vmem:[%s3974] ss:$9 sm:$0xff]
      %4032 = vst [vmem:[#allocation1] sm:$0xff] %v877
      %v4033 = vld [vmem:[%s3962] ss:$9 sm:$0xff]
      %v4034 = vld [vmem:[%s3964] ss:$9 sm:$0xff]
      %v4035 = vld [vmem:[%s3966] ss:$9 sm:$0xff]
      %v4036 = vld [vmem:[%s3968] ss:$9 sm:$0xff]
      %v4037 = vld [vmem:[%s3970] ss:$9 sm:$0xff]
      %v4038 = vld [vmem:[%s3972] ss:$9 sm:$0xff]
      %v4039 = vld [vmem:[%s3974] ss:$9 sm:$0xff]
      %4040 = vst [vmem:[#allocation1] sm:$0xff] %v878
      %v4041 = vld [vmem:[%s3962] ss:$9 sm:$0xff]
      %v4042 = vld [vmem:[%s3964] ss:$9 sm:$0xff]
      %v4043 = vld [vmem:[%s3966] ss:$9 sm:$0xff]
      %v4044 = vld [vmem:[%s3968] ss:$9 sm:$0xff]
      %v4045 = vld [vmem:[%s3970] ss:$9 sm:$0xff]
      %v4046 = vld [vmem:[%s3972] ss:$9 sm:$0xff]
      %v4047 = vld [vmem:[%s3974] ss:$9 sm:$0xff]
      %4048 = vst [vmem:[#allocation1] sm:$0xff] %v879
      %v4049 = vld [vmem:[%s3962] ss:$9 sm:$0xff]
      %v4050 = vld [vmem:[%s3964] ss:$9 sm:$0xff]
      %v4051 = vld [vmem:[%s3966] ss:$9 sm:$0xff]
      %v4052 = vld [vmem:[%s3968] ss:$9 sm:$0xff]
      %v4053 = vld [vmem:[%s3970] ss:$9 sm:$0xff]
      %v4054 = vld [vmem:[%s3972] ss:$9 sm:$0xff]
      %v4055 = vld [vmem:[%s3974] ss:$9 sm:$0xff]
      %4056 = vst [vmem:[#allocation1] sm:$0xff] %v880
      %v4057 = vld [vmem:[%s3962] ss:$9 sm:$0xff]
      %v4058 = vld [vmem:[%s3964] ss:$9 sm:$0xff]
      %v4059 = vld [vmem:[%s3966] ss:$9 sm:$0xff]
      %v4060 = vld [vmem:[%s3968] ss:$9 sm:$0xff]
      %v4061 = vld [vmem:[%s3970] ss:$9 sm:$0xff]
      %v4062 = vld [vmem:[%s3972] ss:$9 sm:$0xff]
      %v4063 = vld [vmem:[%s3974] ss:$9 sm:$0xff]
      %4064 = vst [vmem:[#allocation1] sm:$0xff] %v881
      %v4065 = vld [vmem:[%s3962] ss:$9 sm:$0xff]
      %v4066 = vld [vmem:[%s3964] ss:$9 sm:$0xff]
      %v4067 = vld [vmem:[%s3966] ss:$9 sm:$0xff]
      %v4068 = vld [vmem:[%s3968] ss:$9 sm:$0xff]
      %v4069 = vld [vmem:[%s3970] ss:$9 sm:$0xff]
      %v4070 = vld [vmem:[%s3972] ss:$9 sm:$0xff]
      %v4071 = vld [vmem:[%s3974] ss:$9 sm:$0xff]
      %4072 = vst [vmem:[#allocation1] sm:$0xff] %v882
      %v4073 = vld [vmem:[%s3962] ss:$9 sm:$0xff]
      %v4074 = vld [vmem:[%s3964] ss:$9 sm:$0xff]
      %v4075 = vld [vmem:[%s3966] ss:$9 sm:$0xff]
      %v4076 = vld [vmem:[%s3968] ss:$9 sm:$0xff]
      %v4077 = vld [vmem:[%s3970] ss:$9 sm:$0xff]
      %v4078 = vld [vmem:[%s3972] ss:$9 sm:$0xff]
      %v4079 = vld [vmem:[%s3974] ss:$9 sm:$0xff]
      %v4080 = vld [vmem:[%s3 + $0x140] sm:$0xf]
      %v4081 = vld [vmem:[%s3 + $0x144] sm:$0xf]
      %v4082 = vld [vmem:[%s3 + $0x148] sm:$0xf]
      %v4083 = vld [vmem:[%s3 + $0x14c] sm:$0xf]
      %v4084 = vld [vmem:[%s3 + $0x150] sm:$0xf]
      %v4085 = vld [vmem:[%s3 + $0x154] sm:$0xf]
      %v4086 = vld [vmem:[%s3 + $0x158] sm:$0xf]
      %v4087 = vld [vmem:[%s3 + $0x15c] sm:$0xf]
      %v4088 = vld [vmem:[%s3 + $0x160] sm:$0xf]
      %v4089 = vld [vmem:[%s3 + $0x164] sm:$0xf]
      %v4090 = vld [vmem:[%s3 + $0x168] sm:$0xf]
      %v4091 = vld [vmem:[%s3 + $0x16c] sm:$0xf]
      %v4092 = vld [vmem:[%s3 + $0x170] sm:$0xf]
      %v4093 = vld [vmem:[%s3 + $0x174] sm:$0xf]
      %v4094 = vld [vmem:[%s3 + $0x178] sm:$0xf]
      %v4095 = vld [vmem:[%s3 + $0x17c] sm:$0xf]
      %4096 = vst [vmem:[#allocation1] ss:$9 sm:$0xff] %v3963
      %s4097 = scalar_lea.vmem [#allocation1], 1
      %4098 = vst [vmem:[%s4097] ss:$9 sm:$0xff] %v3965
      %s4099 = scalar_lea.vmem [#allocation1], 2
      %4100 = vst [vmem:[%s4099] ss:$9 sm:$0xff] %v3967
      %s4101 = scalar_lea.vmem [#allocation1], 3
      %4102 = vst [vmem:[%s4101] ss:$9 sm:$0xff] %v3969
      %s4103 = scalar_lea.vmem [#allocation1], 4
      %4104 = vst [vmem:[%s4103] ss:$9 sm:$0xff] %v3971
      %s4105 = scalar_lea.vmem [#allocation1], 5
      %4106 = vst [vmem:[%s4105] ss:$9 sm:$0xff] %v3973
      %s4107 = scalar_lea.vmem [#allocation1], 6
      %4108 = vst [vmem:[%s4107] ss:$9 sm:$0xff] %v3975
      %s4109 = scalar_lea.vmem [#allocation1], 7
      %4110 = vst [vmem:[%s4109] ss:$9 sm:$0xff] %v3977
      %v4111 = vld [vmem:[#allocation1] sm:$0xff]
      %4112 = vst [vmem:[#allocation1] ss:$9 sm:$0xff] %v3978
      %4113 = vst [vmem:[%s4097] ss:$9 sm:$0xff] %v3979
      %4114 = vst [vmem:[%s4099] ss:$9 sm:$0xff] %v3980
      %4115 = vst [vmem:[%s4101] ss:$9 sm:$0xff] %v3981
      %4116 = vst [vmem:[%s4103] ss:$9 sm:$0xff] %v3982
      %4117 = vst [vmem:[%s4105] ss:$9 sm:$0xff] %v3983
      %4118 = vst [vmem:[%s4107] ss:$9 sm:$0xff] %v3985
      %4119 = vst [vmem:[%s4109] ss:$9 sm:$0xff] %v3986
      %v4120 = vld [vmem:[#allocation1] sm:$0xff]
      %4121 = vst [vmem:[#allocation1] ss:$9 sm:$0xff] %v3987
      %4122 = vst [vmem:[%s4097] ss:$9 sm:$0xff] %v3988
      %4123 = vst [vmem:[%s4099] ss:$9 sm:$0xff] %v3989
      %4124 = vst [vmem:[%s4101] ss:$9 sm:$0xff] %v3990
      %4125 = vst [vmem:[%s4103] ss:$9 sm:$0xff] %v3991
      %4126 = vst [vmem:[%s4105] ss:$9 sm:$0xff] %v3993
      %4127 = vst [vmem:[%s4107] ss:$9 sm:$0xff] %v3994
      %4128 = vst [vmem:[%s4109] ss:$9 sm:$0xff] %v3995
      %v4129 = vld [vmem:[#allocation1] sm:$0xff]
      %4130 = vst [vmem:[#allocation1] ss:$9 sm:$0xff] %v3996
      %4131 = vst [vmem:[%s4097] ss:$9 sm:$0xff] %v3997
      %4132 = vst [vmem:[%s4099] ss:$9 sm:$0xff] %v3998
      %4133 = vst [vmem:[%s4101] ss:$9 sm:$0xff] %v3999
      %4134 = vst [vmem:[%s4103] ss:$9 sm:$0xff] %v4001
      %4135 = vst [vmem:[%s4105] ss:$9 sm:$0xff] %v4002
      %4136 = vst [vmem:[%s4107] ss:$9 sm:$0xff] %v4003
      %4137 = vst [vmem:[%s4109] ss:$9 sm:$0xff] %v4004
      %v4138 = vld [vmem:[#allocation1] sm:$0xff]
      %4139 = vst [vmem:[#allocation1] ss:$9 sm:$0xff] %v4005
      %4140 = vst [vmem:[%s4097] ss:$9 sm:$0xff] %v4006
      %4141 = vst [vmem:[%s4099] ss:$9 sm:$0xff] %v4007
      %4142 = vst [vmem:[%s4101] ss:$9 sm:$0xff] %v4009
      %4143 = vst [vmem:[%s4103] ss:$9 sm:$0xff] %v4010
      %4144 = vst [vmem:[%s4105] ss:$9 sm:$0xff] %v4011
      %4145 = vst [vmem:[%s4107] ss:$9 sm:$0xff] %v4012
      %4146 = vst [vmem:[%s4109] ss:$9 sm:$0xff] %v4013
      %v4147 = vld [vmem:[#allocation1] sm:$0xff]
      %4148 = vst [vmem:[#allocation1] ss:$9 sm:$0xff] %v4014
      %4149 = vst [vmem:[%s4097] ss:$9 sm:$0xff] %v4015
      %4150 = vst [vmem:[%s4099] ss:$9 sm:$0xff] %v4017
      %4151 = vst [vmem:[%s4101] ss:$9 sm:$0xff] %v4018
      %4152 = vst [vmem:[%s4103] ss:$9 sm:$0xff] %v4019
      %4153 = vst [vmem:[%s4105] ss:$9 sm:$0xff] %v4020
      %4154 = vst [vmem:[%s4107] ss:$9 sm:$0xff] %v4021
      %4155 = vst [vmem:[%s4109] ss:$9 sm:$0xff] %v4022
      %v4156 = vld [vmem:[#allocation1] sm:$0xff]
      %4157 = vst [vmem:[#allocation1] ss:$9 sm:$0xff] %v4023
      %4158 = vst [vmem:[%s4097] ss:$9 sm:$0xff] %v4025
      %4159 = vst [vmem:[%s4099] ss:$9 sm:$0xff] %v4026
      %4160 = vst [vmem:[%s4101] ss:$9 sm:$0xff] %v4027
      %4161 = vst [vmem:[%s4103] ss:$9 sm:$0xff] %v4028
      %4162 = vst [vmem:[%s4105] ss:$9 sm:$0xff] %v4029
      %4163 = vst [vmem:[%s4107] ss:$9 sm:$0xff] %v4030
      %4164 = vst [vmem:[%s4109] ss:$9 sm:$0xff] %v4031
      %v4165 = vld [vmem:[#allocation1] sm:$0xff]
      %4166 = vst [vmem:[#allocation1] ss:$9 sm:$0xff] %v4033
      %4167 = vst [vmem:[%s4097] ss:$9 sm:$0xff] %v4034
      %4168 = vst [vmem:[%s4099] ss:$9 sm:$0xff] %v4035
      %4169 = vst [vmem:[%s4101] ss:$9 sm:$0xff] %v4036
      %4170 = vst [vmem:[%s4103] ss:$9 sm:$0xff] %v4037
      %4171 = vst [vmem:[%s4105] ss:$9 sm:$0xff] %v4038
      %4172 = vst [vmem:[%s4107] ss:$9 sm:$0xff] %v4039
      %4173 = vst [vmem:[%s4109] ss:$9 sm:$0xff] %v4041
      %v4174 = vld [vmem:[#allocation1] sm:$0xff]
      %4175 = vst [vmem:[#allocation1] ss:$9 sm:$0xff] %v4042
      %4176 = vst [vmem:[%s4097] ss:$9 sm:$0xff] %v4043
      %4177 = vst [vmem:[%s4099] ss:$9 sm:$0xff] %v4044
      %4178 = vst [vmem:[%s4101] ss:$9 sm:$0xff] %v4045
      %4179 = vst [vmem:[%s4103] ss:$9 sm:$0xff] %v4046
      %4180 = vst [vmem:[%s4105] ss:$9 sm:$0xff] %v4047
      %4181 = vst [vmem:[%s4107] ss:$9 sm:$0xff] %v4049
      %4182 = vst [vmem:[%s4109] ss:$9 sm:$0xff] %v4050
      %v4183 = vld [vmem:[#allocation1] sm:$0xff]
      %4184 = vst [vmem:[#allocation1] ss:$9 sm:$0xff] %v4051
      %4185 = vst [vmem:[%s4097] ss:$9 sm:$0xff] %v4052
      %4186 = vst [vmem:[%s4099] ss:$9 sm:$0xff] %v4053
      %4187 = vst [vmem:[%s4101] ss:$9 sm:$0xff] %v4054
      %4188 = vst [vmem:[%s4103] ss:$9 sm:$0xff] %v4055
      %4189 = vst [vmem:[%s4105] ss:$9 sm:$0xff] %v4057
      %4190 = vst [vmem:[%s4107] ss:$9 sm:$0xff] %v4058
      %4191 = vst [vmem:[%s4109] ss:$9 sm:$0xff] %v4059
      %v4192 = vld [vmem:[#allocation1] sm:$0xff]
      %4193 = vst [vmem:[#allocation1] ss:$9 sm:$0xff] %v4060
      %4194 = vst [vmem:[%s4097] ss:$9 sm:$0xff] %v4061
      %4195 = vst [vmem:[%s4099] ss:$9 sm:$0xff] %v4062
      %4196 = vst [vmem:[%s4101] ss:$9 sm:$0xff] %v4063
      %4197 = vst [vmem:[%s4103] ss:$9 sm:$0xff] %v4065
      %4198 = vst [vmem:[%s4105] ss:$9 sm:$0xff] %v4066
      %4199 = vst [vmem:[%s4107] ss:$9 sm:$0xff] %v4067
      %4200 = vst [vmem:[%s4109] ss:$9 sm:$0xff] %v4068
      %v4201 = vld [vmem:[#allocation1] sm:$0xff]
      %4202 = vst [vmem:[#allocation1] ss:$9 sm:$0xff] %v4069
      %4203 = vst [vmem:[%s4097] ss:$9 sm:$0xff] %v4070
      %4204 = vst [vmem:[%s4099] ss:$9 sm:$0xff] %v4071
      %4205 = vst [vmem:[%s4101] ss:$9 sm:$0xff] %v4073
      %4206 = vst [vmem:[%s4103] ss:$9 sm:$0xff] %v4074
      %4207 = vst [vmem:[%s4105] ss:$9 sm:$0xff] %v4075
      %4208 = vst [vmem:[%s4107] ss:$9 sm:$0xff] %v4076
      %4209 = vst [vmem:[%s4109] ss:$9 sm:$0xff] %v4077
      %v4210 = vld [vmem:[#allocation1] sm:$0xff]
      %4211 = vst [vmem:[#allocation1] ss:$9 sm:$0xff] %v4078
      %4212 = vst [vmem:[%s4097] ss:$9 sm:$0xff] %v4079
      %v4213 = vld [vmem:[#allocation1] sm:$0xff]
      %v4243 = vunpack.c.l.b16 %v4080
      %v4244 = vunpack.c.l.b16 %v4081
      %v4245 = vunpack.c.l.b16 %v4082
      %v4246 = vunpack.c.l.b16 %v4083
      %v4247 = vunpack.c.l.b16 %v4084
      %v4248 = vunpack.c.l.b16 %v4085
      %v4249 = vunpack.c.l.b16 %v4086
      %v4250 = vunpack.c.l.b16 %v4087
      %v4251 = vunpack.c.l.b16 %v4088
      %v4252 = vunpack.c.l.b16 %v4089
      %v4253 = vunpack.c.l.b16 %v4090
      %v4254 = vunpack.c.l.b16 %v4091
      %v4255 = vunpack.c.l.b16 %v4092
      %v4256 = vunpack.c.l.b16 %v4093
      %v4257 = vunpack.c.l.b16 %v4094
      %v4258 = vunpack.c.l.b16 %v4095
      %v4259 = vpack.c.b16 %v4244, %v4243
      %v4260 = vpack.c.b16 %v4246, %v4245
      %v4261 = vpack.c.b16 %v4248, %v4247
      %v4262 = vpack.c.b16 %v4250, %v4249
      %v4263 = vpack.c.b16 %v4252, %v4251
      %v4264 = vpack.c.b16 %v4254, %v4253
      %v4265 = vpack.c.b16 %v4256, %v4255
      %v4266 = vpack.c.b16 %v4258, %v4257
      %4275 = vmatpush.bf16.msra.mxu0 %v4266
      %4276 = vmatpush.bf16.msra.mxu0 %v4265
      %4277 = vmatpush.bf16.msra.mxu0 %v4264
      %4278 = vmatpush.bf16.msra.mxu0 %v4263
      %4279 = vmatpush.bf16.msra.mxu0 %v4262
      %4280 = vmatpush.bf16.msra.mxu0 %v4261
      %4281 = vmatpush.bf16.msra.mxu0 %v4260
      %4282 = vmatpush.bf16.msra.mxu0 %v4259
      %4283 = vmatmul.bf16.gmra.mxu0 %v4111
      %v4284 = vpop.f32.mrf.mxu0
      %v4285 = vadd.f32 0.0, %v4284
      %v4286 = vpop.f32.mrf.mxu0
      %v4287 = vadd.f32 0.0, %v4286
      %4288 = vmatmul.bf16.gmra.mxu0 %v4120
      %v4289 = vpop.f32.mrf.mxu0
      %v4290 = vadd.f32 0.0, %v4289
      %v4291 = vpop.f32.mrf.mxu0
      %v4292 = vadd.f32 0.0, %v4291
      %4293 = vmatmul.bf16.gmra.mxu0 %v4129
      %v4294 = vpop.f32.mrf.mxu0
      %v4295 = vadd.f32 0.0, %v4294
      %v4296 = vpop.f32.mrf.mxu0
      %v4297 = vadd.f32 0.0, %v4296
      %4298 = vmatmul.bf16.gmra.mxu0 %v4138
      %v4299 = vpop.f32.mrf.mxu0
      %v4300 = vadd.f32 0.0, %v4299
      %v4301 = vpop.f32.mrf.mxu0
      %v4302 = vadd.f32 0.0, %v4301
      %4303 = vmatmul.bf16.gmra.mxu0 %v4147
      %v4304 = vpop.f32.mrf.mxu0
      %v4305 = vadd.f32 0.0, %v4304
      %v4306 = vpop.f32.mrf.mxu0
      %v4307 = vadd.f32 0.0, %v4306
      %4308 = vmatmul.bf16.gmra.mxu0 %v4156
      %v4309 = vpop.f32.mrf.mxu0
      %v4310 = vadd.f32 0.0, %v4309
      %v4311 = vpop.f32.mrf.mxu0
      %v4312 = vadd.f32 0.0, %v4311
      %4313 = vmatmul.bf16.gmra.mxu0 %v4165
      %v4314 = vpop.f32.mrf.mxu0
      %v4315 = vadd.f32 0.0, %v4314
      %v4316 = vpop.f32.mrf.mxu0
      %v4317 = vadd.f32 0.0, %v4316
      %4318 = vmatmul.bf16.gmra.mxu0 %v4174
      %v4319 = vpop.f32.mrf.mxu0
      %v4320 = vadd.f32 0.0, %v4319
      %v4321 = vpop.f32.mrf.mxu0
      %v4322 = vadd.f32 0.0, %v4321
      %4323 = vmatmul.bf16.gmra.mxu0 %v4183
      %v4324 = vpop.f32.mrf.mxu0
      %v4325 = vadd.f32 0.0, %v4324
      %v4326 = vpop.f32.mrf.mxu0
      %v4327 = vadd.f32 0.0, %v4326
      %4328 = vmatmul.bf16.gmra.mxu0 %v4192
      %v4329 = vpop.f32.mrf.mxu0
      %v4330 = vadd.f32 0.0, %v4329
      %v4331 = vpop.f32.mrf.mxu0
      %v4332 = vadd.f32 0.0, %v4331
      %4333 = vmatmul.bf16.gmra.mxu0 %v4201
      %v4334 = vpop.f32.mrf.mxu0
      %v4335 = vadd.f32 0.0, %v4334
      %v4336 = vpop.f32.mrf.mxu0
      %v4337 = vadd.f32 0.0, %v4336
      %4338 = vmatmul.bf16.gmra.mxu0 %v4210
      %v4339 = vpop.f32.mrf.mxu0
      %v4340 = vadd.f32 0.0, %v4339
      %v4341 = vpop.f32.mrf.mxu0
      %v4342 = vadd.f32 0.0, %v4341
      %4343 = vmatmul.bf16.gmra.mxu0 %v4213
      %v4344 = vpop.f32.mrf.mxu0
      %v4345 = vadd.f32 0.0, %v4344
      %v4346 = vpop.f32.mrf.mxu0
      %4347 = vdwg.mxu0
      %v4348 = vadd.f32 %v3901, %v4285
      %v4349 = vadd.f32 %v3902, %v4287
      %v4350 = vadd.f32 %v3903, %v4290
      %v4351 = vadd.f32 %v3904, %v4292
      %v4352 = vadd.f32 %v3905, %v4295
      %v4353 = vadd.f32 %v3906, %v4297
      %v4354 = vadd.f32 %v3907, %v4300
      %v4355 = vadd.f32 %v3908, %v4302
      %v4356 = vadd.f32 %v3909, %v4305
      %v4357 = vadd.f32 %v3910, %v4307
      %v4358 = vadd.f32 %v3911, %v4310
      %v4359 = vadd.f32 %v3912, %v4312
      %v4360 = vadd.f32 %v3913, %v4315
      %v4361 = vadd.f32 %v3914, %v4317
      %v4362 = vadd.f32 %v3915, %v4320
      %v4363 = vadd.f32 %v3916, %v4322
      %v4364 = vadd.f32 %v3917, %v4325
      %v4365 = vadd.f32 %v3918, %v4327
      %v4366 = vadd.f32 %v3919, %v4330
      %v4367 = vadd.f32 %v3920, %v4332
      %v4368 = vadd.f32 %v3921, %v4335
      %v4369 = vadd.f32 %v3922, %v4337
      %v4370 = vadd.f32 %v3923, %v4340
      %v4371 = vadd.f32 %v3924, %v4342
      %v4372 = vadd.f32 %v3925, %v4345
      %v4373 = vrot.slane %v1001, 2
      %v4374 = vrot.slane %v1017, 2
      %v4375 = vsel %vm532, %v4373, %v4374
      %v4378 = vadd.f32 %v3933, %v3147
      %v4379 = vadd.f32 %v3934, %v3146
      %v4380 = vadd.f32 %v3935, %v3150
      %v4381 = vadd.f32 %v3936, %v3149
      %v4382 = vadd.f32 %v3937, %v3153
      %v4383 = vadd.f32 %v3938, %v3152
      %v4384 = vadd.f32 %v3939, %v3156
      %v4385 = vadd.f32 %v3940, %v3155
      %v4386 = vadd.f32 %v3941, %v3159
      %v4387 = vadd.f32 %v3942, %v3158
      %v4388 = vadd.f32 %v3943, %v3162
      %v4389 = vadd.f32 %v3944, %v3161
      %v4390 = vadd.f32 %v3945, %v3165
      %v4391 = vadd.f32 %v3946, %v3164
      %v4392 = vadd.f32 %v3947, %v3168
      %v4393 = vadd.f32 %v3948, %v3167
      %v4394 = vadd.f32 %v3949, %v3171
      %v4395 = vadd.f32 %v3950, %v3170
      %v4396 = vadd.f32 %v3951, %v3174
      %v4397 = vadd.f32 %v3952, %v3173
      %v4398 = vadd.f32 %v3953, %v3177
      %v4399 = vadd.f32 %v3954, %v3176
      %v4400 = vadd.f32 %v3955, %v3180
      %v4401 = vadd.f32 %v3956, %v3179
      %v4402 = vadd.f32 %v3957, %v3183
      %v4403 = vadd.f32 %v3958, %v3182
      %v4404 = vadd.f32 %v3959, %v4375
      %v4405 = vadd.f32 %v3960, %v4374
      %v4406 = vld [vmem:[%s3 + $0x180] sm:$0xf]
      %v4407 = vld [vmem:[%s3 + $0x184] sm:$0xf]
      %v4408 = vld [vmem:[%s3 + $0x188] sm:$0xf]
      %v4409 = vld [vmem:[%s3 + $0x18c] sm:$0xf]
      %v4410 = vld [vmem:[%s3 + $0x190] sm:$0xf]
      %v4411 = vld [vmem:[%s3 + $0x194] sm:$0xf]
      %v4412 = vld [vmem:[%s3 + $0x198] sm:$0xf]
      %v4413 = vld [vmem:[%s3 + $0x19c] sm:$0xf]
      %v4414 = vld [vmem:[%s3 + $0x1a0] sm:$0xf]
      %v4415 = vld [vmem:[%s3 + $0x1a4] sm:$0xf]
      %v4416 = vld [vmem:[%s3 + $0x1a8] sm:$0xf]
      %v4417 = vld [vmem:[%s3 + $0x1ac] sm:$0xf]
      %v4418 = vld [vmem:[%s3 + $0x1b0] sm:$0xf]
      %v4419 = vld [vmem:[%s3 + $0x1b4] sm:$0xf]
      %v4420 = vld [vmem:[%s3 + $0x1b8] sm:$0xf]
      %v4421 = vld [vmem:[%s3 + $0x1bc] sm:$0xf]
      %4422 = vst [vmem:[#allocation1] ss:$9 sm:$0xff] %v870
      %s4423 = scalar_lea.vmem [#allocation1], 1
      %4424 = vst [vmem:[%s4423] ss:$9 sm:$0xff] %v1044
      %s4425 = scalar_lea.vmem [#allocation1], 2
      %4426 = vst [vmem:[%s4425] ss:$9 sm:$0xff] %v1045
      %s4427 = scalar_lea.vmem [#allocation1], 3
      %4428 = vst [vmem:[%s4427] ss:$9 sm:$0xff] %v1046
      %s4429 = scalar_lea.vmem [#allocation1], 4
      %4430 = vst [vmem:[%s4429] ss:$9 sm:$0xff] %v1047
      %s4431 = scalar_lea.vmem [#allocation1], 5
      %4432 = vst [vmem:[%s4431] ss:$9 sm:$0xff] %v1048
      %s4433 = scalar_lea.vmem [#allocation1], 6
      %4434 = vst [vmem:[%s4433] ss:$9 sm:$0xff] %v1049
      %s4435 = scalar_lea.vmem [#allocation1], 7
      %4436 = vst [vmem:[%s4435] ss:$9 sm:$0xff] %v871
      %v4437 = vld [vmem:[#allocation1] sm:$0xff]
      %4438 = vst [vmem:[#allocation1] ss:$9 sm:$0xff] %v1050
      %4439 = vst [vmem:[%s4423] ss:$9 sm:$0xff] %v1051
      %4440 = vst [vmem:[%s4425] ss:$9 sm:$0xff] %v1052
      %4441 = vst [vmem:[%s4427] ss:$9 sm:$0xff] %v1053
      %4442 = vst [vmem:[%s4429] ss:$9 sm:$0xff] %v1054
      %4443 = vst [vmem:[%s4431] ss:$9 sm:$0xff] %v1055
      %4444 = vst [vmem:[%s4433] ss:$9 sm:$0xff] %v872
      %4445 = vst [vmem:[%s4435] ss:$9 sm:$0xff] %v1056
      %v4446 = vld [vmem:[#allocation1] sm:$0xff]
      %4447 = vst [vmem:[#allocation1] ss:$9 sm:$0xff] %v1057
      %4448 = vst [vmem:[%s4423] ss:$9 sm:$0xff] %v1058
      %4449 = vst [vmem:[%s4425] ss:$9 sm:$0xff] %v1059
      %4450 = vst [vmem:[%s4427] ss:$9 sm:$0xff] %v1060
      %4451 = vst [vmem:[%s4429] ss:$9 sm:$0xff] %v1061
      %4452 = vst [vmem:[%s4431] ss:$9 sm:$0xff] %v873
      %4453 = vst [vmem:[%s4433] ss:$9 sm:$0xff] %v1062
      %4454 = vst [vmem:[%s4435] ss:$9 sm:$0xff] %v1063
      %v4455 = vld [vmem:[#allocation1] sm:$0xff]
      %4456 = vst [vmem:[#allocation1] ss:$9 sm:$0xff] %v1064
      %4457 = vst [vmem:[%s4423] ss:$9 sm:$0xff] %v1065
      %4458 = vst [vmem:[%s4425] ss:$9 sm:$0xff] %v1066
      %4459 = vst [vmem:[%s4427] ss:$9 sm:$0xff] %v1067
      %4460 = vst [vmem:[%s4429] ss:$9 sm:$0xff] %v874
      %4461 = vst [vmem:[%s4431] ss:$9 sm:$0xff] %v1068
      %4462 = vst [vmem:[%s4433] ss:$9 sm:$0xff] %v1069
      %4463 = vst [vmem:[%s4435] ss:$9 sm:$0xff] %v1070
      %v4464 = vld [vmem:[#allocation1] sm:$0xff]
      %4465 = vst [vmem:[#allocation1] ss:$9 sm:$0xff] %v1071
      %4466 = vst [vmem:[%s4423] ss:$9 sm:$0xff] %v1072
      %4467 = vst [vmem:[%s4425] ss:$9 sm:$0xff] %v1073
      %4468 = vst [vmem:[%s4427] ss:$9 sm:$0xff] %v875
      %4469 = vst [vmem:[%s4429] ss:$9 sm:$0xff] %v1074
      %4470 = vst [vmem:[%s4431] ss:$9 sm:$0xff] %v1075
      %4471 = vst [vmem:[%s4433] ss:$9 sm:$0xff] %v1076
      %4472 = vst [vmem:[%s4435] ss:$9 sm:$0xff] %v1077
      %v4473 = vld [vmem:[#allocation1] sm:$0xff]
      %4474 = vst [vmem:[#allocation1] ss:$9 sm:$0xff] %v1078
      %4475 = vst [vmem:[%s4423] ss:$9 sm:$0xff] %v1079
      %4476 = vst [vmem:[%s4425] ss:$9 sm:$0xff] %v876
      %4477 = vst [vmem:[%s4427] ss:$9 sm:$0xff] %v1080
      %4478 = vst [vmem:[%s4429] ss:$9 sm:$0xff] %v1081
      %4479 = vst [vmem:[%s4431] ss:$9 sm:$0xff] %v1082
      %4480 = vst [vmem:[%s4433] ss:$9 sm:$0xff] %v1083
      %4481 = vst [vmem:[%s4435] ss:$9 sm:$0xff] %v1084
      %v4482 = vld [vmem:[#allocation1] sm:$0xff]
      %4483 = vst [vmem:[#allocation1] ss:$9 sm:$0xff] %v1085
      %4484 = vst [vmem:[%s4423] ss:$9 sm:$0xff] %v877
      %4485 = vst [vmem:[%s4425] ss:$9 sm:$0xff] %v1086
      %4486 = vst [vmem:[%s4427] ss:$9 sm:$0xff] %v1087
      %4487 = vst [vmem:[%s4429] ss:$9 sm:$0xff] %v1088
      %4488 = vst [vmem:[%s4431] ss:$9 sm:$0xff] %v1089
      %4489 = vst [vmem:[%s4433] ss:$9 sm:$0xff] %v1090
      %4490 = vst [vmem:[%s4435] ss:$9 sm:$0xff] %v1091
      %v4491 = vld [vmem:[#allocation1] sm:$0xff]
      %4492 = vst [vmem:[#allocation1] ss:$9 sm:$0xff] %v878
      %4493 = vst [vmem:[%s4423] ss:$9 sm:$0xff] %v1092
      %4494 = vst [vmem:[%s4425] ss:$9 sm:$0xff] %v1093
      %4495 = vst [vmem:[%s4427] ss:$9 sm:$0xff] %v1094
      %4496 = vst [vmem:[%s4429] ss:$9 sm:$0xff] %v1095
      %4497 = vst [vmem:[%s4431] ss:$9 sm:$0xff] %v1096
      %4498 = vst [vmem:[%s4433] ss:$9 sm:$0xff] %v1097
      %4499 = vst [vmem:[%s4435] ss:$9 sm:$0xff] %v879
      %v4500 = vld [vmem:[#allocation1] sm:$0xff]
      %4501 = vst [vmem:[#allocation1] ss:$9 sm:$0xff] %v1098
      %4502 = vst [vmem:[%s4423] ss:$9 sm:$0xff] %v1099
      %4503 = vst [vmem:[%s4425] ss:$9 sm:$0xff] %v1100
      %4504 = vst [vmem:[%s4427] ss:$9 sm:$0xff] %v1101
      %4505 = vst [vmem:[%s4429] ss:$9 sm:$0xff] %v1102
      %4506 = vst [vmem:[%s4431] ss:$9 sm:$0xff] %v1103
      %4507 = vst [vmem:[%s4433] ss:$9 sm:$0xff] %v880
      %4508 = vst [vmem:[%s4435] ss:$9 sm:$0xff] %v1104
      %v4509 = vld [vmem:[#allocation1] sm:$0xff]
      %4510 = vst [vmem:[#allocation1] ss:$9 sm:$0xff] %v1105
      %4511 = vst [vmem:[%s4423] ss:$9 sm:$0xff] %v1106
      %4512 = vst [vmem:[%s4425] ss:$9 sm:$0xff] %v1107
      %4513 = vst [vmem:[%s4427] ss:$9 sm:$0xff] %v1108
      %4514 = vst [vmem:[%s4429] ss:$9 sm:$0xff] %v1109
      %4515 = vst [vmem:[%s4431] ss:$9 sm:$0xff] %v881
      %4516 = vst [vmem:[%s4433] ss:$9 sm:$0xff] %v1110
      %4517 = vst [vmem:[%s4435] ss:$9 sm:$0xff] %v1111
      %v4518 = vld [vmem:[#allocation1] sm:$0xff]
      %4519 = vst [vmem:[#allocation1] ss:$9 sm:$0xff] %v1112
      %4520 = vst [vmem:[%s4423] ss:$9 sm:$0xff] %v1113
      %4521 = vst [vmem:[%s4425] ss:$9 sm:$0xff] %v1114
      %4522 = vst [vmem:[%s4427] ss:$9 sm:$0xff] %v1115
      %4523 = vst [vmem:[%s4429] ss:$9 sm:$0xff] %v882
      %4524 = vst [vmem:[%s4431] ss:$9 sm:$0xff] %v3241
      %4525 = vst [vmem:[%s4433] ss:$9 sm:$0xff] %v3242
      %4526 = vst [vmem:[%s4435] ss:$9 sm:$0xff] %v3243
      %v4527 = vld [vmem:[#allocation1] sm:$0xff]
      %4528 = vst [vmem:[#allocation1] ss:$9 sm:$0xff] %v3244
      %4529 = vst [vmem:[%s4423] ss:$9 sm:$0xff] %v3245
      %4530 = vst [vmem:[%s4425] ss:$9 sm:$0xff] %v3246
      %4531 = vst [vmem:[%s4427] ss:$9 sm:$0xff] %v868
      %4532 = vst [vmem:[%s4429] ss:$9 sm:$0xff] %v1032
      %4533 = vst [vmem:[%s4431] ss:$9 sm:$0xff] %v1033
      %4534 = vst [vmem:[%s4433] ss:$9 sm:$0xff] %v1034
      %4535 = vst [vmem:[%s4435] ss:$9 sm:$0xff] %v1035
      %v4536 = vld [vmem:[#allocation1] sm:$0xff]
      %4537 = vst [vmem:[#allocation1] ss:$9 sm:$0xff] %v1036
      %4538 = vst [vmem:[%s4423] ss:$9 sm:$0xff] %v1037
      %v4539 = vld [vmem:[#allocation1] sm:$0xff]
      %v4569 = vunpack.c.l.b16 %v4406
      %v4570 = vunpack.c.l.b16 %v4407
      %v4571 = vunpack.c.l.b16 %v4408
      %v4572 = vunpack.c.l.b16 %v4409
      %v4573 = vunpack.c.l.b16 %v4410
      %v4574 = vunpack.c.l.b16 %v4411
      %v4575 = vunpack.c.l.b16 %v4412
      %v4576 = vunpack.c.l.b16 %v4413
      %v4577 = vunpack.c.l.b16 %v4414
      %v4578 = vunpack.c.l.b16 %v4415
      %v4579 = vunpack.c.l.b16 %v4416
      %v4580 = vunpack.c.l.b16 %v4417
      %v4581 = vunpack.c.l.b16 %v4418
      %v4582 = vunpack.c.l.b16 %v4419
      %v4583 = vunpack.c.l.b16 %v4420
      %v4584 = vunpack.c.l.b16 %v4421
      %v4585 = vpack.c.b16 %v4570, %v4569
      %v4586 = vpack.c.b16 %v4572, %v4571
      %v4587 = vpack.c.b16 %v4574, %v4573
      %v4588 = vpack.c.b16 %v4576, %v4575
      %v4589 = vpack.c.b16 %v4578, %v4577
      %v4590 = vpack.c.b16 %v4580, %v4579
      %v4591 = vpack.c.b16 %v4582, %v4581
      %v4592 = vpack.c.b16 %v4584, %v4583
      %4601 = vmatpush.bf16.msra.mxu0 %v4592
      %4602 = vmatpush.bf16.msra.mxu0 %v4591
      %4603 = vmatpush.bf16.msra.mxu0 %v4590
      %4604 = vmatpush.bf16.msra.mxu0 %v4589
      %4605 = vmatpush.bf16.msra.mxu0 %v4588
      %4606 = vmatpush.bf16.msra.mxu0 %v4587
      %4607 = vmatpush.bf16.msra.mxu0 %v4586
      %4608 = vmatpush.bf16.msra.mxu0 %v4585
      %4609 = vmatmul.bf16.gmra.mxu0 %v4437
      %v4610 = vpop.f32.mrf.mxu0
      %v4611 = vadd.f32 0.0, %v4610
      %v4612 = vpop.f32.mrf.mxu0
      %v4613 = vadd.f32 0.0, %v4612
      %4614 = vmatmul.bf16.gmra.mxu0 %v4446
      %v4615 = vpop.f32.mrf.mxu0
      %v4616 = vadd.f32 0.0, %v4615
      %v4617 = vpop.f32.mrf.mxu0
      %v4618 = vadd.f32 0.0, %v4617
      %4619 = vmatmul.bf16.gmra.mxu0 %v4455
      %v4620 = vpop.f32.mrf.mxu0
      %v4621 = vadd.f32 0.0, %v4620
      %v4622 = vpop.f32.mrf.mxu0
      %v4623 = vadd.f32 0.0, %v4622
      %4624 = vmatmul.bf16.gmra.mxu0 %v4464
      %v4625 = vpop.f32.mrf.mxu0
      %v4626 = vadd.f32 0.0, %v4625
      %v4627 = vpop.f32.mrf.mxu0
      %v4628 = vadd.f32 0.0, %v4627
      %4629 = vmatmul.bf16.gmra.mxu0 %v4473
      %v4630 = vpop.f32.mrf.mxu0
      %v4631 = vadd.f32 0.0, %v4630
      %v4632 = vpop.f32.mrf.mxu0
      %v4633 = vadd.f32 0.0, %v4632
      %4634 = vmatmul.bf16.gmra.mxu0 %v4482
      %v4635 = vpop.f32.mrf.mxu0
      %v4636 = vadd.f32 0.0, %v4635
      %v4637 = vpop.f32.mrf.mxu0
      %v4638 = vadd.f32 0.0, %v4637
      %4639 = vmatmul.bf16.gmra.mxu0 %v4491
      %v4640 = vpop.f32.mrf.mxu0
      %v4641 = vadd.f32 0.0, %v4640
      %v4642 = vpop.f32.mrf.mxu0
      %v4643 = vadd.f32 0.0, %v4642
      %4644 = vmatmul.bf16.gmra.mxu0 %v4500
      %v4645 = vpop.f32.mrf.mxu0
      %v4646 = vadd.f32 0.0, %v4645
      %v4647 = vpop.f32.mrf.mxu0
      %v4648 = vadd.f32 0.0, %v4647
      %4649 = vmatmul.bf16.gmra.mxu0 %v4509
      %v4650 = vpop.f32.mrf.mxu0
      %v4651 = vadd.f32 0.0, %v4650
      %v4652 = vpop.f32.mrf.mxu0
      %v4653 = vadd.f32 0.0, %v4652
      %4654 = vmatmul.bf16.gmra.mxu0 %v4518
      %v4655 = vpop.f32.mrf.mxu0
      %v4656 = vadd.f32 0.0, %v4655
      %v4657 = vpop.f32.mrf.mxu0
      %v4658 = vadd.f32 0.0, %v4657
      %4659 = vmatmul.bf16.gmra.mxu0 %v4527
      %v4660 = vpop.f32.mrf.mxu0
      %v4661 = vadd.f32 0.0, %v4660
      %v4662 = vpop.f32.mrf.mxu0
      %v4663 = vadd.f32 0.0, %v4662
      %4664 = vmatmul.bf16.gmra.mxu0 %v4536
      %v4665 = vpop.f32.mrf.mxu0
      %v4666 = vadd.f32 0.0, %v4665
      %v4667 = vpop.f32.mrf.mxu0
      %v4668 = vadd.f32 0.0, %v4667
      %4669 = vmatmul.bf16.gmra.mxu0 %v4539
      %v4670 = vpop.f32.mrf.mxu0
      %v4671 = vadd.f32 0.0, %v4670
      %v4672 = vpop.f32.mrf.mxu0
      %4673 = vdwg.mxu0
      %v4674 = vadd.f32 %v4348, %v4611
      %v4675 = vadd.f32 %v4349, %v4613
      %v4676 = vadd.f32 %v4350, %v4616
      %v4677 = vadd.f32 %v4351, %v4618
      %v4678 = vadd.f32 %v4352, %v4621
      %v4679 = vadd.f32 %v4353, %v4623
      %v4680 = vadd.f32 %v4354, %v4626
      %v4681 = vadd.f32 %v4355, %v4628
      %v4682 = vadd.f32 %v4356, %v4631
      %v4683 = vadd.f32 %v4357, %v4633
      %v4684 = vadd.f32 %v4358, %v4636
      %v4685 = vadd.f32 %v4359, %v4638
      %v4686 = vadd.f32 %v4360, %v4641
      %v4687 = vadd.f32 %v4361, %v4643
      %v4688 = vadd.f32 %v4362, %v4646
      %v4689 = vadd.f32 %v4363, %v4648
      %v4690 = vadd.f32 %v4364, %v4651
      %v4691 = vadd.f32 %v4365, %v4653
      %v4692 = vadd.f32 %v4366, %v4656
      %v4693 = vadd.f32 %v4367, %v4658
      %v4694 = vadd.f32 %v4368, %v4661
      %v4695 = vadd.f32 %v4369, %v4663
      %v4696 = vadd.f32 %v4370, %v4666
      %v4697 = vadd.f32 %v4371, %v4668
      %v4698 = vadd.f32 %v4372, %v4671
      %v4699 = vadd.f32 %v4378, %v989
      %v4700 = vadd.f32 %v4379, %v1005
      %v4701 = vadd.f32 %v4380, %v990
      %v4702 = vadd.f32 %v4381, %v1006
      %v4703 = vadd.f32 %v4382, %v991
      %v4704 = vadd.f32 %v4383, %v1007
      %v4705 = vadd.f32 %v4384, %v992
      %v4706 = vadd.f32 %v4385, %v1008
      %v4707 = vadd.f32 %v4386, %v993
      %v4708 = vadd.f32 %v4387, %v1009
      %v4709 = vadd.f32 %v4388, %v994
      %v4710 = vadd.f32 %v4389, %v1010
      %v4711 = vadd.f32 %v4390, %v995
      %v4712 = vadd.f32 %v4391, %v1011
      %v4713 = vadd.f32 %v4392, %v996
      %v4714 = vadd.f32 %v4393, %v1012
      %v4715 = vadd.f32 %v4394, %v997
      %v4716 = vadd.f32 %v4395, %v1013
      %v4717 = vadd.f32 %v4396, %v998
      %v4718 = vadd.f32 %v4397, %v1014
      %v4719 = vadd.f32 %v4398, %v999
      %v4720 = vadd.f32 %v4399, %v1015
      %v4721 = vadd.f32 %v4400, %v1000
      %v4722 = vadd.f32 %v4401, %v1016
      %v4723 = vadd.f32 %v4402, %v1001
      %v4724 = vadd.f32 %v4403, %v1017
      %v4725 = vadd.f32 %v4404, %v987
      %v4726 = vadd.f32 %v4405, %v1003
      %v4727 = vld [vmem:[%s3 + $0x1c0] sm:$0xf]
      %v4728 = vld [vmem:[%s3 + $0x1c4] sm:$0xf]
      %v4729 = vld [vmem:[%s3 + $0x1c8] sm:$0xf]
      %v4730 = vld [vmem:[%s3 + $0x1cc] sm:$0xf]
      %v4731 = vld [vmem:[%s3 + $0x1d0] sm:$0xf]
      %v4732 = vld [vmem:[%s3 + $0x1d4] sm:$0xf]
      %v4733 = vld [vmem:[%s3 + $0x1d8] sm:$0xf]
      %v4734 = vld [vmem:[%s3 + $0x1dc] sm:$0xf]
      %v4735 = vld [vmem:[%s3 + $0x1e0] sm:$0xf]
      %v4736 = vld [vmem:[%s3 + $0x1e4] sm:$0xf]
      %v4737 = vld [vmem:[%s3 + $0x1e8] sm:$0xf]
      %v4738 = vld [vmem:[%s3 + $0x1ec] sm:$0xf]
      %v4739 = vld [vmem:[%s3 + $0x1f0] sm:$0xf]
      %v4740 = vld [vmem:[%s3 + $0x1f4] sm:$0xf]
      %v4741 = vld [vmem:[%s3 + $0x1f8] sm:$0xf]
      %v4742 = vld [vmem:[%s3 + $0x1fc] sm:$0xf]
      %4743 = vst [vmem:[#allocation1] ss:$9 sm:$0xff] %v1310
      %s4744 = scalar_lea.vmem [#allocation1], 1
      %4745 = vst [vmem:[%s4744] ss:$9 sm:$0xff] %v1318
      %s4746 = scalar_lea.vmem [#allocation1], 2
      %4747 = vst [vmem:[%s4746] ss:$9 sm:$0xff] %v1326
      %s4748 = scalar_lea.vmem [#allocation1], 3
      %4749 = vst [vmem:[%s4748] ss:$9 sm:$0xff] %v1334
      %s4750 = scalar_lea.vmem [#allocation1], 4
      %4751 = vst [vmem:[%s4750] ss:$9 sm:$0xff] %v1342
      %s4752 = scalar_lea.vmem [#allocation1], 5
      %4753 = vst [vmem:[%s4752] ss:$9 sm:$0xff] %v1350
      %s4754 = scalar_lea.vmem [#allocation1], 6
      %4755 = vst [vmem:[%s4754] ss:$9 sm:$0xff] %v1358
      %s4756 = scalar_lea.vmem [#allocation1], 7
      %4757 = vst [vmem:[%s4756] ss:$9 sm:$0xff] %v1367
      %v4758 = vld [vmem:[#allocation1] sm:$0xff]
      %4759 = vst [vmem:[#allocation1] ss:$9 sm:$0xff] %v1375
      %4760 = vst [vmem:[%s4744] ss:$9 sm:$0xff] %v1383
      %4761 = vst [vmem:[%s4746] ss:$9 sm:$0xff] %v1391
      %4762 = vst [vmem:[%s4748] ss:$9 sm:$0xff] %v1399
      %4763 = vst [vmem:[%s4750] ss:$9 sm:$0xff] %v1407
      %4764 = vst [vmem:[%s4752] ss:$9 sm:$0xff] %v1415
      %4765 = vst [vmem:[%s4754] ss:$9 sm:$0xff] %v1424
      %4766 = vst [vmem:[%s4756] ss:$9 sm:$0xff] %v1432
      %v4767 = vld [vmem:[#allocation1] sm:$0xff]
      %4768 = vst [vmem:[#allocation1] ss:$9 sm:$0xff] %v1440
      %4769 = vst [vmem:[%s4744] ss:$9 sm:$0xff] %v1448
      %4770 = vst [vmem:[%s4746] ss:$9 sm:$0xff] %v1456
      %4771 = vst [vmem:[%s4748] ss:$9 sm:$0xff] %v1464
      %4772 = vst [vmem:[%s4750] ss:$9 sm:$0xff] %v1472
      %4773 = vst [vmem:[%s4752] ss:$9 sm:$0xff] %v1481
      %4774 = vst [vmem:[%s4754] ss:$9 sm:$0xff] %v1489
      %4775 = vst [vmem:[%s4756] ss:$9 sm:$0xff] %v1497
      %v4776 = vld [vmem:[#allocation1] sm:$0xff]
      %4777 = vst [vmem:[#allocation1] ss:$9 sm:$0xff] %v1505
      %4778 = vst [vmem:[%s4744] ss:$9 sm:$0xff] %v1513
      %4779 = vst [vmem:[%s4746] ss:$9 sm:$0xff] %v1521
      %4780 = vst [vmem:[%s4748] ss:$9 sm:$0xff] %v1529
      %4781 = vst [vmem:[%s4750] ss:$9 sm:$0xff] %v1538
      %4782 = vst [vmem:[%s4752] ss:$9 sm:$0xff] %v1546
      %4783 = vst [vmem:[%s4754] ss:$9 sm:$0xff] %v1554
      %4784 = vst [vmem:[%s4756] ss:$9 sm:$0xff] %v1562
      %v4785 = vld [vmem:[#allocation1] sm:$0xff]
      %4786 = vst [vmem:[#allocation1] ss:$9 sm:$0xff] %v1570
      %4787 = vst [vmem:[%s4744] ss:$9 sm:$0xff] %v1578
      %4788 = vst [vmem:[%s4746] ss:$9 sm:$0xff] %v1586
      %4789 = vst [vmem:[%s4748] ss:$9 sm:$0xff] %v1595
      %4790 = vst [vmem:[%s4750] ss:$9 sm:$0xff] %v1603
      %4791 = vst [vmem:[%s4752] ss:$9 sm:$0xff] %v1611
      %4792 = vst [vmem:[%s4754] ss:$9 sm:$0xff] %v1619
      %4793 = vst [vmem:[%s4756] ss:$9 sm:$0xff] %v1627
      %v4794 = vld [vmem:[#allocation1] sm:$0xff]
      %4795 = vst [vmem:[#allocation1] ss:$9 sm:$0xff] %v1635
      %4796 = vst [vmem:[%s4744] ss:$9 sm:$0xff] %v1643
      %4797 = vst [vmem:[%s4746] ss:$9 sm:$0xff] %v1652
      %4798 = vst [vmem:[%s4748] ss:$9 sm:$0xff] %v1660
      %4799 = vst [vmem:[%s4750] ss:$9 sm:$0xff] %v1668
      %4800 = vst [vmem:[%s4752] ss:$9 sm:$0xff] %v1676
      %4801 = vst [vmem:[%s4754] ss:$9 sm:$0xff] %v1684
      %4802 = vst [vmem:[%s4756] ss:$9 sm:$0xff] %v1692
      %v4803 = vld [vmem:[#allocation1] sm:$0xff]
      %4804 = vst [vmem:[#allocation1] ss:$9 sm:$0xff] %v1700
      %4805 = vst [vmem:[%s4744] ss:$9 sm:$0xff] %v1709
      %4806 = vst [vmem:[%s4746] ss:$9 sm:$0xff] %v1717
      %4807 = vst [vmem:[%s4748] ss:$9 sm:$0xff] %v1725
      %4808 = vst [vmem:[%s4750] ss:$9 sm:$0xff] %v1733
      %4809 = vst [vmem:[%s4752] ss:$9 sm:$0xff] %v1741
      %4810 = vst [vmem:[%s4754] ss:$9 sm:$0xff] %v1749
      %4811 = vst [vmem:[%s4756] ss:$9 sm:$0xff] %v1757
      %v4812 = vld [vmem:[#allocation1] sm:$0xff]
      %4813 = vst [vmem:[#allocation1] ss:$9 sm:$0xff] %v1766
      %4814 = vst [vmem:[%s4744] ss:$9 sm:$0xff] %v1774
      %4815 = vst [vmem:[%s4746] ss:$9 sm:$0xff] %v1782
      %4816 = vst [vmem:[%s4748] ss:$9 sm:$0xff] %v1790
      %4817 = vst [vmem:[%s4750] ss:$9 sm:$0xff] %v1798
      %4818 = vst [vmem:[%s4752] ss:$9 sm:$0xff] %v1806
      %4819 = vst [vmem:[%s4754] ss:$9 sm:$0xff] %v1814
      %4820 = vst [vmem:[%s4756] ss:$9 sm:$0xff] %v1823
      %v4821 = vld [vmem:[#allocation1] sm:$0xff]
      %4822 = vst [vmem:[#allocation1] ss:$9 sm:$0xff] %v1831
      %4823 = vst [vmem:[%s4744] ss:$9 sm:$0xff] %v1839
      %4824 = vst [vmem:[%s4746] ss:$9 sm:$0xff] %v1847
      %4825 = vst [vmem:[%s4748] ss:$9 sm:$0xff] %v1855
      %4826 = vst [vmem:[%s4750] ss:$9 sm:$0xff] %v1863
      %4827 = vst [vmem:[%s4752] ss:$9 sm:$0xff] %v1871
      %4828 = vst [vmem:[%s4754] ss:$9 sm:$0xff] %v1880
      %4829 = vst [vmem:[%s4756] ss:$9 sm:$0xff] %v1888
      %v4830 = vld [vmem:[#allocation1] sm:$0xff]
      %4831 = vst [vmem:[#allocation1] ss:$9 sm:$0xff] %v1896
      %4832 = vst [vmem:[%s4744] ss:$9 sm:$0xff] %v1904
      %4833 = vst [vmem:[%s4746] ss:$9 sm:$0xff] %v1912
      %4834 = vst [vmem:[%s4748] ss:$9 sm:$0xff] %v1920
      %4835 = vst [vmem:[%s4750] ss:$9 sm:$0xff] %v1928
      %4836 = vst [vmem:[%s4752] ss:$9 sm:$0xff] %v1937
      %4837 = vst [vmem:[%s4754] ss:$9 sm:$0xff] %v1945
      %4838 = vst [vmem:[%s4756] ss:$9 sm:$0xff] %v1953
      %v4839 = vld [vmem:[#allocation1] sm:$0xff]
      %4840 = vst [vmem:[#allocation1] ss:$9 sm:$0xff] %v1961
      %4841 = vst [vmem:[%s4744] ss:$9 sm:$0xff] %v1969
      %4842 = vst [vmem:[%s4746] ss:$9 sm:$0xff] %v1977
      %4843 = vst [vmem:[%s4748] ss:$9 sm:$0xff] %v1985
      %4844 = vst [vmem:[%s4750] ss:$9 sm:$0xff] %v3582
      %4845 = vst [vmem:[%s4752] ss:$9 sm:$0xff] %v3589
      %4846 = vst [vmem:[%s4754] ss:$9 sm:$0xff] %v3596
      %4847 = vst [vmem:[%s4756] ss:$9 sm:$0xff] %v3603
      %v4848 = vld [vmem:[#allocation1] sm:$0xff]
      %4849 = vst [vmem:[#allocation1] ss:$9 sm:$0xff] %v3610
      %4850 = vst [vmem:[%s4744] ss:$9 sm:$0xff] %v3617
      %4851 = vst [vmem:[%s4746] ss:$9 sm:$0xff] %v3625
      %4852 = vst [vmem:[%s4748] ss:$9 sm:$0xff] %v1196
      %4853 = vst [vmem:[%s4750] ss:$9 sm:$0xff] %v1204
      %4854 = vst [vmem:[%s4752] ss:$9 sm:$0xff] %v1212
      %4855 = vst [vmem:[%s4754] ss:$9 sm:$0xff] %v1220
      %4856 = vst [vmem:[%s4756] ss:$9 sm:$0xff] %v1228
      %v4857 = vld [vmem:[#allocation1] sm:$0xff]
      %4858 = vst [vmem:[#allocation1] ss:$9 sm:$0xff] %v1236
      %4859 = vst [vmem:[%s4744] ss:$9 sm:$0xff] %v1244
      %v4860 = vld [vmem:[#allocation1] sm:$0xff]
      %v4890 = vunpack.c.l.b16 %v4727
      %v4891 = vunpack.c.l.b16 %v4728
      %v4892 = vunpack.c.l.b16 %v4729
      %v4893 = vunpack.c.l.b16 %v4730
      %v4894 = vunpack.c.l.b16 %v4731
      %v4895 = vunpack.c.l.b16 %v4732
      %v4896 = vunpack.c.l.b16 %v4733
      %v4897 = vunpack.c.l.b16 %v4734
      %v4898 = vunpack.c.l.b16 %v4735
      %v4899 = vunpack.c.l.b16 %v4736
      %v4900 = vunpack.c.l.b16 %v4737
      %v4901 = vunpack.c.l.b16 %v4738
      %v4902 = vunpack.c.l.b16 %v4739
      %v4903 = vunpack.c.l.b16 %v4740
      %v4904 = vunpack.c.l.b16 %v4741
      %v4905 = vunpack.c.l.b16 %v4742
      %v4906 = vpack.c.b16 %v4891, %v4890
      %v4907 = vpack.c.b16 %v4893, %v4892
      %v4908 = vpack.c.b16 %v4895, %v4894
      %v4909 = vpack.c.b16 %v4897, %v4896
      %v4910 = vpack.c.b16 %v4899, %v4898
      %v4911 = vpack.c.b16 %v4901, %v4900
      %v4912 = vpack.c.b16 %v4903, %v4902
      %v4913 = vpack.c.b16 %v4905, %v4904
      %4922 = vmatpush.bf16.msra.mxu0 %v4913
      %4923 = vmatpush.bf16.msra.mxu0 %v4912
      %4924 = vmatpush.bf16.msra.mxu0 %v4911
      %4925 = vmatpush.bf16.msra.mxu0 %v4910
      %4926 = vmatpush.bf16.msra.mxu0 %v4909
      %4927 = vmatpush.bf16.msra.mxu0 %v4908
      %4928 = vmatpush.bf16.msra.mxu0 %v4907
      %4929 = vmatpush.bf16.msra.mxu0 %v4906
      %4930 = vmatmul.bf16.gmra.mxu0 %v4758
      %v4931 = vpop.f32.mrf.mxu0
      %v4932 = vadd.f32 0.0, %v4931
      %v4933 = vpop.f32.mrf.mxu0
      %v4934 = vadd.f32 0.0, %v4933
      %4935 = vmatmul.bf16.gmra.mxu0 %v4767
      %v4936 = vpop.f32.mrf.mxu0
      %v4937 = vadd.f32 0.0, %v4936
      %v4938 = vpop.f32.mrf.mxu0
      %v4939 = vadd.f32 0.0, %v4938
      %4940 = vmatmul.bf16.gmra.mxu0 %v4776
      %v4941 = vpop.f32.mrf.mxu0
      %v4942 = vadd.f32 0.0, %v4941
      %v4943 = vpop.f32.mrf.mxu0
      %v4944 = vadd.f32 0.0, %v4943
      %4945 = vmatmul.bf16.gmra.mxu0 %v4785
      %v4946 = vpop.f32.mrf.mxu0
      %v4947 = vadd.f32 0.0, %v4946
      %v4948 = vpop.f32.mrf.mxu0
      %v4949 = vadd.f32 0.0, %v4948
      %4950 = vmatmul.bf16.gmra.mxu0 %v4794
      %v4951 = vpop.f32.mrf.mxu0
      %v4952 = vadd.f32 0.0, %v4951
      %v4953 = vpop.f32.mrf.mxu0
      %v4954 = vadd.f32 0.0, %v4953
      %4955 = vmatmul.bf16.gmra.mxu0 %v4803
      %v4956 = vpop.f32.mrf.mxu0
      %v4957 = vadd.f32 0.0, %v4956
      %v4958 = vpop.f32.mrf.mxu0
      %v4959 = vadd.f32 0.0, %v4958
      %4960 = vmatmul.bf16.gmra.mxu0 %v4812
      %v4961 = vpop.f32.mrf.mxu0
      %v4962 = vadd.f32 0.0, %v4961
      %v4963 = vpop.f32.mrf.mxu0
      %v4964 = vadd.f32 0.0, %v4963
      %4965 = vmatmul.bf16.gmra.mxu0 %v4821
      %v4966 = vpop.f32.mrf.mxu0
      %v4967 = vadd.f32 0.0, %v4966
      %v4968 = vpop.f32.mrf.mxu0
      %v4969 = vadd.f32 0.0, %v4968
      %4970 = vmatmul.bf16.gmra.mxu0 %v4830
      %v4971 = vpop.f32.mrf.mxu0
      %v4972 = vadd.f32 0.0, %v4971
      %v4973 = vpop.f32.mrf.mxu0
      %v4974 = vadd.f32 0.0, %v4973
      %4975 = vmatmul.bf16.gmra.mxu0 %v4839
      %v4976 = vpop.f32.mrf.mxu0
      %v4977 = vadd.f32 0.0, %v4976
      %v4978 = vpop.f32.mrf.mxu0
      %v4979 = vadd.f32 0.0, %v4978
      %4980 = vmatmul.bf16.gmra.mxu0 %v4848
      %v4981 = vpop.f32.mrf.mxu0
      %v4982 = vadd.f32 0.0, %v4981
      %v4983 = vpop.f32.mrf.mxu0
      %v4984 = vadd.f32 0.0, %v4983
      %4985 = vmatmul.bf16.gmra.mxu0 %v4857
      %v4986 = vpop.f32.mrf.mxu0
      %v4987 = vadd.f32 0.0, %v4986
      %v4988 = vpop.f32.mrf.mxu0
      %v4989 = vadd.f32 0.0, %v4988
      %4990 = vmatmul.bf16.gmra.mxu0 %v4860
      %v4991 = vpop.f32.mrf.mxu0
      %v4992 = vadd.f32 0.0, %v4991
      %v4993 = vpop.f32.mrf.mxu0
      %4994 = vdwg.mxu0
      %v4995 = vadd.f32 %v4674, %v4932
      %v4996 = vadd.f32 %v4675, %v4934
      %v4997 = vadd.f32 %v4676, %v4937
      %v4998 = vadd.f32 %v4677, %v4939
      %v4999 = vadd.f32 %v4678, %v4942
      %v5000 = vadd.f32 %v4679, %v4944
      %v5001 = vadd.f32 %v4680, %v4947
      %v5002 = vadd.f32 %v4681, %v4949
      %v5003 = vadd.f32 %v4682, %v4952
      %v5004 = vadd.f32 %v4683, %v4954
      %v5005 = vadd.f32 %v4684, %v4957
      %v5006 = vadd.f32 %v4685, %v4959
      %v5007 = vadd.f32 %v4686, %v4962
      %v5008 = vadd.f32 %v4687, %v4964
      %v5009 = vadd.f32 %v4688, %v4967
      %v5010 = vadd.f32 %v4689, %v4969
      %v5011 = vadd.f32 %v4690, %v4972
      %v5012 = vadd.f32 %v4691, %v4974
      %v5013 = vadd.f32 %v4692, %v4977
      %v5014 = vadd.f32 %v4693, %v4979
      %v5015 = vadd.f32 %v4694, %v4982
      %v5016 = vadd.f32 %v4695, %v4984
      %v5017 = vadd.f32 %v4696, %v4987
      %v5018 = vadd.f32 %v4697, %v4989
      %v5019 = vadd.f32 %v4698, %v4992
      %v5020 = vadd.f32 %v4699, %v2640
      %v5021 = vadd.f32 %v4700, %v2639
      %v5022 = vadd.f32 %v4701, %v2643
      %v5023 = vadd.f32 %v4702, %v2642
      %v5024 = vadd.f32 %v4703, %v2646
      %v5025 = vadd.f32 %v4704, %v2645
      %v5026 = vadd.f32 %v4705, %v2649
      %v5027 = vadd.f32 %v4706, %v2648
      %v5028 = vadd.f32 %v4707, %v2652
      %v5029 = vadd.f32 %v4708, %v2651
      %v5030 = vadd.f32 %v4709, %v2655
      %v5031 = vadd.f32 %v4710, %v2654
      %v5032 = vadd.f32 %v4711, %v2658
      %v5033 = vadd.f32 %v4712, %v2657
      %v5034 = vadd.f32 %v4713, %v2661
      %v5035 = vadd.f32 %v4714, %v2660
      %v5036 = vadd.f32 %v4715, %v2664
      %v5037 = vadd.f32 %v4716, %v2663
      %v5038 = vadd.f32 %v4717, %v2667
      %v5039 = vadd.f32 %v4718, %v2666
      %v5040 = vadd.f32 %v4719, %v2670
      %v5041 = vadd.f32 %v4720, %v2669
      %v5042 = vadd.f32 %v4721, %v2673
      %v5043 = vadd.f32 %v4722, %v2672
      %v5044 = vadd.f32 %v4723, %v3930
      %v5045 = vadd.f32 %v4724, %v3929
      %v5046 = vadd.f32 %v4725, %v2634
      %v5047 = vadd.f32 %v4726, %v2633
      %5048 = vst [vmem:[#allocation1] sm:$0xff] %v870
      %s5049 = scalar_lea.vmem [#allocation1], 1
      %v5050 = vld [vmem:[%s5049] ss:$9 sm:$0xff]
      %s5051 = scalar_lea.vmem [#allocation1], 2
      %v5052 = vld [vmem:[%s5051] ss:$9 sm:$0xff]
      %s5053 = scalar_lea.vmem [#allocation1], 3
      %v5054 = vld [vmem:[%s5053] ss:$9 sm:$0xff]
      %s5055 = scalar_lea.vmem [#allocation1], 4
      %v5056 = vld [vmem:[%s5055] ss:$9 sm:$0xff]
      %s5057 = scalar_lea.vmem [#allocation1], 5
      %v5058 = vld [vmem:[%s5057] ss:$9 sm:$0xff]
      %s5059 = scalar_lea.vmem [#allocation1], 6
      %v5060 = vld [vmem:[%s5059] ss:$9 sm:$0xff]
      %s5061 = scalar_lea.vmem [#allocation1], 7
      %v5062 = vld [vmem:[%s5061] ss:$9 sm:$0xff]
      %5063 = vst [vmem:[#allocation1] sm:$0xff] %v871
      %v5064 = vld [vmem:[%s5049] ss:$9 sm:$0xff]
      %v5065 = vld [vmem:[%s5051] ss:$9 sm:$0xff]
      %v5066 = vld [vmem:[%s5053] ss:$9 sm:$0xff]
      %v5067 = vld [vmem:[%s5055] ss:$9 sm:$0xff]
      %v5068 = vld [vmem:[%s5057] ss:$9 sm:$0xff]
      %v5069 = vld [vmem:[%s5059] ss:$9 sm:$0xff]
      %v5070 = vld [vmem:[%s5061] ss:$9 sm:$0xff]
      %5071 = vst [vmem:[#allocation1] sm:$0xff] %v872
      %v5072 = vld [vmem:[%s5049] ss:$9 sm:$0xff]
      %v5073 = vld [vmem:[%s5051] ss:$9 sm:$0xff]
      %v5074 = vld [vmem:[%s5053] ss:$9 sm:$0xff]
      %v5075 = vld [vmem:[%s5055] ss:$9 sm:$0xff]
      %v5076 = vld [vmem:[%s5057] ss:$9 sm:$0xff]
      %v5077 = vld [vmem:[%s5059] ss:$9 sm:$0xff]
      %v5078 = vld [vmem:[%s5061] ss:$9 sm:$0xff]
      %5079 = vst [vmem:[#allocation1] sm:$0xff] %v873
      %v5080 = vld [vmem:[%s5049] ss:$9 sm:$0xff]
      %v5081 = vld [vmem:[%s5051] ss:$9 sm:$0xff]
      %v5082 = vld [vmem:[%s5053] ss:$9 sm:$0xff]
      %v5083 = vld [vmem:[%s5055] ss:$9 sm:$0xff]
      %v5084 = vld [vmem:[%s5057] ss:$9 sm:$0xff]
      %v5085 = vld [vmem:[%s5059] ss:$9 sm:$0xff]
      %v5086 = vld [vmem:[%s5061] ss:$9 sm:$0xff]
      %5087 = vst [vmem:[#allocation1] sm:$0xff] %v874
      %v5088 = vld [vmem:[%s5049] ss:$9 sm:$0xff]
      %v5089 = vld [vmem:[%s5051] ss:$9 sm:$0xff]
      %v5090 = vld [vmem:[%s5053] ss:$9 sm:$0xff]
      %v5091 = vld [vmem:[%s5055] ss:$9 sm:$0xff]
      %v5092 = vld [vmem:[%s5057] ss:$9 sm:$0xff]
      %v5093 = vld [vmem:[%s5059] ss:$9 sm:$0xff]
      %v5094 = vld [vmem:[%s5061] ss:$9 sm:$0xff]
      %5095 = vst [vmem:[#allocation1] sm:$0xff] %v875
      %v5096 = vld [vmem:[%s5049] ss:$9 sm:$0xff]
      %v5097 = vld [vmem:[%s5051] ss:$9 sm:$0xff]
      %v5098 = vld [vmem:[%s5053] ss:$9 sm:$0xff]
      %v5099 = vld [vmem:[%s5055] ss:$9 sm:$0xff]
      %v5100 = vld [vmem:[%s5057] ss:$9 sm:$0xff]
      %v5101 = vld [vmem:[%s5059] ss:$9 sm:$0xff]
      %v5102 = vld [vmem:[%s5061] ss:$9 sm:$0xff]
      %5103 = vst [vmem:[#allocation1] sm:$0xff] %v876
      %v5104 = vld [vmem:[%s5049] ss:$9 sm:$0xff]
      %v5105 = vld [vmem:[%s5051] ss:$9 sm:$0xff]
      %v5106 = vld [vmem:[%s5053] ss:$9 sm:$0xff]
      %v5107 = vld [vmem:[%s5055] ss:$9 sm:$0xff]
      %v5108 = vld [vmem:[%s5057] ss:$9 sm:$0xff]
      %v5109 = vld [vmem:[%s5059] ss:$9 sm:$0xff]
      %v5110 = vld [vmem:[%s5061] ss:$9 sm:$0xff]
      %5111 = vst [vmem:[#allocation1] sm:$0xff] %v877
      %v5112 = vld [vmem:[%s5049] ss:$9 sm:$0xff]
      %v5113 = vld [vmem:[%s5051] ss:$9 sm:$0xff]
      %v5114 = vld [vmem:[%s5053] ss:$9 sm:$0xff]
      %v5115 = vld [vmem:[%s5055] ss:$9 sm:$0xff]
      %v5116 = vld [vmem:[%s5057] ss:$9 sm:$0xff]
      %v5117 = vld [vmem:[%s5059] ss:$9 sm:$0xff]
      %v5118 = vld [vmem:[%s5061] ss:$9 sm:$0xff]
      %5119 = vst [vmem:[#allocation1] sm:$0xff] %v878
      %v5120 = vld [vmem:[%s5049] ss:$9 sm:$0xff]
      %v5121 = vld [vmem:[%s5051] ss:$9 sm:$0xff]
      %v5122 = vld [vmem:[%s5053] ss:$9 sm:$0xff]
      %v5123 = vld [vmem:[%s5055] ss:$9 sm:$0xff]
      %v5124 = vld [vmem:[%s5057] ss:$9 sm:$0xff]
      %v5125 = vld [vmem:[%s5059] ss:$9 sm:$0xff]
      %v5126 = vld [vmem:[%s5061] ss:$9 sm:$0xff]
      %5127 = vst [vmem:[#allocation1] sm:$0xff] %v879
      %v5128 = vld [vmem:[%s5049] ss:$9 sm:$0xff]
      %v5129 = vld [vmem:[%s5051] ss:$9 sm:$0xff]
      %v5130 = vld [vmem:[%s5053] ss:$9 sm:$0xff]
      %v5131 = vld [vmem:[%s5055] ss:$9 sm:$0xff]
      %v5132 = vld [vmem:[%s5057] ss:$9 sm:$0xff]
      %v5133 = vld [vmem:[%s5059] ss:$9 sm:$0xff]
      %v5134 = vld [vmem:[%s5061] ss:$9 sm:$0xff]
      %5135 = vst [vmem:[#allocation1] sm:$0xff] %v880
      %v5136 = vld [vmem:[%s5049] ss:$9 sm:$0xff]
      %v5137 = vld [vmem:[%s5051] ss:$9 sm:$0xff]
      %v5138 = vld [vmem:[%s5053] ss:$9 sm:$0xff]
      %v5139 = vld [vmem:[%s5055] ss:$9 sm:$0xff]
      %v5140 = vld [vmem:[%s5057] ss:$9 sm:$0xff]
      %v5141 = vld [vmem:[%s5059] ss:$9 sm:$0xff]
      %v5142 = vld [vmem:[%s5061] ss:$9 sm:$0xff]
      %5143 = vst [vmem:[#allocation1] sm:$0xff] %v881
      %v5144 = vld [vmem:[%s5049] ss:$9 sm:$0xff]
      %v5145 = vld [vmem:[%s5051] ss:$9 sm:$0xff]
      %v5146 = vld [vmem:[%s5053] ss:$9 sm:$0xff]
      %v5147 = vld [vmem:[%s5055] ss:$9 sm:$0xff]
      %v5148 = vld [vmem:[%s5057] ss:$9 sm:$0xff]
      %v5149 = vld [vmem:[%s5059] ss:$9 sm:$0xff]
      %v5150 = vld [vmem:[%s5061] ss:$9 sm:$0xff]
      %5151 = vst [vmem:[#allocation1] sm:$0xff] %v882
      %v5152 = vld [vmem:[%s5049] ss:$9 sm:$0xff]
      %v5153 = vld [vmem:[%s5051] ss:$9 sm:$0xff]
      %v5154 = vld [vmem:[%s5053] ss:$9 sm:$0xff]
      %v5155 = vld [vmem:[%s5055] ss:$9 sm:$0xff]
      %v5156 = vld [vmem:[%s5057] ss:$9 sm:$0xff]
      %v5157 = vld [vmem:[%s5059] ss:$9 sm:$0xff]
      %v5158 = vld [vmem:[%s5061] ss:$9 sm:$0xff]
      %5159 = vst [vmem:[#allocation1] sm:$0xff] %v868
      %v5160 = vld [vmem:[%s5049] ss:$9 sm:$0xff]
      %v5161 = vld [vmem:[%s5051] ss:$9 sm:$0xff]
      %v5162 = vld [vmem:[%s5053] ss:$9 sm:$0xff]
      %v5163 = vld [vmem:[%s5055] ss:$9 sm:$0xff]
      %v5164 = vld [vmem:[%s5057] ss:$9 sm:$0xff]
      %v5165 = vld [vmem:[%s5059] ss:$9 sm:$0xff]
      %v5166 = vld [vmem:[%s5061] ss:$9 sm:$0xff]
      %v5167 = vld [vmem:[%s3 + $0x200] sm:$0xf]
      %v5168 = vld [vmem:[%s3 + $0x204] sm:$0xf]
      %v5169 = vld [vmem:[%s3 + $0x208] sm:$0xf]
      %v5170 = vld [vmem:[%s3 + $0x20c] sm:$0xf]
      %v5171 = vld [vmem:[%s3 + $0x210] sm:$0xf]
      %v5172 = vld [vmem:[%s3 + $0x214] sm:$0xf]
      %v5173 = vld [vmem:[%s3 + $0x218] sm:$0xf]
      %v5174 = vld [vmem:[%s3 + $0x21c] sm:$0xf]
      %v5175 = vld [vmem:[%s3 + $0x220] sm:$0xf]
      %v5176 = vld [vmem:[%s3 + $0x224] sm:$0xf]
      %v5177 = vld [vmem:[%s3 + $0x228] sm:$0xf]
      %v5178 = vld [vmem:[%s3 + $0x22c] sm:$0xf]
      %v5179 = vld [vmem:[%s3 + $0x230] sm:$0xf]
      %v5180 = vld [vmem:[%s3 + $0x234] sm:$0xf]
      %v5181 = vld [vmem:[%s3 + $0x238] sm:$0xf]
      %v5182 = vld [vmem:[%s3 + $0x23c] sm:$0xf]
      %5183 = vst [vmem:[#allocation1] ss:$9 sm:$0xff] %v5050
      %s5184 = scalar_lea.vmem [#allocation1], 1
      %5185 = vst [vmem:[%s5184] ss:$9 sm:$0xff] %v5052
      %s5186 = scalar_lea.vmem [#allocation1], 2
      %5187 = vst [vmem:[%s5186] ss:$9 sm:$0xff] %v5054
      %s5188 = scalar_lea.vmem [#allocation1], 3
      %5189 = vst [vmem:[%s5188] ss:$9 sm:$0xff] %v5056
      %s5190 = scalar_lea.vmem [#allocation1], 4
      %5191 = vst [vmem:[%s5190] ss:$9 sm:$0xff] %v5058
      %s5192 = scalar_lea.vmem [#allocation1], 5
      %5193 = vst [vmem:[%s5192] ss:$9 sm:$0xff] %v5060
      %s5194 = scalar_lea.vmem [#allocation1], 6
      %5195 = vst [vmem:[%s5194] ss:$9 sm:$0xff] %v5062
      %s5196 = scalar_lea.vmem [#allocation1], 7
      %5197 = vst [vmem:[%s5196] ss:$9 sm:$0xff] %v5064
      %v5198 = vld [vmem:[#allocation1] sm:$0xff]
      %5199 = vst [vmem:[#allocation1] ss:$9 sm:$0xff] %v5065
      %5200 = vst [vmem:[%s5184] ss:$9 sm:$0xff] %v5066
      %5201 = vst [vmem:[%s5186] ss:$9 sm:$0xff] %v5067
      %5202 = vst [vmem:[%s5188] ss:$9 sm:$0xff] %v5068
      %5203 = vst [vmem:[%s5190] ss:$9 sm:$0xff] %v5069
      %5204 = vst [vmem:[%s5192] ss:$9 sm:$0xff] %v5070
      %5205 = vst [vmem:[%s5194] ss:$9 sm:$0xff] %v5072
      %5206 = vst [vmem:[%s5196] ss:$9 sm:$0xff] %v5073
      %v5207 = vld [vmem:[#allocation1] sm:$0xff]
      %5208 = vst [vmem:[#allocation1] ss:$9 sm:$0xff] %v5074
      %5209 = vst [vmem:[%s5184] ss:$9 sm:$0xff] %v5075
      %5210 = vst [vmem:[%s5186] ss:$9 sm:$0xff] %v5076
      %5211 = vst [vmem:[%s5188] ss:$9 sm:$0xff] %v5077
      %5212 = vst [vmem:[%s5190] ss:$9 sm:$0xff] %v5078
      %5213 = vst [vmem:[%s5192] ss:$9 sm:$0xff] %v5080
      %5214 = vst [vmem:[%s5194] ss:$9 sm:$0xff] %v5081
      %5215 = vst [vmem:[%s5196] ss:$9 sm:$0xff] %v5082
      %v5216 = vld [vmem:[#allocation1] sm:$0xff]
      %5217 = vst [vmem:[#allocation1] ss:$9 sm:$0xff] %v5083
      %5218 = vst [vmem:[%s5184] ss:$9 sm:$0xff] %v5084
      %5219 = vst [vmem:[%s5186] ss:$9 sm:$0xff] %v5085
      %5220 = vst [vmem:[%s5188] ss:$9 sm:$0xff] %v5086
      %5221 = vst [vmem:[%s5190] ss:$9 sm:$0xff] %v5088
      %5222 = vst [vmem:[%s5192] ss:$9 sm:$0xff] %v5089
      %5223 = vst [vmem:[%s5194] ss:$9 sm:$0xff] %v5090
      %5224 = vst [vmem:[%s5196] ss:$9 sm:$0xff] %v5091
      %v5225 = vld [vmem:[#allocation1] sm:$0xff]
      %5226 = vst [vmem:[#allocation1] ss:$9 sm:$0xff] %v5092
      %5227 = vst [vmem:[%s5184] ss:$9 sm:$0xff] %v5093
      %5228 = vst [vmem:[%s5186] ss:$9 sm:$0xff] %v5094
      %5229 = vst [vmem:[%s5188] ss:$9 sm:$0xff] %v5096
      %5230 = vst [vmem:[%s5190] ss:$9 sm:$0xff] %v5097
      %5231 = vst [vmem:[%s5192] ss:$9 sm:$0xff] %v5098
      %5232 = vst [vmem:[%s5194] ss:$9 sm:$0xff] %v5099
      %5233 = vst [vmem:[%s5196] ss:$9 sm:$0xff] %v5100
      %v5234 = vld [vmem:[#allocation1] sm:$0xff]
      %5235 = vst [vmem:[#allocation1] ss:$9 sm:$0xff] %v5101
      %5236 = vst [vmem:[%s5184] ss:$9 sm:$0xff] %v5102
      %5237 = vst [vmem:[%s5186] ss:$9 sm:$0xff] %v5104
      %5238 = vst [vmem:[%s5188] ss:$9 sm:$0xff] %v5105
      %5239 = vst [vmem:[%s5190] ss:$9 sm:$0xff] %v5106
      %5240 = vst [vmem:[%s5192] ss:$9 sm:$0xff] %v5107
      %5241 = vst [vmem:[%s5194] ss:$9 sm:$0xff] %v5108
      %5242 = vst [vmem:[%s5196] ss:$9 sm:$0xff] %v5109
      %v5243 = vld [vmem:[#allocation1] sm:$0xff]
      %5244 = vst [vmem:[#allocation1] ss:$9 sm:$0xff] %v5110
      %5245 = vst [vmem:[%s5184] ss:$9 sm:$0xff] %v5112
      %5246 = vst [vmem:[%s5186] ss:$9 sm:$0xff] %v5113
      %5247 = vst [vmem:[%s5188] ss:$9 sm:$0xff] %v5114
      %5248 = vst [vmem:[%s5190] ss:$9 sm:$0xff] %v5115
      %5249 = vst [vmem:[%s5192] ss:$9 sm:$0xff] %v5116
      %5250 = vst [vmem:[%s5194] ss:$9 sm:$0xff] %v5117
      %5251 = vst [vmem:[%s5196] ss:$9 sm:$0xff] %v5118
      %v5252 = vld [vmem:[#allocation1] sm:$0xff]
      %5253 = vst [vmem:[#allocation1] ss:$9 sm:$0xff] %v5120
      %5254 = vst [vmem:[%s5184] ss:$9 sm:$0xff] %v5121
      %5255 = vst [vmem:[%s5186] ss:$9 sm:$0xff] %v5122
      %5256 = vst [vmem:[%s5188] ss:$9 sm:$0xff] %v5123
      %5257 = vst [vmem:[%s5190] ss:$9 sm:$0xff] %v5124
      %5258 = vst [vmem:[%s5192] ss:$9 sm:$0xff] %v5125
      %5259 = vst [vmem:[%s5194] ss:$9 sm:$0xff] %v5126
      %5260 = vst [vmem:[%s5196] ss:$9 sm:$0xff] %v5128
      %v5261 = vld [vmem:[#allocation1] sm:$0xff]
      %5262 = vst [vmem:[#allocation1] ss:$9 sm:$0xff] %v5129
      %5263 = vst [vmem:[%s5184] ss:$9 sm:$0xff] %v5130
      %5264 = vst [vmem:[%s5186] ss:$9 sm:$0xff] %v5131
      %5265 = vst [vmem:[%s5188] ss:$9 sm:$0xff] %v5132
      %5266 = vst [vmem:[%s5190] ss:$9 sm:$0xff] %v5133
      %5267 = vst [vmem:[%s5192] ss:$9 sm:$0xff] %v5134
      %5268 = vst [vmem:[%s5194] ss:$9 sm:$0xff] %v5136
      %5269 = vst [vmem:[%s5196] ss:$9 sm:$0xff] %v5137
      %v5270 = vld [vmem:[#allocation1] sm:$0xff]
      %5271 = vst [vmem:[#allocation1] ss:$9 sm:$0xff] %v5138
      %5272 = vst [vmem:[%s5184] ss:$9 sm:$0xff] %v5139
      %5273 = vst [vmem:[%s5186] ss:$9 sm:$0xff] %v5140
      %5274 = vst [vmem:[%s5188] ss:$9 sm:$0xff] %v5141
      %5275 = vst [vmem:[%s5190] ss:$9 sm:$0xff] %v5142
      %5276 = vst [vmem:[%s5192] ss:$9 sm:$0xff] %v5144
      %5277 = vst [vmem:[%s5194] ss:$9 sm:$0xff] %v5145
      %5278 = vst [vmem:[%s5196] ss:$9 sm:$0xff] %v5146
      %v5279 = vld [vmem:[#allocation1] sm:$0xff]
      %5280 = vst [vmem:[#allocation1] ss:$9 sm:$0xff] %v5147
      %5281 = vst [vmem:[%s5184] ss:$9 sm:$0xff] %v5148
      %5282 = vst [vmem:[%s5186] ss:$9 sm:$0xff] %v5149
      %5283 = vst [vmem:[%s5188] ss:$9 sm:$0xff] %v5150
      %5284 = vst [vmem:[%s5190] ss:$9 sm:$0xff] %v5152
      %5285 = vst [vmem:[%s5192] ss:$9 sm:$0xff] %v5153
      %5286 = vst [vmem:[%s5194] ss:$9 sm:$0xff] %v5154
      %5287 = vst [vmem:[%s5196] ss:$9 sm:$0xff] %v5155
      %v5288 = vld [vmem:[#allocation1] sm:$0xff]
      %5289 = vst [vmem:[#allocation1] ss:$9 sm:$0xff] %v5156
      %5290 = vst [vmem:[%s5184] ss:$9 sm:$0xff] %v5157
      %5291 = vst [vmem:[%s5186] ss:$9 sm:$0xff] %v5158
      %5292 = vst [vmem:[%s5188] ss:$9 sm:$0xff] %v5160
      %5293 = vst [vmem:[%s5190] ss:$9 sm:$0xff] %v5161
      %5294 = vst [vmem:[%s5192] ss:$9 sm:$0xff] %v5162
      %5295 = vst [vmem:[%s5194] ss:$9 sm:$0xff] %v5163
      %5296 = vst [vmem:[%s5196] ss:$9 sm:$0xff] %v5164
      %v5297 = vld [vmem:[#allocation1] sm:$0xff]
      %5298 = vst [vmem:[#allocation1] ss:$9 sm:$0xff] %v5165
      %5299 = vst [vmem:[%s5184] ss:$9 sm:$0xff] %v5166
      %v5300 = vld [vmem:[#allocation1] sm:$0xff]
      %v5330 = vunpack.c.l.b16 %v5167
      %v5331 = vunpack.c.l.b16 %v5168
      %v5332 = vunpack.c.l.b16 %v5169
      %v5333 = vunpack.c.l.b16 %v5170
      %v5334 = vunpack.c.l.b16 %v5171
      %v5335 = vunpack.c.l.b16 %v5172
      %v5336 = vunpack.c.l.b16 %v5173
      %v5337 = vunpack.c.l.b16 %v5174
      %v5338 = vunpack.c.l.b16 %v5175
      %v5339 = vunpack.c.l.b16 %v5176
      %v5340 = vunpack.c.l.b16 %v5177
      %v5341 = vunpack.c.l.b16 %v5178
      %v5342 = vunpack.c.l.b16 %v5179
      %v5343 = vunpack.c.l.b16 %v5180
      %v5344 = vunpack.c.l.b16 %v5181
      %v5345 = vunpack.c.l.b16 %v5182
      %v5346 = vpack.c.b16 %v5331, %v5330
      %v5347 = vpack.c.b16 %v5333, %v5332
      %v5348 = vpack.c.b16 %v5335, %v5334
      %v5349 = vpack.c.b16 %v5337, %v5336
      %v5350 = vpack.c.b16 %v5339, %v5338
      %v5351 = vpack.c.b16 %v5341, %v5340
      %v5352 = vpack.c.b16 %v5343, %v5342
      %v5353 = vpack.c.b16 %v5345, %v5344
      %5362 = vmatpush.bf16.msra.mxu0 %v5353
      %5363 = vmatpush.bf16.msra.mxu0 %v5352
      %5364 = vmatpush.bf16.msra.mxu0 %v5351
      %5365 = vmatpush.bf16.msra.mxu0 %v5350
      %5366 = vmatpush.bf16.msra.mxu0 %v5349
      %5367 = vmatpush.bf16.msra.mxu0 %v5348
      %5368 = vmatpush.bf16.msra.mxu0 %v5347
      %5369 = vmatpush.bf16.msra.mxu0 %v5346
      %5370 = vmatmul.bf16.gmra.mxu0 %v5198
      %v5371 = vpop.f32.mrf.mxu0
      %v5372 = vadd.f32 0.0, %v5371
      %v5373 = vpop.f32.mrf.mxu0
      %v5374 = vadd.f32 0.0, %v5373
      %5375 = vmatmul.bf16.gmra.mxu0 %v5207
      %v5376 = vpop.f32.mrf.mxu0
      %v5377 = vadd.f32 0.0, %v5376
      %v5378 = vpop.f32.mrf.mxu0
      %v5379 = vadd.f32 0.0, %v5378
      %5380 = vmatmul.bf16.gmra.mxu0 %v5216
      %v5381 = vpop.f32.mrf.mxu0
      %v5382 = vadd.f32 0.0, %v5381
      %v5383 = vpop.f32.mrf.mxu0
      %v5384 = vadd.f32 0.0, %v5383
      %5385 = vmatmul.bf16.gmra.mxu0 %v5225
      %v5386 = vpop.f32.mrf.mxu0
      %v5387 = vadd.f32 0.0, %v5386
      %v5388 = vpop.f32.mrf.mxu0
      %v5389 = vadd.f32 0.0, %v5388
      %5390 = vmatmul.bf16.gmra.mxu0 %v5234
      %v5391 = vpop.f32.mrf.mxu0
      %v5392 = vadd.f32 0.0, %v5391
      %v5393 = vpop.f32.mrf.mxu0
      %v5394 = vadd.f32 0.0, %v5393
      %5395 = vmatmul.bf16.gmra.mxu0 %v5243
      %v5396 = vpop.f32.mrf.mxu0
      %v5397 = vadd.f32 0.0, %v5396
      %v5398 = vpop.f32.mrf.mxu0
      %v5399 = vadd.f32 0.0, %v5398
      %5400 = vmatmul.bf16.gmra.mxu0 %v5252
      %v5401 = vpop.f32.mrf.mxu0
      %v5402 = vadd.f32 0.0, %v5401
      %v5403 = vpop.f32.mrf.mxu0
      %v5404 = vadd.f32 0.0, %v5403
      %5405 = vmatmul.bf16.gmra.mxu0 %v5261
      %v5406 = vpop.f32.mrf.mxu0
      %v5407 = vadd.f32 0.0, %v5406
      %v5408 = vpop.f32.mrf.mxu0
      %v5409 = vadd.f32 0.0, %v5408
      %5410 = vmatmul.bf16.gmra.mxu0 %v5270
      %v5411 = vpop.f32.mrf.mxu0
      %v5412 = vadd.f32 0.0, %v5411
      %v5413 = vpop.f32.mrf.mxu0
      %v5414 = vadd.f32 0.0, %v5413
      %5415 = vmatmul.bf16.gmra.mxu0 %v5279
      %v5416 = vpop.f32.mrf.mxu0
      %v5417 = vadd.f32 0.0, %v5416
      %v5418 = vpop.f32.mrf.mxu0
      %v5419 = vadd.f32 0.0, %v5418
      %5420 = vmatmul.bf16.gmra.mxu0 %v5288
      %v5421 = vpop.f32.mrf.mxu0
      %v5422 = vadd.f32 0.0, %v5421
      %v5423 = vpop.f32.mrf.mxu0
      %v5424 = vadd.f32 0.0, %v5423
      %5425 = vmatmul.bf16.gmra.mxu0 %v5297
      %v5426 = vpop.f32.mrf.mxu0
      %v5427 = vadd.f32 0.0, %v5426
      %v5428 = vpop.f32.mrf.mxu0
      %v5429 = vadd.f32 0.0, %v5428
      %5430 = vmatmul.bf16.gmra.mxu0 %v5300
      %v5431 = vpop.f32.mrf.mxu0
      %v5432 = vadd.f32 0.0, %v5431
      %v5433 = vpop.f32.mrf.mxu0
      %5434 = vdwg.mxu0
      %v5435 = vadd.f32 %v4995, %v5372
      %v5436 = vadd.f32 %v4996, %v5374
      %v5437 = vadd.f32 %v4997, %v5377
      %v5438 = vadd.f32 %v4998, %v5379
      %v5439 = vadd.f32 %v4999, %v5382
      %v5440 = vadd.f32 %v5000, %v5384
      %v5441 = vadd.f32 %v5001, %v5387
      %v5442 = vadd.f32 %v5002, %v5389
      %v5443 = vadd.f32 %v5003, %v5392
      %v5444 = vadd.f32 %v5004, %v5394
      %v5445 = vadd.f32 %v5005, %v5397
      %v5446 = vadd.f32 %v5006, %v5399
      %v5447 = vadd.f32 %v5007, %v5402
      %v5448 = vadd.f32 %v5008, %v5404
      %v5449 = vadd.f32 %v5009, %v5407
      %v5450 = vadd.f32 %v5010, %v5409
      %v5451 = vadd.f32 %v5011, %v5412
      %v5452 = vadd.f32 %v5012, %v5414
      %v5453 = vadd.f32 %v5013, %v5417
      %v5454 = vadd.f32 %v5014, %v5419
      %v5455 = vadd.f32 %v5015, %v5422
      %v5456 = vadd.f32 %v5016, %v5424
      %v5457 = vadd.f32 %v5017, %v5427
      %v5458 = vadd.f32 %v5018, %v5429
      %v5459 = vadd.f32 %v5019, %v5432
      %v5460 = vadd.f32 %v5020, %v3150
      %v5461 = vadd.f32 %v5021, %v3149
      %v5462 = vadd.f32 %v5022, %v3153
      %v5463 = vadd.f32 %v5023, %v3152
      %v5464 = vadd.f32 %v5024, %v3156
      %v5465 = vadd.f32 %v5025, %v3155
      %v5466 = vadd.f32 %v5026, %v3159
      %v5467 = vadd.f32 %v5027, %v3158
      %v5468 = vadd.f32 %v5028, %v3162
      %v5469 = vadd.f32 %v5029, %v3161
      %v5470 = vadd.f32 %v5030, %v3165
      %v5471 = vadd.f32 %v5031, %v3164
      %v5472 = vadd.f32 %v5032, %v3168
      %v5473 = vadd.f32 %v5033, %v3167
      %v5474 = vadd.f32 %v5034, %v3171
      %v5475 = vadd.f32 %v5035, %v3170
      %v5476 = vadd.f32 %v5036, %v3174
      %v5477 = vadd.f32 %v5037, %v3173
      %v5478 = vadd.f32 %v5038, %v3177
      %v5479 = vadd.f32 %v5039, %v3176
      %v5480 = vadd.f32 %v5040, %v3180
      %v5481 = vadd.f32 %v5041, %v3179
      %v5482 = vadd.f32 %v5042, %v3183
      %v5483 = vadd.f32 %v5043, %v3182
      %v5484 = vadd.f32 %v5044, %v4375
      %v5485 = vadd.f32 %v5045, %v4374
      %v5486 = vadd.f32 %v5046, %v3144
      %v5487 = vadd.f32 %v5047, %v3143
      %v5488 = vmul.f32 %v5460, 0.11111111
      %v5489 = vmul.f32 %v5461, 0.11111111
      %v5490 = vmul.f32 %v5462, 0.11111111
      %v5491 = vmul.f32 %v5463, 0.11111111
      %v5492 = vmul.f32 %v5464, 0.11111111
      %v5493 = vmul.f32 %v5465, 0.11111111
      %v5494 = vmul.f32 %v5466, 0.11111111
      %v5495 = vmul.f32 %v5467, 0.11111111
      %v5496 = vmul.f32 %v5468, 0.11111111
      %v5497 = vmul.f32 %v5469, 0.11111111
      %v5498 = vmul.f32 %v5470, 0.11111111
      %v5499 = vmul.f32 %v5471, 0.11111111
      %v5500 = vmul.f32 %v5472, 0.11111111
      %v5501 = vmul.f32 %v5473, 0.11111111
      %v5502 = vmul.f32 %v5474, 0.11111111
      %v5503 = vmul.f32 %v5475, 0.11111111
      %v5504 = vmul.f32 %v5476, 0.11111111
      %v5505 = vmul.f32 %v5477, 0.11111111
      %v5506 = vmul.f32 %v5478, 0.11111111
      %v5507 = vmul.f32 %v5479, 0.11111111
      %v5508 = vmul.f32 %v5480, 0.11111111
      %v5509 = vmul.f32 %v5481, 0.11111111
      %v5510 = vmul.f32 %v5482, 0.11111111
      %v5511 = vmul.f32 %v5483, 0.11111111
      %v5512 = vmul.f32 %v5484, 0.11111111
      %v5513 = vmul.f32 %v5485, 0.11111111
      %v5514 = vmul.f32 %v5486, 0.11111111
      %v5515 = vmul.f32 %v5487, 0.11111111
      %v5544 = vrot.slane %v5488, 2
      %v5545 = vrot.slane %v5488, 4
      %v5546 = vrot.slane %v5488, 6
      %v5547 = vrot.slane %v5489, 2
      %v5548 = vrot.slane %v5489, 4
      %v5549 = vrot.slane %v5490, 2
      %v5550 = vrot.slane %v5490, 4
      %v5551 = vrot.slane %v5490, 6
      %v5552 = vrot.slane %v5491, 2
      %v5553 = vrot.slane %v5491, 4
      %v5554 = vrot.slane %v5492, 2
      %v5555 = vrot.slane %v5492, 4
      %v5556 = vrot.slane %v5492, 6
      %v5557 = vrot.slane %v5493, 2
      %v5558 = vrot.slane %v5493, 4
      %v5559 = vrot.slane %v5494, 2
      %v5560 = vrot.slane %v5494, 4
      %v5561 = vrot.slane %v5494, 6
      %v5562 = vrot.slane %v5495, 2
      %v5563 = vrot.slane %v5495, 4
      %v5564 = vrot.slane %v5496, 2
      %v5565 = vrot.slane %v5496, 4
      %v5566 = vrot.slane %v5496, 6
      %v5567 = vrot.slane %v5497, 2
      %v5568 = vrot.slane %v5497, 4
      %v5569 = vrot.slane %v5498, 2
      %v5570 = vrot.slane %v5498, 4
      %v5571 = vrot.slane %v5498, 6
      %v5572 = vrot.slane %v5499, 2
      %v5573 = vrot.slane %v5499, 4
      %v5574 = vrot.slane %v5500, 2
      %v5575 = vrot.slane %v5500, 4
      %v5576 = vrot.slane %v5500, 6
      %v5577 = vrot.slane %v5501, 2
      %v5578 = vrot.slane %v5501, 4
      %v5579 = vrot.slane %v5502, 2
      %v5580 = vrot.slane %v5502, 4
      %v5581 = vrot.slane %v5502, 6
      %v5582 = vrot.slane %v5503, 2
      %v5583 = vrot.slane %v5503, 4
      %v5584 = vrot.slane %v5504, 2
      %v5585 = vrot.slane %v5504, 4
      %v5586 = vrot.slane %v5504, 6
      %v5587 = vrot.slane %v5505, 2
      %v5588 = vrot.slane %v5505, 4
      %v5589 = vrot.slane %v5506, 2
      %v5590 = vrot.slane %v5506, 4
      %v5591 = vrot.slane %v5506, 6
      %v5592 = vrot.slane %v5507, 2
      %v5593 = vrot.slane %v5507, 4
      %v5594 = vrot.slane %v5508, 2
      %v5595 = vrot.slane %v5508, 4
      %v5596 = vrot.slane %v5508, 6
      %v5597 = vrot.slane %v5509, 2
      %v5598 = vrot.slane %v5509, 4
      %v5599 = vrot.slane %v5510, 2
      %v5600 = vrot.slane %v5510, 4
      %v5601 = vrot.slane %v5510, 6
      %v5602 = vrot.slane %v5511, 2
      %v5603 = vrot.slane %v5511, 4
      %v5604 = vrot.slane %v5512, 2
      %v5605 = vrot.slane %v5512, 4
      %v5606 = vrot.slane %v5512, 6
      %v5607 = vrot.slane %v5513, 2
      %v5608 = vrot.slane %v5513, 4
      %v5609 = vrot.slane %v5514, 2
      %v5610 = vrot.slane %v5514, 4
      %v5611 = vrot.slane %v5514, 6
      %v5612 = vrot.slane %v5515, 2
      %v5613 = vrot.slane %v5515, 4
      %5614 = vset.pattern.permute.xlu0 0
      %5615 = vperm.xlu0 %5614, %v5488
      %v5616 = vpop.permute.xlu0 %5615
      %v5619 = vunpack.c.l.s4 269488144
      %v5620 = vunpack.c.0.s8 %v5619
      %v5621 = vperm.slane %v5616, %v5620
      %5622 = vset.pattern.permute.xlu0 0
      %5623 = vperm.xlu0 %5622, %v5544
      %v5624 = vpop.permute.xlu0 %5623
      %v5627 = vunpack.c.l.s4 269488144
      %v5628 = vunpack.c.0.s8 %v5627
      %v5629 = vperm.slane %v5624, %v5628
      %5630 = vset.pattern.permute.xlu0 0
      %5631 = vperm.xlu0 %5630, %v5545
      %v5632 = vpop.permute.xlu0 %5631
      %v5635 = vunpack.c.l.s4 269488144
      %v5636 = vunpack.c.0.s8 %v5635
      %v5637 = vperm.slane %v5632, %v5636
      %5638 = vset.pattern.permute.xlu0 0
      %5639 = vperm.xlu0 %5638, %v5546
      %v5640 = vpop.permute.xlu0 %5639
      %v5643 = vunpack.c.l.s4 269488144
      %v5644 = vunpack.c.0.s8 %v5643
      %v5645 = vperm.slane %v5640, %v5644
      %5646 = vset.pattern.permute.xlu0 0
      %5647 = vperm.xlu0 %5646, %v5489
      %v5648 = vpop.permute.xlu0 %5647
      %v5651 = vunpack.c.l.s4 269488144
      %v5652 = vunpack.c.0.s8 %v5651
      %v5653 = vperm.slane %v5648, %v5652
      %5654 = vset.pattern.permute.xlu0 0
      %5655 = vperm.xlu0 %5654, %v5547
      %v5656 = vpop.permute.xlu0 %5655
      %v5659 = vunpack.c.l.s4 269488144
      %v5660 = vunpack.c.0.s8 %v5659
      %v5661 = vperm.slane %v5656, %v5660
      %5662 = vset.pattern.permute.xlu0 0
      %5663 = vperm.xlu0 %5662, %v5548
      %v5664 = vpop.permute.xlu0 %5663
      %v5667 = vunpack.c.l.s4 269488144
      %v5668 = vunpack.c.0.s8 %v5667
      %v5669 = vperm.slane %v5664, %v5668
      %5670 = vset.pattern.permute.xlu0 0
      %5671 = vperm.xlu0 %5670, %v5490
      %v5672 = vpop.permute.xlu0 %5671
      %v5675 = vunpack.c.l.s4 269488144
      %v5676 = vunpack.c.0.s8 %v5675
      %v5677 = vperm.slane %v5672, %v5676
      %5678 = vset.pattern.permute.xlu0 0
      %5679 = vperm.xlu0 %5678, %v5549
      %v5680 = vpop.permute.xlu0 %5679
      %v5683 = vunpack.c.l.s4 269488144
      %v5684 = vunpack.c.0.s8 %v5683
      %v5685 = vperm.slane %v5680, %v5684
      %5686 = vset.pattern.permute.xlu0 0
      %5687 = vperm.xlu0 %5686, %v5550
      %v5688 = vpop.permute.xlu0 %5687
      %v5691 = vunpack.c.l.s4 269488144
      %v5692 = vunpack.c.0.s8 %v5691
      %v5693 = vperm.slane %v5688, %v5692
      %5694 = vset.pattern.permute.xlu0 0
      %5695 = vperm.xlu0 %5694, %v5551
      %v5696 = vpop.permute.xlu0 %5695
      %v5699 = vunpack.c.l.s4 269488144
      %v5700 = vunpack.c.0.s8 %v5699
      %v5701 = vperm.slane %v5696, %v5700
      %5702 = vset.pattern.permute.xlu0 0
      %5703 = vperm.xlu0 %5702, %v5491
      %v5704 = vpop.permute.xlu0 %5703
      %v5707 = vunpack.c.l.s4 269488144
      %v5708 = vunpack.c.0.s8 %v5707
      %v5709 = vperm.slane %v5704, %v5708
      %5710 = vset.pattern.permute.xlu0 0
      %5711 = vperm.xlu0 %5710, %v5552
      %v5712 = vpop.permute.xlu0 %5711
      %v5715 = vunpack.c.l.s4 269488144
      %v5716 = vunpack.c.0.s8 %v5715
      %v5717 = vperm.slane %v5712, %v5716
      %5718 = vset.pattern.permute.xlu0 0
      %5719 = vperm.xlu0 %5718, %v5553
      %v5720 = vpop.permute.xlu0 %5719
      %v5723 = vunpack.c.l.s4 269488144
      %v5724 = vunpack.c.0.s8 %v5723
      %v5725 = vperm.slane %v5720, %v5724
      %5726 = vset.pattern.permute.xlu0 0
      %5727 = vperm.xlu0 %5726, %v5492
      %v5728 = vpop.permute.xlu0 %5727
      %v5731 = vunpack.c.l.s4 269488144
      %v5732 = vunpack.c.0.s8 %v5731
      %v5733 = vperm.slane %v5728, %v5732
      %5734 = vset.pattern.permute.xlu0 0
      %5735 = vperm.xlu0 %5734, %v5554
      %v5736 = vpop.permute.xlu0 %5735
      %v5739 = vunpack.c.l.s4 269488144
      %v5740 = vunpack.c.0.s8 %v5739
      %v5741 = vperm.slane %v5736, %v5740
      %5742 = vset.pattern.permute.xlu0 0
      %5743 = vperm.xlu0 %5742, %v5555
      %v5744 = vpop.permute.xlu0 %5743
      %v5747 = vunpack.c.l.s4 269488144
      %v5748 = vunpack.c.0.s8 %v5747
      %v5749 = vperm.slane %v5744, %v5748
      %5750 = vset.pattern.permute.xlu0 0
      %5751 = vperm.xlu0 %5750, %v5556
      %v5752 = vpop.permute.xlu0 %5751
      %v5755 = vunpack.c.l.s4 269488144
      %v5756 = vunpack.c.0.s8 %v5755
      %v5757 = vperm.slane %v5752, %v5756
      %5758 = vset.pattern.permute.xlu0 0
      %5759 = vperm.xlu0 %5758, %v5493
      %v5760 = vpop.permute.xlu0 %5759
      %v5763 = vunpack.c.l.s4 269488144
      %v5764 = vunpack.c.0.s8 %v5763
      %v5765 = vperm.slane %v5760, %v5764
      %5766 = vset.pattern.permute.xlu0 0
      %5767 = vperm.xlu0 %5766, %v5557
      %v5768 = vpop.permute.xlu0 %5767
      %v5771 = vunpack.c.l.s4 269488144
      %v5772 = vunpack.c.0.s8 %v5771
      %v5773 = vperm.slane %v5768, %v5772
      %5774 = vset.pattern.permute.xlu0 0
      %5775 = vperm.xlu0 %5774, %v5558
      %v5776 = vpop.permute.xlu0 %5775
      %v5779 = vunpack.c.l.s4 269488144
      %v5780 = vunpack.c.0.s8 %v5779
      %v5781 = vperm.slane %v5776, %v5780
      %5782 = vset.pattern.permute.xlu0 0
      %5783 = vperm.xlu0 %5782, %v5494
      %v5784 = vpop.permute.xlu0 %5783
      %v5787 = vunpack.c.l.s4 269488144
      %v5788 = vunpack.c.0.s8 %v5787
      %v5789 = vperm.slane %v5784, %v5788
      %5790 = vset.pattern.permute.xlu0 0
      %5791 = vperm.xlu0 %5790, %v5559
      %v5792 = vpop.permute.xlu0 %5791
      %v5795 = vunpack.c.l.s4 269488144
      %v5796 = vunpack.c.0.s8 %v5795
      %v5797 = vperm.slane %v5792, %v5796
      %5798 = vset.pattern.permute.xlu0 0
      %5799 = vperm.xlu0 %5798, %v5560
      %v5800 = vpop.permute.xlu0 %5799
      %v5803 = vunpack.c.l.s4 269488144
      %v5804 = vunpack.c.0.s8 %v5803
      %v5805 = vperm.slane %v5800, %v5804
      %5806 = vset.pattern.permute.xlu0 0
      %5807 = vperm.xlu0 %5806, %v5561
      %v5808 = vpop.permute.xlu0 %5807
      %v5811 = vunpack.c.l.s4 269488144
      %v5812 = vunpack.c.0.s8 %v5811
      %v5813 = vperm.slane %v5808, %v5812
      %5814 = vset.pattern.permute.xlu0 0
      %5815 = vperm.xlu0 %5814, %v5495
      %v5816 = vpop.permute.xlu0 %5815
      %v5819 = vunpack.c.l.s4 269488144
      %v5820 = vunpack.c.0.s8 %v5819
      %v5821 = vperm.slane %v5816, %v5820
      %5822 = vset.pattern.permute.xlu0 0
      %5823 = vperm.xlu0 %5822, %v5562
      %v5824 = vpop.permute.xlu0 %5823
      %v5827 = vunpack.c.l.s4 269488144
      %v5828 = vunpack.c.0.s8 %v5827
      %v5829 = vperm.slane %v5824, %v5828
      %5830 = vset.pattern.permute.xlu0 0
      %5831 = vperm.xlu0 %5830, %v5563
      %v5832 = vpop.permute.xlu0 %5831
      %v5835 = vunpack.c.l.s4 269488144
      %v5836 = vunpack.c.0.s8 %v5835
      %v5837 = vperm.slane %v5832, %v5836
      %5838 = vset.pattern.permute.xlu0 0
      %5839 = vperm.xlu0 %5838, %v5496
      %v5840 = vpop.permute.xlu0 %5839
      %v5843 = vunpack.c.l.s4 269488144
      %v5844 = vunpack.c.0.s8 %v5843
      %v5845 = vperm.slane %v5840, %v5844
      %5846 = vset.pattern.permute.xlu0 0
      %5847 = vperm.xlu0 %5846, %v5564
      %v5848 = vpop.permute.xlu0 %5847
      %v5851 = vunpack.c.l.s4 269488144
      %v5852 = vunpack.c.0.s8 %v5851
      %v5853 = vperm.slane %v5848, %v5852
      %5854 = vset.pattern.permute.xlu0 0
      %5855 = vperm.xlu0 %5854, %v5565
      %v5856 = vpop.permute.xlu0 %5855
      %v5859 = vunpack.c.l.s4 269488144
      %v5860 = vunpack.c.0.s8 %v5859
      %v5861 = vperm.slane %v5856, %v5860
      %5862 = vset.pattern.permute.xlu0 0
      %5863 = vperm.xlu0 %5862, %v5566
      %v5864 = vpop.permute.xlu0 %5863
      %v5867 = vunpack.c.l.s4 269488144
      %v5868 = vunpack.c.0.s8 %v5867
      %v5869 = vperm.slane %v5864, %v5868
      %5870 = vset.pattern.permute.xlu0 0
      %5871 = vperm.xlu0 %5870, %v5497
      %v5872 = vpop.permute.xlu0 %5871
      %v5875 = vunpack.c.l.s4 269488144
      %v5876 = vunpack.c.0.s8 %v5875
      %v5877 = vperm.slane %v5872, %v5876
      %5878 = vset.pattern.permute.xlu0 0
      %5879 = vperm.xlu0 %5878, %v5567
      %v5880 = vpop.permute.xlu0 %5879
      %v5883 = vunpack.c.l.s4 269488144
      %v5884 = vunpack.c.0.s8 %v5883
      %v5885 = vperm.slane %v5880, %v5884
      %5886 = vset.pattern.permute.xlu0 0
      %5887 = vperm.xlu0 %5886, %v5568
      %v5888 = vpop.permute.xlu0 %5887
      %v5891 = vunpack.c.l.s4 269488144
      %v5892 = vunpack.c.0.s8 %v5891
      %v5893 = vperm.slane %v5888, %v5892
      %5894 = vset.pattern.permute.xlu0 0
      %5895 = vperm.xlu0 %5894, %v5498
      %v5896 = vpop.permute.xlu0 %5895
      %v5899 = vunpack.c.l.s4 269488144
      %v5900 = vunpack.c.0.s8 %v5899
      %v5901 = vperm.slane %v5896, %v5900
      %5902 = vset.pattern.permute.xlu0 0
      %5903 = vperm.xlu0 %5902, %v5569
      %v5904 = vpop.permute.xlu0 %5903
      %v5907 = vunpack.c.l.s4 269488144
      %v5908 = vunpack.c.0.s8 %v5907
      %v5909 = vperm.slane %v5904, %v5908
      %5910 = vset.pattern.permute.xlu0 0
      %5911 = vperm.xlu0 %5910, %v5570
      %v5912 = vpop.permute.xlu0 %5911
      %v5915 = vunpack.c.l.s4 269488144
      %v5916 = vunpack.c.0.s8 %v5915
      %v5917 = vperm.slane %v5912, %v5916
      %5918 = vset.pattern.permute.xlu0 0
      %5919 = vperm.xlu0 %5918, %v5571
      %v5920 = vpop.permute.xlu0 %5919
      %v5923 = vunpack.c.l.s4 269488144
      %v5924 = vunpack.c.0.s8 %v5923
      %v5925 = vperm.slane %v5920, %v5924
      %5926 = vset.pattern.permute.xlu0 0
      %5927 = vperm.xlu0 %5926, %v5499
      %v5928 = vpop.permute.xlu0 %5927
      %v5931 = vunpack.c.l.s4 269488144
      %v5932 = vunpack.c.0.s8 %v5931
      %v5933 = vperm.slane %v5928, %v5932
      %5934 = vset.pattern.permute.xlu0 0
      %5935 = vperm.xlu0 %5934, %v5572
      %v5936 = vpop.permute.xlu0 %5935
      %v5939 = vunpack.c.l.s4 269488144
      %v5940 = vunpack.c.0.s8 %v5939
      %v5941 = vperm.slane %v5936, %v5940
      %5942 = vset.pattern.permute.xlu0 0
      %5943 = vperm.xlu0 %5942, %v5573
      %v5944 = vpop.permute.xlu0 %5943
      %v5947 = vunpack.c.l.s4 269488144
      %v5948 = vunpack.c.0.s8 %v5947
      %v5949 = vperm.slane %v5944, %v5948
      %5950 = vset.pattern.permute.xlu0 0
      %5951 = vperm.xlu0 %5950, %v5500
      %v5952 = vpop.permute.xlu0 %5951
      %v5955 = vunpack.c.l.s4 269488144
      %v5956 = vunpack.c.0.s8 %v5955
      %v5957 = vperm.slane %v5952, %v5956
      %5958 = vset.pattern.permute.xlu0 0
      %5959 = vperm.xlu0 %5958, %v5574
      %v5960 = vpop.permute.xlu0 %5959
      %v5963 = vunpack.c.l.s4 269488144
      %v5964 = vunpack.c.0.s8 %v5963
      %v5965 = vperm.slane %v5960, %v5964
      %5966 = vset.pattern.permute.xlu0 0
      %5967 = vperm.xlu0 %5966, %v5575
      %v5968 = vpop.permute.xlu0 %5967
      %v5971 = vunpack.c.l.s4 269488144
      %v5972 = vunpack.c.0.s8 %v5971
      %v5973 = vperm.slane %v5968, %v5972
      %5974 = vset.pattern.permute.xlu0 0
      %5975 = vperm.xlu0 %5974, %v5576
      %v5976 = vpop.permute.xlu0 %5975
      %v5979 = vunpack.c.l.s4 269488144
      %v5980 = vunpack.c.0.s8 %v5979
      %v5981 = vperm.slane %v5976, %v5980
      %5982 = vset.pattern.permute.xlu0 0
      %5983 = vperm.xlu0 %5982, %v5501
      %v5984 = vpop.permute.xlu0 %5983
      %v5987 = vunpack.c.l.s4 269488144
      %v5988 = vunpack.c.0.s8 %v5987
      %v5989 = vperm.slane %v5984, %v5988
      %5990 = vset.pattern.permute.xlu0 0
      %5991 = vperm.xlu0 %5990, %v5577
      %v5992 = vpop.permute.xlu0 %5991
      %v5995 = vunpack.c.l.s4 269488144
      %v5996 = vunpack.c.0.s8 %v5995
      %v5997 = vperm.slane %v5992, %v5996
      %5998 = vset.pattern.permute.xlu0 0
      %5999 = vperm.xlu0 %5998, %v5578
      %v6000 = vpop.permute.xlu0 %5999
      %v6003 = vunpack.c.l.s4 269488144
      %v6004 = vunpack.c.0.s8 %v6003
      %v6005 = vperm.slane %v6000, %v6004
      %6006 = vset.pattern.permute.xlu0 0
      %6007 = vperm.xlu0 %6006, %v5502
      %v6008 = vpop.permute.xlu0 %6007
      %v6011 = vunpack.c.l.s4 269488144
      %v6012 = vunpack.c.0.s8 %v6011
      %v6013 = vperm.slane %v6008, %v6012
      %6014 = vset.pattern.permute.xlu0 0
      %6015 = vperm.xlu0 %6014, %v5579
      %v6016 = vpop.permute.xlu0 %6015
      %v6019 = vunpack.c.l.s4 269488144
      %v6020 = vunpack.c.0.s8 %v6019
      %v6021 = vperm.slane %v6016, %v6020
      %6022 = vset.pattern.permute.xlu0 0
      %6023 = vperm.xlu0 %6022, %v5580
      %v6024 = vpop.permute.xlu0 %6023
      %v6027 = vunpack.c.l.s4 269488144
      %v6028 = vunpack.c.0.s8 %v6027
      %v6029 = vperm.slane %v6024, %v6028
      %6030 = vset.pattern.permute.xlu0 0
      %6031 = vperm.xlu0 %6030, %v5581
      %v6032 = vpop.permute.xlu0 %6031
      %v6035 = vunpack.c.l.s4 269488144
      %v6036 = vunpack.c.0.s8 %v6035
      %v6037 = vperm.slane %v6032, %v6036
      %6038 = vset.pattern.permute.xlu0 0
      %6039 = vperm.xlu0 %6038, %v5503
      %v6040 = vpop.permute.xlu0 %6039
      %v6043 = vunpack.c.l.s4 269488144
      %v6044 = vunpack.c.0.s8 %v6043
      %v6045 = vperm.slane %v6040, %v6044
      %6046 = vset.pattern.permute.xlu0 0
      %6047 = vperm.xlu0 %6046, %v5582
      %v6048 = vpop.permute.xlu0 %6047
      %v6051 = vunpack.c.l.s4 269488144
      %v6052 = vunpack.c.0.s8 %v6051
      %v6053 = vperm.slane %v6048, %v6052
      %6054 = vset.pattern.permute.xlu0 0
      %6055 = vperm.xlu0 %6054, %v5583
      %v6056 = vpop.permute.xlu0 %6055
      %v6059 = vunpack.c.l.s4 269488144
      %v6060 = vunpack.c.0.s8 %v6059
      %v6061 = vperm.slane %v6056, %v6060
      %6062 = vset.pattern.permute.xlu0 0
      %6063 = vperm.xlu0 %6062, %v5504
      %v6064 = vpop.permute.xlu0 %6063
      %v6067 = vunpack.c.l.s4 269488144
      %v6068 = vunpack.c.0.s8 %v6067
      %v6069 = vperm.slane %v6064, %v6068
      %6070 = vset.pattern.permute.xlu0 0
      %6071 = vperm.xlu0 %6070, %v5584
      %v6072 = vpop.permute.xlu0 %6071
      %v6075 = vunpack.c.l.s4 269488144
      %v6076 = vunpack.c.0.s8 %v6075
      %v6077 = vperm.slane %v6072, %v6076
      %6078 = vset.pattern.permute.xlu0 0
      %6079 = vperm.xlu0 %6078, %v5585
      %v6080 = vpop.permute.xlu0 %6079
      %v6083 = vunpack.c.l.s4 269488144
      %v6084 = vunpack.c.0.s8 %v6083
      %v6085 = vperm.slane %v6080, %v6084
      %6086 = vset.pattern.permute.xlu0 0
      %6087 = vperm.xlu0 %6086, %v5586
      %v6088 = vpop.permute.xlu0 %6087
      %v6091 = vunpack.c.l.s4 269488144
      %v6092 = vunpack.c.0.s8 %v6091
      %v6093 = vperm.slane %v6088, %v6092
      %6094 = vset.pattern.permute.xlu0 0
      %6095 = vperm.xlu0 %6094, %v5505
      %v6096 = vpop.permute.xlu0 %6095
      %v6099 = vunpack.c.l.s4 269488144
      %v6100 = vunpack.c.0.s8 %v6099
      %v6101 = vperm.slane %v6096, %v6100
      %6102 = vset.pattern.permute.xlu0 0
      %6103 = vperm.xlu0 %6102, %v5587
      %v6104 = vpop.permute.xlu0 %6103
      %v6107 = vunpack.c.l.s4 269488144
      %v6108 = vunpack.c.0.s8 %v6107
      %v6109 = vperm.slane %v6104, %v6108
      %6110 = vset.pattern.permute.xlu0 0
      %6111 = vperm.xlu0 %6110, %v5588
      %v6112 = vpop.permute.xlu0 %6111
      %v6115 = vunpack.c.l.s4 269488144
      %v6116 = vunpack.c.0.s8 %v6115
      %v6117 = vperm.slane %v6112, %v6116
      %6118 = vset.pattern.permute.xlu0 0
      %6119 = vperm.xlu0 %6118, %v5506
      %v6120 = vpop.permute.xlu0 %6119
      %v6123 = vunpack.c.l.s4 269488144
      %v6124 = vunpack.c.0.s8 %v6123
      %v6125 = vperm.slane %v6120, %v6124
      %6126 = vset.pattern.permute.xlu0 0
      %6127 = vperm.xlu0 %6126, %v5589
      %v6128 = vpop.permute.xlu0 %6127
      %v6131 = vunpack.c.l.s4 269488144
      %v6132 = vunpack.c.0.s8 %v6131
      %v6133 = vperm.slane %v6128, %v6132
      %6134 = vset.pattern.permute.xlu0 0
      %6135 = vperm.xlu0 %6134, %v5590
      %v6136 = vpop.permute.xlu0 %6135
      %v6139 = vunpack.c.l.s4 269488144
      %v6140 = vunpack.c.0.s8 %v6139
      %v6141 = vperm.slane %v6136, %v6140
      %6142 = vset.pattern.permute.xlu0 0
      %6143 = vperm.xlu0 %6142, %v5591
      %v6144 = vpop.permute.xlu0 %6143
      %v6147 = vunpack.c.l.s4 269488144
      %v6148 = vunpack.c.0.s8 %v6147
      %v6149 = vperm.slane %v6144, %v6148
      %6150 = vset.pattern.permute.xlu0 0
      %6151 = vperm.xlu0 %6150, %v5507
      %v6152 = vpop.permute.xlu0 %6151
      %v6155 = vunpack.c.l.s4 269488144
      %v6156 = vunpack.c.0.s8 %v6155
      %v6157 = vperm.slane %v6152, %v6156
      %6158 = vset.pattern.permute.xlu0 0
      %6159 = vperm.xlu0 %6158, %v5592
      %v6160 = vpop.permute.xlu0 %6159
      %v6163 = vunpack.c.l.s4 269488144
      %v6164 = vunpack.c.0.s8 %v6163
      %v6165 = vperm.slane %v6160, %v6164
      %6166 = vset.pattern.permute.xlu0 0
      %6167 = vperm.xlu0 %6166, %v5593
      %v6168 = vpop.permute.xlu0 %6167
      %v6171 = vunpack.c.l.s4 269488144
      %v6172 = vunpack.c.0.s8 %v6171
      %v6173 = vperm.slane %v6168, %v6172
      %6174 = vset.pattern.permute.xlu0 0
      %6175 = vperm.xlu0 %6174, %v5508
      %v6176 = vpop.permute.xlu0 %6175
      %v6179 = vunpack.c.l.s4 269488144
      %v6180 = vunpack.c.0.s8 %v6179
      %v6181 = vperm.slane %v6176, %v6180
      %6182 = vset.pattern.permute.xlu0 0
      %6183 = vperm.xlu0 %6182, %v5594
      %v6184 = vpop.permute.xlu0 %6183
      %v6187 = vunpack.c.l.s4 269488144
      %v6188 = vunpack.c.0.s8 %v6187
      %v6189 = vperm.slane %v6184, %v6188
      %6190 = vset.pattern.permute.xlu0 0
      %6191 = vperm.xlu0 %6190, %v5595
      %v6192 = vpop.permute.xlu0 %6191
      %v6195 = vunpack.c.l.s4 269488144
      %v6196 = vunpack.c.0.s8 %v6195
      %v6197 = vperm.slane %v6192, %v6196
      %6198 = vset.pattern.permute.xlu0 0
      %6199 = vperm.xlu0 %6198, %v5596
      %v6200 = vpop.permute.xlu0 %6199
      %v6203 = vunpack.c.l.s4 269488144
      %v6204 = vunpack.c.0.s8 %v6203
      %v6205 = vperm.slane %v6200, %v6204
      %6206 = vset.pattern.permute.xlu0 0
      %6207 = vperm.xlu0 %6206, %v5509
      %v6208 = vpop.permute.xlu0 %6207
      %v6211 = vunpack.c.l.s4 269488144
      %v6212 = vunpack.c.0.s8 %v6211
      %v6213 = vperm.slane %v6208, %v6212
      %6214 = vset.pattern.permute.xlu0 0
      %6215 = vperm.xlu0 %6214, %v5597
      %v6216 = vpop.permute.xlu0 %6215
      %v6219 = vunpack.c.l.s4 269488144
      %v6220 = vunpack.c.0.s8 %v6219
      %v6221 = vperm.slane %v6216, %v6220
      %6222 = vset.pattern.permute.xlu0 0
      %6223 = vperm.xlu0 %6222, %v5598
      %v6224 = vpop.permute.xlu0 %6223
      %v6227 = vunpack.c.l.s4 269488144
      %v6228 = vunpack.c.0.s8 %v6227
      %v6229 = vperm.slane %v6224, %v6228
      %6230 = vset.pattern.permute.xlu0 0
      %6231 = vperm.xlu0 %6230, %v5510
      %v6232 = vpop.permute.xlu0 %6231
      %v6235 = vunpack.c.l.s4 269488144
      %v6236 = vunpack.c.0.s8 %v6235
      %v6237 = vperm.slane %v6232, %v6236
      %6238 = vset.pattern.permute.xlu0 0
      %6239 = vperm.xlu0 %6238, %v5599
      %v6240 = vpop.permute.xlu0 %6239
      %v6243 = vunpack.c.l.s4 269488144
      %v6244 = vunpack.c.0.s8 %v6243
      %v6245 = vperm.slane %v6240, %v6244
      %6246 = vset.pattern.permute.xlu0 0
      %6247 = vperm.xlu0 %6246, %v5600
      %v6248 = vpop.permute.xlu0 %6247
      %v6251 = vunpack.c.l.s4 269488144
      %v6252 = vunpack.c.0.s8 %v6251
      %v6253 = vperm.slane %v6248, %v6252
      %6254 = vset.pattern.permute.xlu0 0
      %6255 = vperm.xlu0 %6254, %v5601
      %v6256 = vpop.permute.xlu0 %6255
      %v6259 = vunpack.c.l.s4 269488144
      %v6260 = vunpack.c.0.s8 %v6259
      %v6261 = vperm.slane %v6256, %v6260
      %6262 = vset.pattern.permute.xlu0 0
      %6263 = vperm.xlu0 %6262, %v5511
      %v6264 = vpop.permute.xlu0 %6263
      %v6267 = vunpack.c.l.s4 269488144
      %v6268 = vunpack.c.0.s8 %v6267
      %v6269 = vperm.slane %v6264, %v6268
      %6270 = vset.pattern.permute.xlu0 0
      %6271 = vperm.xlu0 %6270, %v5602
      %v6272 = vpop.permute.xlu0 %6271
      %v6275 = vunpack.c.l.s4 269488144
      %v6276 = vunpack.c.0.s8 %v6275
      %v6277 = vperm.slane %v6272, %v6276
      %6278 = vset.pattern.permute.xlu0 0
      %6279 = vperm.xlu0 %6278, %v5603
      %v6280 = vpop.permute.xlu0 %6279
      %v6283 = vunpack.c.l.s4 269488144
      %v6284 = vunpack.c.0.s8 %v6283
      %v6285 = vperm.slane %v6280, %v6284
      %6286 = vset.pattern.permute.xlu0 0
      %6287 = vperm.xlu0 %6286, %v5512
      %v6288 = vpop.permute.xlu0 %6287
      %v6291 = vunpack.c.l.s4 269488144
      %v6292 = vunpack.c.0.s8 %v6291
      %v6293 = vperm.slane %v6288, %v6292
      %6294 = vset.pattern.permute.xlu0 0
      %6295 = vperm.xlu0 %6294, %v5604
      %v6296 = vpop.permute.xlu0 %6295
      %v6299 = vunpack.c.l.s4 269488144
      %v6300 = vunpack.c.0.s8 %v6299
      %v6301 = vperm.slane %v6296, %v6300
      %6302 = vset.pattern.permute.xlu0 0
      %6303 = vperm.xlu0 %6302, %v5605
      %v6304 = vpop.permute.xlu0 %6303
      %v6307 = vunpack.c.l.s4 269488144
      %v6308 = vunpack.c.0.s8 %v6307
      %v6309 = vperm.slane %v6304, %v6308
      %6310 = vset.pattern.permute.xlu0 0
      %6311 = vperm.xlu0 %6310, %v5606
      %v6312 = vpop.permute.xlu0 %6311
      %v6315 = vunpack.c.l.s4 269488144
      %v6316 = vunpack.c.0.s8 %v6315
      %v6317 = vperm.slane %v6312, %v6316
      %6318 = vset.pattern.permute.xlu0 0
      %6319 = vperm.xlu0 %6318, %v5513
      %v6320 = vpop.permute.xlu0 %6319
      %v6323 = vunpack.c.l.s4 269488144
      %v6324 = vunpack.c.0.s8 %v6323
      %v6325 = vperm.slane %v6320, %v6324
      %6326 = vset.pattern.permute.xlu0 0
      %6327 = vperm.xlu0 %6326, %v5607
      %v6328 = vpop.permute.xlu0 %6327
      %v6331 = vunpack.c.l.s4 269488144
      %v6332 = vunpack.c.0.s8 %v6331
      %v6333 = vperm.slane %v6328, %v6332
      %6334 = vset.pattern.permute.xlu0 0
      %6335 = vperm.xlu0 %6334, %v5608
      %v6336 = vpop.permute.xlu0 %6335
      %v6339 = vunpack.c.l.s4 269488144
      %v6340 = vunpack.c.0.s8 %v6339
      %v6341 = vperm.slane %v6336, %v6340
      %6342 = vset.pattern.permute.xlu0 0
      %6343 = vperm.xlu0 %6342, %v5514
      %v6344 = vpop.permute.xlu0 %6343
      %v6347 = vunpack.c.l.s4 269488144
      %v6348 = vunpack.c.0.s8 %v6347
      %v6349 = vperm.slane %v6344, %v6348
      %6350 = vset.pattern.permute.xlu0 0
      %6351 = vperm.xlu0 %6350, %v5609
      %v6352 = vpop.permute.xlu0 %6351
      %v6355 = vunpack.c.l.s4 269488144
      %v6356 = vunpack.c.0.s8 %v6355
      %v6357 = vperm.slane %v6352, %v6356
      %6358 = vset.pattern.permute.xlu0 0
      %6359 = vperm.xlu0 %6358, %v5610
      %v6360 = vpop.permute.xlu0 %6359
      %v6363 = vunpack.c.l.s4 269488144
      %v6364 = vunpack.c.0.s8 %v6363
      %v6365 = vperm.slane %v6360, %v6364
      %6366 = vset.pattern.permute.xlu0 0
      %6367 = vperm.xlu0 %6366, %v5611
      %v6368 = vpop.permute.xlu0 %6367
      %v6371 = vunpack.c.l.s4 269488144
      %v6372 = vunpack.c.0.s8 %v6371
      %v6373 = vperm.slane %v6368, %v6372
      %6374 = vset.pattern.permute.xlu0 0
      %6375 = vperm.xlu0 %6374, %v5515
      %v6376 = vpop.permute.xlu0 %6375
      %v6379 = vunpack.c.l.s4 269488144
      %v6380 = vunpack.c.0.s8 %v6379
      %v6381 = vperm.slane %v6376, %v6380
      %6382 = vset.pattern.permute.xlu0 0
      %6383 = vperm.xlu0 %6382, %v5612
      %v6384 = vpop.permute.xlu0 %6383
      %v6387 = vunpack.c.l.s4 269488144
      %v6388 = vunpack.c.0.s8 %v6387
      %v6389 = vperm.slane %v6384, %v6388
      %6390 = vset.pattern.permute.xlu0 0
      %6391 = vperm.xlu0 %6390, %v5613
      %v6392 = vpop.permute.xlu0 %6391
      %v6395 = vunpack.c.l.s4 269488144
      %v6396 = vunpack.c.0.s8 %v6395
      %v6397 = vperm.slane %v6392, %v6396
      %6496 = vst [vmem:[#allocation1] ss:$4 sm:$0xff] %v5621
      %s6497 = scalar_lea.vmem [#allocation1], 1
      %6498 = vst [vmem:[%s6497] ss:$4 sm:$0xff] %v5629
      %s6499 = scalar_lea.vmem [#allocation1], 2
      %6500 = vst [vmem:[%s6499] ss:$4 sm:$0xff] %v5637
      %s6501 = scalar_lea.vmem [#allocation1], 3
      %6502 = vst [vmem:[%s6501] ss:$4 sm:$0xff] %v5645
      %s6503 = scalar_lea.vmem [#allocation1], 32
      %6504 = vst [vmem:[%s6503] ss:$4 sm:$0xff] %v5653
      %s6505 = scalar_lea.vmem [#allocation1], 33
      %6506 = vst [vmem:[%s6505] ss:$4 sm:$0xff] %v5661
      %s6507 = scalar_lea.vmem [#allocation1], 34
      %6508 = vst [vmem:[%s6507] ss:$4 sm:$0xff] %v5669
      %s6509 = scalar_lea.vmem [#allocation1], 35
      %6510 = vst [vmem:[%s6509] ss:$4 sm:$0xff] %v5677
      %v6511 = vld.sshfl [vmem:[#allocation1] sm:$0xff pattern:$0x73625140]
      %v6512 = vld.sshfl [vmem:[#allocation1 + $0x20] sm:$0xff pattern:$0x73625140]
      %6513 = vst [vmem:[#allocation1] ss:$4 sm:$0xff] %v5685
      %6514 = vst [vmem:[%s6497] ss:$4 sm:$0xff] %v5693
      %6515 = vst [vmem:[%s6499] ss:$4 sm:$0xff] %v5701
      %6516 = vst [vmem:[%s6501] ss:$4 sm:$0xff] %v5709
      %6517 = vst [vmem:[%s6503] ss:$4 sm:$0xff] %v5717
      %6518 = vst [vmem:[%s6505] ss:$4 sm:$0xff] %v5725
      %6519 = vst [vmem:[%s6507] ss:$4 sm:$0xff] %v5733
      %6520 = vst [vmem:[%s6509] ss:$4 sm:$0xff] %v5741
      %v6521 = vld.sshfl [vmem:[#allocation1] sm:$0xff pattern:$0x73625140]
      %v6522 = vld.sshfl [vmem:[#allocation1 + $0x20] sm:$0xff pattern:$0x73625140]
      %6523 = vst [vmem:[#allocation1] ss:$4 sm:$0xff] %v5749
      %6524 = vst [vmem:[%s6497] ss:$4 sm:$0xff] %v5757
      %6525 = vst [vmem:[%s6499] ss:$4 sm:$0xff] %v5765
      %6526 = vst [vmem:[%s6501] ss:$4 sm:$0xff] %v5773
      %6527 = vst [vmem:[%s6503] ss:$4 sm:$0xff] %v5781
      %6528 = vst [vmem:[%s6505] ss:$4 sm:$0xff] %v5789
      %6529 = vst [vmem:[%s6507] ss:$4 sm:$0xff] %v5797
      %6530 = vst [vmem:[%s6509] ss:$4 sm:$0xff] %v5805
      %v6531 = vld.sshfl [vmem:[#allocation1] sm:$0xff pattern:$0x73625140]
      %v6532 = vld.sshfl [vmem:[#allocation1 + $0x20] sm:$0xff pattern:$0x73625140]
      %6533 = vst [vmem:[#allocation1] ss:$4 sm:$0xff] %v5813
      %6534 = vst [vmem:[%s6497] ss:$4 sm:$0xff] %v5821
      %6535 = vst [vmem:[%s6499] ss:$4 sm:$0xff] %v5829
      %6536 = vst [vmem:[%s6501] ss:$4 sm:$0xff] %v5837
      %6537 = vst [vmem:[%s6503] ss:$4 sm:$0xff] %v5845
      %6538 = vst [vmem:[%s6505] ss:$4 sm:$0xff] %v5853
      %6539 = vst [vmem:[%s6507] ss:$4 sm:$0xff] %v5861
      %6540 = vst [vmem:[%s6509] ss:$4 sm:$0xff] %v5869
      %v6541 = vld.sshfl [vmem:[#allocation1] sm:$0xff pattern:$0x73625140]
      %v6542 = vld.sshfl [vmem:[#allocation1 + $0x20] sm:$0xff pattern:$0x73625140]
      %6543 = vst [vmem:[#allocation1] ss:$4 sm:$0xff] %v5877
      %6544 = vst [vmem:[%s6497] ss:$4 sm:$0xff] %v5885
      %6545 = vst [vmem:[%s6499] ss:$4 sm:$0xff] %v5893
      %6546 = vst [vmem:[%s6501] ss:$4 sm:$0xff] %v5901
      %6547 = vst [vmem:[%s6503] ss:$4 sm:$0xff] %v5909
      %6548 = vst [vmem:[%s6505] ss:$4 sm:$0xff] %v5917
      %6549 = vst [vmem:[%s6507] ss:$4 sm:$0xff] %v5925
      %6550 = vst [vmem:[%s6509] ss:$4 sm:$0xff] %v5933
      %v6551 = vld.sshfl [vmem:[#allocation1] sm:$0xff pattern:$0x73625140]
      %v6552 = vld.sshfl [vmem:[#allocation1 + $0x20] sm:$0xff pattern:$0x73625140]
      %6553 = vst [vmem:[#allocation1] ss:$4 sm:$0xff] %v5941
      %6554 = vst [vmem:[%s6497] ss:$4 sm:$0xff] %v5949
      %6555 = vst [vmem:[%s6499] ss:$4 sm:$0xff] %v5957
      %6556 = vst [vmem:[%s6501] ss:$4 sm:$0xff] %v5965
      %6557 = vst [vmem:[%s6503] ss:$4 sm:$0xff] %v5973
      %6558 = vst [vmem:[%s6505] ss:$4 sm:$0xff] %v5981
      %6559 = vst [vmem:[%s6507] ss:$4 sm:$0xff] %v5989
      %6560 = vst [vmem:[%s6509] ss:$4 sm:$0xff] %v5997
      %v6561 = vld.sshfl [vmem:[#allocation1] sm:$0xff pattern:$0x73625140]
      %v6562 = vld.sshfl [vmem:[#allocation1 + $0x20] sm:$0xff pattern:$0x73625140]
      %6563 = vst [vmem:[#allocation1] ss:$4 sm:$0xff] %v6005
      %6564 = vst [vmem:[%s6497] ss:$4 sm:$0xff] %v6013
      %6565 = vst [vmem:[%s6499] ss:$4 sm:$0xff] %v6021
      %6566 = vst [vmem:[%s6501] ss:$4 sm:$0xff] %v6029
      %6567 = vst [vmem:[%s6503] ss:$4 sm:$0xff] %v6037
      %6568 = vst [vmem:[%s6505] ss:$4 sm:$0xff] %v6045
      %6569 = vst [vmem:[%s6507] ss:$4 sm:$0xff] %v6053
      %6570 = vst [vmem:[%s6509] ss:$4 sm:$0xff] %v6061
      %v6571 = vld.sshfl [vmem:[#allocation1] sm:$0xff pattern:$0x73625140]
      %v6572 = vld.sshfl [vmem:[#allocation1 + $0x20] sm:$0xff pattern:$0x73625140]
      %6573 = vst [vmem:[#allocation1] ss:$4 sm:$0xff] %v6069
      %6574 = vst [vmem:[%s6497] ss:$4 sm:$0xff] %v6077
      %6575 = vst [vmem:[%s6499] ss:$4 sm:$0xff] %v6085
      %6576 = vst [vmem:[%s6501] ss:$4 sm:$0xff] %v6093
      %6577 = vst [vmem:[%s6503] ss:$4 sm:$0xff] %v6101
      %6578 = vst [vmem:[%s6505] ss:$4 sm:$0xff] %v6109
      %6579 = vst [vmem:[%s6507] ss:$4 sm:$0xff] %v6117
      %6580 = vst [vmem:[%s6509] ss:$4 sm:$0xff] %v6125
      %v6581 = vld.sshfl [vmem:[#allocation1] sm:$0xff pattern:$0x73625140]
      %v6582 = vld.sshfl [vmem:[#allocation1 + $0x20] sm:$0xff pattern:$0x73625140]
      %6583 = vst [vmem:[#allocation1] ss:$4 sm:$0xff] %v6133
      %6584 = vst [vmem:[%s6497] ss:$4 sm:$0xff] %v6141
      %6585 = vst [vmem:[%s6499] ss:$4 sm:$0xff] %v6149
      %6586 = vst [vmem:[%s6501] ss:$4 sm:$0xff] %v6157
      %6587 = vst [vmem:[%s6503] ss:$4 sm:$0xff] %v6165
      %6588 = vst [vmem:[%s6505] ss:$4 sm:$0xff] %v6173
      %6589 = vst [vmem:[%s6507] ss:$4 sm:$0xff] %v6181
      %6590 = vst [vmem:[%s6509] ss:$4 sm:$0xff] %v6189
      %v6591 = vld.sshfl [vmem:[#allocation1] sm:$0xff pattern:$0x73625140]
      %v6592 = vld.sshfl [vmem:[#allocation1 + $0x20] sm:$0xff pattern:$0x73625140]
      %6593 = vst [vmem:[#allocation1] ss:$4 sm:$0xff] %v6197
      %6594 = vst [vmem:[%s6497] ss:$4 sm:$0xff] %v6205
      %6595 = vst [vmem:[%s6499] ss:$4 sm:$0xff] %v6213
      %6596 = vst [vmem:[%s6501] ss:$4 sm:$0xff] %v6221
      %6597 = vst [vmem:[%s6503] ss:$4 sm:$0xff] %v6229
      %6598 = vst [vmem:[%s6505] ss:$4 sm:$0xff] %v6237
      %6599 = vst [vmem:[%s6507] ss:$4 sm:$0xff] %v6245
      %6600 = vst [vmem:[%s6509] ss:$4 sm:$0xff] %v6253
      %v6601 = vld.sshfl [vmem:[#allocation1] sm:$0xff pattern:$0x73625140]
      %v6602 = vld.sshfl [vmem:[#allocation1 + $0x20] sm:$0xff pattern:$0x73625140]
      %6603 = vst [vmem:[#allocation1] ss:$4 sm:$0xff] %v6261
      %6604 = vst [vmem:[%s6497] ss:$4 sm:$0xff] %v6269
      %6605 = vst [vmem:[%s6499] ss:$4 sm:$0xff] %v6277
      %6606 = vst [vmem:[%s6501] ss:$4 sm:$0xff] %v6285
      %6607 = vst [vmem:[%s6503] ss:$4 sm:$0xff] %v6293
      %6608 = vst [vmem:[%s6505] ss:$4 sm:$0xff] %v6301
      %6609 = vst [vmem:[%s6507] ss:$4 sm:$0xff] %v6309
      %6610 = vst [vmem:[%s6509] ss:$4 sm:$0xff] %v6317
      %v6611 = vld.sshfl [vmem:[#allocation1] sm:$0xff pattern:$0x73625140]
      %v6612 = vld.sshfl [vmem:[#allocation1 + $0x20] sm:$0xff pattern:$0x73625140]
      %6613 = vst [vmem:[#allocation1] ss:$4 sm:$0xff] %v6325
      %6614 = vst [vmem:[%s6497] ss:$4 sm:$0xff] %v6333
      %6615 = vst [vmem:[%s6499] ss:$4 sm:$0xff] %v6341
      %6616 = vst [vmem:[%s6501] ss:$4 sm:$0xff] %v6349
      %6617 = vst [vmem:[%s6503] ss:$4 sm:$0xff] %v6357
      %6618 = vst [vmem:[%s6505] ss:$4 sm:$0xff] %v6365
      %6619 = vst [vmem:[%s6507] ss:$4 sm:$0xff] %v6373
      %6620 = vst [vmem:[%s6509] ss:$4 sm:$0xff] %v6381
      %v6621 = vld.sshfl [vmem:[#allocation1] sm:$0xff pattern:$0x73625140]
      %v6622 = vld.sshfl [vmem:[#allocation1 + $0x20] sm:$0xff pattern:$0x73625140]
      %6623 = vst [vmem:[#allocation1] ss:$4 sm:$0xff] %v6389
      %6624 = vst [vmem:[%s6497] ss:$4 sm:$0xff] %v6397
      %v6625 = vld.sshfl [vmem:[#allocation1] sm:$0xff pattern:$0x73625140]
      %v6651 = vmul.f32 %v5435, %v6511
      %v6652 = vmul.f32 %v5436, %v6512
      %v6653 = vmul.f32 %v5437, %v6521
      %v6654 = vmul.f32 %v5438, %v6522
      %v6655 = vmul.f32 %v5439, %v6531
      %v6656 = vmul.f32 %v5440, %v6532
      %v6657 = vmul.f32 %v5441, %v6541
      %v6658 = vmul.f32 %v5442, %v6542
      %v6659 = vmul.f32 %v5443, %v6551
      %v6660 = vmul.f32 %v5444, %v6552
      %v6661 = vmul.f32 %v5445, %v6561
      %v6662 = vmul.f32 %v5446, %v6562
      %v6663 = vmul.f32 %v5447, %v6571
      %v6664 = vmul.f32 %v5448, %v6572
      %v6665 = vmul.f32 %v5449, %v6581
      %v6666 = vmul.f32 %v5450, %v6582
      %v6667 = vmul.f32 %v5451, %v6591
      %v6668 = vmul.f32 %v5452, %v6592
      %v6669 = vmul.f32 %v5453, %v6601
      %v6670 = vmul.f32 %v5454, %v6602
      %v6671 = vmul.f32 %v5455, %v6611
      %v6672 = vmul.f32 %v5456, %v6612
      %v6673 = vmul.f32 %v5457, %v6621
      %v6674 = vmul.f32 %v5458, %v6622
      %v6675 = vmul.f32 %v5459, %v6625
      %v6701 = vrot.slane %v6651, 2
      %v6702 = vrot.slane %v6651, 4
      %v6703 = vrot.slane %v6651, 6
      %v6704 = vrot.slane %v6652, 2
      %v6705 = vrot.slane %v6652, 4
      %v6706 = vrot.slane %v6652, 6
      %v6707 = vrot.slane %v6653, 2
      %v6708 = vrot.slane %v6653, 4
      %v6709 = vrot.slane %v6653, 6
      %v6710 = vrot.slane %v6654, 2
      %v6711 = vrot.slane %v6654, 4
      %v6712 = vrot.slane %v6654, 6
      %v6713 = vrot.slane %v6655, 2
      %v6714 = vrot.slane %v6655, 4
      %v6715 = vrot.slane %v6655, 6
      %v6716 = vrot.slane %v6656, 2
      %v6717 = vrot.slane %v6656, 4
      %v6718 = vrot.slane %v6656, 6
      %v6719 = vrot.slane %v6657, 2
      %v6720 = vrot.slane %v6657, 4
      %v6721 = vrot.slane %v6657, 6
      %v6722 = vrot.slane %v6658, 2
      %v6723 = vrot.slane %v6658, 4
      %v6724 = vrot.slane %v6658, 6
      %v6725 = vrot.slane %v6659, 2
      %v6726 = vrot.slane %v6659, 4
      %v6727 = vrot.slane %v6659, 6
      %v6728 = vrot.slane %v6660, 2
      %v6729 = vrot.slane %v6660, 4
      %v6730 = vrot.slane %v6660, 6
      %v6731 = vrot.slane %v6661, 2
      %v6732 = vrot.slane %v6661, 4
      %v6733 = vrot.slane %v6661, 6
      %v6734 = vrot.slane %v6662, 2
      %v6735 = vrot.slane %v6662, 4
      %v6736 = vrot.slane %v6662, 6
      %v6737 = vrot.slane %v6663, 2
      %v6738 = vrot.slane %v6663, 4
      %v6739 = vrot.slane %v6663, 6
      %v6740 = vrot.slane %v6664, 2
      %v6741 = vrot.slane %v6664, 4
      %v6742 = vrot.slane %v6664, 6
      %v6743 = vrot.slane %v6665, 2
      %v6744 = vrot.slane %v6665, 4
      %v6745 = vrot.slane %v6665, 6
      %v6746 = vrot.slane %v6666, 2
      %v6747 = vrot.slane %v6666, 4
      %v6748 = vrot.slane %v6666, 6
      %v6749 = vrot.slane %v6667, 2
      %v6750 = vrot.slane %v6667, 4
      %v6751 = vrot.slane %v6667, 6
      %v6752 = vrot.slane %v6668, 2
      %v6753 = vrot.slane %v6668, 4
      %v6754 = vrot.slane %v6668, 6
      %v6755 = vrot.slane %v6669, 2
      %v6756 = vrot.slane %v6669, 4
      %v6757 = vrot.slane %v6669, 6
      %v6758 = vrot.slane %v6670, 2
      %v6759 = vrot.slane %v6670, 4
      %v6760 = vrot.slane %v6670, 6
      %v6761 = vrot.slane %v6671, 2
      %v6762 = vrot.slane %v6671, 4
      %v6763 = vrot.slane %v6671, 6
      %v6764 = vrot.slane %v6672, 2
      %v6765 = vrot.slane %v6672, 4
      %v6766 = vrot.slane %v6672, 6
      %v6767 = vrot.slane %v6673, 2
      %v6768 = vrot.slane %v6673, 4
      %v6769 = vrot.slane %v6673, 6
      %v6770 = vrot.slane %v6674, 2
      %v6771 = vrot.slane %v6674, 4
      %v6772 = vrot.slane %v6674, 6
      %v6773 = vrot.slane %v6675, 2
      %6774 = vst [vmem:[#allocation1] ss:$4 sm:$0xff] %v6651
      %s6775 = scalar_lea.vmem [#allocation1], 1
      %6776 = vst [vmem:[%s6775] ss:$4 sm:$0xff] %v6701
      %s6777 = scalar_lea.vmem [#allocation1], 2
      %6778 = vst [vmem:[%s6777] ss:$4 sm:$0xff] %v6702
      %s6779 = scalar_lea.vmem [#allocation1], 3
      %6780 = vst [vmem:[%s6779] ss:$4 sm:$0xff] %v6703
      %s6781 = scalar_lea.vmem [#allocation1], 32
      %6782 = vst [vmem:[%s6781] ss:$4 sm:$0xff] %v6652
      %s6783 = scalar_lea.vmem [#allocation1], 33
      %6784 = vst [vmem:[%s6783] ss:$4 sm:$0xff] %v6704
      %s6785 = scalar_lea.vmem [#allocation1], 34
      %6786 = vst [vmem:[%s6785] ss:$4 sm:$0xff] %v6705
      %v6787 = vld.sshfl [vmem:[#allocation1] sm:$0xff pattern:$0x73625140]
      %v6788 = vld.sshfl [vmem:[#allocation1 + $0x20] sm:$0xff pattern:$0x73625140]
      %6789 = vst [vmem:[#allocation1] ss:$4 sm:$0xff] %v6706
      %6790 = vst [vmem:[%s6775] ss:$4 sm:$0xff] %v6653
      %6791 = vst [vmem:[%s6777] ss:$4 sm:$0xff] %v6707
      %6792 = vst [vmem:[%s6779] ss:$4 sm:$0xff] %v6708
      %6793 = vst [vmem:[%s6781] ss:$4 sm:$0xff] %v6709
      %6794 = vst [vmem:[%s6783] ss:$4 sm:$0xff] %v6654
      %6795 = vst [vmem:[%s6785] ss:$4 sm:$0xff] %v6710
      %v6796 = vld.sshfl [vmem:[#allocation1] sm:$0xff pattern:$0x73625140]
      %v6797 = vld.sshfl [vmem:[#allocation1 + $0x20] sm:$0xff pattern:$0x73625140]
      %6798 = vst [vmem:[#allocation1] ss:$4 sm:$0xff] %v6711
      %6799 = vst [vmem:[%s6775] ss:$4 sm:$0xff] %v6712
      %6800 = vst [vmem:[%s6777] ss:$4 sm:$0xff] %v6655
      %6801 = vst [vmem:[%s6779] ss:$4 sm:$0xff] %v6713
      %6802 = vst [vmem:[%s6781] ss:$4 sm:$0xff] %v6714
      %6803 = vst [vmem:[%s6783] ss:$4 sm:$0xff] %v6715
      %6804 = vst [vmem:[%s6785] ss:$4 sm:$0xff] %v6656
      %v6805 = vld.sshfl [vmem:[#allocation1] sm:$0xff pattern:$0x73625140]
      %v6806 = vld.sshfl [vmem:[#allocation1 + $0x20] sm:$0xff pattern:$0x73625140]
      %6807 = vst [vmem:[#allocation1] ss:$4 sm:$0xff] %v6716
      %6808 = vst [vmem:[%s6775] ss:$4 sm:$0xff] %v6717
      %6809 = vst [vmem:[%s6777] ss:$4 sm:$0xff] %v6718
      %6810 = vst [vmem:[%s6779] ss:$4 sm:$0xff] %v6657
      %6811 = vst [vmem:[%s6781] ss:$4 sm:$0xff] %v6719
      %6812 = vst [vmem:[%s6783] ss:$4 sm:$0xff] %v6720
      %6813 = vst [vmem:[%s6785] ss:$4 sm:$0xff] %v6721
      %v6814 = vld.sshfl [vmem:[#allocation1] sm:$0xff pattern:$0x73625140]
      %v6815 = vld.sshfl [vmem:[#allocation1 + $0x20] sm:$0xff pattern:$0x73625140]
      %6816 = vst [vmem:[#allocation1] ss:$4 sm:$0xff] %v6658
      %6817 = vst [vmem:[%s6775] ss:$4 sm:$0xff] %v6722
      %6818 = vst [vmem:[%s6777] ss:$4 sm:$0xff] %v6723
      %6819 = vst [vmem:[%s6779] ss:$4 sm:$0xff] %v6724
      %6820 = vst [vmem:[%s6781] ss:$4 sm:$0xff] %v6659
      %6821 = vst [vmem:[%s6783] ss:$4 sm:$0xff] %v6725
      %6822 = vst [vmem:[%s6785] ss:$4 sm:$0xff] %v6726
      %v6823 = vld.sshfl [vmem:[#allocation1] sm:$0xff pattern:$0x73625140]
      %v6824 = vld.sshfl [vmem:[#allocation1 + $0x20] sm:$0xff pattern:$0x73625140]
      %6825 = vst [vmem:[#allocation1] ss:$4 sm:$0xff] %v6727
      %6826 = vst [vmem:[%s6775] ss:$4 sm:$0xff] %v6660
      %6827 = vst [vmem:[%s6777] ss:$4 sm:$0xff] %v6728
      %6828 = vst [vmem:[%s6779] ss:$4 sm:$0xff] %v6729
      %6829 = vst [vmem:[%s6781] ss:$4 sm:$0xff] %v6730
      %6830 = vst [vmem:[%s6783] ss:$4 sm:$0xff] %v6661
      %6831 = vst [vmem:[%s6785] ss:$4 sm:$0xff] %v6731
      %v6832 = vld.sshfl [vmem:[#allocation1] sm:$0xff pattern:$0x73625140]
      %v6833 = vld.sshfl [vmem:[#allocation1 + $0x20] sm:$0xff pattern:$0x73625140]
      %6834 = vst [vmem:[#allocation1] ss:$4 sm:$0xff] %v6732
      %6835 = vst [vmem:[%s6775] ss:$4 sm:$0xff] %v6733
      %6836 = vst [vmem:[%s6777] ss:$4 sm:$0xff] %v6662
      %6837 = vst [vmem:[%s6779] ss:$4 sm:$0xff] %v6734
      %6838 = vst [vmem:[%s6781] ss:$4 sm:$0xff] %v6735
      %6839 = vst [vmem:[%s6783] ss:$4 sm:$0xff] %v6736
      %6840 = vst [vmem:[%s6785] ss:$4 sm:$0xff] %v6663
      %v6841 = vld.sshfl [vmem:[#allocation1] sm:$0xff pattern:$0x73625140]
      %v6842 = vld.sshfl [vmem:[#allocation1 + $0x20] sm:$0xff pattern:$0x73625140]
      %6843 = vst [vmem:[#allocation1] ss:$4 sm:$0xff] %v6737
      %6844 = vst [vmem:[%s6775] ss:$4 sm:$0xff] %v6738
      %6845 = vst [vmem:[%s6777] ss:$4 sm:$0xff] %v6739
      %6846 = vst [vmem:[%s6779] ss:$4 sm:$0xff] %v6664
      %6847 = vst [vmem:[%s6781] ss:$4 sm:$0xff] %v6740
      %6848 = vst [vmem:[%s6783] ss:$4 sm:$0xff] %v6741
      %6849 = vst [vmem:[%s6785] ss:$4 sm:$0xff] %v6742
      %v6850 = vld.sshfl [vmem:[#allocation1] sm:$0xff pattern:$0x73625140]
      %v6851 = vld.sshfl [vmem:[#allocation1 + $0x20] sm:$0xff pattern:$0x73625140]
      %6852 = vst [vmem:[#allocation1] ss:$4 sm:$0xff] %v6665
      %6853 = vst [vmem:[%s6775] ss:$4 sm:$0xff] %v6743
      %6854 = vst [vmem:[%s6777] ss:$4 sm:$0xff] %v6744
      %6855 = vst [vmem:[%s6779] ss:$4 sm:$0xff] %v6745
      %6856 = vst [vmem:[%s6781] ss:$4 sm:$0xff] %v6666
      %6857 = vst [vmem:[%s6783] ss:$4 sm:$0xff] %v6746
      %6858 = vst [vmem:[%s6785] ss:$4 sm:$0xff] %v6747
      %v6859 = vld.sshfl [vmem:[#allocation1] sm:$0xff pattern:$0x73625140]
      %v6860 = vld.sshfl [vmem:[#allocation1 + $0x20] sm:$0xff pattern:$0x73625140]
      %6861 = vst [vmem:[#allocation1] ss:$4 sm:$0xff] %v6748
      %6862 = vst [vmem:[%s6775] ss:$4 sm:$0xff] %v6667
      %6863 = vst [vmem:[%s6777] ss:$4 sm:$0xff] %v6749
      %6864 = vst [vmem:[%s6779] ss:$4 sm:$0xff] %v6750
      %6865 = vst [vmem:[%s6781] ss:$4 sm:$0xff] %v6751
      %6866 = vst [vmem:[%s6783] ss:$4 sm:$0xff] %v6668
      %6867 = vst [vmem:[%s6785] ss:$4 sm:$0xff] %v6752
      %v6868 = vld.sshfl [vmem:[#allocation1] sm:$0xff pattern:$0x73625140]
      %v6869 = vld.sshfl [vmem:[#allocation1 + $0x20] sm:$0xff pattern:$0x73625140]
      %6870 = vst [vmem:[#allocation1] ss:$4 sm:$0xff] %v6753
      %6871 = vst [vmem:[%s6775] ss:$4 sm:$0xff] %v6754
      %6872 = vst [vmem:[%s6777] ss:$4 sm:$0xff] %v6669
      %6873 = vst [vmem:[%s6779] ss:$4 sm:$0xff] %v6755
      %6874 = vst [vmem:[%s6781] ss:$4 sm:$0xff] %v6756
      %6875 = vst [vmem:[%s6783] ss:$4 sm:$0xff] %v6757
      %6876 = vst [vmem:[%s6785] ss:$4 sm:$0xff] %v6670
      %v6877 = vld.sshfl [vmem:[#allocation1] sm:$0xff pattern:$0x73625140]
      %v6878 = vld.sshfl [vmem:[#allocation1 + $0x20] sm:$0xff pattern:$0x73625140]
      %6879 = vst [vmem:[#allocation1] ss:$4 sm:$0xff] %v6758
      %6880 = vst [vmem:[%s6775] ss:$4 sm:$0xff] %v6759
      %6881 = vst [vmem:[%s6777] ss:$4 sm:$0xff] %v6760
      %6882 = vst [vmem:[%s6779] ss:$4 sm:$0xff] %v6671
      %6883 = vst [vmem:[%s6781] ss:$4 sm:$0xff] %v6761
      %6884 = vst [vmem:[%s6783] ss:$4 sm:$0xff] %v6762
      %6885 = vst [vmem:[%s6785] ss:$4 sm:$0xff] %v6763
      %v6886 = vld.sshfl [vmem:[#allocation1] sm:$0xff pattern:$0x73625140]
      %v6887 = vld.sshfl [vmem:[#allocation1 + $0x20] sm:$0xff pattern:$0x73625140]
      %6888 = vst [vmem:[#allocation1] ss:$4 sm:$0xff] %v6672
      %6889 = vst [vmem:[%s6775] ss:$4 sm:$0xff] %v6764
      %6890 = vst [vmem:[%s6777] ss:$4 sm:$0xff] %v6765
      %6891 = vst [vmem:[%s6779] ss:$4 sm:$0xff] %v6766
      %6892 = vst [vmem:[%s6781] ss:$4 sm:$0xff] %v6673
      %6893 = vst [vmem:[%s6783] ss:$4 sm:$0xff] %v6767
      %6894 = vst [vmem:[%s6785] ss:$4 sm:$0xff] %v6768
      %v6895 = vld.sshfl [vmem:[#allocation1] sm:$0xff pattern:$0x73625140]
      %v6896 = vld.sshfl [vmem:[#allocation1 + $0x20] sm:$0xff pattern:$0x73625140]
      %6897 = vst [vmem:[#allocation1] ss:$4 sm:$0xff] %v6769
      %6898 = vst [vmem:[%s6775] ss:$4 sm:$0xff] %v6674
      %6899 = vst [vmem:[%s6777] ss:$4 sm:$0xff] %v6770
      %6900 = vst [vmem:[%s6779] ss:$4 sm:$0xff] %v6771
      %6901 = vst [vmem:[%s6781] ss:$4 sm:$0xff] %v6772
      %6902 = vst [vmem:[%s6783] ss:$4 sm:$0xff] %v6675
      %6903 = vst [vmem:[%s6785] ss:$4 sm:$0xff] %v6773
      %v6904 = vld.sshfl [vmem:[#allocation1] sm:$0xff pattern:$0x73625140]
      %v6905 = vld.sshfl [vmem:[#allocation1 + $0x20] sm:$0xff pattern:$0x73625140]
      %v6934 = vpack.c.bf16 %v6787, %v6787
      %v6935 = vpack.c.bf16 %v6788, %v6788
      %v6936 = vpack.c.bf16 %v6796, %v6796
      %v6937 = vpack.c.bf16 %v6797, %v6797
      %v6938 = vpack.c.bf16 %v6805, %v6805
      %v6939 = vpack.c.bf16 %v6806, %v6806
      %v6940 = vpack.c.bf16 %v6814, %v6814
      %v6941 = vpack.c.bf16 %v6815, %v6815
      %v6942 = vpack.c.bf16 %v6823, %v6823
      %v6943 = vpack.c.bf16 %v6824, %v6824
      %v6944 = vpack.c.bf16 %v6832, %v6832
      %v6945 = vpack.c.bf16 %v6833, %v6833
      %v6946 = vpack.c.bf16 %v6841, %v6841
      %v6947 = vpack.c.bf16 %v6842, %v6842
      %v6948 = vpack.c.bf16 %v6850, %v6850
      %v6949 = vpack.c.bf16 %v6851, %v6851
      %v6950 = vpack.c.bf16 %v6859, %v6859
      %v6951 = vpack.c.bf16 %v6860, %v6860
      %v6952 = vpack.c.bf16 %v6868, %v6868
      %v6953 = vpack.c.bf16 %v6869, %v6869
      %v6954 = vpack.c.bf16 %v6877, %v6877
      %v6955 = vpack.c.bf16 %v6878, %v6878
      %v6956 = vpack.c.bf16 %v6886, %v6886
      %v6957 = vpack.c.bf16 %v6887, %v6887
      %v6958 = vpack.c.bf16 %v6895, %v6895
      %v6959 = vpack.c.bf16 %v6896, %v6896
      %v6960 = vpack.c.bf16 %v6904, %v6904
      %v6961 = vpack.c.bf16 %v6905, %v6905
      %6962 = vst [vmem:[%s262] sm:$0xf] %v6934
      %6963 = vst [vmem:[%s262 + $0x4] sm:$0x7] %v6935
      %6964 = vst [vmem:[%s262 + $0x8] sm:$0xf] %v6936
      %6965 = vst [vmem:[%s262 + $0xc] sm:$0x7] %v6937
      %6966 = vst [vmem:[%s262 + $0x10] sm:$0xf] %v6938
      %6967 = vst [vmem:[%s262 + $0x14] sm:$0x7] %v6939
      %6968 = vst [vmem:[%s262 + $0x18] sm:$0xf] %v6940
      %6969 = vst [vmem:[%s262 + $0x1c] sm:$0x7] %v6941
      %6970 = vst [vmem:[%s262 + $0x20] sm:$0xf] %v6942
      %6971 = vst [vmem:[%s262 + $0x24] sm:$0x7] %v6943
      %6972 = vst [vmem:[%s262 + $0x28] sm:$0xf] %v6944
      %6973 = vst [vmem:[%s262 + $0x2c] sm:$0x7] %v6945
      %6974 = vst [vmem:[%s262 + $0x30] sm:$0xf] %v6946
      %6975 = vst [vmem:[%s262 + $0x34] sm:$0x7] %v6947
      %6976 = vst [vmem:[%s262 + $0x38] sm:$0xf] %v6948
      %6977 = vst [vmem:[%s262 + $0x3c] sm:$0x7] %v6949
      %6978 = vst [vmem:[%s262 + $0x40] sm:$0xf] %v6950
      %6979 = vst [vmem:[%s262 + $0x44] sm:$0x7] %v6951
      %6980 = vst [vmem:[%s262 + $0x48] sm:$0xf] %v6952
      %6981 = vst [vmem:[%s262 + $0x4c] sm:$0x7] %v6953
      %6982 = vst [vmem:[%s262 + $0x50] sm:$0xf] %v6954
      %6983 = vst [vmem:[%s262 + $0x54] sm:$0x7] %v6955
      %6984 = vst [vmem:[%s262 + $0x58] sm:$0xf] %v6956
      %6985 = vst [vmem:[%s262 + $0x5c] sm:$0x7] %v6957
      %6986 = vst [vmem:[%s262 + $0x60] sm:$0xf] %v6958
      %6987 = vst [vmem:[%s262 + $0x64] sm:$0x7] %v6959
      %6988 = vst [vmem:[%s262 + $0x68] sm:$0xf] %v6960
      %6989 = vst [vmem:[%s262 + $0x6c] sm:$0x7] %v6961
      %v6990 = vadd.f32 %v6651, %v6652
      %v6991 = vadd.f32 %v6990, %v6653
      %v6992 = vadd.f32 %v6991, %v6654
      %v6993 = vadd.f32 %v6992, %v6655
      %v6994 = vadd.f32 %v6993, %v6656
      %v6995 = vadd.f32 %v6994, %v6657
      %v6996 = vadd.f32 %v6995, %v6658
      %v6997 = vadd.f32 %v6996, %v6659
      %v6998 = vadd.f32 %v6997, %v6660
      %v6999 = vadd.f32 %v6998, %v6661
      %v7000 = vadd.f32 %v6999, %v6662
      %v7001 = vadd.f32 %v7000, %v6663
      %v7002 = vadd.f32 %v7001, %v6664
      %v7003 = vadd.f32 %v7002, %v6665
      %v7004 = vadd.f32 %v7003, %v6666
      %v7005 = vadd.f32 %v7004, %v6667
      %v7006 = vadd.f32 %v7005, %v6668
      %v7007 = vadd.f32 %v7006, %v6669
      %v7008 = vadd.f32 %v7007, %v6670
      %v7009 = vadd.f32 %v7008, %v6671
      %v7010 = vadd.f32 %v7009, %v6672
      %v7011 = vadd.f32 %v7010, %v6673
      %v7012 = vadd.f32 %v7011, %v6674
      %vm7013 = vcmask 1043456
      %v7014 = vsel %vm7013, %v6675, 0.0
      %v7015 = vadd.f32 %v7012, %v7014
      %v7016 = vrot.slane %v7015, 4
      %v7017 = vadd.f32 %v7015, %v7016
      %v7018 = vrot.slane %v7017, 2
      %v7019 = vadd.f32 %v7017, %v7018
      %v7020 = vrot.slane %v7019, 1
      %v7021 = vadd.f32 %v7019, %v7020
      %7022 = vst [vmem:[%s265] sm:$0x1] %v7021
      %v7023 = vmul.f32 %v6651, %v6651
      %v7024 = vmul.f32 %v6652, %v6652
      %v7025 = vmul.f32 %v6653, %v6653
      %v7026 = vmul.f32 %v6654, %v6654
      %v7027 = vmul.f32 %v6655, %v6655
      %v7028 = vmul.f32 %v6656, %v6656
      %v7029 = vmul.f32 %v6657, %v6657
      %v7030 = vmul.f32 %v6658, %v6658
      %v7031 = vmul.f32 %v6659, %v6659
      %v7032 = vmul.f32 %v6660, %v6660
      %v7033 = vmul.f32 %v6661, %v6661
      %v7034 = vmul.f32 %v6662, %v6662
      %v7035 = vmul.f32 %v6663, %v6663
      %v7036 = vmul.f32 %v6664, %v6664
      %v7037 = vmul.f32 %v6665, %v6665
      %v7038 = vmul.f32 %v6666, %v6666
      %v7039 = vmul.f32 %v6667, %v6667
      %v7040 = vmul.f32 %v6668, %v6668
      %v7041 = vmul.f32 %v6669, %v6669
      %v7042 = vmul.f32 %v6670, %v6670
      %v7043 = vmul.f32 %v6671, %v6671
      %v7044 = vmul.f32 %v6672, %v6672
      %v7045 = vmul.f32 %v6673, %v6673
      %v7046 = vmul.f32 %v6674, %v6674
      %v7047 = vmul.f32 %v6675, %v6675
      %v7048 = vadd.f32 %v7023, %v7024
      %v7049 = vadd.f32 %v7048, %v7025
      %v7050 = vadd.f32 %v7049, %v7026
      %v7051 = vadd.f32 %v7050, %v7027
      %v7052 = vadd.f32 %v7051, %v7028
      %v7053 = vadd.f32 %v7052, %v7029
      %v7054 = vadd.f32 %v7053, %v7030
      %v7055 = vadd.f32 %v7054, %v7031
      %v7056 = vadd.f32 %v7055, %v7032
      %v7057 = vadd.f32 %v7056, %v7033
      %v7058 = vadd.f32 %v7057, %v7034
      %v7059 = vadd.f32 %v7058, %v7035
      %v7060 = vadd.f32 %v7059, %v7036
      %v7061 = vadd.f32 %v7060, %v7037
      %v7062 = vadd.f32 %v7061, %v7038
      %v7063 = vadd.f32 %v7062, %v7039
      %v7064 = vadd.f32 %v7063, %v7040
      %v7065 = vadd.f32 %v7064, %v7041
      %v7066 = vadd.f32 %v7065, %v7042
      %v7067 = vadd.f32 %v7066, %v7043
      %v7068 = vadd.f32 %v7067, %v7044
      %v7069 = vadd.f32 %v7068, %v7045
      %v7070 = vadd.f32 %v7069, %v7046
      %v7071 = vsel %vm7013, %v7047, 0.0
      %v7072 = vadd.f32 %v7070, %v7071
      %v7073 = vrot.slane %v7072, 4
      %v7074 = vadd.f32 %v7072, %v7073
      %v7075 = vrot.slane %v7074, 2
      %v7076 = vadd.f32 %v7074, %v7075
      %v7077 = vrot.slane %v7076, 1
      %v7078 = vadd.f32 %v7076, %v7077
      %7079 = vst [vmem:[%s268] sm:$0x1] %v7078
      %p7080 = scmp.lt.s32.totalorder %s18, 1
      %s7081 = scalar_select %p7080, %s18, 1
      %s7082 = smul.addr %s7081, 28
      %s7083 = smul.addr %s7082, 4
      %s7084 = scalar_lea.vmem %s4, %s7083
      %p7085 = scmp.lt.s32.totalorder %s18, 1
      %s7086 = scalar_select %p7085, %s18, 1
      %s7087 = scalar_lea.vmem %s5, %s7086
      %p7088 = scmp.lt.s32.totalorder %s18, 1
      %s7089 = scalar_select %p7088, %s18, 1
      %s7090 = scalar_lea.vmem %s6, %s7089
      // Predicated region
      $region37: #{bottleneck_forward.4} parent=35 // pred_check
        %p7091 = pneg %p125
      $region38: #{bottleneck_forward.4} parent=35 // pred_check_branch
        %7093 = sbr.rel (%p7091) target = $region40
      $region39: #{bottleneck_forward.4} parent=35 // pred_region
        _
      $region40: #{bottleneck_forward.4} parent=35 // pred_fallthru
        _
      // Predicated region
      $region41: #{bottleneck_forward.4} parent=35 // pred_check
        %p7094 = pneg %p151
      $region42: #{bottleneck_forward.4} parent=35 // pred_check_branch
        %7096 = sbr.rel (%p7094) target = $region44
      $region43: #{bottleneck_forward.4} parent=35 // pred_region
        _
      $region44: #{bottleneck_forward.4} parent=35 // pred_fallthru
        _
      // Predicated region
      $region45: #{bottleneck_forward.4} parent=35 // pred_check
        %p7097 = pneg %p177
      $region46: #{bottleneck_forward.4} parent=35 // pred_check_branch
        %7099 = sbr.rel (%p7097) target = $region48
      $region47: #{bottleneck_forward.4} parent=35 // pred_region
        _
      $region48: #{bottleneck_forward.4} parent=35 // pred_fallthru
        _
    $region36: #{bottleneck_forward.4} parent=5 // pred_fallthru
      _
    %p7100 = scmp.le.s32.totalorder 2, %s13
    // Predicated region
    $region49: #{bottleneck_forward.4} parent=5 // pred_check
      %p7101 = pneg %p7100
    $region50: #{bottleneck_forward.4} parent=5 // pred_check_branch
      %7103 = sbr.rel (%p7101) target = $region52
    $region51: #{bottleneck_forward.4} parent=5 // pred_region
      %s7104 = ssub.s32 %s13, 2
      // Predicated region
      $region53: #{bottleneck_forward.4} parent=51 // pred_check
        %p7105 = pneg %p131
      $region54: #{bottleneck_forward.4} parent=51 // pred_check_branch
        %7107 = sbr.rel (%p7105) target = $region56
      $region55: #{bottleneck_forward.4} parent=51 // pred_region
        %p7108 = scmp.lt.s32.totalorder %s19, 1
        %s7109 = scalar_select %p7108, %s19, 1
        %s7110 = smul.addr %s7109, 28
        %s7111 = smul.addr %s7110, 4
        %s7112 = scalar_lea.vmem %s4, %s7111
      $region56: #{bottleneck_forward.4} parent=51 // pred_fallthru
        _
      // Predicated region
      $region57: #{bottleneck_forward.4} parent=51 // pred_check
        %p7113 = pneg %p157
      $region58: #{bottleneck_forward.4} parent=51 // pred_check_branch
        %7115 = sbr.rel (%p7113) target = $region60
      $region59: #{bottleneck_forward.4} parent=51 // pred_region
        %p7116 = scmp.lt.s32.totalorder %s19, 1
        %s7117 = scalar_select %p7116, %s19, 1
        %s7118 = scalar_lea.vmem %s5, %s7117
      $region60: #{bottleneck_forward.4} parent=51 // pred_fallthru
        _
      // Predicated region
      $region61: #{bottleneck_forward.4} parent=51 // pred_check
        %p7119 = pneg %p183
      $region62: #{bottleneck_forward.4} parent=51 // pred_check_branch
        %7121 = sbr.rel (%p7119) target = $region64
      $region63: #{bottleneck_forward.4} parent=51 // pred_region
        %p7122 = scmp.lt.s32.totalorder %s19, 1
        %s7123 = scalar_select %p7122, %s19, 1
        %s7124 = scalar_lea.vmem %s6, %s7123
      $region64: #{bottleneck_forward.4} parent=51 // pred_fallthru
        _
    $region52: #{bottleneck_forward.4} parent=5 // pred_fallthru
      _
  $region6: #{bottleneck_forward.4} parent=0 // loop_footer
    %s17 = sadd.s32 1, %s13
  $region7: #{bottleneck_forward.4} parent=0 // loop_footer_branch
    %12 = sbr.rel target = $region3
  $region8: #{bottleneck_forward.4} parent=0 // loop_exit
    _

</llo_original>
